<compile_context>
chip_gen: v7x
topology: tpu7x:2x2x1
jax: 0.10.0
libtpu: 0.0.40
codegen_flags: <defaults>
</compile_context>

<pallas_src>
import jax
import jax.numpy as jnp
from jax.experimental import pallas as pl
from jax.experimental.pallas import tpu as pltpu

# ---------------- small test configuration (consistent with ViT_SNN.__init__) ----------
IMAGE_SIZE = 16
PATCH_SIZE = 8
PATCH_OVERLAP = 0.5
STRIDE = int(PATCH_SIZE * (1 - PATCH_OVERLAP))            # 4
IN_CHANNELS = 1
EMBED_DIM = 16
NUM_PATCHES_H = (IMAGE_SIZE - PATCH_SIZE) // STRIDE + 1   # 3
NUM_PATCHES = NUM_PATCHES_H * NUM_PATCHES_H               # 9
PATCH_DIM = IN_CHANNELS * PATCH_SIZE * PATCH_SIZE         # 64
FOLD_DIM = NUM_PATCHES * PATCH_DIM                        # 576 (K of folded embed+layer1)
SNN_INPUT = NUM_PATCHES * EMBED_DIM                       # 144 (n_input of the SNN)
N_HIDDEN = 128                                            # n_hidden (small test size)
N_OUTPUT = 11
N_OUT_PAD = 128                                           # lane-dense padded output width
N_STEPS = 5
N_HIDDEN_LINEARS = 8      # Linear(n_hidden, n_hidden) layers between first and last
N_HIDDEN_LAYERS = N_HIDDEN_LINEARS + 1                    # 9 hidden Leaky layers
BETA = 0.8                # ViT_SNN default
THRESHOLD = 0.5
LM_SPN = 0.001
STEP_LANE0 = 16           # lanes [16, 16+N_STEPS) of the output slab hold per-step row sums

assert N_OUTPUT <= STEP_LANE0 and STEP_LANE0 + N_STEPS <= N_OUT_PAD


# ---------------- fused Pallas kernel ---------------------------------------------------
def vit_snn_kernel(x_ref, w1_ref, b1_ref, w_h_ref, b_h_ref, w_out_ref, b_out_ref,
                   out_ref,
                   cur1_ref, mem_h_ref, spk_h_ref, mem_o_ref, spk_o_ref, steps_ref):
    """Folded patch-embed/layer-1 matmul + 5 time steps x (1 + 8 + 1) Leaky layers.

    x_ref:     (TB, 576) bf16 flattened patches (patch-major, pixel-minor)
    w1_ref:    (576, H)  bf16  = concat_p(w_pe @ w_in[p])           (exact linear fold)
    b1_ref:    (1, H)    f32   = b_in + (b_pe + pos_embed) @ w_in   (exact linear fold)
    w_h_ref:   (8, H, H) bf16      b_h_ref:  (8, 1, H) f32
    w_out_ref: (H, 128)  bf16      b_out_ref:(1, 128)  f32 (cols >= n_output are zero)
    out_ref:   (TB, 128) f32 — lanes 0..10: spk_rec.sum(0)/n_steps,
                               lanes 16..20: per-step per-row output-spike sums.
    Scratch (VMEM; holds all cross-step state, so the time loop carries no SSA values):
      cur1_ref (TB,H) f32, mem_h_ref (9,TB,H) f32, spk_h_ref (9,TB,H) bf16,
      mem_o_ref/spk_o_ref/steps_ref (TB,128) f32.
    """
    # Layer-1 current is constant across time steps -> compute once per batch tile.
    cur1_ref[...] = (jnp.dot(x_ref[...], w1_ref[...],
                             preferred_element_type=jnp.float32) + b1_ref[...])

    # Reset the recurrent state (scratch persists across grid tiles).
    mem_h_ref[...] = jnp.zeros_like(mem_h_ref)
    spk_h_ref[...] = jnp.zeros_like(spk_h_ref)
    mem_o_ref[...] = jnp.zeros_like(mem_o_ref)
    spk_o_ref[...] = jnp.zeros_like(spk_o_ref)
    steps_ref[...] = jnp.zeros_like(steps_ref)
    out_ref[...] = jnp.zeros_like(out_ref)

    lane = jax.lax.broadcasted_iota(jnp.int32, out_ref.shape, 1)   # hoisted, computed once

    def leaky_hidden(l, cur):
        # snntorch Leaky, reset_mechanism="subtract": the reset term uses the spike emitted
        # at the previous time step, carried in bf16 scratch ({0,1} bf16 -> reset is exact).
        mem_new = BETA * mem_h_ref[l] + cur - spk_h_ref[l] * THRESHOLD
        spk = (mem_new > THRESHOLD).astype(jnp.bfloat16)           # bf16 feeds next matmul
        mem_h_ref[l] = mem_new
        spk_h_ref[l] = spk
        return spk

    # Time loop: unrolled; all cross-step state lives in VMEM scratch (no register carry).
    for t in range(N_STEPS):
        # layer 1: precomputed current + Leaky
        spk = leaky_hidden(0, cur1_ref[...])

        # 8 x (Linear(H, H) + Leaky + Dropout[eval: identity])
        for l in range(N_HIDDEN_LINEARS):
            cur = jnp.dot(spk, w_h_ref[l],
                          preferred_element_type=jnp.float32) + b_h_ref[l]
            spk = leaky_hidden(l + 1, cur)

        # output layer: Linear(H, n_output[padded]) + Leaky(output=True)
        cur = jnp.dot(spk, w_out_ref[...],
                      preferred_element_type=jnp.float32) + b_out_ref[...]
        mem_o = BETA * mem_o_ref[...] + cur - spk_o_ref[...] * THRESHOLD
        spk_o = (mem_o > THRESHOLD).astype(jnp.float32)
        mem_o_ref[...] = mem_o
        spk_o_ref[...] = spk_o

        out_ref[...] += spk_o                                   # spike-sum accumulator
        row_sum = jnp.sum(spk_o, axis=1, keepdims=True)         # (TB, 1) per-row count
        steps_ref[...] = jnp.where(lane == STEP_LANE0 + t, row_sum, steps_ref[...])

    # Finalize: spike mean in lanes 0..10 (padded output lanes never spike -> stay 0);
    # per-step per-row sums merged into lanes 16..20 of the same lane-dense slab.
    out_ref[...] = out_ref[...] / float(N_STEPS) + steps_ref[...]


# ---------------- wrapper ----------------------------------------------------------------
def _round_up(n, m):
    return ((n + m - 1) // m) * m


def _choose_tile(B):
    # Sublane-aligned batch tile; prefer >= 2 grid tiles whenever the batch allows (so the
    # "parallel" axis shards across both TensorCores on v7x), capped at 256 rows/tile
    # (fills the 256-wide MXU on v6e/v7x; VMEM use stays far below the scoped limit).
    b8 = _round_up(max(B, 1), 8)
    if b8 <= 8:
        return 8
    return min(256, _round_up((b8 + 1) // 2, 8))


def prepare_params(params):
    """One-time cast/pad/fold of PyTorch-layout params into the kernel layout."""
    w_in_p = params["w_in"].reshape(NUM_PATCHES, EMBED_DIM, N_HIDDEN)
    # Exact linear folds:
    #   patch-embed weight through layer 1: W_fold[p] = w_pe @ w_in[p] -> (576, H)
    #   (b_pe + pos_embed) through layer 1 into its bias
    w1 = jnp.einsum("de,peh->pdh", params["w_pe"], w_in_p,
                    precision=jax.lax.Precision.HIGHEST).reshape(FOLD_DIM, N_HIDDEN)
    pe_bias = params["b_pe"] + params["pos_embed"]                       # (P, E)
    b1 = params["b_in"] + jnp.dot(pe_bias.reshape(1, SNN_INPUT), params["w_in"],
                                  precision=jax.lax.Precision.HIGHEST)   # (1, H)
    w_out = jnp.zeros((N_HIDDEN, N_OUT_PAD), jnp.float32).at[:, :N_OUTPUT].set(params["w_out"])
    b_out = jnp.zeros((1, N_OUT_PAD), jnp.float32).at[:, :N_OUTPUT].set(params["b_out"])
    return dict(
        w1=w1.astype(jnp.bfloat16),
        b1=b1.astype(jnp.float32),
        w_h=params["w_h"].astype(jnp.bfloat16),
        b_h=params["b_h"].astype(jnp.float32),
        w_out=w_out.astype(jnp.bfloat16),
        b_out=b_out,
    )


@jax.jit
def vit_snn_forward(x, kp):
    B = x.shape[0]

    # Single fused patch-extraction op. With C=1 the feature ordering (ph, pw) matches
    # torch's unfold->unfold->permute->flatten(2).
    patches = jax.lax.conv_general_dilated_patches(
        x, filter_shape=(PATCH_SIZE, PATCH_SIZE),
        window_strides=(STRIDE, STRIDE), padding="VALID")        # (B, C*p*p, nh, nw)
    patches = patches.reshape(B, PATCH_DIM, NUM_PATCHES)
    patches = jnp.transpose(patches, (0, 2, 1)).reshape(B, FOLD_DIM)   # (B, 576) p-major
    patches = patches.astype(jnp.bfloat16)                       # halve the input DMA

    tile = _choose_tile(B)
    b_pad = _round_up(B, tile)
    if b_pad != B:
        patches = jnp.pad(patches, ((0, b_pad - B), (0, 0)))
    n_tiles = b_pad // tile

    out = pl.pallas_call(
        vit_snn_kernel,
        out_shape=jax.ShapeDtypeStruct((b_pad, N_OUT_PAD), jnp.float32),
        grid_spec=pltpu.PrefetchScalarGridSpec(
            num_scalar_prefetch=0,
            grid=(n_tiles,),
            in_specs=[
                pl.BlockSpec((tile, FOLD_DIM), lambda b: (b, 0)),
                # Constant-index weight/bias blocks stay VMEM-resident across batch tiles.
                pl.BlockSpec((FOLD_DIM, N_HIDDEN), lambda b: (0, 0)),
                pl.BlockSpec((1, N_HIDDEN), lambda b: (0, 0)),
                pl.BlockSpec((N_HIDDEN_LINEARS, N_HIDDEN, N_HIDDEN), lambda b: (0, 0, 0)),
                pl.BlockSpec((N_HIDDEN_LINEARS, 1, N_HIDDEN), lambda b: (0, 0, 0)),
                pl.BlockSpec((N_HIDDEN, N_OUT_PAD), lambda b: (0, 0)),
                pl.BlockSpec((1, N_OUT_PAD), lambda b: (0, 0)),
            ],
            out_specs=pl.BlockSpec((tile, N_OUT_PAD), lambda b: (b, 0)),
            scratch_shapes=[
                pltpu.VMEM((tile, N_HIDDEN), jnp.float32),                   # cur1
                pltpu.VMEM((N_HIDDEN_LAYERS, tile, N_HIDDEN), jnp.float32),  # mem_h
                pltpu.VMEM((N_HIDDEN_LAYERS, tile, N_HIDDEN), jnp.bfloat16), # spk_h (prev)
                pltpu.VMEM((tile, N_OUT_PAD), jnp.float32),                  # mem_out
                pltpu.VMEM((tile, N_OUT_PAD), jnp.float32),                  # spk_out (prev)
                pltpu.VMEM((tile, N_OUT_PAD), jnp.float32),                  # per-step sums
            ],
        ),
        compiler_params=pltpu.CompilerParams(
            dimension_semantics=("parallel",)),
    )(patches, kp["w1"], kp["b1"], kp["w_h"], kp["b_h"], kp["w_out"], kp["b_out"])

    spk_mean = out[:B, :N_OUTPUT]                                 # spk_rec.sum(0)/n_steps

    # Spike-regularization (tiny scalar reduction in the wrapper; padded batch rows are
    # excluded here, so the kernel never needs a cross-row reduction over padding):
    #   m_t = mean spike at step t over (B, n_output); T_t = cumulative total_spikes
    #   reg = sum_t lm*T_t + sum_{t>0} lm*|T_t - T_{t-1}|   (exact reference formula)
    step_mean = jnp.sum(out[:B, STEP_LANE0:STEP_LANE0 + N_STEPS], axis=0) \
        / float(B * N_OUTPUT)
    totals = jnp.cumsum(step_mean)
    reg = LM_SPN * jnp.sum(totals) + LM_SPN * jnp.sum(jnp.abs(totals[1:] - totals[:-1]))
    reg_loss_norm = reg / float(N_STEPS)

    # matches: return (spk_rec.sum(0) / n_steps, reg_loss_norm)
    return spk_mean, reg_loss_norm


# ---------------- deterministic parameter init (PyTorch-default-style uniform) ----------
def init_params(key):
    def linear(k, fan_in, fan_out):
        kw, kb = jax.random.split(k)
        bound = float(fan_in) ** -0.5
        w = jax.random.uniform(kw, (fan_in, fan_out), jnp.float32, -bound, bound)
        b = jax.random.uniform(kb, (1, fan_out), jnp.float32, -bound, bound)
        return w, b

    keys = jax.random.split(key, 3 + N_HIDDEN_LINEARS)
    w_pe, b_pe = linear(keys[0], PATCH_DIM, EMBED_DIM)
    w_in, b_in = linear(keys[1], SNN_INPUT, N_HIDDEN)
    w_hs, b_hs = [], []
    for l in range(N_HIDDEN_LINEARS):
        w, b = linear(keys[2 + l], N_HIDDEN, N_HIDDEN)
        w_hs.append(w)
        b_hs.append(b)
    w_h = jnp.stack(w_hs)                         # (8, H, H)   [layer, in, out]
    b_h = jnp.stack(b_hs)                         # (8, 1, H)
    w_out, b_out = linear(keys[2 + N_HIDDEN_LINEARS], N_HIDDEN, N_OUTPUT)
    pos_embed = jnp.zeros((NUM_PATCHES, EMBED_DIM), jnp.float32)  # torch.zeros init
    return dict(w_pe=w_pe, b_pe=b_pe, pos_embed=pos_embed,
                w_in=w_in, b_in=b_in, w_h=w_h, b_h=b_h,
                w_out=w_out, b_out=b_out)


if __name__ == "__main__":
    key = jax.random.PRNGKey(0)
    kx, kparam = jax.random.split(key)
    x = jax.random.normal(kx, (2, IN_CHANNELS, IMAGE_SIZE, IMAGE_SIZE), jnp.float32)
    params = init_params(kparam)
    kp = prepare_params(params)   # one-time weight cast / pad / fold

    spk_mean, reg_loss = vit_snn_forward(x, kp)
    jax.block_until_ready((spk_mean, reg_loss))
    assert spk_mean.shape == (2, N_OUTPUT)
    assert reg_loss.shape == ()
    print("KERNEL_OK")
</pallas_src>

<mosaic_0001>
module attributes {stable_mosaic.version = 11 : i64} {
  func.func @vit_snn_kernel(%arg0: i32, %arg1: memref<8x576xbf16, #tpu.memory_space<vmem>>, %arg2: memref<576x128xbf16, #tpu.memory_space<vmem>>, %arg3: memref<1x128xf32, #tpu.memory_space<vmem>>, %arg4: memref<8x128x128xbf16, #tpu.memory_space<vmem>>, %arg5: memref<8x1x128xf32, #tpu.memory_space<vmem>>, %arg6: memref<128x128xbf16, #tpu.memory_space<vmem>>, %arg7: memref<1x128xf32, #tpu.memory_space<vmem>>, %arg8: memref<8x128xf32, #tpu.memory_space<vmem>>, %arg9: memref<8x128xf32, #tpu.memory_space<vmem>>, %arg10: memref<9x8x128xf32, #tpu.memory_space<vmem>>, %arg11: memref<9x8x128xbf16, #tpu.memory_space<vmem>>, %arg12: memref<8x128xf32, #tpu.memory_space<vmem>>, %arg13: memref<8x128xf32, #tpu.memory_space<vmem>>, %arg14: memref<8x128xf32, #tpu.memory_space<vmem>>) attributes {dimension_semantics = [#tpu.dimension_semantics<parallel>], iteration_bounds = array<i64: 1>, scalar_prefetch = 0 : i64, scratch_operands = 6 : i64, tpu.core_type = #tpu.core_type<tc>, window_params = [{transform_indices = @transform_0, window_bounds = array<i64: 8, 576>}, {pipeline_mode = #tpu.pipeline_mode<synchronous>, transform_indices = @transform_1, window_bounds = array<i64: 576, 128>}, {pipeline_mode = #tpu.pipeline_mode<synchronous>, transform_indices = @transform_2, window_bounds = array<i64: 1, 128>}, {pipeline_mode = #tpu.pipeline_mode<synchronous>, transform_indices = @transform_3, window_bounds = array<i64: 8, 128, 128>}, {pipeline_mode = #tpu.pipeline_mode<synchronous>, transform_indices = @transform_4, window_bounds = array<i64: 8, 1, 128>}, {pipeline_mode = #tpu.pipeline_mode<synchronous>, transform_indices = @transform_5, window_bounds = array<i64: 128, 128>}, {pipeline_mode = #tpu.pipeline_mode<synchronous>, transform_indices = @transform_6, window_bounds = array<i64: 1, 128>}, {transform_indices = @transform_7, window_bounds = array<i64: 8, 128>}]} {
    %c0 = arith.constant 0 : index
    %c0_0 = arith.constant 0 : index
    %0 = vector.load %arg1[%c0, %c0_0] : memref<8x576xbf16, #tpu.memory_space<vmem>>, vector<8x576xbf16>
    %c0_1 = arith.constant 0 : index
    %c0_2 = arith.constant 0 : index
    %1 = vector.load %arg2[%c0_1, %c0_2] : memref<576x128xbf16, #tpu.memory_space<vmem>>, vector<576x128xbf16>
    %cst = arith.constant dense<0.000000e+00> : vector<8x128xf32>
    %2 = tpu.matmul %0, %1, %cst {dimension_numbers = #tpu.dot_dimension_numbers<[1], [0], [0], [1], [0, 0, 1, 1], [], []>} : vector<8x576xbf16>, vector<576x128xbf16>, vector<8x128xf32> -> vector<8x128xf32>
    %c0_3 = arith.constant 0 : index
    %c0_4 = arith.constant 0 : index
    %3 = vector.load %arg3[%c0_3, %c0_4] : memref<1x128xf32, #tpu.memory_space<vmem>>, vector<1x128xf32>
    %4 = vector.broadcast %3 : vector<1x128xf32> to vector<8x128xf32>
    %5 = arith.addf %2, %4 : vector<8x128xf32>
    %c0_5 = arith.constant 0 : index
    %c0_6 = arith.constant 0 : index
    %6 = vector.load %arg9[%c0_5, %c0_6] : memref<8x128xf32, #tpu.memory_space<vmem>>, vector<8x128xf32>
    tpu.vector_store %arg9[%c0_5, %c0_6], %5 {strides = array<i32>} : memref<8x128xf32, #tpu.memory_space<vmem>>, vector<8x128xf32>,
    %cst_7 = arith.constant 0.000000e+00 : f32
    %7 = vector.broadcast %cst_7 : f32 to vector<9x8x128xf32>
    %c0_8 = arith.constant 0 : index
    %c0_9 = arith.constant 0 : index
    %c0_10 = arith.constant 0 : index
    %8 = vector.load %arg10[%c0_8, %c0_9, %c0_10] : memref<9x8x128xf32, #tpu.memory_space<vmem>>, vector<9x8x128xf32>
    tpu.vector_store %arg10[%c0_8, %c0_9, %c0_10], %7 {strides = array<i32>} : memref<9x8x128xf32, #tpu.memory_space<vmem>>, vector<9x8x128xf32>,
    %cst_11 = arith.constant 0.000000e+00 : bf16
    %9 = vector.broadcast %cst_11 : bf16 to vector<9x8x128xbf16>
    %c0_12 = arith.constant 0 : index
    %c0_13 = arith.constant 0 : index
    %c0_14 = arith.constant 0 : index
    %10 = vector.load %arg11[%c0_12, %c0_13, %c0_14] : memref<9x8x128xbf16, #tpu.memory_space<vmem>>, vector<9x8x128xbf16>
    tpu.vector_store %arg11[%c0_12, %c0_13, %c0_14], %9 {strides = array<i32>} : memref<9x8x128xbf16, #tpu.memory_space<vmem>>, vector<9x8x128xbf16>,
    %cst_15 = arith.constant 0.000000e+00 : f32
    %11 = vector.broadcast %cst_15 : f32 to vector<8x128xf32>
    %c0_16 = arith.constant 0 : index
    %c0_17 = arith.constant 0 : index
    %12 = vector.load %arg12[%c0_16, %c0_17] : memref<8x128xf32, #tpu.memory_space<vmem>>, vector<8x128xf32>
    tpu.vector_store %arg12[%c0_16, %c0_17], %11 {strides = array<i32>} : memref<8x128xf32, #tpu.memory_space<vmem>>, vector<8x128xf32>,
    %cst_18 = arith.constant 0.000000e+00 : f32
    %13 = vector.broadcast %cst_18 : f32 to vector<8x128xf32>
    %c0_19 = arith.constant 0 : index
    %c0_20 = arith.constant 0 : index
    %14 = vector.load %arg13[%c0_19, %c0_20] : memref<8x128xf32, #tpu.memory_space<vmem>>, vector<8x128xf32>
    tpu.vector_store %arg13[%c0_19, %c0_20], %13 {strides = array<i32>} : memref<8x128xf32, #tpu.memory_space<vmem>>, vector<8x128xf32>,
    %cst_21 = arith.constant 0.000000e+00 : f32
    %15 = vector.broadcast %cst_21 : f32 to vector<8x128xf32>
    %c0_22 = arith.constant 0 : index
    %c0_23 = arith.constant 0 : index
    %16 = vector.load %arg14[%c0_22, %c0_23] : memref<8x128xf32, #tpu.memory_space<vmem>>, vector<8x128xf32>
    tpu.vector_store %arg14[%c0_22, %c0_23], %15 {strides = array<i32>} : memref<8x128xf32, #tpu.memory_space<vmem>>, vector<8x128xf32>,
    %cst_24 = arith.constant 0.000000e+00 : f32
    %17 = vector.broadcast %cst_24 : f32 to vector<8x128xf32>
    %c0_25 = arith.constant 0 : index
    %c0_26 = arith.constant 0 : index
    %18 = vector.load %arg8[%c0_25, %c0_26] : memref<8x128xf32, #tpu.memory_space<vmem>>, vector<8x128xf32>
    tpu.vector_store %arg8[%c0_25, %c0_26], %17 {strides = array<i32>} : memref<8x128xf32, #tpu.memory_space<vmem>>, vector<8x128xf32>,
    %19 = tpu.iota {dimensions = array<i32: 1>} : vector<8x128xi32>
    %c0_27 = arith.constant 0 : index
    %c0_28 = arith.constant 0 : index
    %20 = vector.load %arg9[%c0_27, %c0_28] : memref<8x128xf32, #tpu.memory_space<vmem>>, vector<8x128xf32>
    %c0_29 = arith.constant 0 : index
    %c0_30 = arith.constant 0 : index
    %c0_31 = arith.constant 0 : index
    %21 = vector.load %arg10[%c0_29, %c0_30, %c0_31] : memref<9x8x128xf32, #tpu.memory_space<vmem>>, vector<1x8x128xf32>
    %22 = vector.shape_cast %21 : vector<1x8x128xf32> to vector<8x128xf32>
    %cst_32 = arith.constant 8.000000e-01 : f32
    %23 = vector.broadcast %cst_32 : f32 to vector<8x128xf32>
    %24 = arith.mulf %23, %22 : vector<8x128xf32>
    %25 = arith.addf %24, %20 : vector<8x128xf32>
    %c0_33 = arith.constant 0 : index
    %c0_34 = arith.constant 0 : index
    %c0_35 = arith.constant 0 : index
    %26 = vector.load %arg11[%c0_33, %c0_34, %c0_35] : memref<9x8x128xbf16, #tpu.memory_space<vmem>>, vector<1x8x128xbf16>
    %27 = vector.shape_cast %26 : vector<1x8x128xbf16> to vector<8x128xbf16>
    %cst_36 = arith.constant 5.000000e-01 : bf16
    %28 = vector.broadcast %cst_36 : bf16 to vector<8x128xbf16>
    %29 = arith.mulf %27, %28 : vector<8x128xbf16>
    %30 = arith.extf %29 : vector<8x128xbf16> to vector<8x128xf32>
    %31 = arith.subf %25, %30 : vector<8x128xf32>
    %cst_37 = arith.constant 5.000000e-01 : f32
    %32 = vector.broadcast %cst_37 : f32 to vector<8x128xf32>
    %33 = arith.cmpf ogt, %31, %32 : vector<8x128xf32>
    %34 = arith.extui %33 : vector<8x128xi1> to vector<8x128xi32>
    %35 = arith.sitofp %34 : vector<8x128xi32> to vector<8x128xf32>
    %36 = arith.truncf %35 : vector<8x128xf32> to vector<8x128xbf16>
    %c0_38 = arith.constant 0 : index
    %c0_39 = arith.constant 0 : index
    %c0_40 = arith.constant 0 : index
    %37 = vector.load %arg10[%c0_38, %c0_39, %c0_40] : memref<9x8x128xf32, #tpu.memory_space<vmem>>, vector<1x8x128xf32>
    %38 = vector.shape_cast %37 : vector<1x8x128xf32> to vector<8x128xf32>
    %39 = vector.shape_cast %31 : vector<8x128xf32> to vector<1x8x128xf32>
    tpu.vector_store %arg10[%c0_38, %c0_39, %c0_40], %39 {strides = array<i32>} : memref<9x8x128xf32, #tpu.memory_space<vmem>>, vector<1x8x128xf32>,
    %c0_41 = arith.constant 0 : index
    %c0_42 = arith.constant 0 : index
    %c0_43 = arith.constant 0 : index
    %40 = vector.load %arg11[%c0_41, %c0_42, %c0_43] : memref<9x8x128xbf16, #tpu.memory_space<vmem>>, vector<1x8x128xbf16>
    %41 = vector.shape_cast %40 : vector<1x8x128xbf16> to vector<8x128xbf16>
    %42 = vector.shape_cast %36 : vector<8x128xbf16> to vector<1x8x128xbf16>
    tpu.vector_store %arg11[%c0_41, %c0_42, %c0_43], %42 {strides = array<i32>} : memref<9x8x128xbf16, #tpu.memory_space<vmem>>, vector<1x8x128xbf16>,
    %c0_44 = arith.constant 0 : index
    %c0_45 = arith.constant 0 : index
    %c0_46 = arith.constant 0 : index
    %43 = vector.load %arg4[%c0_44, %c0_45, %c0_46] : memref<8x128x128xbf16, #tpu.memory_space<vmem>>, vector<1x128x128xbf16>
    %44 = vector.shape_cast %43 : vector<1x128x128xbf16> to vector<128x128xbf16>
    %cst_47 = arith.constant dense<0.000000e+00> : vector<8x128xf32>
    %45 = tpu.matmul %36, %44, %cst_47 {dimension_numbers = #tpu.dot_dimension_numbers<[1], [0], [0], [1], [0, 0, 1, 1], [], []>} : vector<8x128xbf16>, vector<128x128xbf16>, vector<8x128xf32> -> vector<8x128xf32>
    %c0_48 = arith.constant 0 : index
    %c0_49 = arith.constant 0 : index
    %c0_50 = arith.constant 0 : index
    %46 = vector.load %arg5[%c0_48, %c0_49, %c0_50] : memref<8x1x128xf32, #tpu.memory_space<vmem>>, vector<1x1x128xf32>
    %47 = vector.shape_cast %46 : vector<1x1x128xf32> to vector<1x128xf32>
    %48 = vector.broadcast %47 : vector<1x128xf32> to vector<8x128xf32>
    %49 = arith.addf %45, %48 : vector<8x128xf32>
    %c1 = arith.constant 1 : index
    %c0_51 = arith.constant 0 : index
    %c0_52 = arith.constant 0 : index
    %50 = vector.load %arg10[%c1, %c0_51, %c0_52] : memref<9x8x128xf32, #tpu.memory_space<vmem>>, vector<1x8x128xf32>
    %51 = vector.shape_cast %50 : vector<1x8x128xf32> to vector<8x128xf32>
    %cst_53 = arith.constant 8.000000e-01 : f32
    %52 = vector.broadcast %cst_53 : f32 to vector<8x128xf32>
    %53 = arith.mulf %52, %51 : vector<8x128xf32>
    %54 = arith.addf %53, %49 : vector<8x128xf32>
    %c1_54 = arith.constant 1 : index
    %c0_55 = arith.constant 0 : index
    %c0_56 = arith.constant 0 : index
    %55 = vector.load %arg11[%c1_54, %c0_55, %c0_56] : memref<9x8x128xbf16, #tpu.memory_space<vmem>>, vector<1x8x128xbf16>
    %56 = vector.shape_cast %55 : vector<1x8x128xbf16> to vector<8x128xbf16>
    %cst_57 = arith.constant 5.000000e-01 : bf16
    %57 = vector.broadcast %cst_57 : bf16 to vector<8x128xbf16>
    %58 = arith.mulf %56, %57 : vector<8x128xbf16>
    %59 = arith.extf %58 : vector<8x128xbf16> to vector<8x128xf32>
    %60 = arith.subf %54, %59 : vector<8x128xf32>
    %cst_58 = arith.constant 5.000000e-01 : f32
    %61 = vector.broadcast %cst_58 : f32 to vector<8x128xf32>
    %62 = arith.cmpf ogt, %60, %61 : vector<8x128xf32>
    %63 = arith.extui %62 : vector<8x128xi1> to vector<8x128xi32>
    %64 = arith.sitofp %63 : vector<8x128xi32> to vector<8x128xf32>
    %65 = arith.truncf %64 : vector<8x128xf32> to vector<8x128xbf16>
    %c1_59 = arith.constant 1 : index
    %c0_60 = arith.constant 0 : index
    %c0_61 = arith.constant 0 : index
    %66 = vector.load %arg10[%c1_59, %c0_60, %c0_61] : memref<9x8x128xf32, #tpu.memory_space<vmem>>, vector<1x8x128xf32>
    %67 = vector.shape_cast %66 : vector<1x8x128xf32> to vector<8x128xf32>
    %68 = vector.shape_cast %60 : vector<8x128xf32> to vector<1x8x128xf32>
    tpu.vector_store %arg10[%c1_59, %c0_60, %c0_61], %68 {strides = array<i32>} : memref<9x8x128xf32, #tpu.memory_space<vmem>>, vector<1x8x128xf32>,
    %c1_62 = arith.constant 1 : index
    %c0_63 = arith.constant 0 : index
    %c0_64 = arith.constant 0 : index
    %69 = vector.load %arg11[%c1_62, %c0_63, %c0_64] : memref<9x8x128xbf16, #tpu.memory_space<vmem>>, vector<1x8x128xbf16>
    %70 = vector.shape_cast %69 : vector<1x8x128xbf16> to vector<8x128xbf16>
    %71 = vector.shape_cast %65 : vector<8x128xbf16> to vector<1x8x128xbf16>
    tpu.vector_store %arg11[%c1_62, %c0_63, %c0_64], %71 {strides = array<i32>} : memref<9x8x128xbf16, #tpu.memory_space<vmem>>, vector<1x8x128xbf16>,
    %c1_65 = arith.constant 1 : index
    %c0_66 = arith.constant 0 : index
    %c0_67 = arith.constant 0 : index
    %72 = vector.load %arg4[%c1_65, %c0_66, %c0_67] : memref<8x128x128xbf16, #tpu.memory_space<vmem>>, vector<1x128x128xbf16>
    %73 = vector.shape_cast %72 : vector<1x128x128xbf16> to vector<128x128xbf16>
    %cst_68 = arith.constant dense<0.000000e+00> : vector<8x128xf32>
    %74 = tpu.matmul %65, %73, %cst_68 {dimension_numbers = #tpu.dot_dimension_numbers<[1], [0], [0], [1], [0, 0, 1, 1], [], []>} : vector<8x128xbf16>, vector<128x128xbf16>, vector<8x128xf32> -> vector<8x128xf32>
    %c1_69 = arith.constant 1 : index
    %c0_70 = arith.constant 0 : index
    %c0_71 = arith.constant 0 : index
    %75 = vector.load %arg5[%c1_69, %c0_70, %c0_71] : memref<8x1x128xf32, #tpu.memory_space<vmem>>, vector<1x1x128xf32>
    %76 = vector.shape_cast %75 : vector<1x1x128xf32> to vector<1x128xf32>
    %77 = vector.broadcast %76 : vector<1x128xf32> to vector<8x128xf32>
    %78 = arith.addf %74, %77 : vector<8x128xf32>
    %c2 = arith.constant 2 : index
    %c0_72 = arith.constant 0 : index
    %c0_73 = arith.constant 0 : index
    %79 = vector.load %arg10[%c2, %c0_72, %c0_73] : memref<9x8x128xf32, #tpu.memory_space<vmem>>, vector<1x8x128xf32>
    %80 = vector.shape_cast %79 : vector<1x8x128xf32> to vector<8x128xf32>
    %cst_74 = arith.constant 8.000000e-01 : f32
    %81 = vector.broadcast %cst_74 : f32 to vector<8x128xf32>
    %82 = arith.mulf %81, %80 : vector<8x128xf32>
    %83 = arith.addf %82, %78 : vector<8x128xf32>
    %c2_75 = arith.constant 2 : index
    %c0_76 = arith.constant 0 : index
    %c0_77 = arith.constant 0 : index
    %84 = vector.load %arg11[%c2_75, %c0_76, %c0_77] : memref<9x8x128xbf16, #tpu.memory_space<vmem>>, vector<1x8x128xbf16>
    %85 = vector.shape_cast %84 : vector<1x8x128xbf16> to vector<8x128xbf16>
    %cst_78 = arith.constant 5.000000e-01 : bf16
    %86 = vector.broadcast %cst_78 : bf16 to vector<8x128xbf16>
    %87 = arith.mulf %85, %86 : vector<8x128xbf16>
    %88 = arith.extf %87 : vector<8x128xbf16> to vector<8x128xf32>
    %89 = arith.subf %83, %88 : vector<8x128xf32>
    %cst_79 = arith.constant 5.000000e-01 : f32
    %90 = vector.broadcast %cst_79 : f32 to vector<8x128xf32>
    %91 = arith.cmpf ogt, %89, %90 : vector<8x128xf32>
    %92 = arith.extui %91 : vector<8x128xi1> to vector<8x128xi32>
    %93 = arith.sitofp %92 : vector<8x128xi32> to vector<8x128xf32>
    %94 = arith.truncf %93 : vector<8x128xf32> to vector<8x128xbf16>
    %c2_80 = arith.constant 2 : index
    %c0_81 = arith.constant 0 : index
    %c0_82 = arith.constant 0 : index
    %95 = vector.load %arg10[%c2_80, %c0_81, %c0_82] : memref<9x8x128xf32, #tpu.memory_space<vmem>>, vector<1x8x128xf32>
    %96 = vector.shape_cast %95 : vector<1x8x128xf32> to vector<8x128xf32>
    %97 = vector.shape_cast %89 : vector<8x128xf32> to vector<1x8x128xf32>
    tpu.vector_store %arg10[%c2_80, %c0_81, %c0_82], %97 {strides = array<i32>} : memref<9x8x128xf32, #tpu.memory_space<vmem>>, vector<1x8x128xf32>,
    %c2_83 = arith.constant 2 : index
    %c0_84 = arith.constant 0 : index
    %c0_85 = arith.constant 0 : index
    %98 = vector.load %arg11[%c2_83, %c0_84, %c0_85] : memref<9x8x128xbf16, #tpu.memory_space<vmem>>, vector<1x8x128xbf16>
    %99 = vector.shape_cast %98 : vector<1x8x128xbf16> to vector<8x128xbf16>
    %100 = vector.shape_cast %94 : vector<8x128xbf16> to vector<1x8x128xbf16>
    tpu.vector_store %arg11[%c2_83, %c0_84, %c0_85], %100 {strides = array<i32>} : memref<9x8x128xbf16, #tpu.memory_space<vmem>>, vector<1x8x128xbf16>,
    %c2_86 = arith.constant 2 : index
    %c0_87 = arith.constant 0 : index
    %c0_88 = arith.constant 0 : index
    %101 = vector.load %arg4[%c2_86, %c0_87, %c0_88] : memref<8x128x128xbf16, #tpu.memory_space<vmem>>, vector<1x128x128xbf16>
    %102 = vector.shape_cast %101 : vector<1x128x128xbf16> to vector<128x128xbf16>
    %cst_89 = arith.constant dense<0.000000e+00> : vector<8x128xf32>
    %103 = tpu.matmul %94, %102, %cst_89 {dimension_numbers = #tpu.dot_dimension_numbers<[1], [0], [0], [1], [0, 0, 1, 1], [], []>} : vector<8x128xbf16>, vector<128x128xbf16>, vector<8x128xf32> -> vector<8x128xf32>
    %c2_90 = arith.constant 2 : index
    %c0_91 = arith.constant 0 : index
    %c0_92 = arith.constant 0 : index
    %104 = vector.load %arg5[%c2_90, %c0_91, %c0_92] : memref<8x1x128xf32, #tpu.memory_space<vmem>>, vector<1x1x128xf32>
    %105 = vector.shape_cast %104 : vector<1x1x128xf32> to vector<1x128xf32>
    %106 = vector.broadcast %105 : vector<1x128xf32> to vector<8x128xf32>
    %107 = arith.addf %103, %106 : vector<8x128xf32>
    %c3 = arith.constant 3 : index
    %c0_93 = arith.constant 0 : index
    %c0_94 = arith.constant 0 : index
    %108 = vector.load %arg10[%c3, %c0_93, %c0_94] : memref<9x8x128xf32, #tpu.memory_space<vmem>>, vector<1x8x128xf32>
    %109 = vector.shape_cast %108 : vector<1x8x128xf32> to vector<8x128xf32>
    %cst_95 = arith.constant 8.000000e-01 : f32
    %110 = vector.broadcast %cst_95 : f32 to vector<8x128xf32>
    %111 = arith.mulf %110, %109 : vector<8x128xf32>
    %112 = arith.addf %111, %107 : vector<8x128xf32>
    %c3_96 = arith.constant 3 : index
    %c0_97 = arith.constant 0 : index
    %c0_98 = arith.constant 0 : index
    %113 = vector.load %arg11[%c3_96, %c0_97, %c0_98] : memref<9x8x128xbf16, #tpu.memory_space<vmem>>, vector<1x8x128xbf16>
    %114 = vector.shape_cast %113 : vector<1x8x128xbf16> to vector<8x128xbf16>
    %cst_99 = arith.constant 5.000000e-01 : bf16
    %115 = vector.broadcast %cst_99 : bf16 to vector<8x128xbf16>
    %116 = arith.mulf %114, %115 : vector<8x128xbf16>
    %117 = arith.extf %116 : vector<8x128xbf16> to vector<8x128xf32>
    %118 = arith.subf %112, %117 : vector<8x128xf32>
    %cst_100 = arith.constant 5.000000e-01 : f32
    %119 = vector.broadcast %cst_100 : f32 to vector<8x128xf32>
    %120 = arith.cmpf ogt, %118, %119 : vector<8x128xf32>
    %121 = arith.extui %120 : vector<8x128xi1> to vector<8x128xi32>
    %122 = arith.sitofp %121 : vector<8x128xi32> to vector<8x128xf32>
    %123 = arith.truncf %122 : vector<8x128xf32> to vector<8x128xbf16>
    %c3_101 = arith.constant 3 : index
    %c0_102 = arith.constant 0 : index
    %c0_103 = arith.constant 0 : index
    %124 = vector.load %arg10[%c3_101, %c0_102, %c0_103] : memref<9x8x128xf32, #tpu.memory_space<vmem>>, vector<1x8x128xf32>
    %125 = vector.shape_cast %124 : vector<1x8x128xf32> to vector<8x128xf32>
    %126 = vector.shape_cast %118 : vector<8x128xf32> to vector<1x8x128xf32>
    tpu.vector_store %arg10[%c3_101, %c0_102, %c0_103], %126 {strides = array<i32>} : memref<9x8x128xf32, #tpu.memory_space<vmem>>, vector<1x8x128xf32>,
    %c3_104 = arith.constant 3 : index
    %c0_105 = arith.constant 0 : index
    %c0_106 = arith.constant 0 : index
    %127 = vector.load %arg11[%c3_104, %c0_105, %c0_106] : memref<9x8x128xbf16, #tpu.memory_space<vmem>>, vector<1x8x128xbf16>
    %128 = vector.shape_cast %127 : vector<1x8x128xbf16> to vector<8x128xbf16>
    %129 = vector.shape_cast %123 : vector<8x128xbf16> to vector<1x8x128xbf16>
    tpu.vector_store %arg11[%c3_104, %c0_105, %c0_106], %129 {strides = array<i32>} : memref<9x8x128xbf16, #tpu.memory_space<vmem>>, vector<1x8x128xbf16>,
    %c3_107 = arith.constant 3 : index
    %c0_108 = arith.constant 0 : index
    %c0_109 = arith.constant 0 : index
    %130 = vector.load %arg4[%c3_107, %c0_108, %c0_109] : memref<8x128x128xbf16, #tpu.memory_space<vmem>>, vector<1x128x128xbf16>
    %131 = vector.shape_cast %130 : vector<1x128x128xbf16> to vector<128x128xbf16>
    %cst_110 = arith.constant dense<0.000000e+00> : vector<8x128xf32>
    %132 = tpu.matmul %123, %131, %cst_110 {dimension_numbers = #tpu.dot_dimension_numbers<[1], [0], [0], [1], [0, 0, 1, 1], [], []>} : vector<8x128xbf16>, vector<128x128xbf16>, vector<8x128xf32> -> vector<8x128xf32>
    %c3_111 = arith.constant 3 : index
    %c0_112 = arith.constant 0 : index
    %c0_113 = arith.constant 0 : index
    %133 = vector.load %arg5[%c3_111, %c0_112, %c0_113] : memref<8x1x128xf32, #tpu.memory_space<vmem>>, vector<1x1x128xf32>
    %134 = vector.shape_cast %133 : vector<1x1x128xf32> to vector<1x128xf32>
    %135 = vector.broadcast %134 : vector<1x128xf32> to vector<8x128xf32>
    %136 = arith.addf %132, %135 : vector<8x128xf32>
    %c4 = arith.constant 4 : index
    %c0_114 = arith.constant 0 : index
    %c0_115 = arith.constant 0 : index
    %137 = vector.load %arg10[%c4, %c0_114, %c0_115] : memref<9x8x128xf32, #tpu.memory_space<vmem>>, vector<1x8x128xf32>
    %138 = vector.shape_cast %137 : vector<1x8x128xf32> to vector<8x128xf32>
    %cst_116 = arith.constant 8.000000e-01 : f32
    %139 = vector.broadcast %cst_116 : f32 to vector<8x128xf32>
    %140 = arith.mulf %139, %138 : vector<8x128xf32>
    %141 = arith.addf %140, %136 : vector<8x128xf32>
    %c4_117 = arith.constant 4 : index
    %c0_118 = arith.constant 0 : index
    %c0_119 = arith.constant 0 : index
    %142 = vector.load %arg11[%c4_117, %c0_118, %c0_119] : memref<9x8x128xbf16, #tpu.memory_space<vmem>>, vector<1x8x128xbf16>
    %143 = vector.shape_cast %142 : vector<1x8x128xbf16> to vector<8x128xbf16>
    %cst_120 = arith.constant 5.000000e-01 : bf16
    %144 = vector.broadcast %cst_120 : bf16 to vector<8x128xbf16>
    %145 = arith.mulf %143, %144 : vector<8x128xbf16>
    %146 = arith.extf %145 : vector<8x128xbf16> to vector<8x128xf32>
    %147 = arith.subf %141, %146 : vector<8x128xf32>
    %cst_121 = arith.constant 5.000000e-01 : f32
    %148 = vector.broadcast %cst_121 : f32 to vector<8x128xf32>
    %149 = arith.cmpf ogt, %147, %148 : vector<8x128xf32>
    %150 = arith.extui %149 : vector<8x128xi1> to vector<8x128xi32>
    %151 = arith.sitofp %150 : vector<8x128xi32> to vector<8x128xf32>
    %152 = arith.truncf %151 : vector<8x128xf32> to vector<8x128xbf16>
    %c4_122 = arith.constant 4 : index
    %c0_123 = arith.constant 0 : index
    %c0_124 = arith.constant 0 : index
    %153 = vector.load %arg10[%c4_122, %c0_123, %c0_124] : memref<9x8x128xf32, #tpu.memory_space<vmem>>, vector<1x8x128xf32>
    %154 = vector.shape_cast %153 : vector<1x8x128xf32> to vector<8x128xf32>
    %155 = vector.shape_cast %147 : vector<8x128xf32> to vector<1x8x128xf32>
    tpu.vector_store %arg10[%c4_122, %c0_123, %c0_124], %155 {strides = array<i32>} : memref<9x8x128xf32, #tpu.memory_space<vmem>>, vector<1x8x128xf32>,
    %c4_125 = arith.constant 4 : index
    %c0_126 = arith.constant 0 : index
    %c0_127 = arith.constant 0 : index
    %156 = vector.load %arg11[%c4_125, %c0_126, %c0_127] : memref<9x8x128xbf16, #tpu.memory_space<vmem>>, vector<1x8x128xbf16>
    %157 = vector.shape_cast %156 : vector<1x8x128xbf16> to vector<8x128xbf16>
    %158 = vector.shape_cast %152 : vector<8x128xbf16> to vector<1x8x128xbf16>
    tpu.vector_store %arg11[%c4_125, %c0_126, %c0_127], %158 {strides = array<i32>} : memref<9x8x128xbf16, #tpu.memory_space<vmem>>, vector<1x8x128xbf16>,
    %c4_128 = arith.constant 4 : index
    %c0_129 = arith.constant 0 : index
    %c0_130 = arith.constant 0 : index
    %159 = vector.load %arg4[%c4_128, %c0_129, %c0_130] : memref<8x128x128xbf16, #tpu.memory_space<vmem>>, vector<1x128x128xbf16>
    %160 = vector.shape_cast %159 : vector<1x128x128xbf16> to vector<128x128xbf16>
    %cst_131 = arith.constant dense<0.000000e+00> : vector<8x128xf32>
    %161 = tpu.matmul %152, %160, %cst_131 {dimension_numbers = #tpu.dot_dimension_numbers<[1], [0], [0], [1], [0, 0, 1, 1], [], []>} : vector<8x128xbf16>, vector<128x128xbf16>, vector<8x128xf32> -> vector<8x128xf32>
    %c4_132 = arith.constant 4 : index
    %c0_133 = arith.constant 0 : index
    %c0_134 = arith.constant 0 : index
    %162 = vector.load %arg5[%c4_132, %c0_133, %c0_134] : memref<8x1x128xf32, #tpu.memory_space<vmem>>, vector<1x1x128xf32>
    %163 = vector.shape_cast %162 : vector<1x1x128xf32> to vector<1x128xf32>
    %164 = vector.broadcast %163 : vector<1x128xf32> to vector<8x128xf32>
    %165 = arith.addf %161, %164 : vector<8x128xf32>
    %c5 = arith.constant 5 : index
    %c0_135 = arith.constant 0 : index
    %c0_136 = arith.constant 0 : index
    %166 = vector.load %arg10[%c5, %c0_135, %c0_136] : memref<9x8x128xf32, #tpu.memory_space<vmem>>, vector<1x8x128xf32>
    %167 = vector.shape_cast %166 : vector<1x8x128xf32> to vector<8x128xf32>
    %cst_137 = arith.constant 8.000000e-01 : f32
    %168 = vector.broadcast %cst_137 : f32 to vector<8x128xf32>
    %169 = arith.mulf %168, %167 : vector<8x128xf32>
    %170 = arith.addf %169, %165 : vector<8x128xf32>
    %c5_138 = arith.constant 5 : index
    %c0_139 = arith.constant 0 : index
    %c0_140 = arith.constant 0 : index
    %171 = vector.load %arg11[%c5_138, %c0_139, %c0_140] : memref<9x8x128xbf16, #tpu.memory_space<vmem>>, vector<1x8x128xbf16>
    %172 = vector.shape_cast %171 : vector<1x8x128xbf16> to vector<8x128xbf16>
    %cst_141 = arith.constant 5.000000e-01 : bf16
    %173 = vector.broadcast %cst_141 : bf16 to vector<8x128xbf16>
    %174 = arith.mulf %172, %173 : vector<8x128xbf16>
    %175 = arith.extf %174 : vector<8x128xbf16> to vector<8x128xf32>
    %176 = arith.subf %170, %175 : vector<8x128xf32>
    %cst_142 = arith.constant 5.000000e-01 : f32
    %177 = vector.broadcast %cst_142 : f32 to vector<8x128xf32>
    %178 = arith.cmpf ogt, %176, %177 : vector<8x128xf32>
    %179 = arith.extui %178 : vector<8x128xi1> to vector<8x128xi32>
    %180 = arith.sitofp %179 : vector<8x128xi32> to vector<8x128xf32>
    %181 = arith.truncf %180 : vector<8x128xf32> to vector<8x128xbf16>
    %c5_143 = arith.constant 5 : index
    %c0_144 = arith.constant 0 : index
    %c0_145 = arith.constant 0 : index
    %182 = vector.load %arg10[%c5_143, %c0_144, %c0_145] : memref<9x8x128xf32, #tpu.memory_space<vmem>>, vector<1x8x128xf32>
    %183 = vector.shape_cast %182 : vector<1x8x128xf32> to vector<8x128xf32>
    %184 = vector.shape_cast %176 : vector<8x128xf32> to vector<1x8x128xf32>
    tpu.vector_store %arg10[%c5_143, %c0_144, %c0_145], %184 {strides = array<i32>} : memref<9x8x128xf32, #tpu.memory_space<vmem>>, vector<1x8x128xf32>,
    %c5_146 = arith.constant 5 : index
    %c0_147 = arith.constant 0 : index
    %c0_148 = arith.constant 0 : index
    %185 = vector.load %arg11[%c5_146, %c0_147, %c0_148] : memref<9x8x128xbf16, #tpu.memory_space<vmem>>, vector<1x8x128xbf16>
    %186 = vector.shape_cast %185 : vector<1x8x128xbf16> to vector<8x128xbf16>
    %187 = vector.shape_cast %181 : vector<8x128xbf16> to vector<1x8x128xbf16>
    tpu.vector_store %arg11[%c5_146, %c0_147, %c0_148], %187 {strides = array<i32>} : memref<9x8x128xbf16, #tpu.memory_space<vmem>>, vector<1x8x128xbf16>,
    %c5_149 = arith.constant 5 : index
    %c0_150 = arith.constant 0 : index
    %c0_151 = arith.constant 0 : index
    %188 = vector.load %arg4[%c5_149, %c0_150, %c0_151] : memref<8x128x128xbf16, #tpu.memory_space<vmem>>, vector<1x128x128xbf16>
    %189 = vector.shape_cast %188 : vector<1x128x128xbf16> to vector<128x128xbf16>
    %cst_152 = arith.constant dense<0.000000e+00> : vector<8x128xf32>
    %190 = tpu.matmul %181, %189, %cst_152 {dimension_numbers = #tpu.dot_dimension_numbers<[1], [0], [0], [1], [0, 0, 1, 1], [], []>} : vector<8x128xbf16>, vector<128x128xbf16>, vector<8x128xf32> -> vector<8x128xf32>
    %c5_153 = arith.constant 5 : index
    %c0_154 = arith.constant 0 : index
    %c0_155 = arith.constant 0 : index
    %191 = vector.load %arg5[%c5_153, %c0_154, %c0_155] : memref<8x1x128xf32, #tpu.memory_space<vmem>>, vector<1x1x128xf32>
    %192 = vector.shape_cast %191 : vector<1x1x128xf32> to vector<1x128xf32>
    %193 = vector.broadcast %192 : vector<1x128xf32> to vector<8x128xf32>
    %194 = arith.addf %190, %193 : vector<8x128xf32>
    %c6 = arith.constant 6 : index
    %c0_156 = arith.constant 0 : index
    %c0_157 = arith.constant 0 : index
    %195 = vector.load %arg10[%c6, %c0_156, %c0_157] : memref<9x8x128xf32, #tpu.memory_space<vmem>>, vector<1x8x128xf32>
    %196 = vector.shape_cast %195 : vector<1x8x128xf32> to vector<8x128xf32>
    %cst_158 = arith.constant 8.000000e-01 : f32
    %197 = vector.broadcast %cst_158 : f32 to vector<8x128xf32>
    %198 = arith.mulf %197, %196 : vector<8x128xf32>
    %199 = arith.addf %198, %194 : vector<8x128xf32>
    %c6_159 = arith.constant 6 : index
    %c0_160 = arith.constant 0 : index
    %c0_161 = arith.constant 0 : index
    %200 = vector.load %arg11[%c6_159, %c0_160, %c0_161] : memref<9x8x128xbf16, #tpu.memory_space<vmem>>, vector<1x8x128xbf16>
    %201 = vector.shape_cast %200 : vector<1x8x128xbf16> to vector<8x128xbf16>
    %cst_162 = arith.constant 5.000000e-01 : bf16
    %202 = vector.broadcast %cst_162 : bf16 to vector<8x128xbf16>
    %203 = arith.mulf %201, %202 : vector<8x128xbf16>
    %204 = arith.extf %203 : vector<8x128xbf16> to vector<8x128xf32>
    %205 = arith.subf %199, %204 : vector<8x128xf32>
    %cst_163 = arith.constant 5.000000e-01 : f32
    %206 = vector.broadcast %cst_163 : f32 to vector<8x128xf32>
    %207 = arith.cmpf ogt, %205, %206 : vector<8x128xf32>
    %208 = arith.extui %207 : vector<8x128xi1> to vector<8x128xi32>
    %209 = arith.sitofp %208 : vector<8x128xi32> to vector<8x128xf32>
    %210 = arith.truncf %209 : vector<8x128xf32> to vector<8x128xbf16>
    %c6_164 = arith.constant 6 : index
    %c0_165 = arith.constant 0 : index
    %c0_166 = arith.constant 0 : index
    %211 = vector.load %arg10[%c6_164, %c0_165, %c0_166] : memref<9x8x128xf32, #tpu.memory_space<vmem>>, vector<1x8x128xf32>
    %212 = vector.shape_cast %211 : vector<1x8x128xf32> to vector<8x128xf32>
    %213 = vector.shape_cast %205 : vector<8x128xf32> to vector<1x8x128xf32>
    tpu.vector_store %arg10[%c6_164, %c0_165, %c0_166], %213 {strides = array<i32>} : memref<9x8x128xf32, #tpu.memory_space<vmem>>, vector<1x8x128xf32>,
    %c6_167 = arith.constant 6 : index
    %c0_168 = arith.constant 0 : index
    %c0_169 = arith.constant 0 : index
    %214 = vector.load %arg11[%c6_167, %c0_168, %c0_169] : memref<9x8x128xbf16, #tpu.memory_space<vmem>>, vector<1x8x128xbf16>
    %215 = vector.shape_cast %214 : vector<1x8x128xbf16> to vector<8x128xbf16>
    %216 = vector.shape_cast %210 : vector<8x128xbf16> to vector<1x8x128xbf16>
    tpu.vector_store %arg11[%c6_167, %c0_168, %c0_169], %216 {strides = array<i32>} : memref<9x8x128xbf16, #tpu.memory_space<vmem>>, vector<1x8x128xbf16>,
    %c6_170 = arith.constant 6 : index
    %c0_171 = arith.constant 0 : index
    %c0_172 = arith.constant 0 : index
    %217 = vector.load %arg4[%c6_170, %c0_171, %c0_172] : memref<8x128x128xbf16, #tpu.memory_space<vmem>>, vector<1x128x128xbf16>
    %218 = vector.shape_cast %217 : vector<1x128x128xbf16> to vector<128x128xbf16>
    %cst_173 = arith.constant dense<0.000000e+00> : vector<8x128xf32>
    %219 = tpu.matmul %210, %218, %cst_173 {dimension_numbers = #tpu.dot_dimension_numbers<[1], [0], [0], [1], [0, 0, 1, 1], [], []>} : vector<8x128xbf16>, vector<128x128xbf16>, vector<8x128xf32> -> vector<8x128xf32>
    %c6_174 = arith.constant 6 : index
    %c0_175 = arith.constant 0 : index
    %c0_176 = arith.constant 0 : index
    %220 = vector.load %arg5[%c6_174, %c0_175, %c0_176] : memref<8x1x128xf32, #tpu.memory_space<vmem>>, vector<1x1x128xf32>
    %221 = vector.shape_cast %220 : vector<1x1x128xf32> to vector<1x128xf32>
    %222 = vector.broadcast %221 : vector<1x128xf32> to vector<8x128xf32>
    %223 = arith.addf %219, %222 : vector<8x128xf32>
    %c7 = arith.constant 7 : index
    %c0_177 = arith.constant 0 : index
    %c0_178 = arith.constant 0 : index
    %224 = vector.load %arg10[%c7, %c0_177, %c0_178] : memref<9x8x128xf32, #tpu.memory_space<vmem>>, vector<1x8x128xf32>
    %225 = vector.shape_cast %224 : vector<1x8x128xf32> to vector<8x128xf32>
    %cst_179 = arith.constant 8.000000e-01 : f32
    %226 = vector.broadcast %cst_179 : f32 to vector<8x128xf32>
    %227 = arith.mulf %226, %225 : vector<8x128xf32>
    %228 = arith.addf %227, %223 : vector<8x128xf32>
    %c7_180 = arith.constant 7 : index
    %c0_181 = arith.constant 0 : index
    %c0_182 = arith.constant 0 : index
    %229 = vector.load %arg11[%c7_180, %c0_181, %c0_182] : memref<9x8x128xbf16, #tpu.memory_space<vmem>>, vector<1x8x128xbf16>
    %230 = vector.shape_cast %229 : vector<1x8x128xbf16> to vector<8x128xbf16>
    %cst_183 = arith.constant 5.000000e-01 : bf16
    %231 = vector.broadcast %cst_183 : bf16 to vector<8x128xbf16>
    %232 = arith.mulf %230, %231 : vector<8x128xbf16>
    %233 = arith.extf %232 : vector<8x128xbf16> to vector<8x128xf32>
    %234 = arith.subf %228, %233 : vector<8x128xf32>
    %cst_184 = arith.constant 5.000000e-01 : f32
    %235 = vector.broadcast %cst_184 : f32 to vector<8x128xf32>
    %236 = arith.cmpf ogt, %234, %235 : vector<8x128xf32>
    %237 = arith.extui %236 : vector<8x128xi1> to vector<8x128xi32>
    %238 = arith.sitofp %237 : vector<8x128xi32> to vector<8x128xf32>
    %239 = arith.truncf %238 : vector<8x128xf32> to vector<8x128xbf16>
    %c7_185 = arith.constant 7 : index
    %c0_186 = arith.constant 0 : index
    %c0_187 = arith.constant 0 : index
    %240 = vector.load %arg10[%c7_185, %c0_186, %c0_187] : memref<9x8x128xf32, #tpu.memory_space<vmem>>, vector<1x8x128xf32>
    %241 = vector.shape_cast %240 : vector<1x8x128xf32> to vector<8x128xf32>
    %242 = vector.shape_cast %234 : vector<8x128xf32> to vector<1x8x128xf32>
    tpu.vector_store %arg10[%c7_185, %c0_186, %c0_187], %242 {strides = array<i32>} : memref<9x8x128xf32, #tpu.memory_space<vmem>>, vector<1x8x128xf32>,
    %c7_188 = arith.constant 7 : index
    %c0_189 = arith.constant 0 : index
    %c0_190 = arith.constant 0 : index
    %243 = vector.load %arg11[%c7_188, %c0_189, %c0_190] : memref<9x8x128xbf16, #tpu.memory_space<vmem>>, vector<1x8x128xbf16>
    %244 = vector.shape_cast %243 : vector<1x8x128xbf16> to vector<8x128xbf16>
    %245 = vector.shape_cast %239 : vector<8x128xbf16> to vector<1x8x128xbf16>
    tpu.vector_store %arg11[%c7_188, %c0_189, %c0_190], %245 {strides = array<i32>} : memref<9x8x128xbf16, #tpu.memory_space<vmem>>, vector<1x8x128xbf16>,
    %c7_191 = arith.constant 7 : index
    %c0_192 = arith.constant 0 : index
    %c0_193 = arith.constant 0 : index
    %246 = vector.load %arg4[%c7_191, %c0_192, %c0_193] : memref<8x128x128xbf16, #tpu.memory_space<vmem>>, vector<1x128x128xbf16>
    %247 = vector.shape_cast %246 : vector<1x128x128xbf16> to vector<128x128xbf16>
    %cst_194 = arith.constant dense<0.000000e+00> : vector<8x128xf32>
    %248 = tpu.matmul %239, %247, %cst_194 {dimension_numbers = #tpu.dot_dimension_numbers<[1], [0], [0], [1], [0, 0, 1, 1], [], []>} : vector<8x128xbf16>, vector<128x128xbf16>, vector<8x128xf32> -> vector<8x128xf32>
    %c7_195 = arith.constant 7 : index
    %c0_196 = arith.constant 0 : index
    %c0_197 = arith.constant 0 : index
    %249 = vector.load %arg5[%c7_195, %c0_196, %c0_197] : memref<8x1x128xf32, #tpu.memory_space<vmem>>, vector<1x1x128xf32>
    %250 = vector.shape_cast %249 : vector<1x1x128xf32> to vector<1x128xf32>
    %251 = vector.broadcast %250 : vector<1x128xf32> to vector<8x128xf32>
    %252 = arith.addf %248, %251 : vector<8x128xf32>
    %c8 = arith.constant 8 : index
    %c0_198 = arith.constant 0 : index
    %c0_199 = arith.constant 0 : index
    %253 = vector.load %arg10[%c8, %c0_198, %c0_199] : memref<9x8x128xf32, #tpu.memory_space<vmem>>, vector<1x8x128xf32>
    %254 = vector.shape_cast %253 : vector<1x8x128xf32> to vector<8x128xf32>
    %cst_200 = arith.constant 8.000000e-01 : f32
    %255 = vector.broadcast %cst_200 : f32 to vector<8x128xf32>
    %256 = arith.mulf %255, %254 : vector<8x128xf32>
    %257 = arith.addf %256, %252 : vector<8x128xf32>
    %c8_201 = arith.constant 8 : index
    %c0_202 = arith.constant 0 : index
    %c0_203 = arith.constant 0 : index
    %258 = vector.load %arg11[%c8_201, %c0_202, %c0_203] : memref<9x8x128xbf16, #tpu.memory_space<vmem>>, vector<1x8x128xbf16>
    %259 = vector.shape_cast %258 : vector<1x8x128xbf16> to vector<8x128xbf16>
    %cst_204 = arith.constant 5.000000e-01 : bf16
    %260 = vector.broadcast %cst_204 : bf16 to vector<8x128xbf16>
    %261 = arith.mulf %259, %260 : vector<8x128xbf16>
    %262 = arith.extf %261 : vector<8x128xbf16> to vector<8x128xf32>
    %263 = arith.subf %257, %262 : vector<8x128xf32>
    %cst_205 = arith.constant 5.000000e-01 : f32
    %264 = vector.broadcast %cst_205 : f32 to vector<8x128xf32>
    %265 = arith.cmpf ogt, %263, %264 : vector<8x128xf32>
    %266 = arith.extui %265 : vector<8x128xi1> to vector<8x128xi32>
    %267 = arith.sitofp %266 : vector<8x128xi32> to vector<8x128xf32>
    %268 = arith.truncf %267 : vector<8x128xf32> to vector<8x128xbf16>
    %c8_206 = arith.constant 8 : index
    %c0_207 = arith.constant 0 : index
    %c0_208 = arith.constant 0 : index
    %269 = vector.load %arg10[%c8_206, %c0_207, %c0_208] : memref<9x8x128xf32, #tpu.memory_space<vmem>>, vector<1x8x128xf32>
    %270 = vector.shape_cast %269 : vector<1x8x128xf32> to vector<8x128xf32>
    %271 = vector.shape_cast %263 : vector<8x128xf32> to vector<1x8x128xf32>
    tpu.vector_store %arg10[%c8_206, %c0_207, %c0_208], %271 {strides = array<i32>} : memref<9x8x128xf32, #tpu.memory_space<vmem>>, vector<1x8x128xf32>,
    %c8_209 = arith.constant 8 : index
    %c0_210 = arith.constant 0 : index
    %c0_211 = arith.constant 0 : index
    %272 = vector.load %arg11[%c8_209, %c0_210, %c0_211] : memref<9x8x128xbf16, #tpu.memory_space<vmem>>, vector<1x8x128xbf16>
    %273 = vector.shape_cast %272 : vector<1x8x128xbf16> to vector<8x128xbf16>
    %274 = vector.shape_cast %268 : vector<8x128xbf16> to vector<1x8x128xbf16>
    tpu.vector_store %arg11[%c8_209, %c0_210, %c0_211], %274 {strides = array<i32>} : memref<9x8x128xbf16, #tpu.memory_space<vmem>>, vector<1x8x128xbf16>,
    %c0_212 = arith.constant 0 : index
    %c0_213 = arith.constant 0 : index
    %275 = vector.load %arg6[%c0_212, %c0_213] : memref<128x128xbf16, #tpu.memory_space<vmem>>, vector<128x128xbf16>
    %cst_214 = arith.constant dense<0.000000e+00> : vector<8x128xf32>
    %276 = tpu.matmul %268, %275, %cst_214 {dimension_numbers = #tpu.dot_dimension_numbers<[1], [0], [0], [1], [0, 0, 1, 1], [], []>} : vector<8x128xbf16>, vector<128x128xbf16>, vector<8x128xf32> -> vector<8x128xf32>
    %c0_215 = arith.constant 0 : index
    %c0_216 = arith.constant 0 : index
    %277 = vector.load %arg7[%c0_215, %c0_216] : memref<1x128xf32, #tpu.memory_space<vmem>>, vector<1x128xf32>
    %278 = vector.broadcast %277 : vector<1x128xf32> to vector<8x128xf32>
    %279 = arith.addf %276, %278 : vector<8x128xf32>
    %c0_217 = arith.constant 0 : index
    %c0_218 = arith.constant 0 : index
    %280 = vector.load %arg12[%c0_217, %c0_218] : memref<8x128xf32, #tpu.memory_space<vmem>>, vector<8x128xf32>
    %cst_219 = arith.constant 8.000000e-01 : f32
    %281 = vector.broadcast %cst_219 : f32 to vector<8x128xf32>
    %282 = arith.mulf %281, %280 : vector<8x128xf32>
    %283 = arith.addf %282, %279 : vector<8x128xf32>
    %c0_220 = arith.constant 0 : index
    %c0_221 = arith.constant 0 : index
    %284 = vector.load %arg13[%c0_220, %c0_221] : memref<8x128xf32, #tpu.memory_space<vmem>>, vector<8x128xf32>
    %cst_222 = arith.constant 5.000000e-01 : f32
    %285 = vector.broadcast %cst_222 : f32 to vector<8x128xf32>
    %286 = arith.mulf %284, %285 : vector<8x128xf32>
    %287 = arith.subf %283, %286 : vector<8x128xf32>
    %cst_223 = arith.constant 5.000000e-01 : f32
    %288 = vector.broadcast %cst_223 : f32 to vector<8x128xf32>
    %289 = arith.cmpf ogt, %287, %288 : vector<8x128xf32>
    %290 = arith.extui %289 : vector<8x128xi1> to vector<8x128xi32>
    %291 = arith.sitofp %290 : vector<8x128xi32> to vector<8x128xf32>
    %c0_224 = arith.constant 0 : index
    %c0_225 = arith.constant 0 : index
    %292 = vector.load %arg12[%c0_224, %c0_225] : memref<8x128xf32, #tpu.memory_space<vmem>>, vector<8x128xf32>
    tpu.vector_store %arg12[%c0_224, %c0_225], %287 {strides = array<i32>} : memref<8x128xf32, #tpu.memory_space<vmem>>, vector<8x128xf32>,
    %c0_226 = arith.constant 0 : index
    %c0_227 = arith.constant 0 : index
    %293 = vector.load %arg13[%c0_226, %c0_227] : memref<8x128xf32, #tpu.memory_space<vmem>>, vector<8x128xf32>
    tpu.vector_store %arg13[%c0_226, %c0_227], %291 {strides = array<i32>} : memref<8x128xf32, #tpu.memory_space<vmem>>, vector<8x128xf32>,
    %c0_228 = arith.constant 0 : index
    %c0_229 = arith.constant 0 : index
    %294 = vector.load %arg8[%c0_228, %c0_229] : memref<8x128xf32, #tpu.memory_space<vmem>>, vector<8x128xf32>
    %295 = arith.addf %294, %291 : vector<8x128xf32>
    %c0_230 = arith.constant 0 : index
    %c0_231 = arith.constant 0 : index
    %296 = vector.load %arg8[%c0_230, %c0_231] : memref<8x128xf32, #tpu.memory_space<vmem>>, vector<8x128xf32>
    tpu.vector_store %arg8[%c0_230, %c0_231], %295 {strides = array<i32>} : memref<8x128xf32, #tpu.memory_space<vmem>>, vector<8x128xf32>,
    %cst_232 = arith.constant dense<0.000000e+00> : vector<8xf32>
    %297 = vector.multi_reduction <add>, %291, %cst_232 [1] : vector<8x128xf32> to vector<8xf32>
    %298 = vector.shape_cast %297 : vector<8xf32> to vector<8x1xf32>
    %c16_i32 = arith.constant 16 : i32
    %299 = vector.broadcast %c16_i32 : i32 to vector<8x128xi32>
    %300 = arith.cmpi eq, %19, %299 : vector<8x128xi32>
    %c0_233 = arith.constant 0 : index
    %c0_234 = arith.constant 0 : index
    %301 = vector.load %arg14[%c0_233, %c0_234] : memref<8x128xf32, #tpu.memory_space<vmem>>, vector<8x128xf32>
    %302 = vector.shape_cast %298 : vector<8x1xf32> to vector<8x1xf32>
    %303 = vector.broadcast %302 : vector<8x1xf32> to vector<8x128xf32>
    %304 = arith.select %300, %303, %301 : vector<8x128xi1>, vector<8x128xf32>
    %c0_235 = arith.constant 0 : index
    %c0_236 = arith.constant 0 : index
    %305 = vector.load %arg14[%c0_235, %c0_236] : memref<8x128xf32, #tpu.memory_space<vmem>>, vector<8x128xf32>
    tpu.vector_store %arg14[%c0_235, %c0_236], %304 {strides = array<i32>} : memref<8x128xf32, #tpu.memory_space<vmem>>, vector<8x128xf32>,
    %c0_237 = arith.constant 0 : index
    %c0_238 = arith.constant 0 : index
    %306 = vector.load %arg9[%c0_237, %c0_238] : memref<8x128xf32, #tpu.memory_space<vmem>>, vector<8x128xf32>
    %c0_239 = arith.constant 0 : index
    %c0_240 = arith.constant 0 : index
    %c0_241 = arith.constant 0 : index
    %307 = vector.load %arg10[%c0_239, %c0_240, %c0_241] : memref<9x8x128xf32, #tpu.memory_space<vmem>>, vector<1x8x128xf32>
    %308 = vector.shape_cast %307 : vector<1x8x128xf32> to vector<8x128xf32>
    %cst_242 = arith.constant 8.000000e-01 : f32
    %309 = vector.broadcast %cst_242 : f32 to vector<8x128xf32>
    %310 = arith.mulf %309, %308 : vector<8x128xf32>
    %311 = arith.addf %310, %306 : vector<8x128xf32>
    %c0_243 = arith.constant 0 : index
    %c0_244 = arith.constant 0 : index
    %c0_245 = arith.constant 0 : index
    %312 = vector.load %arg11[%c0_243, %c0_244, %c0_245] : memref<9x8x128xbf16, #tpu.memory_space<vmem>>, vector<1x8x128xbf16>
    %313 = vector.shape_cast %312 : vector<1x8x128xbf16> to vector<8x128xbf16>
    %cst_246 = arith.constant 5.000000e-01 : bf16
    %314 = vector.broadcast %cst_246 : bf16 to vector<8x128xbf16>
    %315 = arith.mulf %313, %314 : vector<8x128xbf16>
    %316 = arith.extf %315 : vector<8x128xbf16> to vector<8x128xf32>
    %317 = arith.subf %311, %316 : vector<8x128xf32>
    %cst_247 = arith.constant 5.000000e-01 : f32
    %318 = vector.broadcast %cst_247 : f32 to vector<8x128xf32>
    %319 = arith.cmpf ogt, %317, %318 : vector<8x128xf32>
    %320 = arith.extui %319 : vector<8x128xi1> to vector<8x128xi32>
    %321 = arith.sitofp %320 : vector<8x128xi32> to vector<8x128xf32>
    %322 = arith.truncf %321 : vector<8x128xf32> to vector<8x128xbf16>
    %c0_248 = arith.constant 0 : index
    %c0_249 = arith.constant 0 : index
    %c0_250 = arith.constant 0 : index
    %323 = vector.load %arg10[%c0_248, %c0_249, %c0_250] : memref<9x8x128xf32, #tpu.memory_space<vmem>>, vector<1x8x128xf32>
    %324 = vector.shape_cast %323 : vector<1x8x128xf32> to vector<8x128xf32>
    %325 = vector.shape_cast %317 : vector<8x128xf32> to vector<1x8x128xf32>
    tpu.vector_store %arg10[%c0_248, %c0_249, %c0_250], %325 {strides = array<i32>} : memref<9x8x128xf32, #tpu.memory_space<vmem>>, vector<1x8x128xf32>,
    %c0_251 = arith.constant 0 : index
    %c0_252 = arith.constant 0 : index
    %c0_253 = arith.constant 0 : index
    %326 = vector.load %arg11[%c0_251, %c0_252, %c0_253] : memref<9x8x128xbf16, #tpu.memory_space<vmem>>, vector<1x8x128xbf16>
    %327 = vector.shape_cast %326 : vector<1x8x128xbf16> to vector<8x128xbf16>
    %328 = vector.shape_cast %322 : vector<8x128xbf16> to vector<1x8x128xbf16>
    tpu.vector_store %arg11[%c0_251, %c0_252, %c0_253], %328 {strides = array<i32>} : memref<9x8x128xbf16, #tpu.memory_space<vmem>>, vector<1x8x128xbf16>,
    %c0_254 = arith.constant 0 : index
    %c0_255 = arith.constant 0 : index
    %c0_256 = arith.constant 0 : index
    %329 = vector.load %arg4[%c0_254, %c0_255, %c0_256] : memref<8x128x128xbf16, #tpu.memory_space<vmem>>, vector<1x128x128xbf16>
    %330 = vector.shape_cast %329 : vector<1x128x128xbf16> to vector<128x128xbf16>
    %cst_257 = arith.constant dense<0.000000e+00> : vector<8x128xf32>
    %331 = tpu.matmul %322, %330, %cst_257 {dimension_numbers = #tpu.dot_dimension_numbers<[1], [0], [0], [1], [0, 0, 1, 1], [], []>} : vector<8x128xbf16>, vector<128x128xbf16>, vector<8x128xf32> -> vector<8x128xf32>
    %c0_258 = arith.constant 0 : index
    %c0_259 = arith.constant 0 : index
    %c0_260 = arith.constant 0 : index
    %332 = vector.load %arg5[%c0_258, %c0_259, %c0_260] : memref<8x1x128xf32, #tpu.memory_space<vmem>>, vector<1x1x128xf32>
    %333 = vector.shape_cast %332 : vector<1x1x128xf32> to vector<1x128xf32>
    %334 = vector.broadcast %333 : vector<1x128xf32> to vector<8x128xf32>
    %335 = arith.addf %331, %334 : vector<8x128xf32>
    %c1_261 = arith.constant 1 : index
    %c0_262 = arith.constant 0 : index
    %c0_263 = arith.constant 0 : index
    %336 = vector.load %arg10[%c1_261, %c0_262, %c0_263] : memref<9x8x128xf32, #tpu.memory_space<vmem>>, vector<1x8x128xf32>
    %337 = vector.shape_cast %336 : vector<1x8x128xf32> to vector<8x128xf32>
    %cst_264 = arith.constant 8.000000e-01 : f32
    %338 = vector.broadcast %cst_264 : f32 to vector<8x128xf32>
    %339 = arith.mulf %338, %337 : vector<8x128xf32>
    %340 = arith.addf %339, %335 : vector<8x128xf32>
    %c1_265 = arith.constant 1 : index
    %c0_266 = arith.constant 0 : index
    %c0_267 = arith.constant 0 : index
    %341 = vector.load %arg11[%c1_265, %c0_266, %c0_267] : memref<9x8x128xbf16, #tpu.memory_space<vmem>>, vector<1x8x128xbf16>
    %342 = vector.shape_cast %341 : vector<1x8x128xbf16> to vector<8x128xbf16>
    %cst_268 = arith.constant 5.000000e-01 : bf16
    %343 = vector.broadcast %cst_268 : bf16 to vector<8x128xbf16>
    %344 = arith.mulf %342, %343 : vector<8x128xbf16>
    %345 = arith.extf %344 : vector<8x128xbf16> to vector<8x128xf32>
    %346 = arith.subf %340, %345 : vector<8x128xf32>
    %cst_269 = arith.constant 5.000000e-01 : f32
    %347 = vector.broadcast %cst_269 : f32 to vector<8x128xf32>
    %348 = arith.cmpf ogt, %346, %347 : vector<8x128xf32>
    %349 = arith.extui %348 : vector<8x128xi1> to vector<8x128xi32>
    %350 = arith.sitofp %349 : vector<8x128xi32> to vector<8x128xf32>
    %351 = arith.truncf %350 : vector<8x128xf32> to vector<8x128xbf16>
    %c1_270 = arith.constant 1 : index
    %c0_271 = arith.constant 0 : index
    %c0_272 = arith.constant 0 : index
    %352 = vector.load %arg10[%c1_270, %c0_271, %c0_272] : memref<9x8x128xf32, #tpu.memory_space<vmem>>, vector<1x8x128xf32>
    %353 = vector.shape_cast %352 : vector<1x8x128xf32> to vector<8x128xf32>
    %354 = vector.shape_cast %346 : vector<8x128xf32> to vector<1x8x128xf32>
    tpu.vector_store %arg10[%c1_270, %c0_271, %c0_272], %354 {strides = array<i32>} : memref<9x8x128xf32, #tpu.memory_space<vmem>>, vector<1x8x128xf32>,
    %c1_273 = arith.constant 1 : index
    %c0_274 = arith.constant 0 : index
    %c0_275 = arith.constant 0 : index
    %355 = vector.load %arg11[%c1_273, %c0_274, %c0_275] : memref<9x8x128xbf16, #tpu.memory_space<vmem>>, vector<1x8x128xbf16>
    %356 = vector.shape_cast %355 : vector<1x8x128xbf16> to vector<8x128xbf16>
    %357 = vector.shape_cast %351 : vector<8x128xbf16> to vector<1x8x128xbf16>
    tpu.vector_store %arg11[%c1_273, %c0_274, %c0_275], %357 {strides = array<i32>} : memref<9x8x128xbf16, #tpu.memory_space<vmem>>, vector<1x8x128xbf16>,
    %c1_276 = arith.constant 1 : index
    %c0_277 = arith.constant 0 : index
    %c0_278 = arith.constant 0 : index
    %358 = vector.load %arg4[%c1_276, %c0_277, %c0_278] : memref<8x128x128xbf16, #tpu.memory_space<vmem>>, vector<1x128x128xbf16>
    %359 = vector.shape_cast %358 : vector<1x128x128xbf16> to vector<128x128xbf16>
    %cst_279 = arith.constant dense<0.000000e+00> : vector<8x128xf32>
    %360 = tpu.matmul %351, %359, %cst_279 {dimension_numbers = #tpu.dot_dimension_numbers<[1], [0], [0], [1], [0, 0, 1, 1], [], []>} : vector<8x128xbf16>, vector<128x128xbf16>, vector<8x128xf32> -> vector<8x128xf32>
    %c1_280 = arith.constant 1 : index
    %c0_281 = arith.constant 0 : index
    %c0_282 = arith.constant 0 : index
    %361 = vector.load %arg5[%c1_280, %c0_281, %c0_282] : memref<8x1x128xf32, #tpu.memory_space<vmem>>, vector<1x1x128xf32>
    %362 = vector.shape_cast %361 : vector<1x1x128xf32> to vector<1x128xf32>
    %363 = vector.broadcast %362 : vector<1x128xf32> to vector<8x128xf32>
    %364 = arith.addf %360, %363 : vector<8x128xf32>
    %c2_283 = arith.constant 2 : index
    %c0_284 = arith.constant 0 : index
    %c0_285 = arith.constant 0 : index
    %365 = vector.load %arg10[%c2_283, %c0_284, %c0_285] : memref<9x8x128xf32, #tpu.memory_space<vmem>>, vector<1x8x128xf32>
    %366 = vector.shape_cast %365 : vector<1x8x128xf32> to vector<8x128xf32>
    %cst_286 = arith.constant 8.000000e-01 : f32
    %367 = vector.broadcast %cst_286 : f32 to vector<8x128xf32>
    %368 = arith.mulf %367, %366 : vector<8x128xf32>
    %369 = arith.addf %368, %364 : vector<8x128xf32>
    %c2_287 = arith.constant 2 : index
    %c0_288 = arith.constant 0 : index
    %c0_289 = arith.constant 0 : index
    %370 = vector.load %arg11[%c2_287, %c0_288, %c0_289] : memref<9x8x128xbf16, #tpu.memory_space<vmem>>, vector<1x8x128xbf16>
    %371 = vector.shape_cast %370 : vector<1x8x128xbf16> to vector<8x128xbf16>
    %cst_290 = arith.constant 5.000000e-01 : bf16
    %372 = vector.broadcast %cst_290 : bf16 to vector<8x128xbf16>
    %373 = arith.mulf %371, %372 : vector<8x128xbf16>
    %374 = arith.extf %373 : vector<8x128xbf16> to vector<8x128xf32>
    %375 = arith.subf %369, %374 : vector<8x128xf32>
    %cst_291 = arith.constant 5.000000e-01 : f32
    %376 = vector.broadcast %cst_291 : f32 to vector<8x128xf32>
    %377 = arith.cmpf ogt, %375, %376 : vector<8x128xf32>
    %378 = arith.extui %377 : vector<8x128xi1> to vector<8x128xi32>
    %379 = arith.sitofp %378 : vector<8x128xi32> to vector<8x128xf32>
    %380 = arith.truncf %379 : vector<8x128xf32> to vector<8x128xbf16>
    %c2_292 = arith.constant 2 : index
    %c0_293 = arith.constant 0 : index
    %c0_294 = arith.constant 0 : index
    %381 = vector.load %arg10[%c2_292, %c0_293, %c0_294] : memref<9x8x128xf32, #tpu.memory_space<vmem>>, vector<1x8x128xf32>
    %382 = vector.shape_cast %381 : vector<1x8x128xf32> to vector<8x128xf32>
    %383 = vector.shape_cast %375 : vector<8x128xf32> to vector<1x8x128xf32>
    tpu.vector_store %arg10[%c2_292, %c0_293, %c0_294], %383 {strides = array<i32>} : memref<9x8x128xf32, #tpu.memory_space<vmem>>, vector<1x8x128xf32>,
    %c2_295 = arith.constant 2 : index
    %c0_296 = arith.constant 0 : index
    %c0_297 = arith.constant 0 : index
    %384 = vector.load %arg11[%c2_295, %c0_296, %c0_297] : memref<9x8x128xbf16, #tpu.memory_space<vmem>>, vector<1x8x128xbf16>
    %385 = vector.shape_cast %384 : vector<1x8x128xbf16> to vector<8x128xbf16>
    %386 = vector.shape_cast %380 : vector<8x128xbf16> to vector<1x8x128xbf16>
    tpu.vector_store %arg11[%c2_295, %c0_296, %c0_297], %386 {strides = array<i32>} : memref<9x8x128xbf16, #tpu.memory_space<vmem>>, vector<1x8x128xbf16>,
    %c2_298 = arith.constant 2 : index
    %c0_299 = arith.constant 0 : index
    %c0_300 = arith.constant 0 : index
    %387 = vector.load %arg4[%c2_298, %c0_299, %c0_300] : memref<8x128x128xbf16, #tpu.memory_space<vmem>>, vector<1x128x128xbf16>
    %388 = vector.shape_cast %387 : vector<1x128x128xbf16> to vector<128x128xbf16>
    %cst_301 = arith.constant dense<0.000000e+00> : vector<8x128xf32>
    %389 = tpu.matmul %380, %388, %cst_301 {dimension_numbers = #tpu.dot_dimension_numbers<[1], [0], [0], [1], [0, 0, 1, 1], [], []>} : vector<8x128xbf16>, vector<128x128xbf16>, vector<8x128xf32> -> vector<8x128xf32>
    %c2_302 = arith.constant 2 : index
    %c0_303 = arith.constant 0 : index
    %c0_304 = arith.constant 0 : index
    %390 = vector.load %arg5[%c2_302, %c0_303, %c0_304] : memref<8x1x128xf32, #tpu.memory_space<vmem>>, vector<1x1x128xf32>
    %391 = vector.shape_cast %390 : vector<1x1x128xf32> to vector<1x128xf32>
    %392 = vector.broadcast %391 : vector<1x128xf32> to vector<8x128xf32>
    %393 = arith.addf %389, %392 : vector<8x128xf32>
    %c3_305 = arith.constant 3 : index
    %c0_306 = arith.constant 0 : index
    %c0_307 = arith.constant 0 : index
    %394 = vector.load %arg10[%c3_305, %c0_306, %c0_307] : memref<9x8x128xf32, #tpu.memory_space<vmem>>, vector<1x8x128xf32>
    %395 = vector.shape_cast %394 : vector<1x8x128xf32> to vector<8x128xf32>
    %cst_308 = arith.constant 8.000000e-01 : f32
    %396 = vector.broadcast %cst_308 : f32 to vector<8x128xf32>
    %397 = arith.mulf %396, %395 : vector<8x128xf32>
    %398 = arith.addf %397, %393 : vector<8x128xf32>
    %c3_309 = arith.constant 3 : index
    %c0_310 = arith.constant 0 : index
    %c0_311 = arith.constant 0 : index
    %399 = vector.load %arg11[%c3_309, %c0_310, %c0_311] : memref<9x8x128xbf16, #tpu.memory_space<vmem>>, vector<1x8x128xbf16>
    %400 = vector.shape_cast %399 : vector<1x8x128xbf16> to vector<8x128xbf16>
    %cst_312 = arith.constant 5.000000e-01 : bf16
    %401 = vector.broadcast %cst_312 : bf16 to vector<8x128xbf16>
    %402 = arith.mulf %400, %401 : vector<8x128xbf16>
    %403 = arith.extf %402 : vector<8x128xbf16> to vector<8x128xf32>
    %404 = arith.subf %398, %403 : vector<8x128xf32>
    %cst_313 = arith.constant 5.000000e-01 : f32
    %405 = vector.broadcast %cst_313 : f32 to vector<8x128xf32>
    %406 = arith.cmpf ogt, %404, %405 : vector<8x128xf32>
    %407 = arith.extui %406 : vector<8x128xi1> to vector<8x128xi32>
    %408 = arith.sitofp %407 : vector<8x128xi32> to vector<8x128xf32>
    %409 = arith.truncf %408 : vector<8x128xf32> to vector<8x128xbf16>
    %c3_314 = arith.constant 3 : index
    %c0_315 = arith.constant 0 : index
    %c0_316 = arith.constant 0 : index
    %410 = vector.load %arg10[%c3_314, %c0_315, %c0_316] : memref<9x8x128xf32, #tpu.memory_space<vmem>>, vector<1x8x128xf32>
    %411 = vector.shape_cast %410 : vector<1x8x128xf32> to vector<8x128xf32>
    %412 = vector.shape_cast %404 : vector<8x128xf32> to vector<1x8x128xf32>
    tpu.vector_store %arg10[%c3_314, %c0_315, %c0_316], %412 {strides = array<i32>} : memref<9x8x128xf32, #tpu.memory_space<vmem>>, vector<1x8x128xf32>,
    %c3_317 = arith.constant 3 : index
    %c0_318 = arith.constant 0 : index
    %c0_319 = arith.constant 0 : index
    %413 = vector.load %arg11[%c3_317, %c0_318, %c0_319] : memref<9x8x128xbf16, #tpu.memory_space<vmem>>, vector<1x8x128xbf16>
    %414 = vector.shape_cast %413 : vector<1x8x128xbf16> to vector<8x128xbf16>
    %415 = vector.shape_cast %409 : vector<8x128xbf16> to vector<1x8x128xbf16>
    tpu.vector_store %arg11[%c3_317, %c0_318, %c0_319], %415 {strides = array<i32>} : memref<9x8x128xbf16, #tpu.memory_space<vmem>>, vector<1x8x128xbf16>,
    %c3_320 = arith.constant 3 : index
    %c0_321 = arith.constant 0 : index
    %c0_322 = arith.constant 0 : index
    %416 = vector.load %arg4[%c3_320, %c0_321, %c0_322] : memref<8x128x128xbf16, #tpu.memory_space<vmem>>, vector<1x128x128xbf16>
    %417 = vector.shape_cast %416 : vector<1x128x128xbf16> to vector<128x128xbf16>
    %cst_323 = arith.constant dense<0.000000e+00> : vector<8x128xf32>
    %418 = tpu.matmul %409, %417, %cst_323 {dimension_numbers = #tpu.dot_dimension_numbers<[1], [0], [0], [1], [0, 0, 1, 1], [], []>} : vector<8x128xbf16>, vector<128x128xbf16>, vector<8x128xf32> -> vector<8x128xf32>
    %c3_324 = arith.constant 3 : index
    %c0_325 = arith.constant 0 : index
    %c0_326 = arith.constant 0 : index
    %419 = vector.load %arg5[%c3_324, %c0_325, %c0_326] : memref<8x1x128xf32, #tpu.memory_space<vmem>>, vector<1x1x128xf32>
    %420 = vector.shape_cast %419 : vector<1x1x128xf32> to vector<1x128xf32>
    %421 = vector.broadcast %420 : vector<1x128xf32> to vector<8x128xf32>
    %422 = arith.addf %418, %421 : vector<8x128xf32>
    %c4_327 = arith.constant 4 : index
    %c0_328 = arith.constant 0 : index
    %c0_329 = arith.constant 0 : index
    %423 = vector.load %arg10[%c4_327, %c0_328, %c0_329] : memref<9x8x128xf32, #tpu.memory_space<vmem>>, vector<1x8x128xf32>
    %424 = vector.shape_cast %423 : vector<1x8x128xf32> to vector<8x128xf32>
    %cst_330 = arith.constant 8.000000e-01 : f32
    %425 = vector.broadcast %cst_330 : f32 to vector<8x128xf32>
    %426 = arith.mulf %425, %424 : vector<8x128xf32>
    %427 = arith.addf %426, %422 : vector<8x128xf32>
    %c4_331 = arith.constant 4 : index
    %c0_332 = arith.constant 0 : index
    %c0_333 = arith.constant 0 : index
    %428 = vector.load %arg11[%c4_331, %c0_332, %c0_333] : memref<9x8x128xbf16, #tpu.memory_space<vmem>>, vector<1x8x128xbf16>
    %429 = vector.shape_cast %428 : vector<1x8x128xbf16> to vector<8x128xbf16>
    %cst_334 = arith.constant 5.000000e-01 : bf16
    %430 = vector.broadcast %cst_334 : bf16 to vector<8x128xbf16>
    %431 = arith.mulf %429, %430 : vector<8x128xbf16>
    %432 = arith.extf %431 : vector<8x128xbf16> to vector<8x128xf32>
    %433 = arith.subf %427, %432 : vector<8x128xf32>
    %cst_335 = arith.constant 5.000000e-01 : f32
    %434 = vector.broadcast %cst_335 : f32 to vector<8x128xf32>
    %435 = arith.cmpf ogt, %433, %434 : vector<8x128xf32>
    %436 = arith.extui %435 : vector<8x128xi1> to vector<8x128xi32>
    %437 = arith.sitofp %436 : vector<8x128xi32> to vector<8x128xf32>
    %438 = arith.truncf %437 : vector<8x128xf32> to vector<8x128xbf16>
    %c4_336 = arith.constant 4 : index
    %c0_337 = arith.constant 0 : index
    %c0_338 = arith.constant 0 : index
    %439 = vector.load %arg10[%c4_336, %c0_337, %c0_338] : memref<9x8x128xf32, #tpu.memory_space<vmem>>, vector<1x8x128xf32>
    %440 = vector.shape_cast %439 : vector<1x8x128xf32> to vector<8x128xf32>
    %441 = vector.shape_cast %433 : vector<8x128xf32> to vector<1x8x128xf32>
    tpu.vector_store %arg10[%c4_336, %c0_337, %c0_338], %441 {strides = array<i32>} : memref<9x8x128xf32, #tpu.memory_space<vmem>>, vector<1x8x128xf32>,
    %c4_339 = arith.constant 4 : index
    %c0_340 = arith.constant 0 : index
    %c0_341 = arith.constant 0 : index
    %442 = vector.load %arg11[%c4_339, %c0_340, %c0_341] : memref<9x8x128xbf16, #tpu.memory_space<vmem>>, vector<1x8x128xbf16>
    %443 = vector.shape_cast %442 : vector<1x8x128xbf16> to vector<8x128xbf16>
    %444 = vector.shape_cast %438 : vector<8x128xbf16> to vector<1x8x128xbf16>
    tpu.vector_store %arg11[%c4_339, %c0_340, %c0_341], %444 {strides = array<i32>} : memref<9x8x128xbf16, #tpu.memory_space<vmem>>, vector<1x8x128xbf16>,
    %c4_342 = arith.constant 4 : index
    %c0_343 = arith.constant 0 : index
    %c0_344 = arith.constant 0 : index
    %445 = vector.load %arg4[%c4_342, %c0_343, %c0_344] : memref<8x128x128xbf16, #tpu.memory_space<vmem>>, vector<1x128x128xbf16>
    %446 = vector.shape_cast %445 : vector<1x128x128xbf16> to vector<128x128xbf16>
    %cst_345 = arith.constant dense<0.000000e+00> : vector<8x128xf32>
    %447 = tpu.matmul %438, %446, %cst_345 {dimension_numbers = #tpu.dot_dimension_numbers<[1], [0], [0], [1], [0, 0, 1, 1], [], []>} : vector<8x128xbf16>, vector<128x128xbf16>, vector<8x128xf32> -> vector<8x128xf32>
    %c4_346 = arith.constant 4 : index
    %c0_347 = arith.constant 0 : index
    %c0_348 = arith.constant 0 : index
    %448 = vector.load %arg5[%c4_346, %c0_347, %c0_348] : memref<8x1x128xf32, #tpu.memory_space<vmem>>, vector<1x1x128xf32>
    %449 = vector.shape_cast %448 : vector<1x1x128xf32> to vector<1x128xf32>
    %450 = vector.broadcast %449 : vector<1x128xf32> to vector<8x128xf32>
    %451 = arith.addf %447, %450 : vector<8x128xf32>
    %c5_349 = arith.constant 5 : index
    %c0_350 = arith.constant 0 : index
    %c0_351 = arith.constant 0 : index
    %452 = vector.load %arg10[%c5_349, %c0_350, %c0_351] : memref<9x8x128xf32, #tpu.memory_space<vmem>>, vector<1x8x128xf32>
    %453 = vector.shape_cast %452 : vector<1x8x128xf32> to vector<8x128xf32>
    %cst_352 = arith.constant 8.000000e-01 : f32
    %454 = vector.broadcast %cst_352 : f32 to vector<8x128xf32>
    %455 = arith.mulf %454, %453 : vector<8x128xf32>
    %456 = arith.addf %455, %451 : vector<8x128xf32>
    %c5_353 = arith.constant 5 : index
    %c0_354 = arith.constant 0 : index
    %c0_355 = arith.constant 0 : index
    %457 = vector.load %arg11[%c5_353, %c0_354, %c0_355] : memref<9x8x128xbf16, #tpu.memory_space<vmem>>, vector<1x8x128xbf16>
    %458 = vector.shape_cast %457 : vector<1x8x128xbf16> to vector<8x128xbf16>
    %cst_356 = arith.constant 5.000000e-01 : bf16
    %459 = vector.broadcast %cst_356 : bf16 to vector<8x128xbf16>
    %460 = arith.mulf %458, %459 : vector<8x128xbf16>
    %461 = arith.extf %460 : vector<8x128xbf16> to vector<8x128xf32>
    %462 = arith.subf %456, %461 : vector<8x128xf32>
    %cst_357 = arith.constant 5.000000e-01 : f32
    %463 = vector.broadcast %cst_357 : f32 to vector<8x128xf32>
    %464 = arith.cmpf ogt, %462, %463 : vector<8x128xf32>
    %465 = arith.extui %464 : vector<8x128xi1> to vector<8x128xi32>
    %466 = arith.sitofp %465 : vector<8x128xi32> to vector<8x128xf32>
    %467 = arith.truncf %466 : vector<8x128xf32> to vector<8x128xbf16>
    %c5_358 = arith.constant 5 : index
    %c0_359 = arith.constant 0 : index
    %c0_360 = arith.constant 0 : index
    %468 = vector.load %arg10[%c5_358, %c0_359, %c0_360] : memref<9x8x128xf32, #tpu.memory_space<vmem>>, vector<1x8x128xf32>
    %469 = vector.shape_cast %468 : vector<1x8x128xf32> to vector<8x128xf32>
    %470 = vector.shape_cast %462 : vector<8x128xf32> to vector<1x8x128xf32>
    tpu.vector_store %arg10[%c5_358, %c0_359, %c0_360], %470 {strides = array<i32>} : memref<9x8x128xf32, #tpu.memory_space<vmem>>, vector<1x8x128xf32>,
    %c5_361 = arith.constant 5 : index
    %c0_362 = arith.constant 0 : index
    %c0_363 = arith.constant 0 : index
    %471 = vector.load %arg11[%c5_361, %c0_362, %c0_363] : memref<9x8x128xbf16, #tpu.memory_space<vmem>>, vector<1x8x128xbf16>
    %472 = vector.shape_cast %471 : vector<1x8x128xbf16> to vector<8x128xbf16>
    %473 = vector.shape_cast %467 : vector<8x128xbf16> to vector<1x8x128xbf16>
    tpu.vector_store %arg11[%c5_361, %c0_362, %c0_363], %473 {strides = array<i32>} : memref<9x8x128xbf16, #tpu.memory_space<vmem>>, vector<1x8x128xbf16>,
    %c5_364 = arith.constant 5 : index
    %c0_365 = arith.constant 0 : index
    %c0_366 = arith.constant 0 : index
    %474 = vector.load %arg4[%c5_364, %c0_365, %c0_366] : memref<8x128x128xbf16, #tpu.memory_space<vmem>>, vector<1x128x128xbf16>
    %475 = vector.shape_cast %474 : vector<1x128x128xbf16> to vector<128x128xbf16>
    %cst_367 = arith.constant dense<0.000000e+00> : vector<8x128xf32>
    %476 = tpu.matmul %467, %475, %cst_367 {dimension_numbers = #tpu.dot_dimension_numbers<[1], [0], [0], [1], [0, 0, 1, 1], [], []>} : vector<8x128xbf16>, vector<128x128xbf16>, vector<8x128xf32> -> vector<8x128xf32>
    %c5_368 = arith.constant 5 : index
    %c0_369 = arith.constant 0 : index
    %c0_370 = arith.constant 0 : index
    %477 = vector.load %arg5[%c5_368, %c0_369, %c0_370] : memref<8x1x128xf32, #tpu.memory_space<vmem>>, vector<1x1x128xf32>
    %478 = vector.shape_cast %477 : vector<1x1x128xf32> to vector<1x128xf32>
    %479 = vector.broadcast %478 : vector<1x128xf32> to vector<8x128xf32>
    %480 = arith.addf %476, %479 : vector<8x128xf32>
    %c6_371 = arith.constant 6 : index
    %c0_372 = arith.constant 0 : index
    %c0_373 = arith.constant 0 : index
    %481 = vector.load %arg10[%c6_371, %c0_372, %c0_373] : memref<9x8x128xf32, #tpu.memory_space<vmem>>, vector<1x8x128xf32>
    %482 = vector.shape_cast %481 : vector<1x8x128xf32> to vector<8x128xf32>
    %cst_374 = arith.constant 8.000000e-01 : f32
    %483 = vector.broadcast %cst_374 : f32 to vector<8x128xf32>
    %484 = arith.mulf %483, %482 : vector<8x128xf32>
    %485 = arith.addf %484, %480 : vector<8x128xf32>
    %c6_375 = arith.constant 6 : index
    %c0_376 = arith.constant 0 : index
    %c0_377 = arith.constant 0 : index
    %486 = vector.load %arg11[%c6_375, %c0_376, %c0_377] : memref<9x8x128xbf16, #tpu.memory_space<vmem>>, vector<1x8x128xbf16>
    %487 = vector.shape_cast %486 : vector<1x8x128xbf16> to vector<8x128xbf16>
    %cst_378 = arith.constant 5.000000e-01 : bf16
    %488 = vector.broadcast %cst_378 : bf16 to vector<8x128xbf16>
    %489 = arith.mulf %487, %488 : vector<8x128xbf16>
    %490 = arith.extf %489 : vector<8x128xbf16> to vector<8x128xf32>
    %491 = arith.subf %485, %490 : vector<8x128xf32>
    %cst_379 = arith.constant 5.000000e-01 : f32
    %492 = vector.broadcast %cst_379 : f32 to vector<8x128xf32>
    %493 = arith.cmpf ogt, %491, %492 : vector<8x128xf32>
    %494 = arith.extui %493 : vector<8x128xi1> to vector<8x128xi32>
    %495 = arith.sitofp %494 : vector<8x128xi32> to vector<8x128xf32>
    %496 = arith.truncf %495 : vector<8x128xf32> to vector<8x128xbf16>
    %c6_380 = arith.constant 6 : index
    %c0_381 = arith.constant 0 : index
    %c0_382 = arith.constant 0 : index
    %497 = vector.load %arg10[%c6_380, %c0_381, %c0_382] : memref<9x8x128xf32, #tpu.memory_space<vmem>>, vector<1x8x128xf32>
    %498 = vector.shape_cast %497 : vector<1x8x128xf32> to vector<8x128xf32>
    %499 = vector.shape_cast %491 : vector<8x128xf32> to vector<1x8x128xf32>
    tpu.vector_store %arg10[%c6_380, %c0_381, %c0_382], %499 {strides = array<i32>} : memref<9x8x128xf32, #tpu.memory_space<vmem>>, vector<1x8x128xf32>,
    %c6_383 = arith.constant 6 : index
    %c0_384 = arith.constant 0 : index
    %c0_385 = arith.constant 0 : index
    %500 = vector.load %arg11[%c6_383, %c0_384, %c0_385] : memref<9x8x128xbf16, #tpu.memory_space<vmem>>, vector<1x8x128xbf16>
    %501 = vector.shape_cast %500 : vector<1x8x128xbf16> to vector<8x128xbf16>
    %502 = vector.shape_cast %496 : vector<8x128xbf16> to vector<1x8x128xbf16>
    tpu.vector_store %arg11[%c6_383, %c0_384, %c0_385], %502 {strides = array<i32>} : memref<9x8x128xbf16, #tpu.memory_space<vmem>>, vector<1x8x128xbf16>,
    %c6_386 = arith.constant 6 : index
    %c0_387 = arith.constant 0 : index
    %c0_388 = arith.constant 0 : index
    %503 = vector.load %arg4[%c6_386, %c0_387, %c0_388] : memref<8x128x128xbf16, #tpu.memory_space<vmem>>, vector<1x128x128xbf16>
    %504 = vector.shape_cast %503 : vector<1x128x128xbf16> to vector<128x128xbf16>
    %cst_389 = arith.constant dense<0.000000e+00> : vector<8x128xf32>
    %505 = tpu.matmul %496, %504, %cst_389 {dimension_numbers = #tpu.dot_dimension_numbers<[1], [0], [0], [1], [0, 0, 1, 1], [], []>} : vector<8x128xbf16>, vector<128x128xbf16>, vector<8x128xf32> -> vector<8x128xf32>
    %c6_390 = arith.constant 6 : index
    %c0_391 = arith.constant 0 : index
    %c0_392 = arith.constant 0 : index
    %506 = vector.load %arg5[%c6_390, %c0_391, %c0_392] : memref<8x1x128xf32, #tpu.memory_space<vmem>>, vector<1x1x128xf32>
    %507 = vector.shape_cast %506 : vector<1x1x128xf32> to vector<1x128xf32>
    %508 = vector.broadcast %507 : vector<1x128xf32> to vector<8x128xf32>
    %509 = arith.addf %505, %508 : vector<8x128xf32>
    %c7_393 = arith.constant 7 : index
    %c0_394 = arith.constant 0 : index
    %c0_395 = arith.constant 0 : index
    %510 = vector.load %arg10[%c7_393, %c0_394, %c0_395] : memref<9x8x128xf32, #tpu.memory_space<vmem>>, vector<1x8x128xf32>
    %511 = vector.shape_cast %510 : vector<1x8x128xf32> to vector<8x128xf32>
    %cst_396 = arith.constant 8.000000e-01 : f32
    %512 = vector.broadcast %cst_396 : f32 to vector<8x128xf32>
    %513 = arith.mulf %512, %511 : vector<8x128xf32>
    %514 = arith.addf %513, %509 : vector<8x128xf32>
    %c7_397 = arith.constant 7 : index
    %c0_398 = arith.constant 0 : index
    %c0_399 = arith.constant 0 : index
    %515 = vector.load %arg11[%c7_397, %c0_398, %c0_399] : memref<9x8x128xbf16, #tpu.memory_space<vmem>>, vector<1x8x128xbf16>
    %516 = vector.shape_cast %515 : vector<1x8x128xbf16> to vector<8x128xbf16>
    %cst_400 = arith.constant 5.000000e-01 : bf16
    %517 = vector.broadcast %cst_400 : bf16 to vector<8x128xbf16>
    %518 = arith.mulf %516, %517 : vector<8x128xbf16>
    %519 = arith.extf %518 : vector<8x128xbf16> to vector<8x128xf32>
    %520 = arith.subf %514, %519 : vector<8x128xf32>
    %cst_401 = arith.constant 5.000000e-01 : f32
    %521 = vector.broadcast %cst_401 : f32 to vector<8x128xf32>
    %522 = arith.cmpf ogt, %520, %521 : vector<8x128xf32>
    %523 = arith.extui %522 : vector<8x128xi1> to vector<8x128xi32>
    %524 = arith.sitofp %523 : vector<8x128xi32> to vector<8x128xf32>
    %525 = arith.truncf %524 : vector<8x128xf32> to vector<8x128xbf16>
    %c7_402 = arith.constant 7 : index
    %c0_403 = arith.constant 0 : index
    %c0_404 = arith.constant 0 : index
    %526 = vector.load %arg10[%c7_402, %c0_403, %c0_404] : memref<9x8x128xf32, #tpu.memory_space<vmem>>, vector<1x8x128xf32>
    %527 = vector.shape_cast %526 : vector<1x8x128xf32> to vector<8x128xf32>
    %528 = vector.shape_cast %520 : vector<8x128xf32> to vector<1x8x128xf32>
    tpu.vector_store %arg10[%c7_402, %c0_403, %c0_404], %528 {strides = array<i32>} : memref<9x8x128xf32, #tpu.memory_space<vmem>>, vector<1x8x128xf32>,
    %c7_405 = arith.constant 7 : index
    %c0_406 = arith.constant 0 : index
    %c0_407 = arith.constant 0 : index
    %529 = vector.load %arg11[%c7_405, %c0_406, %c0_407] : memref<9x8x128xbf16, #tpu.memory_space<vmem>>, vector<1x8x128xbf16>
    %530 = vector.shape_cast %529 : vector<1x8x128xbf16> to vector<8x128xbf16>
    %531 = vector.shape_cast %525 : vector<8x128xbf16> to vector<1x8x128xbf16>
    tpu.vector_store %arg11[%c7_405, %c0_406, %c0_407], %531 {strides = array<i32>} : memref<9x8x128xbf16, #tpu.memory_space<vmem>>, vector<1x8x128xbf16>,
    %c7_408 = arith.constant 7 : index
    %c0_409 = arith.constant 0 : index
    %c0_410 = arith.constant 0 : index
    %532 = vector.load %arg4[%c7_408, %c0_409, %c0_410] : memref<8x128x128xbf16, #tpu.memory_space<vmem>>, vector<1x128x128xbf16>
    %533 = vector.shape_cast %532 : vector<1x128x128xbf16> to vector<128x128xbf16>
    %cst_411 = arith.constant dense<0.000000e+00> : vector<8x128xf32>
    %534 = tpu.matmul %525, %533, %cst_411 {dimension_numbers = #tpu.dot_dimension_numbers<[1], [0], [0], [1], [0, 0, 1, 1], [], []>} : vector<8x128xbf16>, vector<128x128xbf16>, vector<8x128xf32> -> vector<8x128xf32>
    %c7_412 = arith.constant 7 : index
    %c0_413 = arith.constant 0 : index
    %c0_414 = arith.constant 0 : index
    %535 = vector.load %arg5[%c7_412, %c0_413, %c0_414] : memref<8x1x128xf32, #tpu.memory_space<vmem>>, vector<1x1x128xf32>
    %536 = vector.shape_cast %535 : vector<1x1x128xf32> to vector<1x128xf32>
    %537 = vector.broadcast %536 : vector<1x128xf32> to vector<8x128xf32>
    %538 = arith.addf %534, %537 : vector<8x128xf32>
    %c8_415 = arith.constant 8 : index
    %c0_416 = arith.constant 0 : index
    %c0_417 = arith.constant 0 : index
    %539 = vector.load %arg10[%c8_415, %c0_416, %c0_417] : memref<9x8x128xf32, #tpu.memory_space<vmem>>, vector<1x8x128xf32>
    %540 = vector.shape_cast %539 : vector<1x8x128xf32> to vector<8x128xf32>
    %cst_418 = arith.constant 8.000000e-01 : f32
    %541 = vector.broadcast %cst_418 : f32 to vector<8x128xf32>
    %542 = arith.mulf %541, %540 : vector<8x128xf32>
    %543 = arith.addf %542, %538 : vector<8x128xf32>
    %c8_419 = arith.constant 8 : index
    %c0_420 = arith.constant 0 : index
    %c0_421 = arith.constant 0 : index
    %544 = vector.load %arg11[%c8_419, %c0_420, %c0_421] : memref<9x8x128xbf16, #tpu.memory_space<vmem>>, vector<1x8x128xbf16>
    %545 = vector.shape_cast %544 : vector<1x8x128xbf16> to vector<8x128xbf16>
    %cst_422 = arith.constant 5.000000e-01 : bf16
    %546 = vector.broadcast %cst_422 : bf16 to vector<8x128xbf16>
    %547 = arith.mulf %545, %546 : vector<8x128xbf16>
    %548 = arith.extf %547 : vector<8x128xbf16> to vector<8x128xf32>
    %549 = arith.subf %543, %548 : vector<8x128xf32>
    %cst_423 = arith.constant 5.000000e-01 : f32
    %550 = vector.broadcast %cst_423 : f32 to vector<8x128xf32>
    %551 = arith.cmpf ogt, %549, %550 : vector<8x128xf32>
    %552 = arith.extui %551 : vector<8x128xi1> to vector<8x128xi32>
    %553 = arith.sitofp %552 : vector<8x128xi32> to vector<8x128xf32>
    %554 = arith.truncf %553 : vector<8x128xf32> to vector<8x128xbf16>
    %c8_424 = arith.constant 8 : index
    %c0_425 = arith.constant 0 : index
    %c0_426 = arith.constant 0 : index
    %555 = vector.load %arg10[%c8_424, %c0_425, %c0_426] : memref<9x8x128xf32, #tpu.memory_space<vmem>>, vector<1x8x128xf32>
    %556 = vector.shape_cast %555 : vector<1x8x128xf32> to vector<8x128xf32>
    %557 = vector.shape_cast %549 : vector<8x128xf32> to vector<1x8x128xf32>
    tpu.vector_store %arg10[%c8_424, %c0_425, %c0_426], %557 {strides = array<i32>} : memref<9x8x128xf32, #tpu.memory_space<vmem>>, vector<1x8x128xf32>,
    %c8_427 = arith.constant 8 : index
    %c0_428 = arith.constant 0 : index
    %c0_429 = arith.constant 0 : index
    %558 = vector.load %arg11[%c8_427, %c0_428, %c0_429] : memref<9x8x128xbf16, #tpu.memory_space<vmem>>, vector<1x8x128xbf16>
    %559 = vector.shape_cast %558 : vector<1x8x128xbf16> to vector<8x128xbf16>
    %560 = vector.shape_cast %554 : vector<8x128xbf16> to vector<1x8x128xbf16>
    tpu.vector_store %arg11[%c8_427, %c0_428, %c0_429], %560 {strides = array<i32>} : memref<9x8x128xbf16, #tpu.memory_space<vmem>>, vector<1x8x128xbf16>,
    %c0_430 = arith.constant 0 : index
    %c0_431 = arith.constant 0 : index
    %561 = vector.load %arg6[%c0_430, %c0_431] : memref<128x128xbf16, #tpu.memory_space<vmem>>, vector<128x128xbf16>
    %cst_432 = arith.constant dense<0.000000e+00> : vector<8x128xf32>
    %562 = tpu.matmul %554, %561, %cst_432 {dimension_numbers = #tpu.dot_dimension_numbers<[1], [0], [0], [1], [0, 0, 1, 1], [], []>} : vector<8x128xbf16>, vector<128x128xbf16>, vector<8x128xf32> -> vector<8x128xf32>
    %c0_433 = arith.constant 0 : index
    %c0_434 = arith.constant 0 : index
    %563 = vector.load %arg7[%c0_433, %c0_434] : memref<1x128xf32, #tpu.memory_space<vmem>>, vector<1x128xf32>
    %564 = vector.broadcast %563 : vector<1x128xf32> to vector<8x128xf32>
    %565 = arith.addf %562, %564 : vector<8x128xf32>
    %c0_435 = arith.constant 0 : index
    %c0_436 = arith.constant 0 : index
    %566 = vector.load %arg12[%c0_435, %c0_436] : memref<8x128xf32, #tpu.memory_space<vmem>>, vector<8x128xf32>
    %cst_437 = arith.constant 8.000000e-01 : f32
    %567 = vector.broadcast %cst_437 : f32 to vector<8x128xf32>
    %568 = arith.mulf %567, %566 : vector<8x128xf32>
    %569 = arith.addf %568, %565 : vector<8x128xf32>
    %c0_438 = arith.constant 0 : index
    %c0_439 = arith.constant 0 : index
    %570 = vector.load %arg13[%c0_438, %c0_439] : memref<8x128xf32, #tpu.memory_space<vmem>>, vector<8x128xf32>
    %cst_440 = arith.constant 5.000000e-01 : f32
    %571 = vector.broadcast %cst_440 : f32 to vector<8x128xf32>
    %572 = arith.mulf %570, %571 : vector<8x128xf32>
    %573 = arith.subf %569, %572 : vector<8x128xf32>
    %cst_441 = arith.constant 5.000000e-01 : f32
    %574 = vector.broadcast %cst_441 : f32 to vector<8x128xf32>
    %575 = arith.cmpf ogt, %573, %574 : vector<8x128xf32>
    %576 = arith.extui %575 : vector<8x128xi1> to vector<8x128xi32>
    %577 = arith.sitofp %576 : vector<8x128xi32> to vector<8x128xf32>
    %c0_442 = arith.constant 0 : index
    %c0_443 = arith.constant 0 : index
    %578 = vector.load %arg12[%c0_442, %c0_443] : memref<8x128xf32, #tpu.memory_space<vmem>>, vector<8x128xf32>
    tpu.vector_store %arg12[%c0_442, %c0_443], %573 {strides = array<i32>} : memref<8x128xf32, #tpu.memory_space<vmem>>, vector<8x128xf32>,
    %c0_444 = arith.constant 0 : index
    %c0_445 = arith.constant 0 : index
    %579 = vector.load %arg13[%c0_444, %c0_445] : memref<8x128xf32, #tpu.memory_space<vmem>>, vector<8x128xf32>
    tpu.vector_store %arg13[%c0_444, %c0_445], %577 {strides = array<i32>} : memref<8x128xf32, #tpu.memory_space<vmem>>, vector<8x128xf32>,
    %c0_446 = arith.constant 0 : index
    %c0_447 = arith.constant 0 : index
    %580 = vector.load %arg8[%c0_446, %c0_447] : memref<8x128xf32, #tpu.memory_space<vmem>>, vector<8x128xf32>
    %581 = arith.addf %580, %577 : vector<8x128xf32>
    %c0_448 = arith.constant 0 : index
    %c0_449 = arith.constant 0 : index
    %582 = vector.load %arg8[%c0_448, %c0_449] : memref<8x128xf32, #tpu.memory_space<vmem>>, vector<8x128xf32>
    tpu.vector_store %arg8[%c0_448, %c0_449], %581 {strides = array<i32>} : memref<8x128xf32, #tpu.memory_space<vmem>>, vector<8x128xf32>,
    %cst_450 = arith.constant dense<0.000000e+00> : vector<8xf32>
    %583 = vector.multi_reduction <add>, %577, %cst_450 [1] : vector<8x128xf32> to vector<8xf32>
    %584 = vector.shape_cast %583 : vector<8xf32> to vector<8x1xf32>
    %c17_i32 = arith.constant 17 : i32
    %585 = vector.broadcast %c17_i32 : i32 to vector<8x128xi32>
    %586 = arith.cmpi eq, %19, %585 : vector<8x128xi32>
    %c0_451 = arith.constant 0 : index
    %c0_452 = arith.constant 0 : index
    %587 = vector.load %arg14[%c0_451, %c0_452] : memref<8x128xf32, #tpu.memory_space<vmem>>, vector<8x128xf32>
    %588 = vector.shape_cast %584 : vector<8x1xf32> to vector<8x1xf32>
    %589 = vector.broadcast %588 : vector<8x1xf32> to vector<8x128xf32>
    %590 = arith.select %586, %589, %587 : vector<8x128xi1>, vector<8x128xf32>
    %c0_453 = arith.constant 0 : index
    %c0_454 = arith.constant 0 : index
    %591 = vector.load %arg14[%c0_453, %c0_454] : memref<8x128xf32, #tpu.memory_space<vmem>>, vector<8x128xf32>
    tpu.vector_store %arg14[%c0_453, %c0_454], %590 {strides = array<i32>} : memref<8x128xf32, #tpu.memory_space<vmem>>, vector<8x128xf32>,
    %c0_455 = arith.constant 0 : index
    %c0_456 = arith.constant 0 : index
    %592 = vector.load %arg9[%c0_455, %c0_456] : memref<8x128xf32, #tpu.memory_space<vmem>>, vector<8x128xf32>
    %c0_457 = arith.constant 0 : index
    %c0_458 = arith.constant 0 : index
    %c0_459 = arith.constant 0 : index
    %593 = vector.load %arg10[%c0_457, %c0_458, %c0_459] : memref<9x8x128xf32, #tpu.memory_space<vmem>>, vector<1x8x128xf32>
    %594 = vector.shape_cast %593 : vector<1x8x128xf32> to vector<8x128xf32>
    %cst_460 = arith.constant 8.000000e-01 : f32
    %595 = vector.broadcast %cst_460 : f32 to vector<8x128xf32>
    %596 = arith.mulf %595, %594 : vector<8x128xf32>
    %597 = arith.addf %596, %592 : vector<8x128xf32>
    %c0_461 = arith.constant 0 : index
    %c0_462 = arith.constant 0 : index
    %c0_463 = arith.constant 0 : index
    %598 = vector.load %arg11[%c0_461, %c0_462, %c0_463] : memref<9x8x128xbf16, #tpu.memory_space<vmem>>, vector<1x8x128xbf16>
    %599 = vector.shape_cast %598 : vector<1x8x128xbf16> to vector<8x128xbf16>
    %cst_464 = arith.constant 5.000000e-01 : bf16
    %600 = vector.broadcast %cst_464 : bf16 to vector<8x128xbf16>
    %601 = arith.mulf %599, %600 : vector<8x128xbf16>
    %602 = arith.extf %601 : vector<8x128xbf16> to vector<8x128xf32>
    %603 = arith.subf %597, %602 : vector<8x128xf32>
    %cst_465 = arith.constant 5.000000e-01 : f32
    %604 = vector.broadcast %cst_465 : f32 to vector<8x128xf32>
    %605 = arith.cmpf ogt, %603, %604 : vector<8x128xf32>
    %606 = arith.extui %605 : vector<8x128xi1> to vector<8x128xi32>
    %607 = arith.sitofp %606 : vector<8x128xi32> to vector<8x128xf32>
    %608 = arith.truncf %607 : vector<8x128xf32> to vector<8x128xbf16>
    %c0_466 = arith.constant 0 : index
    %c0_467 = arith.constant 0 : index
    %c0_468 = arith.constant 0 : index
    %609 = vector.load %arg10[%c0_466, %c0_467, %c0_468] : memref<9x8x128xf32, #tpu.memory_space<vmem>>, vector<1x8x128xf32>
    %610 = vector.shape_cast %609 : vector<1x8x128xf32> to vector<8x128xf32>
    %611 = vector.shape_cast %603 : vector<8x128xf32> to vector<1x8x128xf32>
    tpu.vector_store %arg10[%c0_466, %c0_467, %c0_468], %611 {strides = array<i32>} : memref<9x8x128xf32, #tpu.memory_space<vmem>>, vector<1x8x128xf32>,
    %c0_469 = arith.constant 0 : index
    %c0_470 = arith.constant 0 : index
    %c0_471 = arith.constant 0 : index
    %612 = vector.load %arg11[%c0_469, %c0_470, %c0_471] : memref<9x8x128xbf16, #tpu.memory_space<vmem>>, vector<1x8x128xbf16>
    %613 = vector.shape_cast %612 : vector<1x8x128xbf16> to vector<8x128xbf16>
    %614 = vector.shape_cast %608 : vector<8x128xbf16> to vector<1x8x128xbf16>
    tpu.vector_store %arg11[%c0_469, %c0_470, %c0_471], %614 {strides = array<i32>} : memref<9x8x128xbf16, #tpu.memory_space<vmem>>, vector<1x8x128xbf16>,
    %c0_472 = arith.constant 0 : index
    %c0_473 = arith.constant 0 : index
    %c0_474 = arith.constant 0 : index
    %615 = vector.load %arg4[%c0_472, %c0_473, %c0_474] : memref<8x128x128xbf16, #tpu.memory_space<vmem>>, vector<1x128x128xbf16>
    %616 = vector.shape_cast %615 : vector<1x128x128xbf16> to vector<128x128xbf16>
    %cst_475 = arith.constant dense<0.000000e+00> : vector<8x128xf32>
    %617 = tpu.matmul %608, %616, %cst_475 {dimension_numbers = #tpu.dot_dimension_numbers<[1], [0], [0], [1], [0, 0, 1, 1], [], []>} : vector<8x128xbf16>, vector<128x128xbf16>, vector<8x128xf32> -> vector<8x128xf32>
    %c0_476 = arith.constant 0 : index
    %c0_477 = arith.constant 0 : index
    %c0_478 = arith.constant 0 : index
    %618 = vector.load %arg5[%c0_476, %c0_477, %c0_478] : memref<8x1x128xf32, #tpu.memory_space<vmem>>, vector<1x1x128xf32>
    %619 = vector.shape_cast %618 : vector<1x1x128xf32> to vector<1x128xf32>
    %620 = vector.broadcast %619 : vector<1x128xf32> to vector<8x128xf32>
    %621 = arith.addf %617, %620 : vector<8x128xf32>
    %c1_479 = arith.constant 1 : index
    %c0_480 = arith.constant 0 : index
    %c0_481 = arith.constant 0 : index
    %622 = vector.load %arg10[%c1_479, %c0_480, %c0_481] : memref<9x8x128xf32, #tpu.memory_space<vmem>>, vector<1x8x128xf32>
    %623 = vector.shape_cast %622 : vector<1x8x128xf32> to vector<8x128xf32>
    %cst_482 = arith.constant 8.000000e-01 : f32
    %624 = vector.broadcast %cst_482 : f32 to vector<8x128xf32>
    %625 = arith.mulf %624, %623 : vector<8x128xf32>
    %626 = arith.addf %625, %621 : vector<8x128xf32>
    %c1_483 = arith.constant 1 : index
    %c0_484 = arith.constant 0 : index
    %c0_485 = arith.constant 0 : index
    %627 = vector.load %arg11[%c1_483, %c0_484, %c0_485] : memref<9x8x128xbf16, #tpu.memory_space<vmem>>, vector<1x8x128xbf16>
    %628 = vector.shape_cast %627 : vector<1x8x128xbf16> to vector<8x128xbf16>
    %cst_486 = arith.constant 5.000000e-01 : bf16
    %629 = vector.broadcast %cst_486 : bf16 to vector<8x128xbf16>
    %630 = arith.mulf %628, %629 : vector<8x128xbf16>
    %631 = arith.extf %630 : vector<8x128xbf16> to vector<8x128xf32>
    %632 = arith.subf %626, %631 : vector<8x128xf32>
    %cst_487 = arith.constant 5.000000e-01 : f32
    %633 = vector.broadcast %cst_487 : f32 to vector<8x128xf32>
    %634 = arith.cmpf ogt, %632, %633 : vector<8x128xf32>
    %635 = arith.extui %634 : vector<8x128xi1> to vector<8x128xi32>
    %636 = arith.sitofp %635 : vector<8x128xi32> to vector<8x128xf32>
    %637 = arith.truncf %636 : vector<8x128xf32> to vector<8x128xbf16>
    %c1_488 = arith.constant 1 : index
    %c0_489 = arith.constant 0 : index
    %c0_490 = arith.constant 0 : index
    %638 = vector.load %arg10[%c1_488, %c0_489, %c0_490] : memref<9x8x128xf32, #tpu.memory_space<vmem>>, vector<1x8x128xf32>
    %639 = vector.shape_cast %638 : vector<1x8x128xf32> to vector<8x128xf32>
    %640 = vector.shape_cast %632 : vector<8x128xf32> to vector<1x8x128xf32>
    tpu.vector_store %arg10[%c1_488, %c0_489, %c0_490], %640 {strides = array<i32>} : memref<9x8x128xf32, #tpu.memory_space<vmem>>, vector<1x8x128xf32>,
    %c1_491 = arith.constant 1 : index
    %c0_492 = arith.constant 0 : index
    %c0_493 = arith.constant 0 : index
    %641 = vector.load %arg11[%c1_491, %c0_492, %c0_493] : memref<9x8x128xbf16, #tpu.memory_space<vmem>>, vector<1x8x128xbf16>
    %642 = vector.shape_cast %641 : vector<1x8x128xbf16> to vector<8x128xbf16>
    %643 = vector.shape_cast %637 : vector<8x128xbf16> to vector<1x8x128xbf16>
    tpu.vector_store %arg11[%c1_491, %c0_492, %c0_493], %643 {strides = array<i32>} : memref<9x8x128xbf16, #tpu.memory_space<vmem>>, vector<1x8x128xbf16>,
    %c1_494 = arith.constant 1 : index
    %c0_495 = arith.constant 0 : index
    %c0_496 = arith.constant 0 : index
    %644 = vector.load %arg4[%c1_494, %c0_495, %c0_496] : memref<8x128x128xbf16, #tpu.memory_space<vmem>>, vector<1x128x128xbf16>
    %645 = vector.shape_cast %644 : vector<1x128x128xbf16> to vector<128x128xbf16>
    %cst_497 = arith.constant dense<0.000000e+00> : vector<8x128xf32>
    %646 = tpu.matmul %637, %645, %cst_497 {dimension_numbers = #tpu.dot_dimension_numbers<[1], [0], [0], [1], [0, 0, 1, 1], [], []>} : vector<8x128xbf16>, vector<128x128xbf16>, vector<8x128xf32> -> vector<8x128xf32>
    %c1_498 = arith.constant 1 : index
    %c0_499 = arith.constant 0 : index
    %c0_500 = arith.constant 0 : index
    %647 = vector.load %arg5[%c1_498, %c0_499, %c0_500] : memref<8x1x128xf32, #tpu.memory_space<vmem>>, vector<1x1x128xf32>
    %648 = vector.shape_cast %647 : vector<1x1x128xf32> to vector<1x128xf32>
    %649 = vector.broadcast %648 : vector<1x128xf32> to vector<8x128xf32>
    %650 = arith.addf %646, %649 : vector<8x128xf32>
    %c2_501 = arith.constant 2 : index
    %c0_502 = arith.constant 0 : index
    %c0_503 = arith.constant 0 : index
    %651 = vector.load %arg10[%c2_501, %c0_502, %c0_503] : memref<9x8x128xf32, #tpu.memory_space<vmem>>, vector<1x8x128xf32>
    %652 = vector.shape_cast %651 : vector<1x8x128xf32> to vector<8x128xf32>
    %cst_504 = arith.constant 8.000000e-01 : f32
    %653 = vector.broadcast %cst_504 : f32 to vector<8x128xf32>
    %654 = arith.mulf %653, %652 : vector<8x128xf32>
    %655 = arith.addf %654, %650 : vector<8x128xf32>
    %c2_505 = arith.constant 2 : index
    %c0_506 = arith.constant 0 : index
    %c0_507 = arith.constant 0 : index
    %656 = vector.load %arg11[%c2_505, %c0_506, %c0_507] : memref<9x8x128xbf16, #tpu.memory_space<vmem>>, vector<1x8x128xbf16>
    %657 = vector.shape_cast %656 : vector<1x8x128xbf16> to vector<8x128xbf16>
    %cst_508 = arith.constant 5.000000e-01 : bf16
    %658 = vector.broadcast %cst_508 : bf16 to vector<8x128xbf16>
    %659 = arith.mulf %657, %658 : vector<8x128xbf16>
    %660 = arith.extf %659 : vector<8x128xbf16> to vector<8x128xf32>
    %661 = arith.subf %655, %660 : vector<8x128xf32>
    %cst_509 = arith.constant 5.000000e-01 : f32
    %662 = vector.broadcast %cst_509 : f32 to vector<8x128xf32>
    %663 = arith.cmpf ogt, %661, %662 : vector<8x128xf32>
    %664 = arith.extui %663 : vector<8x128xi1> to vector<8x128xi32>
    %665 = arith.sitofp %664 : vector<8x128xi32> to vector<8x128xf32>
    %666 = arith.truncf %665 : vector<8x128xf32> to vector<8x128xbf16>
    %c2_510 = arith.constant 2 : index
    %c0_511 = arith.constant 0 : index
    %c0_512 = arith.constant 0 : index
    %667 = vector.load %arg10[%c2_510, %c0_511, %c0_512] : memref<9x8x128xf32, #tpu.memory_space<vmem>>, vector<1x8x128xf32>
    %668 = vector.shape_cast %667 : vector<1x8x128xf32> to vector<8x128xf32>
    %669 = vector.shape_cast %661 : vector<8x128xf32> to vector<1x8x128xf32>
    tpu.vector_store %arg10[%c2_510, %c0_511, %c0_512], %669 {strides = array<i32>} : memref<9x8x128xf32, #tpu.memory_space<vmem>>, vector<1x8x128xf32>,
    %c2_513 = arith.constant 2 : index
    %c0_514 = arith.constant 0 : index
    %c0_515 = arith.constant 0 : index
    %670 = vector.load %arg11[%c2_513, %c0_514, %c0_515] : memref<9x8x128xbf16, #tpu.memory_space<vmem>>, vector<1x8x128xbf16>
    %671 = vector.shape_cast %670 : vector<1x8x128xbf16> to vector<8x128xbf16>
    %672 = vector.shape_cast %666 : vector<8x128xbf16> to vector<1x8x128xbf16>
    tpu.vector_store %arg11[%c2_513, %c0_514, %c0_515], %672 {strides = array<i32>} : memref<9x8x128xbf16, #tpu.memory_space<vmem>>, vector<1x8x128xbf16>,
    %c2_516 = arith.constant 2 : index
    %c0_517 = arith.constant 0 : index
    %c0_518 = arith.constant 0 : index
    %673 = vector.load %arg4[%c2_516, %c0_517, %c0_518] : memref<8x128x128xbf16, #tpu.memory_space<vmem>>, vector<1x128x128xbf16>
    %674 = vector.shape_cast %673 : vector<1x128x128xbf16> to vector<128x128xbf16>
    %cst_519 = arith.constant dense<0.000000e+00> : vector<8x128xf32>
    %675 = tpu.matmul %666, %674, %cst_519 {dimension_numbers = #tpu.dot_dimension_numbers<[1], [0], [0], [1], [0, 0, 1, 1], [], []>} : vector<8x128xbf16>, vector<128x128xbf16>, vector<8x128xf32> -> vector<8x128xf32>
    %c2_520 = arith.constant 2 : index
    %c0_521 = arith.constant 0 : index
    %c0_522 = arith.constant 0 : index
    %676 = vector.load %arg5[%c2_520, %c0_521, %c0_522] : memref<8x1x128xf32, #tpu.memory_space<vmem>>, vector<1x1x128xf32>
    %677 = vector.shape_cast %676 : vector<1x1x128xf32> to vector<1x128xf32>
    %678 = vector.broadcast %677 : vector<1x128xf32> to vector<8x128xf32>
    %679 = arith.addf %675, %678 : vector<8x128xf32>
    %c3_523 = arith.constant 3 : index
    %c0_524 = arith.constant 0 : index
    %c0_525 = arith.constant 0 : index
    %680 = vector.load %arg10[%c3_523, %c0_524, %c0_525] : memref<9x8x128xf32, #tpu.memory_space<vmem>>, vector<1x8x128xf32>
    %681 = vector.shape_cast %680 : vector<1x8x128xf32> to vector<8x128xf32>
    %cst_526 = arith.constant 8.000000e-01 : f32
    %682 = vector.broadcast %cst_526 : f32 to vector<8x128xf32>
    %683 = arith.mulf %682, %681 : vector<8x128xf32>
    %684 = arith.addf %683, %679 : vector<8x128xf32>
    %c3_527 = arith.constant 3 : index
    %c0_528 = arith.constant 0 : index
    %c0_529 = arith.constant 0 : index
    %685 = vector.load %arg11[%c3_527, %c0_528, %c0_529] : memref<9x8x128xbf16, #tpu.memory_space<vmem>>, vector<1x8x128xbf16>
    %686 = vector.shape_cast %685 : vector<1x8x128xbf16> to vector<8x128xbf16>
    %cst_530 = arith.constant 5.000000e-01 : bf16
    %687 = vector.broadcast %cst_530 : bf16 to vector<8x128xbf16>
    %688 = arith.mulf %686, %687 : vector<8x128xbf16>
    %689 = arith.extf %688 : vector<8x128xbf16> to vector<8x128xf32>
    %690 = arith.subf %684, %689 : vector<8x128xf32>
    %cst_531 = arith.constant 5.000000e-01 : f32
    %691 = vector.broadcast %cst_531 : f32 to vector<8x128xf32>
    %692 = arith.cmpf ogt, %690, %691 : vector<8x128xf32>
    %693 = arith.extui %692 : vector<8x128xi1> to vector<8x128xi32>
    %694 = arith.sitofp %693 : vector<8x128xi32> to vector<8x128xf32>
    %695 = arith.truncf %694 : vector<8x128xf32> to vector<8x128xbf16>
    %c3_532 = arith.constant 3 : index
    %c0_533 = arith.constant 0 : index
    %c0_534 = arith.constant 0 : index
    %696 = vector.load %arg10[%c3_532, %c0_533, %c0_534] : memref<9x8x128xf32, #tpu.memory_space<vmem>>, vector<1x8x128xf32>
    %697 = vector.shape_cast %696 : vector<1x8x128xf32> to vector<8x128xf32>
    %698 = vector.shape_cast %690 : vector<8x128xf32> to vector<1x8x128xf32>
    tpu.vector_store %arg10[%c3_532, %c0_533, %c0_534], %698 {strides = array<i32>} : memref<9x8x128xf32, #tpu.memory_space<vmem>>, vector<1x8x128xf32>,
    %c3_535 = arith.constant 3 : index
    %c0_536 = arith.constant 0 : index
    %c0_537 = arith.constant 0 : index
    %699 = vector.load %arg11[%c3_535, %c0_536, %c0_537] : memref<9x8x128xbf16, #tpu.memory_space<vmem>>, vector<1x8x128xbf16>
    %700 = vector.shape_cast %699 : vector<1x8x128xbf16> to vector<8x128xbf16>
    %701 = vector.shape_cast %695 : vector<8x128xbf16> to vector<1x8x128xbf16>
    tpu.vector_store %arg11[%c3_535, %c0_536, %c0_537], %701 {strides = array<i32>} : memref<9x8x128xbf16, #tpu.memory_space<vmem>>, vector<1x8x128xbf16>,
    %c3_538 = arith.constant 3 : index
    %c0_539 = arith.constant 0 : index
    %c0_540 = arith.constant 0 : index
    %702 = vector.load %arg4[%c3_538, %c0_539, %c0_540] : memref<8x128x128xbf16, #tpu.memory_space<vmem>>, vector<1x128x128xbf16>
    %703 = vector.shape_cast %702 : vector<1x128x128xbf16> to vector<128x128xbf16>
    %cst_541 = arith.constant dense<0.000000e+00> : vector<8x128xf32>
    %704 = tpu.matmul %695, %703, %cst_541 {dimension_numbers = #tpu.dot_dimension_numbers<[1], [0], [0], [1], [0, 0, 1, 1], [], []>} : vector<8x128xbf16>, vector<128x128xbf16>, vector<8x128xf32> -> vector<8x128xf32>
    %c3_542 = arith.constant 3 : index
    %c0_543 = arith.constant 0 : index
    %c0_544 = arith.constant 0 : index
    %705 = vector.load %arg5[%c3_542, %c0_543, %c0_544] : memref<8x1x128xf32, #tpu.memory_space<vmem>>, vector<1x1x128xf32>
    %706 = vector.shape_cast %705 : vector<1x1x128xf32> to vector<1x128xf32>
    %707 = vector.broadcast %706 : vector<1x128xf32> to vector<8x128xf32>
    %708 = arith.addf %704, %707 : vector<8x128xf32>
    %c4_545 = arith.constant 4 : index
    %c0_546 = arith.constant 0 : index
    %c0_547 = arith.constant 0 : index
    %709 = vector.load %arg10[%c4_545, %c0_546, %c0_547] : memref<9x8x128xf32, #tpu.memory_space<vmem>>, vector<1x8x128xf32>
    %710 = vector.shape_cast %709 : vector<1x8x128xf32> to vector<8x128xf32>
    %cst_548 = arith.constant 8.000000e-01 : f32
    %711 = vector.broadcast %cst_548 : f32 to vector<8x128xf32>
    %712 = arith.mulf %711, %710 : vector<8x128xf32>
    %713 = arith.addf %712, %708 : vector<8x128xf32>
    %c4_549 = arith.constant 4 : index
    %c0_550 = arith.constant 0 : index
    %c0_551 = arith.constant 0 : index
    %714 = vector.load %arg11[%c4_549, %c0_550, %c0_551] : memref<9x8x128xbf16, #tpu.memory_space<vmem>>, vector<1x8x128xbf16>
    %715 = vector.shape_cast %714 : vector<1x8x128xbf16> to vector<8x128xbf16>
    %cst_552 = arith.constant 5.000000e-01 : bf16
    %716 = vector.broadcast %cst_552 : bf16 to vector<8x128xbf16>
    %717 = arith.mulf %715, %716 : vector<8x128xbf16>
    %718 = arith.extf %717 : vector<8x128xbf16> to vector<8x128xf32>
    %719 = arith.subf %713, %718 : vector<8x128xf32>
    %cst_553 = arith.constant 5.000000e-01 : f32
    %720 = vector.broadcast %cst_553 : f32 to vector<8x128xf32>
    %721 = arith.cmpf ogt, %719, %720 : vector<8x128xf32>
    %722 = arith.extui %721 : vector<8x128xi1> to vector<8x128xi32>
    %723 = arith.sitofp %722 : vector<8x128xi32> to vector<8x128xf32>
    %724 = arith.truncf %723 : vector<8x128xf32> to vector<8x128xbf16>
    %c4_554 = arith.constant 4 : index
    %c0_555 = arith.constant 0 : index
    %c0_556 = arith.constant 0 : index
    %725 = vector.load %arg10[%c4_554, %c0_555, %c0_556] : memref<9x8x128xf32, #tpu.memory_space<vmem>>, vector<1x8x128xf32>
    %726 = vector.shape_cast %725 : vector<1x8x128xf32> to vector<8x128xf32>
    %727 = vector.shape_cast %719 : vector<8x128xf32> to vector<1x8x128xf32>
    tpu.vector_store %arg10[%c4_554, %c0_555, %c0_556], %727 {strides = array<i32>} : memref<9x8x128xf32, #tpu.memory_space<vmem>>, vector<1x8x128xf32>,
    %c4_557 = arith.constant 4 : index
    %c0_558 = arith.constant 0 : index
    %c0_559 = arith.constant 0 : index
    %728 = vector.load %arg11[%c4_557, %c0_558, %c0_559] : memref<9x8x128xbf16, #tpu.memory_space<vmem>>, vector<1x8x128xbf16>
    %729 = vector.shape_cast %728 : vector<1x8x128xbf16> to vector<8x128xbf16>
    %730 = vector.shape_cast %724 : vector<8x128xbf16> to vector<1x8x128xbf16>
    tpu.vector_store %arg11[%c4_557, %c0_558, %c0_559], %730 {strides = array<i32>} : memref<9x8x128xbf16, #tpu.memory_space<vmem>>, vector<1x8x128xbf16>,
    %c4_560 = arith.constant 4 : index
    %c0_561 = arith.constant 0 : index
    %c0_562 = arith.constant 0 : index
    %731 = vector.load %arg4[%c4_560, %c0_561, %c0_562] : memref<8x128x128xbf16, #tpu.memory_space<vmem>>, vector<1x128x128xbf16>
    %732 = vector.shape_cast %731 : vector<1x128x128xbf16> to vector<128x128xbf16>
    %cst_563 = arith.constant dense<0.000000e+00> : vector<8x128xf32>
    %733 = tpu.matmul %724, %732, %cst_563 {dimension_numbers = #tpu.dot_dimension_numbers<[1], [0], [0], [1], [0, 0, 1, 1], [], []>} : vector<8x128xbf16>, vector<128x128xbf16>, vector<8x128xf32> -> vector<8x128xf32>
    %c4_564 = arith.constant 4 : index
    %c0_565 = arith.constant 0 : index
    %c0_566 = arith.constant 0 : index
    %734 = vector.load %arg5[%c4_564, %c0_565, %c0_566] : memref<8x1x128xf32, #tpu.memory_space<vmem>>, vector<1x1x128xf32>
    %735 = vector.shape_cast %734 : vector<1x1x128xf32> to vector<1x128xf32>
    %736 = vector.broadcast %735 : vector<1x128xf32> to vector<8x128xf32>
    %737 = arith.addf %733, %736 : vector<8x128xf32>
    %c5_567 = arith.constant 5 : index
    %c0_568 = arith.constant 0 : index
    %c0_569 = arith.constant 0 : index
    %738 = vector.load %arg10[%c5_567, %c0_568, %c0_569] : memref<9x8x128xf32, #tpu.memory_space<vmem>>, vector<1x8x128xf32>
    %739 = vector.shape_cast %738 : vector<1x8x128xf32> to vector<8x128xf32>
    %cst_570 = arith.constant 8.000000e-01 : f32
    %740 = vector.broadcast %cst_570 : f32 to vector<8x128xf32>
    %741 = arith.mulf %740, %739 : vector<8x128xf32>
    %742 = arith.addf %741, %737 : vector<8x128xf32>
    %c5_571 = arith.constant 5 : index
    %c0_572 = arith.constant 0 : index
    %c0_573 = arith.constant 0 : index
    %743 = vector.load %arg11[%c5_571, %c0_572, %c0_573] : memref<9x8x128xbf16, #tpu.memory_space<vmem>>, vector<1x8x128xbf16>
    %744 = vector.shape_cast %743 : vector<1x8x128xbf16> to vector<8x128xbf16>
    %cst_574 = arith.constant 5.000000e-01 : bf16
    %745 = vector.broadcast %cst_574 : bf16 to vector<8x128xbf16>
    %746 = arith.mulf %744, %745 : vector<8x128xbf16>
    %747 = arith.extf %746 : vector<8x128xbf16> to vector<8x128xf32>
    %748 = arith.subf %742, %747 : vector<8x128xf32>
    %cst_575 = arith.constant 5.000000e-01 : f32
    %749 = vector.broadcast %cst_575 : f32 to vector<8x128xf32>
    %750 = arith.cmpf ogt, %748, %749 : vector<8x128xf32>
    %751 = arith.extui %750 : vector<8x128xi1> to vector<8x128xi32>
    %752 = arith.sitofp %751 : vector<8x128xi32> to vector<8x128xf32>
    %753 = arith.truncf %752 : vector<8x128xf32> to vector<8x128xbf16>
    %c5_576 = arith.constant 5 : index
    %c0_577 = arith.constant 0 : index
    %c0_578 = arith.constant 0 : index
    %754 = vector.load %arg10[%c5_576, %c0_577, %c0_578] : memref<9x8x128xf32, #tpu.memory_space<vmem>>, vector<1x8x128xf32>
    %755 = vector.shape_cast %754 : vector<1x8x128xf32> to vector<8x128xf32>
    %756 = vector.shape_cast %748 : vector<8x128xf32> to vector<1x8x128xf32>
    tpu.vector_store %arg10[%c5_576, %c0_577, %c0_578], %756 {strides = array<i32>} : memref<9x8x128xf32, #tpu.memory_space<vmem>>, vector<1x8x128xf32>,
    %c5_579 = arith.constant 5 : index
    %c0_580 = arith.constant 0 : index
    %c0_581 = arith.constant 0 : index
    %757 = vector.load %arg11[%c5_579, %c0_580, %c0_581] : memref<9x8x128xbf16, #tpu.memory_space<vmem>>, vector<1x8x128xbf16>
    %758 = vector.shape_cast %757 : vector<1x8x128xbf16> to vector<8x128xbf16>
    %759 = vector.shape_cast %753 : vector<8x128xbf16> to vector<1x8x128xbf16>
    tpu.vector_store %arg11[%c5_579, %c0_580, %c0_581], %759 {strides = array<i32>} : memref<9x8x128xbf16, #tpu.memory_space<vmem>>, vector<1x8x128xbf16>,
    %c5_582 = arith.constant 5 : index
    %c0_583 = arith.constant 0 : index
    %c0_584 = arith.constant 0 : index
    %760 = vector.load %arg4[%c5_582, %c0_583, %c0_584] : memref<8x128x128xbf16, #tpu.memory_space<vmem>>, vector<1x128x128xbf16>
    %761 = vector.shape_cast %760 : vector<1x128x128xbf16> to vector<128x128xbf16>
    %cst_585 = arith.constant dense<0.000000e+00> : vector<8x128xf32>
    %762 = tpu.matmul %753, %761, %cst_585 {dimension_numbers = #tpu.dot_dimension_numbers<[1], [0], [0], [1], [0, 0, 1, 1], [], []>} : vector<8x128xbf16>, vector<128x128xbf16>, vector<8x128xf32> -> vector<8x128xf32>
    %c5_586 = arith.constant 5 : index
    %c0_587 = arith.constant 0 : index
    %c0_588 = arith.constant 0 : index
    %763 = vector.load %arg5[%c5_586, %c0_587, %c0_588] : memref<8x1x128xf32, #tpu.memory_space<vmem>>, vector<1x1x128xf32>
    %764 = vector.shape_cast %763 : vector<1x1x128xf32> to vector<1x128xf32>
    %765 = vector.broadcast %764 : vector<1x128xf32> to vector<8x128xf32>
    %766 = arith.addf %762, %765 : vector<8x128xf32>
    %c6_589 = arith.constant 6 : index
    %c0_590 = arith.constant 0 : index
    %c0_591 = arith.constant 0 : index
    %767 = vector.load %arg10[%c6_589, %c0_590, %c0_591] : memref<9x8x128xf32, #tpu.memory_space<vmem>>, vector<1x8x128xf32>
    %768 = vector.shape_cast %767 : vector<1x8x128xf32> to vector<8x128xf32>
    %cst_592 = arith.constant 8.000000e-01 : f32
    %769 = vector.broadcast %cst_592 : f32 to vector<8x128xf32>
    %770 = arith.mulf %769, %768 : vector<8x128xf32>
    %771 = arith.addf %770, %766 : vector<8x128xf32>
    %c6_593 = arith.constant 6 : index
    %c0_594 = arith.constant 0 : index
    %c0_595 = arith.constant 0 : index
    %772 = vector.load %arg11[%c6_593, %c0_594, %c0_595] : memref<9x8x128xbf16, #tpu.memory_space<vmem>>, vector<1x8x128xbf16>
    %773 = vector.shape_cast %772 : vector<1x8x128xbf16> to vector<8x128xbf16>
    %cst_596 = arith.constant 5.000000e-01 : bf16
    %774 = vector.broadcast %cst_596 : bf16 to vector<8x128xbf16>
    %775 = arith.mulf %773, %774 : vector<8x128xbf16>
    %776 = arith.extf %775 : vector<8x128xbf16> to vector<8x128xf32>
    %777 = arith.subf %771, %776 : vector<8x128xf32>
    %cst_597 = arith.constant 5.000000e-01 : f32
    %778 = vector.broadcast %cst_597 : f32 to vector<8x128xf32>
    %779 = arith.cmpf ogt, %777, %778 : vector<8x128xf32>
    %780 = arith.extui %779 : vector<8x128xi1> to vector<8x128xi32>
    %781 = arith.sitofp %780 : vector<8x128xi32> to vector<8x128xf32>
    %782 = arith.truncf %781 : vector<8x128xf32> to vector<8x128xbf16>
    %c6_598 = arith.constant 6 : index
    %c0_599 = arith.constant 0 : index
    %c0_600 = arith.constant 0 : index
    %783 = vector.load %arg10[%c6_598, %c0_599, %c0_600] : memref<9x8x128xf32, #tpu.memory_space<vmem>>, vector<1x8x128xf32>
    %784 = vector.shape_cast %783 : vector<1x8x128xf32> to vector<8x128xf32>
    %785 = vector.shape_cast %777 : vector<8x128xf32> to vector<1x8x128xf32>
    tpu.vector_store %arg10[%c6_598, %c0_599, %c0_600], %785 {strides = array<i32>} : memref<9x8x128xf32, #tpu.memory_space<vmem>>, vector<1x8x128xf32>,
    %c6_601 = arith.constant 6 : index
    %c0_602 = arith.constant 0 : index
    %c0_603 = arith.constant 0 : index
    %786 = vector.load %arg11[%c6_601, %c0_602, %c0_603] : memref<9x8x128xbf16, #tpu.memory_space<vmem>>, vector<1x8x128xbf16>
    %787 = vector.shape_cast %786 : vector<1x8x128xbf16> to vector<8x128xbf16>
    %788 = vector.shape_cast %782 : vector<8x128xbf16> to vector<1x8x128xbf16>
    tpu.vector_store %arg11[%c6_601, %c0_602, %c0_603], %788 {strides = array<i32>} : memref<9x8x128xbf16, #tpu.memory_space<vmem>>, vector<1x8x128xbf16>,
    %c6_604 = arith.constant 6 : index
    %c0_605 = arith.constant 0 : index
    %c0_606 = arith.constant 0 : index
    %789 = vector.load %arg4[%c6_604, %c0_605, %c0_606] : memref<8x128x128xbf16, #tpu.memory_space<vmem>>, vector<1x128x128xbf16>
    %790 = vector.shape_cast %789 : vector<1x128x128xbf16> to vector<128x128xbf16>
    %cst_607 = arith.constant dense<0.000000e+00> : vector<8x128xf32>
    %791 = tpu.matmul %782, %790, %cst_607 {dimension_numbers = #tpu.dot_dimension_numbers<[1], [0], [0], [1], [0, 0, 1, 1], [], []>} : vector<8x128xbf16>, vector<128x128xbf16>, vector<8x128xf32> -> vector<8x128xf32>
    %c6_608 = arith.constant 6 : index
    %c0_609 = arith.constant 0 : index
    %c0_610 = arith.constant 0 : index
    %792 = vector.load %arg5[%c6_608, %c0_609, %c0_610] : memref<8x1x128xf32, #tpu.memory_space<vmem>>, vector<1x1x128xf32>
    %793 = vector.shape_cast %792 : vector<1x1x128xf32> to vector<1x128xf32>
    %794 = vector.broadcast %793 : vector<1x128xf32> to vector<8x128xf32>
    %795 = arith.addf %791, %794 : vector<8x128xf32>
    %c7_611 = arith.constant 7 : index
    %c0_612 = arith.constant 0 : index
    %c0_613 = arith.constant 0 : index
    %796 = vector.load %arg10[%c7_611, %c0_612, %c0_613] : memref<9x8x128xf32, #tpu.memory_space<vmem>>, vector<1x8x128xf32>
    %797 = vector.shape_cast %796 : vector<1x8x128xf32> to vector<8x128xf32>
    %cst_614 = arith.constant 8.000000e-01 : f32
    %798 = vector.broadcast %cst_614 : f32 to vector<8x128xf32>
    %799 = arith.mulf %798, %797 : vector<8x128xf32>
    %800 = arith.addf %799, %795 : vector<8x128xf32>
    %c7_615 = arith.constant 7 : index
    %c0_616 = arith.constant 0 : index
    %c0_617 = arith.constant 0 : index
    %801 = vector.load %arg11[%c7_615, %c0_616, %c0_617] : memref<9x8x128xbf16, #tpu.memory_space<vmem>>, vector<1x8x128xbf16>
    %802 = vector.shape_cast %801 : vector<1x8x128xbf16> to vector<8x128xbf16>
    %cst_618 = arith.constant 5.000000e-01 : bf16
    %803 = vector.broadcast %cst_618 : bf16 to vector<8x128xbf16>
    %804 = arith.mulf %802, %803 : vector<8x128xbf16>
    %805 = arith.extf %804 : vector<8x128xbf16> to vector<8x128xf32>
    %806 = arith.subf %800, %805 : vector<8x128xf32>
    %cst_619 = arith.constant 5.000000e-01 : f32
    %807 = vector.broadcast %cst_619 : f32 to vector<8x128xf32>
    %808 = arith.cmpf ogt, %806, %807 : vector<8x128xf32>
    %809 = arith.extui %808 : vector<8x128xi1> to vector<8x128xi32>
    %810 = arith.sitofp %809 : vector<8x128xi32> to vector<8x128xf32>
    %811 = arith.truncf %810 : vector<8x128xf32> to vector<8x128xbf16>
    %c7_620 = arith.constant 7 : index
    %c0_621 = arith.constant 0 : index
    %c0_622 = arith.constant 0 : index
    %812 = vector.load %arg10[%c7_620, %c0_621, %c0_622] : memref<9x8x128xf32, #tpu.memory_space<vmem>>, vector<1x8x128xf32>
    %813 = vector.shape_cast %812 : vector<1x8x128xf32> to vector<8x128xf32>
    %814 = vector.shape_cast %806 : vector<8x128xf32> to vector<1x8x128xf32>
    tpu.vector_store %arg10[%c7_620, %c0_621, %c0_622], %814 {strides = array<i32>} : memref<9x8x128xf32, #tpu.memory_space<vmem>>, vector<1x8x128xf32>,
    %c7_623 = arith.constant 7 : index
    %c0_624 = arith.constant 0 : index
    %c0_625 = arith.constant 0 : index
    %815 = vector.load %arg11[%c7_623, %c0_624, %c0_625] : memref<9x8x128xbf16, #tpu.memory_space<vmem>>, vector<1x8x128xbf16>
    %816 = vector.shape_cast %815 : vector<1x8x128xbf16> to vector<8x128xbf16>
    %817 = vector.shape_cast %811 : vector<8x128xbf16> to vector<1x8x128xbf16>
    tpu.vector_store %arg11[%c7_623, %c0_624, %c0_625], %817 {strides = array<i32>} : memref<9x8x128xbf16, #tpu.memory_space<vmem>>, vector<1x8x128xbf16>,
    %c7_626 = arith.constant 7 : index
    %c0_627 = arith.constant 0 : index
    %c0_628 = arith.constant 0 : index
    %818 = vector.load %arg4[%c7_626, %c0_627, %c0_628] : memref<8x128x128xbf16, #tpu.memory_space<vmem>>, vector<1x128x128xbf16>
    %819 = vector.shape_cast %818 : vector<1x128x128xbf16> to vector<128x128xbf16>
    %cst_629 = arith.constant dense<0.000000e+00> : vector<8x128xf32>
    %820 = tpu.matmul %811, %819, %cst_629 {dimension_numbers = #tpu.dot_dimension_numbers<[1], [0], [0], [1], [0, 0, 1, 1], [], []>} : vector<8x128xbf16>, vector<128x128xbf16>, vector<8x128xf32> -> vector<8x128xf32>
    %c7_630 = arith.constant 7 : index
    %c0_631 = arith.constant 0 : index
    %c0_632 = arith.constant 0 : index
    %821 = vector.load %arg5[%c7_630, %c0_631, %c0_632] : memref<8x1x128xf32, #tpu.memory_space<vmem>>, vector<1x1x128xf32>
    %822 = vector.shape_cast %821 : vector<1x1x128xf32> to vector<1x128xf32>
    %823 = vector.broadcast %822 : vector<1x128xf32> to vector<8x128xf32>
    %824 = arith.addf %820, %823 : vector<8x128xf32>
    %c8_633 = arith.constant 8 : index
    %c0_634 = arith.constant 0 : index
    %c0_635 = arith.constant 0 : index
    %825 = vector.load %arg10[%c8_633, %c0_634, %c0_635] : memref<9x8x128xf32, #tpu.memory_space<vmem>>, vector<1x8x128xf32>
    %826 = vector.shape_cast %825 : vector<1x8x128xf32> to vector<8x128xf32>
    %cst_636 = arith.constant 8.000000e-01 : f32
    %827 = vector.broadcast %cst_636 : f32 to vector<8x128xf32>
    %828 = arith.mulf %827, %826 : vector<8x128xf32>
    %829 = arith.addf %828, %824 : vector<8x128xf32>
    %c8_637 = arith.constant 8 : index
    %c0_638 = arith.constant 0 : index
    %c0_639 = arith.constant 0 : index
    %830 = vector.load %arg11[%c8_637, %c0_638, %c0_639] : memref<9x8x128xbf16, #tpu.memory_space<vmem>>, vector<1x8x128xbf16>
    %831 = vector.shape_cast %830 : vector<1x8x128xbf16> to vector<8x128xbf16>
    %cst_640 = arith.constant 5.000000e-01 : bf16
    %832 = vector.broadcast %cst_640 : bf16 to vector<8x128xbf16>
    %833 = arith.mulf %831, %832 : vector<8x128xbf16>
    %834 = arith.extf %833 : vector<8x128xbf16> to vector<8x128xf32>
    %835 = arith.subf %829, %834 : vector<8x128xf32>
    %cst_641 = arith.constant 5.000000e-01 : f32
    %836 = vector.broadcast %cst_641 : f32 to vector<8x128xf32>
    %837 = arith.cmpf ogt, %835, %836 : vector<8x128xf32>
    %838 = arith.extui %837 : vector<8x128xi1> to vector<8x128xi32>
    %839 = arith.sitofp %838 : vector<8x128xi32> to vector<8x128xf32>
    %840 = arith.truncf %839 : vector<8x128xf32> to vector<8x128xbf16>
    %c8_642 = arith.constant 8 : index
    %c0_643 = arith.constant 0 : index
    %c0_644 = arith.constant 0 : index
    %841 = vector.load %arg10[%c8_642, %c0_643, %c0_644] : memref<9x8x128xf32, #tpu.memory_space<vmem>>, vector<1x8x128xf32>
    %842 = vector.shape_cast %841 : vector<1x8x128xf32> to vector<8x128xf32>
    %843 = vector.shape_cast %835 : vector<8x128xf32> to vector<1x8x128xf32>
    tpu.vector_store %arg10[%c8_642, %c0_643, %c0_644], %843 {strides = array<i32>} : memref<9x8x128xf32, #tpu.memory_space<vmem>>, vector<1x8x128xf32>,
    %c8_645 = arith.constant 8 : index
    %c0_646 = arith.constant 0 : index
    %c0_647 = arith.constant 0 : index
    %844 = vector.load %arg11[%c8_645, %c0_646, %c0_647] : memref<9x8x128xbf16, #tpu.memory_space<vmem>>, vector<1x8x128xbf16>
    %845 = vector.shape_cast %844 : vector<1x8x128xbf16> to vector<8x128xbf16>
    %846 = vector.shape_cast %840 : vector<8x128xbf16> to vector<1x8x128xbf16>
    tpu.vector_store %arg11[%c8_645, %c0_646, %c0_647], %846 {strides = array<i32>} : memref<9x8x128xbf16, #tpu.memory_space<vmem>>, vector<1x8x128xbf16>,
    %c0_648 = arith.constant 0 : index
    %c0_649 = arith.constant 0 : index
    %847 = vector.load %arg6[%c0_648, %c0_649] : memref<128x128xbf16, #tpu.memory_space<vmem>>, vector<128x128xbf16>
    %cst_650 = arith.constant dense<0.000000e+00> : vector<8x128xf32>
    %848 = tpu.matmul %840, %847, %cst_650 {dimension_numbers = #tpu.dot_dimension_numbers<[1], [0], [0], [1], [0, 0, 1, 1], [], []>} : vector<8x128xbf16>, vector<128x128xbf16>, vector<8x128xf32> -> vector<8x128xf32>
    %c0_651 = arith.constant 0 : index
    %c0_652 = arith.constant 0 : index
    %849 = vector.load %arg7[%c0_651, %c0_652] : memref<1x128xf32, #tpu.memory_space<vmem>>, vector<1x128xf32>
    %850 = vector.broadcast %849 : vector<1x128xf32> to vector<8x128xf32>
    %851 = arith.addf %848, %850 : vector<8x128xf32>
    %c0_653 = arith.constant 0 : index
    %c0_654 = arith.constant 0 : index
    %852 = vector.load %arg12[%c0_653, %c0_654] : memref<8x128xf32, #tpu.memory_space<vmem>>, vector<8x128xf32>
    %cst_655 = arith.constant 8.000000e-01 : f32
    %853 = vector.broadcast %cst_655 : f32 to vector<8x128xf32>
    %854 = arith.mulf %853, %852 : vector<8x128xf32>
    %855 = arith.addf %854, %851 : vector<8x128xf32>
    %c0_656 = arith.constant 0 : index
    %c0_657 = arith.constant 0 : index
    %856 = vector.load %arg13[%c0_656, %c0_657] : memref<8x128xf32, #tpu.memory_space<vmem>>, vector<8x128xf32>
    %cst_658 = arith.constant 5.000000e-01 : f32
    %857 = vector.broadcast %cst_658 : f32 to vector<8x128xf32>
    %858 = arith.mulf %856, %857 : vector<8x128xf32>
    %859 = arith.subf %855, %858 : vector<8x128xf32>
    %cst_659 = arith.constant 5.000000e-01 : f32
    %860 = vector.broadcast %cst_659 : f32 to vector<8x128xf32>
    %861 = arith.cmpf ogt, %859, %860 : vector<8x128xf32>
    %862 = arith.extui %861 : vector<8x128xi1> to vector<8x128xi32>
    %863 = arith.sitofp %862 : vector<8x128xi32> to vector<8x128xf32>
    %c0_660 = arith.constant 0 : index
    %c0_661 = arith.constant 0 : index
    %864 = vector.load %arg12[%c0_660, %c0_661] : memref<8x128xf32, #tpu.memory_space<vmem>>, vector<8x128xf32>
    tpu.vector_store %arg12[%c0_660, %c0_661], %859 {strides = array<i32>} : memref<8x128xf32, #tpu.memory_space<vmem>>, vector<8x128xf32>,
    %c0_662 = arith.constant 0 : index
    %c0_663 = arith.constant 0 : index
    %865 = vector.load %arg13[%c0_662, %c0_663] : memref<8x128xf32, #tpu.memory_space<vmem>>, vector<8x128xf32>
    tpu.vector_store %arg13[%c0_662, %c0_663], %863 {strides = array<i32>} : memref<8x128xf32, #tpu.memory_space<vmem>>, vector<8x128xf32>,
    %c0_664 = arith.constant 0 : index
    %c0_665 = arith.constant 0 : index
    %866 = vector.load %arg8[%c0_664, %c0_665] : memref<8x128xf32, #tpu.memory_space<vmem>>, vector<8x128xf32>
    %867 = arith.addf %866, %863 : vector<8x128xf32>
    %c0_666 = arith.constant 0 : index
    %c0_667 = arith.constant 0 : index
    %868 = vector.load %arg8[%c0_666, %c0_667] : memref<8x128xf32, #tpu.memory_space<vmem>>, vector<8x128xf32>
    tpu.vector_store %arg8[%c0_666, %c0_667], %867 {strides = array<i32>} : memref<8x128xf32, #tpu.memory_space<vmem>>, vector<8x128xf32>,
    %cst_668 = arith.constant dense<0.000000e+00> : vector<8xf32>
    %869 = vector.multi_reduction <add>, %863, %cst_668 [1] : vector<8x128xf32> to vector<8xf32>
    %870 = vector.shape_cast %869 : vector<8xf32> to vector<8x1xf32>
    %c18_i32 = arith.constant 18 : i32
    %871 = vector.broadcast %c18_i32 : i32 to vector<8x128xi32>
    %872 = arith.cmpi eq, %19, %871 : vector<8x128xi32>
    %c0_669 = arith.constant 0 : index
    %c0_670 = arith.constant 0 : index
    %873 = vector.load %arg14[%c0_669, %c0_670] : memref<8x128xf32, #tpu.memory_space<vmem>>, vector<8x128xf32>
    %874 = vector.shape_cast %870 : vector<8x1xf32> to vector<8x1xf32>
    %875 = vector.broadcast %874 : vector<8x1xf32> to vector<8x128xf32>
    %876 = arith.select %872, %875, %873 : vector<8x128xi1>, vector<8x128xf32>
    %c0_671 = arith.constant 0 : index
    %c0_672 = arith.constant 0 : index
    %877 = vector.load %arg14[%c0_671, %c0_672] : memref<8x128xf32, #tpu.memory_space<vmem>>, vector<8x128xf32>
    tpu.vector_store %arg14[%c0_671, %c0_672], %876 {strides = array<i32>} : memref<8x128xf32, #tpu.memory_space<vmem>>, vector<8x128xf32>,
    %c0_673 = arith.constant 0 : index
    %c0_674 = arith.constant 0 : index
    %878 = vector.load %arg9[%c0_673, %c0_674] : memref<8x128xf32, #tpu.memory_space<vmem>>, vector<8x128xf32>
    %c0_675 = arith.constant 0 : index
    %c0_676 = arith.constant 0 : index
    %c0_677 = arith.constant 0 : index
    %879 = vector.load %arg10[%c0_675, %c0_676, %c0_677] : memref<9x8x128xf32, #tpu.memory_space<vmem>>, vector<1x8x128xf32>
    %880 = vector.shape_cast %879 : vector<1x8x128xf32> to vector<8x128xf32>
    %cst_678 = arith.constant 8.000000e-01 : f32
    %881 = vector.broadcast %cst_678 : f32 to vector<8x128xf32>
    %882 = arith.mulf %881, %880 : vector<8x128xf32>
    %883 = arith.addf %882, %878 : vector<8x128xf32>
    %c0_679 = arith.constant 0 : index
    %c0_680 = arith.constant 0 : index
    %c0_681 = arith.constant 0 : index
    %884 = vector.load %arg11[%c0_679, %c0_680, %c0_681] : memref<9x8x128xbf16, #tpu.memory_space<vmem>>, vector<1x8x128xbf16>
    %885 = vector.shape_cast %884 : vector<1x8x128xbf16> to vector<8x128xbf16>
    %cst_682 = arith.constant 5.000000e-01 : bf16
    %886 = vector.broadcast %cst_682 : bf16 to vector<8x128xbf16>
    %887 = arith.mulf %885, %886 : vector<8x128xbf16>
    %888 = arith.extf %887 : vector<8x128xbf16> to vector<8x128xf32>
    %889 = arith.subf %883, %888 : vector<8x128xf32>
    %cst_683 = arith.constant 5.000000e-01 : f32
    %890 = vector.broadcast %cst_683 : f32 to vector<8x128xf32>
    %891 = arith.cmpf ogt, %889, %890 : vector<8x128xf32>
    %892 = arith.extui %891 : vector<8x128xi1> to vector<8x128xi32>
    %893 = arith.sitofp %892 : vector<8x128xi32> to vector<8x128xf32>
    %894 = arith.truncf %893 : vector<8x128xf32> to vector<8x128xbf16>
    %c0_684 = arith.constant 0 : index
    %c0_685 = arith.constant 0 : index
    %c0_686 = arith.constant 0 : index
    %895 = vector.load %arg10[%c0_684, %c0_685, %c0_686] : memref<9x8x128xf32, #tpu.memory_space<vmem>>, vector<1x8x128xf32>
    %896 = vector.shape_cast %895 : vector<1x8x128xf32> to vector<8x128xf32>
    %897 = vector.shape_cast %889 : vector<8x128xf32> to vector<1x8x128xf32>
    tpu.vector_store %arg10[%c0_684, %c0_685, %c0_686], %897 {strides = array<i32>} : memref<9x8x128xf32, #tpu.memory_space<vmem>>, vector<1x8x128xf32>,
    %c0_687 = arith.constant 0 : index
    %c0_688 = arith.constant 0 : index
    %c0_689 = arith.constant 0 : index
    %898 = vector.load %arg11[%c0_687, %c0_688, %c0_689] : memref<9x8x128xbf16, #tpu.memory_space<vmem>>, vector<1x8x128xbf16>
    %899 = vector.shape_cast %898 : vector<1x8x128xbf16> to vector<8x128xbf16>
    %900 = vector.shape_cast %894 : vector<8x128xbf16> to vector<1x8x128xbf16>
    tpu.vector_store %arg11[%c0_687, %c0_688, %c0_689], %900 {strides = array<i32>} : memref<9x8x128xbf16, #tpu.memory_space<vmem>>, vector<1x8x128xbf16>,
    %c0_690 = arith.constant 0 : index
    %c0_691 = arith.constant 0 : index
    %c0_692 = arith.constant 0 : index
    %901 = vector.load %arg4[%c0_690, %c0_691, %c0_692] : memref<8x128x128xbf16, #tpu.memory_space<vmem>>, vector<1x128x128xbf16>
    %902 = vector.shape_cast %901 : vector<1x128x128xbf16> to vector<128x128xbf16>
    %cst_693 = arith.constant dense<0.000000e+00> : vector<8x128xf32>
    %903 = tpu.matmul %894, %902, %cst_693 {dimension_numbers = #tpu.dot_dimension_numbers<[1], [0], [0], [1], [0, 0, 1, 1], [], []>} : vector<8x128xbf16>, vector<128x128xbf16>, vector<8x128xf32> -> vector<8x128xf32>
    %c0_694 = arith.constant 0 : index
    %c0_695 = arith.constant 0 : index
    %c0_696 = arith.constant 0 : index
    %904 = vector.load %arg5[%c0_694, %c0_695, %c0_696] : memref<8x1x128xf32, #tpu.memory_space<vmem>>, vector<1x1x128xf32>
    %905 = vector.shape_cast %904 : vector<1x1x128xf32> to vector<1x128xf32>
    %906 = vector.broadcast %905 : vector<1x128xf32> to vector<8x128xf32>
    %907 = arith.addf %903, %906 : vector<8x128xf32>
    %c1_697 = arith.constant 1 : index
    %c0_698 = arith.constant 0 : index
    %c0_699 = arith.constant 0 : index
    %908 = vector.load %arg10[%c1_697, %c0_698, %c0_699] : memref<9x8x128xf32, #tpu.memory_space<vmem>>, vector<1x8x128xf32>
    %909 = vector.shape_cast %908 : vector<1x8x128xf32> to vector<8x128xf32>
    %cst_700 = arith.constant 8.000000e-01 : f32
    %910 = vector.broadcast %cst_700 : f32 to vector<8x128xf32>
    %911 = arith.mulf %910, %909 : vector<8x128xf32>
    %912 = arith.addf %911, %907 : vector<8x128xf32>
    %c1_701 = arith.constant 1 : index
    %c0_702 = arith.constant 0 : index
    %c0_703 = arith.constant 0 : index
    %913 = vector.load %arg11[%c1_701, %c0_702, %c0_703] : memref<9x8x128xbf16, #tpu.memory_space<vmem>>, vector<1x8x128xbf16>
    %914 = vector.shape_cast %913 : vector<1x8x128xbf16> to vector<8x128xbf16>
    %cst_704 = arith.constant 5.000000e-01 : bf16
    %915 = vector.broadcast %cst_704 : bf16 to vector<8x128xbf16>
    %916 = arith.mulf %914, %915 : vector<8x128xbf16>
    %917 = arith.extf %916 : vector<8x128xbf16> to vector<8x128xf32>
    %918 = arith.subf %912, %917 : vector<8x128xf32>
    %cst_705 = arith.constant 5.000000e-01 : f32
    %919 = vector.broadcast %cst_705 : f32 to vector<8x128xf32>
    %920 = arith.cmpf ogt, %918, %919 : vector<8x128xf32>
    %921 = arith.extui %920 : vector<8x128xi1> to vector<8x128xi32>
    %922 = arith.sitofp %921 : vector<8x128xi32> to vector<8x128xf32>
    %923 = arith.truncf %922 : vector<8x128xf32> to vector<8x128xbf16>
    %c1_706 = arith.constant 1 : index
    %c0_707 = arith.constant 0 : index
    %c0_708 = arith.constant 0 : index
    %924 = vector.load %arg10[%c1_706, %c0_707, %c0_708] : memref<9x8x128xf32, #tpu.memory_space<vmem>>, vector<1x8x128xf32>
    %925 = vector.shape_cast %924 : vector<1x8x128xf32> to vector<8x128xf32>
    %926 = vector.shape_cast %918 : vector<8x128xf32> to vector<1x8x128xf32>
    tpu.vector_store %arg10[%c1_706, %c0_707, %c0_708], %926 {strides = array<i32>} : memref<9x8x128xf32, #tpu.memory_space<vmem>>, vector<1x8x128xf32>,
    %c1_709 = arith.constant 1 : index
    %c0_710 = arith.constant 0 : index
    %c0_711 = arith.constant 0 : index
    %927 = vector.load %arg11[%c1_709, %c0_710, %c0_711] : memref<9x8x128xbf16, #tpu.memory_space<vmem>>, vector<1x8x128xbf16>
    %928 = vector.shape_cast %927 : vector<1x8x128xbf16> to vector<8x128xbf16>
    %929 = vector.shape_cast %923 : vector<8x128xbf16> to vector<1x8x128xbf16>
    tpu.vector_store %arg11[%c1_709, %c0_710, %c0_711], %929 {strides = array<i32>} : memref<9x8x128xbf16, #tpu.memory_space<vmem>>, vector<1x8x128xbf16>,
    %c1_712 = arith.constant 1 : index
    %c0_713 = arith.constant 0 : index
    %c0_714 = arith.constant 0 : index
    %930 = vector.load %arg4[%c1_712, %c0_713, %c0_714] : memref<8x128x128xbf16, #tpu.memory_space<vmem>>, vector<1x128x128xbf16>
    %931 = vector.shape_cast %930 : vector<1x128x128xbf16> to vector<128x128xbf16>
    %cst_715 = arith.constant dense<0.000000e+00> : vector<8x128xf32>
    %932 = tpu.matmul %923, %931, %cst_715 {dimension_numbers = #tpu.dot_dimension_numbers<[1], [0], [0], [1], [0, 0, 1, 1], [], []>} : vector<8x128xbf16>, vector<128x128xbf16>, vector<8x128xf32> -> vector<8x128xf32>
    %c1_716 = arith.constant 1 : index
    %c0_717 = arith.constant 0 : index
    %c0_718 = arith.constant 0 : index
    %933 = vector.load %arg5[%c1_716, %c0_717, %c0_718] : memref<8x1x128xf32, #tpu.memory_space<vmem>>, vector<1x1x128xf32>
    %934 = vector.shape_cast %933 : vector<1x1x128xf32> to vector<1x128xf32>
    %935 = vector.broadcast %934 : vector<1x128xf32> to vector<8x128xf32>
    %936 = arith.addf %932, %935 : vector<8x128xf32>
    %c2_719 = arith.constant 2 : index
    %c0_720 = arith.constant 0 : index
    %c0_721 = arith.constant 0 : index
    %937 = vector.load %arg10[%c2_719, %c0_720, %c0_721] : memref<9x8x128xf32, #tpu.memory_space<vmem>>, vector<1x8x128xf32>
    %938 = vector.shape_cast %937 : vector<1x8x128xf32> to vector<8x128xf32>
    %cst_722 = arith.constant 8.000000e-01 : f32
    %939 = vector.broadcast %cst_722 : f32 to vector<8x128xf32>
    %940 = arith.mulf %939, %938 : vector<8x128xf32>
    %941 = arith.addf %940, %936 : vector<8x128xf32>
    %c2_723 = arith.constant 2 : index
    %c0_724 = arith.constant 0 : index
    %c0_725 = arith.constant 0 : index
    %942 = vector.load %arg11[%c2_723, %c0_724, %c0_725] : memref<9x8x128xbf16, #tpu.memory_space<vmem>>, vector<1x8x128xbf16>
    %943 = vector.shape_cast %942 : vector<1x8x128xbf16> to vector<8x128xbf16>
    %cst_726 = arith.constant 5.000000e-01 : bf16
    %944 = vector.broadcast %cst_726 : bf16 to vector<8x128xbf16>
    %945 = arith.mulf %943, %944 : vector<8x128xbf16>
    %946 = arith.extf %945 : vector<8x128xbf16> to vector<8x128xf32>
    %947 = arith.subf %941, %946 : vector<8x128xf32>
    %cst_727 = arith.constant 5.000000e-01 : f32
    %948 = vector.broadcast %cst_727 : f32 to vector<8x128xf32>
    %949 = arith.cmpf ogt, %947, %948 : vector<8x128xf32>
    %950 = arith.extui %949 : vector<8x128xi1> to vector<8x128xi32>
    %951 = arith.sitofp %950 : vector<8x128xi32> to vector<8x128xf32>
    %952 = arith.truncf %951 : vector<8x128xf32> to vector<8x128xbf16>
    %c2_728 = arith.constant 2 : index
    %c0_729 = arith.constant 0 : index
    %c0_730 = arith.constant 0 : index
    %953 = vector.load %arg10[%c2_728, %c0_729, %c0_730] : memref<9x8x128xf32, #tpu.memory_space<vmem>>, vector<1x8x128xf32>
    %954 = vector.shape_cast %953 : vector<1x8x128xf32> to vector<8x128xf32>
    %955 = vector.shape_cast %947 : vector<8x128xf32> to vector<1x8x128xf32>
    tpu.vector_store %arg10[%c2_728, %c0_729, %c0_730], %955 {strides = array<i32>} : memref<9x8x128xf32, #tpu.memory_space<vmem>>, vector<1x8x128xf32>,
    %c2_731 = arith.constant 2 : index
    %c0_732 = arith.constant 0 : index
    %c0_733 = arith.constant 0 : index
    %956 = vector.load %arg11[%c2_731, %c0_732, %c0_733] : memref<9x8x128xbf16, #tpu.memory_space<vmem>>, vector<1x8x128xbf16>
    %957 = vector.shape_cast %956 : vector<1x8x128xbf16> to vector<8x128xbf16>
    %958 = vector.shape_cast %952 : vector<8x128xbf16> to vector<1x8x128xbf16>
    tpu.vector_store %arg11[%c2_731, %c0_732, %c0_733], %958 {strides = array<i32>} : memref<9x8x128xbf16, #tpu.memory_space<vmem>>, vector<1x8x128xbf16>,
    %c2_734 = arith.constant 2 : index
    %c0_735 = arith.constant 0 : index
    %c0_736 = arith.constant 0 : index
    %959 = vector.load %arg4[%c2_734, %c0_735, %c0_736] : memref<8x128x128xbf16, #tpu.memory_space<vmem>>, vector<1x128x128xbf16>
    %960 = vector.shape_cast %959 : vector<1x128x128xbf16> to vector<128x128xbf16>
    %cst_737 = arith.constant dense<0.000000e+00> : vector<8x128xf32>
    %961 = tpu.matmul %952, %960, %cst_737 {dimension_numbers = #tpu.dot_dimension_numbers<[1], [0], [0], [1], [0, 0, 1, 1], [], []>} : vector<8x128xbf16>, vector<128x128xbf16>, vector<8x128xf32> -> vector<8x128xf32>
    %c2_738 = arith.constant 2 : index
    %c0_739 = arith.constant 0 : index
    %c0_740 = arith.constant 0 : index
    %962 = vector.load %arg5[%c2_738, %c0_739, %c0_740] : memref<8x1x128xf32, #tpu.memory_space<vmem>>, vector<1x1x128xf32>
    %963 = vector.shape_cast %962 : vector<1x1x128xf32> to vector<1x128xf32>
    %964 = vector.broadcast %963 : vector<1x128xf32> to vector<8x128xf32>
    %965 = arith.addf %961, %964 : vector<8x128xf32>
    %c3_741 = arith.constant 3 : index
    %c0_742 = arith.constant 0 : index
    %c0_743 = arith.constant 0 : index
    %966 = vector.load %arg10[%c3_741, %c0_742, %c0_743] : memref<9x8x128xf32, #tpu.memory_space<vmem>>, vector<1x8x128xf32>
    %967 = vector.shape_cast %966 : vector<1x8x128xf32> to vector<8x128xf32>
    %cst_744 = arith.constant 8.000000e-01 : f32
    %968 = vector.broadcast %cst_744 : f32 to vector<8x128xf32>
    %969 = arith.mulf %968, %967 : vector<8x128xf32>
    %970 = arith.addf %969, %965 : vector<8x128xf32>
    %c3_745 = arith.constant 3 : index
    %c0_746 = arith.constant 0 : index
    %c0_747 = arith.constant 0 : index
    %971 = vector.load %arg11[%c3_745, %c0_746, %c0_747] : memref<9x8x128xbf16, #tpu.memory_space<vmem>>, vector<1x8x128xbf16>
    %972 = vector.shape_cast %971 : vector<1x8x128xbf16> to vector<8x128xbf16>
    %cst_748 = arith.constant 5.000000e-01 : bf16
    %973 = vector.broadcast %cst_748 : bf16 to vector<8x128xbf16>
    %974 = arith.mulf %972, %973 : vector<8x128xbf16>
    %975 = arith.extf %974 : vector<8x128xbf16> to vector<8x128xf32>
    %976 = arith.subf %970, %975 : vector<8x128xf32>
    %cst_749 = arith.constant 5.000000e-01 : f32
    %977 = vector.broadcast %cst_749 : f32 to vector<8x128xf32>
    %978 = arith.cmpf ogt, %976, %977 : vector<8x128xf32>
    %979 = arith.extui %978 : vector<8x128xi1> to vector<8x128xi32>
    %980 = arith.sitofp %979 : vector<8x128xi32> to vector<8x128xf32>
    %981 = arith.truncf %980 : vector<8x128xf32> to vector<8x128xbf16>
    %c3_750 = arith.constant 3 : index
    %c0_751 = arith.constant 0 : index
    %c0_752 = arith.constant 0 : index
    %982 = vector.load %arg10[%c3_750, %c0_751, %c0_752] : memref<9x8x128xf32, #tpu.memory_space<vmem>>, vector<1x8x128xf32>
    %983 = vector.shape_cast %982 : vector<1x8x128xf32> to vector<8x128xf32>
    %984 = vector.shape_cast %976 : vector<8x128xf32> to vector<1x8x128xf32>
    tpu.vector_store %arg10[%c3_750, %c0_751, %c0_752], %984 {strides = array<i32>} : memref<9x8x128xf32, #tpu.memory_space<vmem>>, vector<1x8x128xf32>,
    %c3_753 = arith.constant 3 : index
    %c0_754 = arith.constant 0 : index
    %c0_755 = arith.constant 0 : index
    %985 = vector.load %arg11[%c3_753, %c0_754, %c0_755] : memref<9x8x128xbf16, #tpu.memory_space<vmem>>, vector<1x8x128xbf16>
    %986 = vector.shape_cast %985 : vector<1x8x128xbf16> to vector<8x128xbf16>
    %987 = vector.shape_cast %981 : vector<8x128xbf16> to vector<1x8x128xbf16>
    tpu.vector_store %arg11[%c3_753, %c0_754, %c0_755], %987 {strides = array<i32>} : memref<9x8x128xbf16, #tpu.memory_space<vmem>>, vector<1x8x128xbf16>,
    %c3_756 = arith.constant 3 : index
    %c0_757 = arith.constant 0 : index
    %c0_758 = arith.constant 0 : index
    %988 = vector.load %arg4[%c3_756, %c0_757, %c0_758] : memref<8x128x128xbf16, #tpu.memory_space<vmem>>, vector<1x128x128xbf16>
    %989 = vector.shape_cast %988 : vector<1x128x128xbf16> to vector<128x128xbf16>
    %cst_759 = arith.constant dense<0.000000e+00> : vector<8x128xf32>
    %990 = tpu.matmul %981, %989, %cst_759 {dimension_numbers = #tpu.dot_dimension_numbers<[1], [0], [0], [1], [0, 0, 1, 1], [], []>} : vector<8x128xbf16>, vector<128x128xbf16>, vector<8x128xf32> -> vector<8x128xf32>
    %c3_760 = arith.constant 3 : index
    %c0_761 = arith.constant 0 : index
    %c0_762 = arith.constant 0 : index
    %991 = vector.load %arg5[%c3_760, %c0_761, %c0_762] : memref<8x1x128xf32, #tpu.memory_space<vmem>>, vector<1x1x128xf32>
    %992 = vector.shape_cast %991 : vector<1x1x128xf32> to vector<1x128xf32>
    %993 = vector.broadcast %992 : vector<1x128xf32> to vector<8x128xf32>
    %994 = arith.addf %990, %993 : vector<8x128xf32>
    %c4_763 = arith.constant 4 : index
    %c0_764 = arith.constant 0 : index
    %c0_765 = arith.constant 0 : index
    %995 = vector.load %arg10[%c4_763, %c0_764, %c0_765] : memref<9x8x128xf32, #tpu.memory_space<vmem>>, vector<1x8x128xf32>
    %996 = vector.shape_cast %995 : vector<1x8x128xf32> to vector<8x128xf32>
    %cst_766 = arith.constant 8.000000e-01 : f32
    %997 = vector.broadcast %cst_766 : f32 to vector<8x128xf32>
    %998 = arith.mulf %997, %996 : vector<8x128xf32>
    %999 = arith.addf %998, %994 : vector<8x128xf32>
    %c4_767 = arith.constant 4 : index
    %c0_768 = arith.constant 0 : index
    %c0_769 = arith.constant 0 : index
    %1000 = vector.load %arg11[%c4_767, %c0_768, %c0_769] : memref<9x8x128xbf16, #tpu.memory_space<vmem>>, vector<1x8x128xbf16>
    %1001 = vector.shape_cast %1000 : vector<1x8x128xbf16> to vector<8x128xbf16>
    %cst_770 = arith.constant 5.000000e-01 : bf16
    %1002 = vector.broadcast %cst_770 : bf16 to vector<8x128xbf16>
    %1003 = arith.mulf %1001, %1002 : vector<8x128xbf16>
    %1004 = arith.extf %1003 : vector<8x128xbf16> to vector<8x128xf32>
    %1005 = arith.subf %999, %1004 : vector<8x128xf32>
    %cst_771 = arith.constant 5.000000e-01 : f32
    %1006 = vector.broadcast %cst_771 : f32 to vector<8x128xf32>
    %1007 = arith.cmpf ogt, %1005, %1006 : vector<8x128xf32>
    %1008 = arith.extui %1007 : vector<8x128xi1> to vector<8x128xi32>
    %1009 = arith.sitofp %1008 : vector<8x128xi32> to vector<8x128xf32>
    %1010 = arith.truncf %1009 : vector<8x128xf32> to vector<8x128xbf16>
    %c4_772 = arith.constant 4 : index
    %c0_773 = arith.constant 0 : index
    %c0_774 = arith.constant 0 : index
    %1011 = vector.load %arg10[%c4_772, %c0_773, %c0_774] : memref<9x8x128xf32, #tpu.memory_space<vmem>>, vector<1x8x128xf32>
    %1012 = vector.shape_cast %1011 : vector<1x8x128xf32> to vector<8x128xf32>
    %1013 = vector.shape_cast %1005 : vector<8x128xf32> to vector<1x8x128xf32>
    tpu.vector_store %arg10[%c4_772, %c0_773, %c0_774], %1013 {strides = array<i32>} : memref<9x8x128xf32, #tpu.memory_space<vmem>>, vector<1x8x128xf32>,
    %c4_775 = arith.constant 4 : index
    %c0_776 = arith.constant 0 : index
    %c0_777 = arith.constant 0 : index
    %1014 = vector.load %arg11[%c4_775, %c0_776, %c0_777] : memref<9x8x128xbf16, #tpu.memory_space<vmem>>, vector<1x8x128xbf16>
    %1015 = vector.shape_cast %1014 : vector<1x8x128xbf16> to vector<8x128xbf16>
    %1016 = vector.shape_cast %1010 : vector<8x128xbf16> to vector<1x8x128xbf16>
    tpu.vector_store %arg11[%c4_775, %c0_776, %c0_777], %1016 {strides = array<i32>} : memref<9x8x128xbf16, #tpu.memory_space<vmem>>, vector<1x8x128xbf16>,
    %c4_778 = arith.constant 4 : index
    %c0_779 = arith.constant 0 : index
    %c0_780 = arith.constant 0 : index
    %1017 = vector.load %arg4[%c4_778, %c0_779, %c0_780] : memref<8x128x128xbf16, #tpu.memory_space<vmem>>, vector<1x128x128xbf16>
    %1018 = vector.shape_cast %1017 : vector<1x128x128xbf16> to vector<128x128xbf16>
    %cst_781 = arith.constant dense<0.000000e+00> : vector<8x128xf32>
    %1019 = tpu.matmul %1010, %1018, %cst_781 {dimension_numbers = #tpu.dot_dimension_numbers<[1], [0], [0], [1], [0, 0, 1, 1], [], []>} : vector<8x128xbf16>, vector<128x128xbf16>, vector<8x128xf32> -> vector<8x128xf32>
    %c4_782 = arith.constant 4 : index
    %c0_783 = arith.constant 0 : index
    %c0_784 = arith.constant 0 : index
    %1020 = vector.load %arg5[%c4_782, %c0_783, %c0_784] : memref<8x1x128xf32, #tpu.memory_space<vmem>>, vector<1x1x128xf32>
    %1021 = vector.shape_cast %1020 : vector<1x1x128xf32> to vector<1x128xf32>
    %1022 = vector.broadcast %1021 : vector<1x128xf32> to vector<8x128xf32>
    %1023 = arith.addf %1019, %1022 : vector<8x128xf32>
    %c5_785 = arith.constant 5 : index
    %c0_786 = arith.constant 0 : index
    %c0_787 = arith.constant 0 : index
    %1024 = vector.load %arg10[%c5_785, %c0_786, %c0_787] : memref<9x8x128xf32, #tpu.memory_space<vmem>>, vector<1x8x128xf32>
    %1025 = vector.shape_cast %1024 : vector<1x8x128xf32> to vector<8x128xf32>
    %cst_788 = arith.constant 8.000000e-01 : f32
    %1026 = vector.broadcast %cst_788 : f32 to vector<8x128xf32>
    %1027 = arith.mulf %1026, %1025 : vector<8x128xf32>
    %1028 = arith.addf %1027, %1023 : vector<8x128xf32>
    %c5_789 = arith.constant 5 : index
    %c0_790 = arith.constant 0 : index
    %c0_791 = arith.constant 0 : index
    %1029 = vector.load %arg11[%c5_789, %c0_790, %c0_791] : memref<9x8x128xbf16, #tpu.memory_space<vmem>>, vector<1x8x128xbf16>
    %1030 = vector.shape_cast %1029 : vector<1x8x128xbf16> to vector<8x128xbf16>
    %cst_792 = arith.constant 5.000000e-01 : bf16
    %1031 = vector.broadcast %cst_792 : bf16 to vector<8x128xbf16>
    %1032 = arith.mulf %1030, %1031 : vector<8x128xbf16>
    %1033 = arith.extf %1032 : vector<8x128xbf16> to vector<8x128xf32>
    %1034 = arith.subf %1028, %1033 : vector<8x128xf32>
    %cst_793 = arith.constant 5.000000e-01 : f32
    %1035 = vector.broadcast %cst_793 : f32 to vector<8x128xf32>
    %1036 = arith.cmpf ogt, %1034, %1035 : vector<8x128xf32>
    %1037 = arith.extui %1036 : vector<8x128xi1> to vector<8x128xi32>
    %1038 = arith.sitofp %1037 : vector<8x128xi32> to vector<8x128xf32>
    %1039 = arith.truncf %1038 : vector<8x128xf32> to vector<8x128xbf16>
    %c5_794 = arith.constant 5 : index
    %c0_795 = arith.constant 0 : index
    %c0_796 = arith.constant 0 : index
    %1040 = vector.load %arg10[%c5_794, %c0_795, %c0_796] : memref<9x8x128xf32, #tpu.memory_space<vmem>>, vector<1x8x128xf32>
    %1041 = vector.shape_cast %1040 : vector<1x8x128xf32> to vector<8x128xf32>
    %1042 = vector.shape_cast %1034 : vector<8x128xf32> to vector<1x8x128xf32>
    tpu.vector_store %arg10[%c5_794, %c0_795, %c0_796], %1042 {strides = array<i32>} : memref<9x8x128xf32, #tpu.memory_space<vmem>>, vector<1x8x128xf32>,
    %c5_797 = arith.constant 5 : index
    %c0_798 = arith.constant 0 : index
    %c0_799 = arith.constant 0 : index
    %1043 = vector.load %arg11[%c5_797, %c0_798, %c0_799] : memref<9x8x128xbf16, #tpu.memory_space<vmem>>, vector<1x8x128xbf16>
    %1044 = vector.shape_cast %1043 : vector<1x8x128xbf16> to vector<8x128xbf16>
    %1045 = vector.shape_cast %1039 : vector<8x128xbf16> to vector<1x8x128xbf16>
    tpu.vector_store %arg11[%c5_797, %c0_798, %c0_799], %1045 {strides = array<i32>} : memref<9x8x128xbf16, #tpu.memory_space<vmem>>, vector<1x8x128xbf16>,
    %c5_800 = arith.constant 5 : index
    %c0_801 = arith.constant 0 : index
    %c0_802 = arith.constant 0 : index
    %1046 = vector.load %arg4[%c5_800, %c0_801, %c0_802] : memref<8x128x128xbf16, #tpu.memory_space<vmem>>, vector<1x128x128xbf16>
    %1047 = vector.shape_cast %1046 : vector<1x128x128xbf16> to vector<128x128xbf16>
    %cst_803 = arith.constant dense<0.000000e+00> : vector<8x128xf32>
    %1048 = tpu.matmul %1039, %1047, %cst_803 {dimension_numbers = #tpu.dot_dimension_numbers<[1], [0], [0], [1], [0, 0, 1, 1], [], []>} : vector<8x128xbf16>, vector<128x128xbf16>, vector<8x128xf32> -> vector<8x128xf32>
    %c5_804 = arith.constant 5 : index
    %c0_805 = arith.constant 0 : index
    %c0_806 = arith.constant 0 : index
    %1049 = vector.load %arg5[%c5_804, %c0_805, %c0_806] : memref<8x1x128xf32, #tpu.memory_space<vmem>>, vector<1x1x128xf32>
    %1050 = vector.shape_cast %1049 : vector<1x1x128xf32> to vector<1x128xf32>
    %1051 = vector.broadcast %1050 : vector<1x128xf32> to vector<8x128xf32>
    %1052 = arith.addf %1048, %1051 : vector<8x128xf32>
    %c6_807 = arith.constant 6 : index
    %c0_808 = arith.constant 0 : index
    %c0_809 = arith.constant 0 : index
    %1053 = vector.load %arg10[%c6_807, %c0_808, %c0_809] : memref<9x8x128xf32, #tpu.memory_space<vmem>>, vector<1x8x128xf32>
    %1054 = vector.shape_cast %1053 : vector<1x8x128xf32> to vector<8x128xf32>
    %cst_810 = arith.constant 8.000000e-01 : f32
    %1055 = vector.broadcast %cst_810 : f32 to vector<8x128xf32>
    %1056 = arith.mulf %1055, %1054 : vector<8x128xf32>
    %1057 = arith.addf %1056, %1052 : vector<8x128xf32>
    %c6_811 = arith.constant 6 : index
    %c0_812 = arith.constant 0 : index
    %c0_813 = arith.constant 0 : index
    %1058 = vector.load %arg11[%c6_811, %c0_812, %c0_813] : memref<9x8x128xbf16, #tpu.memory_space<vmem>>, vector<1x8x128xbf16>
    %1059 = vector.shape_cast %1058 : vector<1x8x128xbf16> to vector<8x128xbf16>
    %cst_814 = arith.constant 5.000000e-01 : bf16
    %1060 = vector.broadcast %cst_814 : bf16 to vector<8x128xbf16>
    %1061 = arith.mulf %1059, %1060 : vector<8x128xbf16>
    %1062 = arith.extf %1061 : vector<8x128xbf16> to vector<8x128xf32>
    %1063 = arith.subf %1057, %1062 : vector<8x128xf32>
    %cst_815 = arith.constant 5.000000e-01 : f32
    %1064 = vector.broadcast %cst_815 : f32 to vector<8x128xf32>
    %1065 = arith.cmpf ogt, %1063, %1064 : vector<8x128xf32>
    %1066 = arith.extui %1065 : vector<8x128xi1> to vector<8x128xi32>
    %1067 = arith.sitofp %1066 : vector<8x128xi32> to vector<8x128xf32>
    %1068 = arith.truncf %1067 : vector<8x128xf32> to vector<8x128xbf16>
    %c6_816 = arith.constant 6 : index
    %c0_817 = arith.constant 0 : index
    %c0_818 = arith.constant 0 : index
    %1069 = vector.load %arg10[%c6_816, %c0_817, %c0_818] : memref<9x8x128xf32, #tpu.memory_space<vmem>>, vector<1x8x128xf32>
    %1070 = vector.shape_cast %1069 : vector<1x8x128xf32> to vector<8x128xf32>
    %1071 = vector.shape_cast %1063 : vector<8x128xf32> to vector<1x8x128xf32>
    tpu.vector_store %arg10[%c6_816, %c0_817, %c0_818], %1071 {strides = array<i32>} : memref<9x8x128xf32, #tpu.memory_space<vmem>>, vector<1x8x128xf32>,
    %c6_819 = arith.constant 6 : index
    %c0_820 = arith.constant 0 : index
    %c0_821 = arith.constant 0 : index
    %1072 = vector.load %arg11[%c6_819, %c0_820, %c0_821] : memref<9x8x128xbf16, #tpu.memory_space<vmem>>, vector<1x8x128xbf16>
    %1073 = vector.shape_cast %1072 : vector<1x8x128xbf16> to vector<8x128xbf16>
    %1074 = vector.shape_cast %1068 : vector<8x128xbf16> to vector<1x8x128xbf16>
    tpu.vector_store %arg11[%c6_819, %c0_820, %c0_821], %1074 {strides = array<i32>} : memref<9x8x128xbf16, #tpu.memory_space<vmem>>, vector<1x8x128xbf16>,
    %c6_822 = arith.constant 6 : index
    %c0_823 = arith.constant 0 : index
    %c0_824 = arith.constant 0 : index
    %1075 = vector.load %arg4[%c6_822, %c0_823, %c0_824] : memref<8x128x128xbf16, #tpu.memory_space<vmem>>, vector<1x128x128xbf16>
    %1076 = vector.shape_cast %1075 : vector<1x128x128xbf16> to vector<128x128xbf16>
    %cst_825 = arith.constant dense<0.000000e+00> : vector<8x128xf32>
    %1077 = tpu.matmul %1068, %1076, %cst_825 {dimension_numbers = #tpu.dot_dimension_numbers<[1], [0], [0], [1], [0, 0, 1, 1], [], []>} : vector<8x128xbf16>, vector<128x128xbf16>, vector<8x128xf32> -> vector<8x128xf32>
    %c6_826 = arith.constant 6 : index
    %c0_827 = arith.constant 0 : index
    %c0_828 = arith.constant 0 : index
    %1078 = vector.load %arg5[%c6_826, %c0_827, %c0_828] : memref<8x1x128xf32, #tpu.memory_space<vmem>>, vector<1x1x128xf32>
    %1079 = vector.shape_cast %1078 : vector<1x1x128xf32> to vector<1x128xf32>
    %1080 = vector.broadcast %1079 : vector<1x128xf32> to vector<8x128xf32>
    %1081 = arith.addf %1077, %1080 : vector<8x128xf32>
    %c7_829 = arith.constant 7 : index
    %c0_830 = arith.constant 0 : index
    %c0_831 = arith.constant 0 : index
    %1082 = vector.load %arg10[%c7_829, %c0_830, %c0_831] : memref<9x8x128xf32, #tpu.memory_space<vmem>>, vector<1x8x128xf32>
    %1083 = vector.shape_cast %1082 : vector<1x8x128xf32> to vector<8x128xf32>
    %cst_832 = arith.constant 8.000000e-01 : f32
    %1084 = vector.broadcast %cst_832 : f32 to vector<8x128xf32>
    %1085 = arith.mulf %1084, %1083 : vector<8x128xf32>
    %1086 = arith.addf %1085, %1081 : vector<8x128xf32>
    %c7_833 = arith.constant 7 : index
    %c0_834 = arith.constant 0 : index
    %c0_835 = arith.constant 0 : index
    %1087 = vector.load %arg11[%c7_833, %c0_834, %c0_835] : memref<9x8x128xbf16, #tpu.memory_space<vmem>>, vector<1x8x128xbf16>
    %1088 = vector.shape_cast %1087 : vector<1x8x128xbf16> to vector<8x128xbf16>
    %cst_836 = arith.constant 5.000000e-01 : bf16
    %1089 = vector.broadcast %cst_836 : bf16 to vector<8x128xbf16>
    %1090 = arith.mulf %1088, %1089 : vector<8x128xbf16>
    %1091 = arith.extf %1090 : vector<8x128xbf16> to vector<8x128xf32>
    %1092 = arith.subf %1086, %1091 : vector<8x128xf32>
    %cst_837 = arith.constant 5.000000e-01 : f32
    %1093 = vector.broadcast %cst_837 : f32 to vector<8x128xf32>
    %1094 = arith.cmpf ogt, %1092, %1093 : vector<8x128xf32>
    %1095 = arith.extui %1094 : vector<8x128xi1> to vector<8x128xi32>
    %1096 = arith.sitofp %1095 : vector<8x128xi32> to vector<8x128xf32>
    %1097 = arith.truncf %1096 : vector<8x128xf32> to vector<8x128xbf16>
    %c7_838 = arith.constant 7 : index
    %c0_839 = arith.constant 0 : index
    %c0_840 = arith.constant 0 : index
    %1098 = vector.load %arg10[%c7_838, %c0_839, %c0_840] : memref<9x8x128xf32, #tpu.memory_space<vmem>>, vector<1x8x128xf32>
    %1099 = vector.shape_cast %1098 : vector<1x8x128xf32> to vector<8x128xf32>
    %1100 = vector.shape_cast %1092 : vector<8x128xf32> to vector<1x8x128xf32>
    tpu.vector_store %arg10[%c7_838, %c0_839, %c0_840], %1100 {strides = array<i32>} : memref<9x8x128xf32, #tpu.memory_space<vmem>>, vector<1x8x128xf32>,
    %c7_841 = arith.constant 7 : index
    %c0_842 = arith.constant 0 : index
    %c0_843 = arith.constant 0 : index
    %1101 = vector.load %arg11[%c7_841, %c0_842, %c0_843] : memref<9x8x128xbf16, #tpu.memory_space<vmem>>, vector<1x8x128xbf16>
    %1102 = vector.shape_cast %1101 : vector<1x8x128xbf16> to vector<8x128xbf16>
    %1103 = vector.shape_cast %1097 : vector<8x128xbf16> to vector<1x8x128xbf16>
    tpu.vector_store %arg11[%c7_841, %c0_842, %c0_843], %1103 {strides = array<i32>} : memref<9x8x128xbf16, #tpu.memory_space<vmem>>, vector<1x8x128xbf16>,
    %c7_844 = arith.constant 7 : index
    %c0_845 = arith.constant 0 : index
    %c0_846 = arith.constant 0 : index
    %1104 = vector.load %arg4[%c7_844, %c0_845, %c0_846] : memref<8x128x128xbf16, #tpu.memory_space<vmem>>, vector<1x128x128xbf16>
    %1105 = vector.shape_cast %1104 : vector<1x128x128xbf16> to vector<128x128xbf16>
    %cst_847 = arith.constant dense<0.000000e+00> : vector<8x128xf32>
    %1106 = tpu.matmul %1097, %1105, %cst_847 {dimension_numbers = #tpu.dot_dimension_numbers<[1], [0], [0], [1], [0, 0, 1, 1], [], []>} : vector<8x128xbf16>, vector<128x128xbf16>, vector<8x128xf32> -> vector<8x128xf32>
    %c7_848 = arith.constant 7 : index
    %c0_849 = arith.constant 0 : index
    %c0_850 = arith.constant 0 : index
    %1107 = vector.load %arg5[%c7_848, %c0_849, %c0_850] : memref<8x1x128xf32, #tpu.memory_space<vmem>>, vector<1x1x128xf32>
    %1108 = vector.shape_cast %1107 : vector<1x1x128xf32> to vector<1x128xf32>
    %1109 = vector.broadcast %1108 : vector<1x128xf32> to vector<8x128xf32>
    %1110 = arith.addf %1106, %1109 : vector<8x128xf32>
    %c8_851 = arith.constant 8 : index
    %c0_852 = arith.constant 0 : index
    %c0_853 = arith.constant 0 : index
    %1111 = vector.load %arg10[%c8_851, %c0_852, %c0_853] : memref<9x8x128xf32, #tpu.memory_space<vmem>>, vector<1x8x128xf32>
    %1112 = vector.shape_cast %1111 : vector<1x8x128xf32> to vector<8x128xf32>
    %cst_854 = arith.constant 8.000000e-01 : f32
    %1113 = vector.broadcast %cst_854 : f32 to vector<8x128xf32>
    %1114 = arith.mulf %1113, %1112 : vector<8x128xf32>
    %1115 = arith.addf %1114, %1110 : vector<8x128xf32>
    %c8_855 = arith.constant 8 : index
    %c0_856 = arith.constant 0 : index
    %c0_857 = arith.constant 0 : index
    %1116 = vector.load %arg11[%c8_855, %c0_856, %c0_857] : memref<9x8x128xbf16, #tpu.memory_space<vmem>>, vector<1x8x128xbf16>
    %1117 = vector.shape_cast %1116 : vector<1x8x128xbf16> to vector<8x128xbf16>
    %cst_858 = arith.constant 5.000000e-01 : bf16
    %1118 = vector.broadcast %cst_858 : bf16 to vector<8x128xbf16>
    %1119 = arith.mulf %1117, %1118 : vector<8x128xbf16>
    %1120 = arith.extf %1119 : vector<8x128xbf16> to vector<8x128xf32>
    %1121 = arith.subf %1115, %1120 : vector<8x128xf32>
    %cst_859 = arith.constant 5.000000e-01 : f32
    %1122 = vector.broadcast %cst_859 : f32 to vector<8x128xf32>
    %1123 = arith.cmpf ogt, %1121, %1122 : vector<8x128xf32>
    %1124 = arith.extui %1123 : vector<8x128xi1> to vector<8x128xi32>
    %1125 = arith.sitofp %1124 : vector<8x128xi32> to vector<8x128xf32>
    %1126 = arith.truncf %1125 : vector<8x128xf32> to vector<8x128xbf16>
    %c8_860 = arith.constant 8 : index
    %c0_861 = arith.constant 0 : index
    %c0_862 = arith.constant 0 : index
    %1127 = vector.load %arg10[%c8_860, %c0_861, %c0_862] : memref<9x8x128xf32, #tpu.memory_space<vmem>>, vector<1x8x128xf32>
    %1128 = vector.shape_cast %1127 : vector<1x8x128xf32> to vector<8x128xf32>
    %1129 = vector.shape_cast %1121 : vector<8x128xf32> to vector<1x8x128xf32>
    tpu.vector_store %arg10[%c8_860, %c0_861, %c0_862], %1129 {strides = array<i32>} : memref<9x8x128xf32, #tpu.memory_space<vmem>>, vector<1x8x128xf32>,
    %c8_863 = arith.constant 8 : index
    %c0_864 = arith.constant 0 : index
    %c0_865 = arith.constant 0 : index
    %1130 = vector.load %arg11[%c8_863, %c0_864, %c0_865] : memref<9x8x128xbf16, #tpu.memory_space<vmem>>, vector<1x8x128xbf16>
    %1131 = vector.shape_cast %1130 : vector<1x8x128xbf16> to vector<8x128xbf16>
    %1132 = vector.shape_cast %1126 : vector<8x128xbf16> to vector<1x8x128xbf16>
    tpu.vector_store %arg11[%c8_863, %c0_864, %c0_865], %1132 {strides = array<i32>} : memref<9x8x128xbf16, #tpu.memory_space<vmem>>, vector<1x8x128xbf16>,
    %c0_866 = arith.constant 0 : index
    %c0_867 = arith.constant 0 : index
    %1133 = vector.load %arg6[%c0_866, %c0_867] : memref<128x128xbf16, #tpu.memory_space<vmem>>, vector<128x128xbf16>
    %cst_868 = arith.constant dense<0.000000e+00> : vector<8x128xf32>
    %1134 = tpu.matmul %1126, %1133, %cst_868 {dimension_numbers = #tpu.dot_dimension_numbers<[1], [0], [0], [1], [0, 0, 1, 1], [], []>} : vector<8x128xbf16>, vector<128x128xbf16>, vector<8x128xf32> -> vector<8x128xf32>
    %c0_869 = arith.constant 0 : index
    %c0_870 = arith.constant 0 : index
    %1135 = vector.load %arg7[%c0_869, %c0_870] : memref<1x128xf32, #tpu.memory_space<vmem>>, vector<1x128xf32>
    %1136 = vector.broadcast %1135 : vector<1x128xf32> to vector<8x128xf32>
    %1137 = arith.addf %1134, %1136 : vector<8x128xf32>
    %c0_871 = arith.constant 0 : index
    %c0_872 = arith.constant 0 : index
    %1138 = vector.load %arg12[%c0_871, %c0_872] : memref<8x128xf32, #tpu.memory_space<vmem>>, vector<8x128xf32>
    %cst_873 = arith.constant 8.000000e-01 : f32
    %1139 = vector.broadcast %cst_873 : f32 to vector<8x128xf32>
    %1140 = arith.mulf %1139, %1138 : vector<8x128xf32>
    %1141 = arith.addf %1140, %1137 : vector<8x128xf32>
    %c0_874 = arith.constant 0 : index
    %c0_875 = arith.constant 0 : index
    %1142 = vector.load %arg13[%c0_874, %c0_875] : memref<8x128xf32, #tpu.memory_space<vmem>>, vector<8x128xf32>
    %cst_876 = arith.constant 5.000000e-01 : f32
    %1143 = vector.broadcast %cst_876 : f32 to vector<8x128xf32>
    %1144 = arith.mulf %1142, %1143 : vector<8x128xf32>
    %1145 = arith.subf %1141, %1144 : vector<8x128xf32>
    %cst_877 = arith.constant 5.000000e-01 : f32
    %1146 = vector.broadcast %cst_877 : f32 to vector<8x128xf32>
    %1147 = arith.cmpf ogt, %1145, %1146 : vector<8x128xf32>
    %1148 = arith.extui %1147 : vector<8x128xi1> to vector<8x128xi32>
    %1149 = arith.sitofp %1148 : vector<8x128xi32> to vector<8x128xf32>
    %c0_878 = arith.constant 0 : index
    %c0_879 = arith.constant 0 : index
    %1150 = vector.load %arg12[%c0_878, %c0_879] : memref<8x128xf32, #tpu.memory_space<vmem>>, vector<8x128xf32>
    tpu.vector_store %arg12[%c0_878, %c0_879], %1145 {strides = array<i32>} : memref<8x128xf32, #tpu.memory_space<vmem>>, vector<8x128xf32>,
    %c0_880 = arith.constant 0 : index
    %c0_881 = arith.constant 0 : index
    %1151 = vector.load %arg13[%c0_880, %c0_881] : memref<8x128xf32, #tpu.memory_space<vmem>>, vector<8x128xf32>
    tpu.vector_store %arg13[%c0_880, %c0_881], %1149 {strides = array<i32>} : memref<8x128xf32, #tpu.memory_space<vmem>>, vector<8x128xf32>,
    %c0_882 = arith.constant 0 : index
    %c0_883 = arith.constant 0 : index
    %1152 = vector.load %arg8[%c0_882, %c0_883] : memref<8x128xf32, #tpu.memory_space<vmem>>, vector<8x128xf32>
    %1153 = arith.addf %1152, %1149 : vector<8x128xf32>
    %c0_884 = arith.constant 0 : index
    %c0_885 = arith.constant 0 : index
    %1154 = vector.load %arg8[%c0_884, %c0_885] : memref<8x128xf32, #tpu.memory_space<vmem>>, vector<8x128xf32>
    tpu.vector_store %arg8[%c0_884, %c0_885], %1153 {strides = array<i32>} : memref<8x128xf32, #tpu.memory_space<vmem>>, vector<8x128xf32>,
    %cst_886 = arith.constant dense<0.000000e+00> : vector<8xf32>
    %1155 = vector.multi_reduction <add>, %1149, %cst_886 [1] : vector<8x128xf32> to vector<8xf32>
    %1156 = vector.shape_cast %1155 : vector<8xf32> to vector<8x1xf32>
    %c19_i32 = arith.constant 19 : i32
    %1157 = vector.broadcast %c19_i32 : i32 to vector<8x128xi32>
    %1158 = arith.cmpi eq, %19, %1157 : vector<8x128xi32>
    %c0_887 = arith.constant 0 : index
    %c0_888 = arith.constant 0 : index
    %1159 = vector.load %arg14[%c0_887, %c0_888] : memref<8x128xf32, #tpu.memory_space<vmem>>, vector<8x128xf32>
    %1160 = vector.shape_cast %1156 : vector<8x1xf32> to vector<8x1xf32>
    %1161 = vector.broadcast %1160 : vector<8x1xf32> to vector<8x128xf32>
    %1162 = arith.select %1158, %1161, %1159 : vector<8x128xi1>, vector<8x128xf32>
    %c0_889 = arith.constant 0 : index
    %c0_890 = arith.constant 0 : index
    %1163 = vector.load %arg14[%c0_889, %c0_890] : memref<8x128xf32, #tpu.memory_space<vmem>>, vector<8x128xf32>
    tpu.vector_store %arg14[%c0_889, %c0_890], %1162 {strides = array<i32>} : memref<8x128xf32, #tpu.memory_space<vmem>>, vector<8x128xf32>,
    %c0_891 = arith.constant 0 : index
    %c0_892 = arith.constant 0 : index
    %1164 = vector.load %arg9[%c0_891, %c0_892] : memref<8x128xf32, #tpu.memory_space<vmem>>, vector<8x128xf32>
    %c0_893 = arith.constant 0 : index
    %c0_894 = arith.constant 0 : index
    %c0_895 = arith.constant 0 : index
    %1165 = vector.load %arg10[%c0_893, %c0_894, %c0_895] : memref<9x8x128xf32, #tpu.memory_space<vmem>>, vector<1x8x128xf32>
    %1166 = vector.shape_cast %1165 : vector<1x8x128xf32> to vector<8x128xf32>
    %cst_896 = arith.constant 8.000000e-01 : f32
    %1167 = vector.broadcast %cst_896 : f32 to vector<8x128xf32>
    %1168 = arith.mulf %1167, %1166 : vector<8x128xf32>
    %1169 = arith.addf %1168, %1164 : vector<8x128xf32>
    %c0_897 = arith.constant 0 : index
    %c0_898 = arith.constant 0 : index
    %c0_899 = arith.constant 0 : index
    %1170 = vector.load %arg11[%c0_897, %c0_898, %c0_899] : memref<9x8x128xbf16, #tpu.memory_space<vmem>>, vector<1x8x128xbf16>
    %1171 = vector.shape_cast %1170 : vector<1x8x128xbf16> to vector<8x128xbf16>
    %cst_900 = arith.constant 5.000000e-01 : bf16
    %1172 = vector.broadcast %cst_900 : bf16 to vector<8x128xbf16>
    %1173 = arith.mulf %1171, %1172 : vector<8x128xbf16>
    %1174 = arith.extf %1173 : vector<8x128xbf16> to vector<8x128xf32>
    %1175 = arith.subf %1169, %1174 : vector<8x128xf32>
    %cst_901 = arith.constant 5.000000e-01 : f32
    %1176 = vector.broadcast %cst_901 : f32 to vector<8x128xf32>
    %1177 = arith.cmpf ogt, %1175, %1176 : vector<8x128xf32>
    %1178 = arith.extui %1177 : vector<8x128xi1> to vector<8x128xi32>
    %1179 = arith.sitofp %1178 : vector<8x128xi32> to vector<8x128xf32>
    %1180 = arith.truncf %1179 : vector<8x128xf32> to vector<8x128xbf16>
    %c0_902 = arith.constant 0 : index
    %c0_903 = arith.constant 0 : index
    %c0_904 = arith.constant 0 : index
    %1181 = vector.load %arg10[%c0_902, %c0_903, %c0_904] : memref<9x8x128xf32, #tpu.memory_space<vmem>>, vector<1x8x128xf32>
    %1182 = vector.shape_cast %1181 : vector<1x8x128xf32> to vector<8x128xf32>
    %1183 = vector.shape_cast %1175 : vector<8x128xf32> to vector<1x8x128xf32>
    tpu.vector_store %arg10[%c0_902, %c0_903, %c0_904], %1183 {strides = array<i32>} : memref<9x8x128xf32, #tpu.memory_space<vmem>>, vector<1x8x128xf32>,
    %c0_905 = arith.constant 0 : index
    %c0_906 = arith.constant 0 : index
    %c0_907 = arith.constant 0 : index
    %1184 = vector.load %arg11[%c0_905, %c0_906, %c0_907] : memref<9x8x128xbf16, #tpu.memory_space<vmem>>, vector<1x8x128xbf16>
    %1185 = vector.shape_cast %1184 : vector<1x8x128xbf16> to vector<8x128xbf16>
    %1186 = vector.shape_cast %1180 : vector<8x128xbf16> to vector<1x8x128xbf16>
    tpu.vector_store %arg11[%c0_905, %c0_906, %c0_907], %1186 {strides = array<i32>} : memref<9x8x128xbf16, #tpu.memory_space<vmem>>, vector<1x8x128xbf16>,
    %c0_908 = arith.constant 0 : index
    %c0_909 = arith.constant 0 : index
    %c0_910 = arith.constant 0 : index
    %1187 = vector.load %arg4[%c0_908, %c0_909, %c0_910] : memref<8x128x128xbf16, #tpu.memory_space<vmem>>, vector<1x128x128xbf16>
    %1188 = vector.shape_cast %1187 : vector<1x128x128xbf16> to vector<128x128xbf16>
    %cst_911 = arith.constant dense<0.000000e+00> : vector<8x128xf32>
    %1189 = tpu.matmul %1180, %1188, %cst_911 {dimension_numbers = #tpu.dot_dimension_numbers<[1], [0], [0], [1], [0, 0, 1, 1], [], []>} : vector<8x128xbf16>, vector<128x128xbf16>, vector<8x128xf32> -> vector<8x128xf32>
    %c0_912 = arith.constant 0 : index
    %c0_913 = arith.constant 0 : index
    %c0_914 = arith.constant 0 : index
    %1190 = vector.load %arg5[%c0_912, %c0_913, %c0_914] : memref<8x1x128xf32, #tpu.memory_space<vmem>>, vector<1x1x128xf32>
    %1191 = vector.shape_cast %1190 : vector<1x1x128xf32> to vector<1x128xf32>
    %1192 = vector.broadcast %1191 : vector<1x128xf32> to vector<8x128xf32>
    %1193 = arith.addf %1189, %1192 : vector<8x128xf32>
    %c1_915 = arith.constant 1 : index
    %c0_916 = arith.constant 0 : index
    %c0_917 = arith.constant 0 : index
    %1194 = vector.load %arg10[%c1_915, %c0_916, %c0_917] : memref<9x8x128xf32, #tpu.memory_space<vmem>>, vector<1x8x128xf32>
    %1195 = vector.shape_cast %1194 : vector<1x8x128xf32> to vector<8x128xf32>
    %cst_918 = arith.constant 8.000000e-01 : f32
    %1196 = vector.broadcast %cst_918 : f32 to vector<8x128xf32>
    %1197 = arith.mulf %1196, %1195 : vector<8x128xf32>
    %1198 = arith.addf %1197, %1193 : vector<8x128xf32>
    %c1_919 = arith.constant 1 : index
    %c0_920 = arith.constant 0 : index
    %c0_921 = arith.constant 0 : index
    %1199 = vector.load %arg11[%c1_919, %c0_920, %c0_921] : memref<9x8x128xbf16, #tpu.memory_space<vmem>>, vector<1x8x128xbf16>
    %1200 = vector.shape_cast %1199 : vector<1x8x128xbf16> to vector<8x128xbf16>
    %cst_922 = arith.constant 5.000000e-01 : bf16
    %1201 = vector.broadcast %cst_922 : bf16 to vector<8x128xbf16>
    %1202 = arith.mulf %1200, %1201 : vector<8x128xbf16>
    %1203 = arith.extf %1202 : vector<8x128xbf16> to vector<8x128xf32>
    %1204 = arith.subf %1198, %1203 : vector<8x128xf32>
    %cst_923 = arith.constant 5.000000e-01 : f32
    %1205 = vector.broadcast %cst_923 : f32 to vector<8x128xf32>
    %1206 = arith.cmpf ogt, %1204, %1205 : vector<8x128xf32>
    %1207 = arith.extui %1206 : vector<8x128xi1> to vector<8x128xi32>
    %1208 = arith.sitofp %1207 : vector<8x128xi32> to vector<8x128xf32>
    %1209 = arith.truncf %1208 : vector<8x128xf32> to vector<8x128xbf16>
    %c1_924 = arith.constant 1 : index
    %c0_925 = arith.constant 0 : index
    %c0_926 = arith.constant 0 : index
    %1210 = vector.load %arg10[%c1_924, %c0_925, %c0_926] : memref<9x8x128xf32, #tpu.memory_space<vmem>>, vector<1x8x128xf32>
    %1211 = vector.shape_cast %1210 : vector<1x8x128xf32> to vector<8x128xf32>
    %1212 = vector.shape_cast %1204 : vector<8x128xf32> to vector<1x8x128xf32>
    tpu.vector_store %arg10[%c1_924, %c0_925, %c0_926], %1212 {strides = array<i32>} : memref<9x8x128xf32, #tpu.memory_space<vmem>>, vector<1x8x128xf32>,
    %c1_927 = arith.constant 1 : index
    %c0_928 = arith.constant 0 : index
    %c0_929 = arith.constant 0 : index
    %1213 = vector.load %arg11[%c1_927, %c0_928, %c0_929] : memref<9x8x128xbf16, #tpu.memory_space<vmem>>, vector<1x8x128xbf16>
    %1214 = vector.shape_cast %1213 : vector<1x8x128xbf16> to vector<8x128xbf16>
    %1215 = vector.shape_cast %1209 : vector<8x128xbf16> to vector<1x8x128xbf16>
    tpu.vector_store %arg11[%c1_927, %c0_928, %c0_929], %1215 {strides = array<i32>} : memref<9x8x128xbf16, #tpu.memory_space<vmem>>, vector<1x8x128xbf16>,
    %c1_930 = arith.constant 1 : index
    %c0_931 = arith.constant 0 : index
    %c0_932 = arith.constant 0 : index
    %1216 = vector.load %arg4[%c1_930, %c0_931, %c0_932] : memref<8x128x128xbf16, #tpu.memory_space<vmem>>, vector<1x128x128xbf16>
    %1217 = vector.shape_cast %1216 : vector<1x128x128xbf16> to vector<128x128xbf16>
    %cst_933 = arith.constant dense<0.000000e+00> : vector<8x128xf32>
    %1218 = tpu.matmul %1209, %1217, %cst_933 {dimension_numbers = #tpu.dot_dimension_numbers<[1], [0], [0], [1], [0, 0, 1, 1], [], []>} : vector<8x128xbf16>, vector<128x128xbf16>, vector<8x128xf32> -> vector<8x128xf32>
    %c1_934 = arith.constant 1 : index
    %c0_935 = arith.constant 0 : index
    %c0_936 = arith.constant 0 : index
    %1219 = vector.load %arg5[%c1_934, %c0_935, %c0_936] : memref<8x1x128xf32, #tpu.memory_space<vmem>>, vector<1x1x128xf32>
    %1220 = vector.shape_cast %1219 : vector<1x1x128xf32> to vector<1x128xf32>
    %1221 = vector.broadcast %1220 : vector<1x128xf32> to vector<8x128xf32>
    %1222 = arith.addf %1218, %1221 : vector<8x128xf32>
    %c2_937 = arith.constant 2 : index
    %c0_938 = arith.constant 0 : index
    %c0_939 = arith.constant 0 : index
    %1223 = vector.load %arg10[%c2_937, %c0_938, %c0_939] : memref<9x8x128xf32, #tpu.memory_space<vmem>>, vector<1x8x128xf32>
    %1224 = vector.shape_cast %1223 : vector<1x8x128xf32> to vector<8x128xf32>
    %cst_940 = arith.constant 8.000000e-01 : f32
    %1225 = vector.broadcast %cst_940 : f32 to vector<8x128xf32>
    %1226 = arith.mulf %1225, %1224 : vector<8x128xf32>
    %1227 = arith.addf %1226, %1222 : vector<8x128xf32>
    %c2_941 = arith.constant 2 : index
    %c0_942 = arith.constant 0 : index
    %c0_943 = arith.constant 0 : index
    %1228 = vector.load %arg11[%c2_941, %c0_942, %c0_943] : memref<9x8x128xbf16, #tpu.memory_space<vmem>>, vector<1x8x128xbf16>
    %1229 = vector.shape_cast %1228 : vector<1x8x128xbf16> to vector<8x128xbf16>
    %cst_944 = arith.constant 5.000000e-01 : bf16
    %1230 = vector.broadcast %cst_944 : bf16 to vector<8x128xbf16>
    %1231 = arith.mulf %1229, %1230 : vector<8x128xbf16>
    %1232 = arith.extf %1231 : vector<8x128xbf16> to vector<8x128xf32>
    %1233 = arith.subf %1227, %1232 : vector<8x128xf32>
    %cst_945 = arith.constant 5.000000e-01 : f32
    %1234 = vector.broadcast %cst_945 : f32 to vector<8x128xf32>
    %1235 = arith.cmpf ogt, %1233, %1234 : vector<8x128xf32>
    %1236 = arith.extui %1235 : vector<8x128xi1> to vector<8x128xi32>
    %1237 = arith.sitofp %1236 : vector<8x128xi32> to vector<8x128xf32>
    %1238 = arith.truncf %1237 : vector<8x128xf32> to vector<8x128xbf16>
    %c2_946 = arith.constant 2 : index
    %c0_947 = arith.constant 0 : index
    %c0_948 = arith.constant 0 : index
    %1239 = vector.load %arg10[%c2_946, %c0_947, %c0_948] : memref<9x8x128xf32, #tpu.memory_space<vmem>>, vector<1x8x128xf32>
    %1240 = vector.shape_cast %1239 : vector<1x8x128xf32> to vector<8x128xf32>
    %1241 = vector.shape_cast %1233 : vector<8x128xf32> to vector<1x8x128xf32>
    tpu.vector_store %arg10[%c2_946, %c0_947, %c0_948], %1241 {strides = array<i32>} : memref<9x8x128xf32, #tpu.memory_space<vmem>>, vector<1x8x128xf32>,
    %c2_949 = arith.constant 2 : index
    %c0_950 = arith.constant 0 : index
    %c0_951 = arith.constant 0 : index
    %1242 = vector.load %arg11[%c2_949, %c0_950, %c0_951] : memref<9x8x128xbf16, #tpu.memory_space<vmem>>, vector<1x8x128xbf16>
    %1243 = vector.shape_cast %1242 : vector<1x8x128xbf16> to vector<8x128xbf16>
    %1244 = vector.shape_cast %1238 : vector<8x128xbf16> to vector<1x8x128xbf16>
    tpu.vector_store %arg11[%c2_949, %c0_950, %c0_951], %1244 {strides = array<i32>} : memref<9x8x128xbf16, #tpu.memory_space<vmem>>, vector<1x8x128xbf16>,
    %c2_952 = arith.constant 2 : index
    %c0_953 = arith.constant 0 : index
    %c0_954 = arith.constant 0 : index
    %1245 = vector.load %arg4[%c2_952, %c0_953, %c0_954] : memref<8x128x128xbf16, #tpu.memory_space<vmem>>, vector<1x128x128xbf16>
    %1246 = vector.shape_cast %1245 : vector<1x128x128xbf16> to vector<128x128xbf16>
    %cst_955 = arith.constant dense<0.000000e+00> : vector<8x128xf32>
    %1247 = tpu.matmul %1238, %1246, %cst_955 {dimension_numbers = #tpu.dot_dimension_numbers<[1], [0], [0], [1], [0, 0, 1, 1], [], []>} : vector<8x128xbf16>, vector<128x128xbf16>, vector<8x128xf32> -> vector<8x128xf32>
    %c2_956 = arith.constant 2 : index
    %c0_957 = arith.constant 0 : index
    %c0_958 = arith.constant 0 : index
    %1248 = vector.load %arg5[%c2_956, %c0_957, %c0_958] : memref<8x1x128xf32, #tpu.memory_space<vmem>>, vector<1x1x128xf32>
    %1249 = vector.shape_cast %1248 : vector<1x1x128xf32> to vector<1x128xf32>
    %1250 = vector.broadcast %1249 : vector<1x128xf32> to vector<8x128xf32>
    %1251 = arith.addf %1247, %1250 : vector<8x128xf32>
    %c3_959 = arith.constant 3 : index
    %c0_960 = arith.constant 0 : index
    %c0_961 = arith.constant 0 : index
    %1252 = vector.load %arg10[%c3_959, %c0_960, %c0_961] : memref<9x8x128xf32, #tpu.memory_space<vmem>>, vector<1x8x128xf32>
    %1253 = vector.shape_cast %1252 : vector<1x8x128xf32> to vector<8x128xf32>
    %cst_962 = arith.constant 8.000000e-01 : f32
    %1254 = vector.broadcast %cst_962 : f32 to vector<8x128xf32>
    %1255 = arith.mulf %1254, %1253 : vector<8x128xf32>
    %1256 = arith.addf %1255, %1251 : vector<8x128xf32>
    %c3_963 = arith.constant 3 : index
    %c0_964 = arith.constant 0 : index
    %c0_965 = arith.constant 0 : index
    %1257 = vector.load %arg11[%c3_963, %c0_964, %c0_965] : memref<9x8x128xbf16, #tpu.memory_space<vmem>>, vector<1x8x128xbf16>
    %1258 = vector.shape_cast %1257 : vector<1x8x128xbf16> to vector<8x128xbf16>
    %cst_966 = arith.constant 5.000000e-01 : bf16
    %1259 = vector.broadcast %cst_966 : bf16 to vector<8x128xbf16>
    %1260 = arith.mulf %1258, %1259 : vector<8x128xbf16>
    %1261 = arith.extf %1260 : vector<8x128xbf16> to vector<8x128xf32>
    %1262 = arith.subf %1256, %1261 : vector<8x128xf32>
    %cst_967 = arith.constant 5.000000e-01 : f32
    %1263 = vector.broadcast %cst_967 : f32 to vector<8x128xf32>
    %1264 = arith.cmpf ogt, %1262, %1263 : vector<8x128xf32>
    %1265 = arith.extui %1264 : vector<8x128xi1> to vector<8x128xi32>
    %1266 = arith.sitofp %1265 : vector<8x128xi32> to vector<8x128xf32>
    %1267 = arith.truncf %1266 : vector<8x128xf32> to vector<8x128xbf16>
    %c3_968 = arith.constant 3 : index
    %c0_969 = arith.constant 0 : index
    %c0_970 = arith.constant 0 : index
    %1268 = vector.load %arg10[%c3_968, %c0_969, %c0_970] : memref<9x8x128xf32, #tpu.memory_space<vmem>>, vector<1x8x128xf32>
    %1269 = vector.shape_cast %1268 : vector<1x8x128xf32> to vector<8x128xf32>
    %1270 = vector.shape_cast %1262 : vector<8x128xf32> to vector<1x8x128xf32>
    tpu.vector_store %arg10[%c3_968, %c0_969, %c0_970], %1270 {strides = array<i32>} : memref<9x8x128xf32, #tpu.memory_space<vmem>>, vector<1x8x128xf32>,
    %c3_971 = arith.constant 3 : index
    %c0_972 = arith.constant 0 : index
    %c0_973 = arith.constant 0 : index
    %1271 = vector.load %arg11[%c3_971, %c0_972, %c0_973] : memref<9x8x128xbf16, #tpu.memory_space<vmem>>, vector<1x8x128xbf16>
    %1272 = vector.shape_cast %1271 : vector<1x8x128xbf16> to vector<8x128xbf16>
    %1273 = vector.shape_cast %1267 : vector<8x128xbf16> to vector<1x8x128xbf16>
    tpu.vector_store %arg11[%c3_971, %c0_972, %c0_973], %1273 {strides = array<i32>} : memref<9x8x128xbf16, #tpu.memory_space<vmem>>, vector<1x8x128xbf16>,
    %c3_974 = arith.constant 3 : index
    %c0_975 = arith.constant 0 : index
    %c0_976 = arith.constant 0 : index
    %1274 = vector.load %arg4[%c3_974, %c0_975, %c0_976] : memref<8x128x128xbf16, #tpu.memory_space<vmem>>, vector<1x128x128xbf16>
    %1275 = vector.shape_cast %1274 : vector<1x128x128xbf16> to vector<128x128xbf16>
    %cst_977 = arith.constant dense<0.000000e+00> : vector<8x128xf32>
    %1276 = tpu.matmul %1267, %1275, %cst_977 {dimension_numbers = #tpu.dot_dimension_numbers<[1], [0], [0], [1], [0, 0, 1, 1], [], []>} : vector<8x128xbf16>, vector<128x128xbf16>, vector<8x128xf32> -> vector<8x128xf32>
    %c3_978 = arith.constant 3 : index
    %c0_979 = arith.constant 0 : index
    %c0_980 = arith.constant 0 : index
    %1277 = vector.load %arg5[%c3_978, %c0_979, %c0_980] : memref<8x1x128xf32, #tpu.memory_space<vmem>>, vector<1x1x128xf32>
    %1278 = vector.shape_cast %1277 : vector<1x1x128xf32> to vector<1x128xf32>
    %1279 = vector.broadcast %1278 : vector<1x128xf32> to vector<8x128xf32>
    %1280 = arith.addf %1276, %1279 : vector<8x128xf32>
    %c4_981 = arith.constant 4 : index
    %c0_982 = arith.constant 0 : index
    %c0_983 = arith.constant 0 : index
    %1281 = vector.load %arg10[%c4_981, %c0_982, %c0_983] : memref<9x8x128xf32, #tpu.memory_space<vmem>>, vector<1x8x128xf32>
    %1282 = vector.shape_cast %1281 : vector<1x8x128xf32> to vector<8x128xf32>
    %cst_984 = arith.constant 8.000000e-01 : f32
    %1283 = vector.broadcast %cst_984 : f32 to vector<8x128xf32>
    %1284 = arith.mulf %1283, %1282 : vector<8x128xf32>
    %1285 = arith.addf %1284, %1280 : vector<8x128xf32>
    %c4_985 = arith.constant 4 : index
    %c0_986 = arith.constant 0 : index
    %c0_987 = arith.constant 0 : index
    %1286 = vector.load %arg11[%c4_985, %c0_986, %c0_987] : memref<9x8x128xbf16, #tpu.memory_space<vmem>>, vector<1x8x128xbf16>
    %1287 = vector.shape_cast %1286 : vector<1x8x128xbf16> to vector<8x128xbf16>
    %cst_988 = arith.constant 5.000000e-01 : bf16
    %1288 = vector.broadcast %cst_988 : bf16 to vector<8x128xbf16>
    %1289 = arith.mulf %1287, %1288 : vector<8x128xbf16>
    %1290 = arith.extf %1289 : vector<8x128xbf16> to vector<8x128xf32>
    %1291 = arith.subf %1285, %1290 : vector<8x128xf32>
    %cst_989 = arith.constant 5.000000e-01 : f32
    %1292 = vector.broadcast %cst_989 : f32 to vector<8x128xf32>
    %1293 = arith.cmpf ogt, %1291, %1292 : vector<8x128xf32>
    %1294 = arith.extui %1293 : vector<8x128xi1> to vector<8x128xi32>
    %1295 = arith.sitofp %1294 : vector<8x128xi32> to vector<8x128xf32>
    %1296 = arith.truncf %1295 : vector<8x128xf32> to vector<8x128xbf16>
    %c4_990 = arith.constant 4 : index
    %c0_991 = arith.constant 0 : index
    %c0_992 = arith.constant 0 : index
    %1297 = vector.load %arg10[%c4_990, %c0_991, %c0_992] : memref<9x8x128xf32, #tpu.memory_space<vmem>>, vector<1x8x128xf32>
    %1298 = vector.shape_cast %1297 : vector<1x8x128xf32> to vector<8x128xf32>
    %1299 = vector.shape_cast %1291 : vector<8x128xf32> to vector<1x8x128xf32>
    tpu.vector_store %arg10[%c4_990, %c0_991, %c0_992], %1299 {strides = array<i32>} : memref<9x8x128xf32, #tpu.memory_space<vmem>>, vector<1x8x128xf32>,
    %c4_993 = arith.constant 4 : index
    %c0_994 = arith.constant 0 : index
    %c0_995 = arith.constant 0 : index
    %1300 = vector.load %arg11[%c4_993, %c0_994, %c0_995] : memref<9x8x128xbf16, #tpu.memory_space<vmem>>, vector<1x8x128xbf16>
    %1301 = vector.shape_cast %1300 : vector<1x8x128xbf16> to vector<8x128xbf16>
    %1302 = vector.shape_cast %1296 : vector<8x128xbf16> to vector<1x8x128xbf16>
    tpu.vector_store %arg11[%c4_993, %c0_994, %c0_995], %1302 {strides = array<i32>} : memref<9x8x128xbf16, #tpu.memory_space<vmem>>, vector<1x8x128xbf16>,
    %c4_996 = arith.constant 4 : index
    %c0_997 = arith.constant 0 : index
    %c0_998 = arith.constant 0 : index
    %1303 = vector.load %arg4[%c4_996, %c0_997, %c0_998] : memref<8x128x128xbf16, #tpu.memory_space<vmem>>, vector<1x128x128xbf16>
    %1304 = vector.shape_cast %1303 : vector<1x128x128xbf16> to vector<128x128xbf16>
    %cst_999 = arith.constant dense<0.000000e+00> : vector<8x128xf32>
    %1305 = tpu.matmul %1296, %1304, %cst_999 {dimension_numbers = #tpu.dot_dimension_numbers<[1], [0], [0], [1], [0, 0, 1, 1], [], []>} : vector<8x128xbf16>, vector<128x128xbf16>, vector<8x128xf32> -> vector<8x128xf32>
    %c4_1000 = arith.constant 4 : index
    %c0_1001 = arith.constant 0 : index
    %c0_1002 = arith.constant 0 : index
    %1306 = vector.load %arg5[%c4_1000, %c0_1001, %c0_1002] : memref<8x1x128xf32, #tpu.memory_space<vmem>>, vector<1x1x128xf32>
    %1307 = vector.shape_cast %1306 : vector<1x1x128xf32> to vector<1x128xf32>
    %1308 = vector.broadcast %1307 : vector<1x128xf32> to vector<8x128xf32>
    %1309 = arith.addf %1305, %1308 : vector<8x128xf32>
    %c5_1003 = arith.constant 5 : index
    %c0_1004 = arith.constant 0 : index
    %c0_1005 = arith.constant 0 : index
    %1310 = vector.load %arg10[%c5_1003, %c0_1004, %c0_1005] : memref<9x8x128xf32, #tpu.memory_space<vmem>>, vector<1x8x128xf32>
    %1311 = vector.shape_cast %1310 : vector<1x8x128xf32> to vector<8x128xf32>
    %cst_1006 = arith.constant 8.000000e-01 : f32
    %1312 = vector.broadcast %cst_1006 : f32 to vector<8x128xf32>
    %1313 = arith.mulf %1312, %1311 : vector<8x128xf32>
    %1314 = arith.addf %1313, %1309 : vector<8x128xf32>
    %c5_1007 = arith.constant 5 : index
    %c0_1008 = arith.constant 0 : index
    %c0_1009 = arith.constant 0 : index
    %1315 = vector.load %arg11[%c5_1007, %c0_1008, %c0_1009] : memref<9x8x128xbf16, #tpu.memory_space<vmem>>, vector<1x8x128xbf16>
    %1316 = vector.shape_cast %1315 : vector<1x8x128xbf16> to vector<8x128xbf16>
    %cst_1010 = arith.constant 5.000000e-01 : bf16
    %1317 = vector.broadcast %cst_1010 : bf16 to vector<8x128xbf16>
    %1318 = arith.mulf %1316, %1317 : vector<8x128xbf16>
    %1319 = arith.extf %1318 : vector<8x128xbf16> to vector<8x128xf32>
    %1320 = arith.subf %1314, %1319 : vector<8x128xf32>
    %cst_1011 = arith.constant 5.000000e-01 : f32
    %1321 = vector.broadcast %cst_1011 : f32 to vector<8x128xf32>
    %1322 = arith.cmpf ogt, %1320, %1321 : vector<8x128xf32>
    %1323 = arith.extui %1322 : vector<8x128xi1> to vector<8x128xi32>
    %1324 = arith.sitofp %1323 : vector<8x128xi32> to vector<8x128xf32>
    %1325 = arith.truncf %1324 : vector<8x128xf32> to vector<8x128xbf16>
    %c5_1012 = arith.constant 5 : index
    %c0_1013 = arith.constant 0 : index
    %c0_1014 = arith.constant 0 : index
    %1326 = vector.load %arg10[%c5_1012, %c0_1013, %c0_1014] : memref<9x8x128xf32, #tpu.memory_space<vmem>>, vector<1x8x128xf32>
    %1327 = vector.shape_cast %1326 : vector<1x8x128xf32> to vector<8x128xf32>
    %1328 = vector.shape_cast %1320 : vector<8x128xf32> to vector<1x8x128xf32>
    tpu.vector_store %arg10[%c5_1012, %c0_1013, %c0_1014], %1328 {strides = array<i32>} : memref<9x8x128xf32, #tpu.memory_space<vmem>>, vector<1x8x128xf32>,
    %c5_1015 = arith.constant 5 : index
    %c0_1016 = arith.constant 0 : index
    %c0_1017 = arith.constant 0 : index
    %1329 = vector.load %arg11[%c5_1015, %c0_1016, %c0_1017] : memref<9x8x128xbf16, #tpu.memory_space<vmem>>, vector<1x8x128xbf16>
    %1330 = vector.shape_cast %1329 : vector<1x8x128xbf16> to vector<8x128xbf16>
    %1331 = vector.shape_cast %1325 : vector<8x128xbf16> to vector<1x8x128xbf16>
    tpu.vector_store %arg11[%c5_1015, %c0_1016, %c0_1017], %1331 {strides = array<i32>} : memref<9x8x128xbf16, #tpu.memory_space<vmem>>, vector<1x8x128xbf16>,
    %c5_1018 = arith.constant 5 : index
    %c0_1019 = arith.constant 0 : index
    %c0_1020 = arith.constant 0 : index
    %1332 = vector.load %arg4[%c5_1018, %c0_1019, %c0_1020] : memref<8x128x128xbf16, #tpu.memory_space<vmem>>, vector<1x128x128xbf16>
    %1333 = vector.shape_cast %1332 : vector<1x128x128xbf16> to vector<128x128xbf16>
    %cst_1021 = arith.constant dense<0.000000e+00> : vector<8x128xf32>
    %1334 = tpu.matmul %1325, %1333, %cst_1021 {dimension_numbers = #tpu.dot_dimension_numbers<[1], [0], [0], [1], [0, 0, 1, 1], [], []>} : vector<8x128xbf16>, vector<128x128xbf16>, vector<8x128xf32> -> vector<8x128xf32>
    %c5_1022 = arith.constant 5 : index
    %c0_1023 = arith.constant 0 : index
    %c0_1024 = arith.constant 0 : index
    %1335 = vector.load %arg5[%c5_1022, %c0_1023, %c0_1024] : memref<8x1x128xf32, #tpu.memory_space<vmem>>, vector<1x1x128xf32>
    %1336 = vector.shape_cast %1335 : vector<1x1x128xf32> to vector<1x128xf32>
    %1337 = vector.broadcast %1336 : vector<1x128xf32> to vector<8x128xf32>
    %1338 = arith.addf %1334, %1337 : vector<8x128xf32>
    %c6_1025 = arith.constant 6 : index
    %c0_1026 = arith.constant 0 : index
    %c0_1027 = arith.constant 0 : index
    %1339 = vector.load %arg10[%c6_1025, %c0_1026, %c0_1027] : memref<9x8x128xf32, #tpu.memory_space<vmem>>, vector<1x8x128xf32>
    %1340 = vector.shape_cast %1339 : vector<1x8x128xf32> to vector<8x128xf32>
    %cst_1028 = arith.constant 8.000000e-01 : f32
    %1341 = vector.broadcast %cst_1028 : f32 to vector<8x128xf32>
    %1342 = arith.mulf %1341, %1340 : vector<8x128xf32>
    %1343 = arith.addf %1342, %1338 : vector<8x128xf32>
    %c6_1029 = arith.constant 6 : index
    %c0_1030 = arith.constant 0 : index
    %c0_1031 = arith.constant 0 : index
    %1344 = vector.load %arg11[%c6_1029, %c0_1030, %c0_1031] : memref<9x8x128xbf16, #tpu.memory_space<vmem>>, vector<1x8x128xbf16>
    %1345 = vector.shape_cast %1344 : vector<1x8x128xbf16> to vector<8x128xbf16>
    %cst_1032 = arith.constant 5.000000e-01 : bf16
    %1346 = vector.broadcast %cst_1032 : bf16 to vector<8x128xbf16>
    %1347 = arith.mulf %1345, %1346 : vector<8x128xbf16>
    %1348 = arith.extf %1347 : vector<8x128xbf16> to vector<8x128xf32>
    %1349 = arith.subf %1343, %1348 : vector<8x128xf32>
    %cst_1033 = arith.constant 5.000000e-01 : f32
    %1350 = vector.broadcast %cst_1033 : f32 to vector<8x128xf32>
    %1351 = arith.cmpf ogt, %1349, %1350 : vector<8x128xf32>
    %1352 = arith.extui %1351 : vector<8x128xi1> to vector<8x128xi32>
    %1353 = arith.sitofp %1352 : vector<8x128xi32> to vector<8x128xf32>
    %1354 = arith.truncf %1353 : vector<8x128xf32> to vector<8x128xbf16>
    %c6_1034 = arith.constant 6 : index
    %c0_1035 = arith.constant 0 : index
    %c0_1036 = arith.constant 0 : index
    %1355 = vector.load %arg10[%c6_1034, %c0_1035, %c0_1036] : memref<9x8x128xf32, #tpu.memory_space<vmem>>, vector<1x8x128xf32>
    %1356 = vector.shape_cast %1355 : vector<1x8x128xf32> to vector<8x128xf32>
    %1357 = vector.shape_cast %1349 : vector<8x128xf32> to vector<1x8x128xf32>
    tpu.vector_store %arg10[%c6_1034, %c0_1035, %c0_1036], %1357 {strides = array<i32>} : memref<9x8x128xf32, #tpu.memory_space<vmem>>, vector<1x8x128xf32>,
    %c6_1037 = arith.constant 6 : index
    %c0_1038 = arith.constant 0 : index
    %c0_1039 = arith.constant 0 : index
    %1358 = vector.load %arg11[%c6_1037, %c0_1038, %c0_1039] : memref<9x8x128xbf16, #tpu.memory_space<vmem>>, vector<1x8x128xbf16>
    %1359 = vector.shape_cast %1358 : vector<1x8x128xbf16> to vector<8x128xbf16>
    %1360 = vector.shape_cast %1354 : vector<8x128xbf16> to vector<1x8x128xbf16>
    tpu.vector_store %arg11[%c6_1037, %c0_1038, %c0_1039], %1360 {strides = array<i32>} : memref<9x8x128xbf16, #tpu.memory_space<vmem>>, vector<1x8x128xbf16>,
    %c6_1040 = arith.constant 6 : index
    %c0_1041 = arith.constant 0 : index
    %c0_1042 = arith.constant 0 : index
    %1361 = vector.load %arg4[%c6_1040, %c0_1041, %c0_1042] : memref<8x128x128xbf16, #tpu.memory_space<vmem>>, vector<1x128x128xbf16>
    %1362 = vector.shape_cast %1361 : vector<1x128x128xbf16> to vector<128x128xbf16>
    %cst_1043 = arith.constant dense<0.000000e+00> : vector<8x128xf32>
    %1363 = tpu.matmul %1354, %1362, %cst_1043 {dimension_numbers = #tpu.dot_dimension_numbers<[1], [0], [0], [1], [0, 0, 1, 1], [], []>} : vector<8x128xbf16>, vector<128x128xbf16>, vector<8x128xf32> -> vector<8x128xf32>
    %c6_1044 = arith.constant 6 : index
    %c0_1045 = arith.constant 0 : index
    %c0_1046 = arith.constant 0 : index
    %1364 = vector.load %arg5[%c6_1044, %c0_1045, %c0_1046] : memref<8x1x128xf32, #tpu.memory_space<vmem>>, vector<1x1x128xf32>
    %1365 = vector.shape_cast %1364 : vector<1x1x128xf32> to vector<1x128xf32>
    %1366 = vector.broadcast %1365 : vector<1x128xf32> to vector<8x128xf32>
    %1367 = arith.addf %1363, %1366 : vector<8x128xf32>
    %c7_1047 = arith.constant 7 : index
    %c0_1048 = arith.constant 0 : index
    %c0_1049 = arith.constant 0 : index
    %1368 = vector.load %arg10[%c7_1047, %c0_1048, %c0_1049] : memref<9x8x128xf32, #tpu.memory_space<vmem>>, vector<1x8x128xf32>
    %1369 = vector.shape_cast %1368 : vector<1x8x128xf32> to vector<8x128xf32>
    %cst_1050 = arith.constant 8.000000e-01 : f32
    %1370 = vector.broadcast %cst_1050 : f32 to vector<8x128xf32>
    %1371 = arith.mulf %1370, %1369 : vector<8x128xf32>
    %1372 = arith.addf %1371, %1367 : vector<8x128xf32>
    %c7_1051 = arith.constant 7 : index
    %c0_1052 = arith.constant 0 : index
    %c0_1053 = arith.constant 0 : index
    %1373 = vector.load %arg11[%c7_1051, %c0_1052, %c0_1053] : memref<9x8x128xbf16, #tpu.memory_space<vmem>>, vector<1x8x128xbf16>
    %1374 = vector.shape_cast %1373 : vector<1x8x128xbf16> to vector<8x128xbf16>
    %cst_1054 = arith.constant 5.000000e-01 : bf16
    %1375 = vector.broadcast %cst_1054 : bf16 to vector<8x128xbf16>
    %1376 = arith.mulf %1374, %1375 : vector<8x128xbf16>
    %1377 = arith.extf %1376 : vector<8x128xbf16> to vector<8x128xf32>
    %1378 = arith.subf %1372, %1377 : vector<8x128xf32>
    %cst_1055 = arith.constant 5.000000e-01 : f32
    %1379 = vector.broadcast %cst_1055 : f32 to vector<8x128xf32>
    %1380 = arith.cmpf ogt, %1378, %1379 : vector<8x128xf32>
    %1381 = arith.extui %1380 : vector<8x128xi1> to vector<8x128xi32>
    %1382 = arith.sitofp %1381 : vector<8x128xi32> to vector<8x128xf32>
    %1383 = arith.truncf %1382 : vector<8x128xf32> to vector<8x128xbf16>
    %c7_1056 = arith.constant 7 : index
    %c0_1057 = arith.constant 0 : index
    %c0_1058 = arith.constant 0 : index
    %1384 = vector.load %arg10[%c7_1056, %c0_1057, %c0_1058] : memref<9x8x128xf32, #tpu.memory_space<vmem>>, vector<1x8x128xf32>
    %1385 = vector.shape_cast %1384 : vector<1x8x128xf32> to vector<8x128xf32>
    %1386 = vector.shape_cast %1378 : vector<8x128xf32> to vector<1x8x128xf32>
    tpu.vector_store %arg10[%c7_1056, %c0_1057, %c0_1058], %1386 {strides = array<i32>} : memref<9x8x128xf32, #tpu.memory_space<vmem>>, vector<1x8x128xf32>,
    %c7_1059 = arith.constant 7 : index
    %c0_1060 = arith.constant 0 : index
    %c0_1061 = arith.constant 0 : index
    %1387 = vector.load %arg11[%c7_1059, %c0_1060, %c0_1061] : memref<9x8x128xbf16, #tpu.memory_space<vmem>>, vector<1x8x128xbf16>
    %1388 = vector.shape_cast %1387 : vector<1x8x128xbf16> to vector<8x128xbf16>
    %1389 = vector.shape_cast %1383 : vector<8x128xbf16> to vector<1x8x128xbf16>
    tpu.vector_store %arg11[%c7_1059, %c0_1060, %c0_1061], %1389 {strides = array<i32>} : memref<9x8x128xbf16, #tpu.memory_space<vmem>>, vector<1x8x128xbf16>,
    %c7_1062 = arith.constant 7 : index
    %c0_1063 = arith.constant 0 : index
    %c0_1064 = arith.constant 0 : index
    %1390 = vector.load %arg4[%c7_1062, %c0_1063, %c0_1064] : memref<8x128x128xbf16, #tpu.memory_space<vmem>>, vector<1x128x128xbf16>
    %1391 = vector.shape_cast %1390 : vector<1x128x128xbf16> to vector<128x128xbf16>
    %cst_1065 = arith.constant dense<0.000000e+00> : vector<8x128xf32>
    %1392 = tpu.matmul %1383, %1391, %cst_1065 {dimension_numbers = #tpu.dot_dimension_numbers<[1], [0], [0], [1], [0, 0, 1, 1], [], []>} : vector<8x128xbf16>, vector<128x128xbf16>, vector<8x128xf32> -> vector<8x128xf32>
    %c7_1066 = arith.constant 7 : index
    %c0_1067 = arith.constant 0 : index
    %c0_1068 = arith.constant 0 : index
    %1393 = vector.load %arg5[%c7_1066, %c0_1067, %c0_1068] : memref<8x1x128xf32, #tpu.memory_space<vmem>>, vector<1x1x128xf32>
    %1394 = vector.shape_cast %1393 : vector<1x1x128xf32> to vector<1x128xf32>
    %1395 = vector.broadcast %1394 : vector<1x128xf32> to vector<8x128xf32>
    %1396 = arith.addf %1392, %1395 : vector<8x128xf32>
    %c8_1069 = arith.constant 8 : index
    %c0_1070 = arith.constant 0 : index
    %c0_1071 = arith.constant 0 : index
    %1397 = vector.load %arg10[%c8_1069, %c0_1070, %c0_1071] : memref<9x8x128xf32, #tpu.memory_space<vmem>>, vector<1x8x128xf32>
    %1398 = vector.shape_cast %1397 : vector<1x8x128xf32> to vector<8x128xf32>
    %cst_1072 = arith.constant 8.000000e-01 : f32
    %1399 = vector.broadcast %cst_1072 : f32 to vector<8x128xf32>
    %1400 = arith.mulf %1399, %1398 : vector<8x128xf32>
    %1401 = arith.addf %1400, %1396 : vector<8x128xf32>
    %c8_1073 = arith.constant 8 : index
    %c0_1074 = arith.constant 0 : index
    %c0_1075 = arith.constant 0 : index
    %1402 = vector.load %arg11[%c8_1073, %c0_1074, %c0_1075] : memref<9x8x128xbf16, #tpu.memory_space<vmem>>, vector<1x8x128xbf16>
    %1403 = vector.shape_cast %1402 : vector<1x8x128xbf16> to vector<8x128xbf16>
    %cst_1076 = arith.constant 5.000000e-01 : bf16
    %1404 = vector.broadcast %cst_1076 : bf16 to vector<8x128xbf16>
    %1405 = arith.mulf %1403, %1404 : vector<8x128xbf16>
    %1406 = arith.extf %1405 : vector<8x128xbf16> to vector<8x128xf32>
    %1407 = arith.subf %1401, %1406 : vector<8x128xf32>
    %cst_1077 = arith.constant 5.000000e-01 : f32
    %1408 = vector.broadcast %cst_1077 : f32 to vector<8x128xf32>
    %1409 = arith.cmpf ogt, %1407, %1408 : vector<8x128xf32>
    %1410 = arith.extui %1409 : vector<8x128xi1> to vector<8x128xi32>
    %1411 = arith.sitofp %1410 : vector<8x128xi32> to vector<8x128xf32>
    %1412 = arith.truncf %1411 : vector<8x128xf32> to vector<8x128xbf16>
    %c8_1078 = arith.constant 8 : index
    %c0_1079 = arith.constant 0 : index
    %c0_1080 = arith.constant 0 : index
    %1413 = vector.load %arg10[%c8_1078, %c0_1079, %c0_1080] : memref<9x8x128xf32, #tpu.memory_space<vmem>>, vector<1x8x128xf32>
    %1414 = vector.shape_cast %1413 : vector<1x8x128xf32> to vector<8x128xf32>
    %1415 = vector.shape_cast %1407 : vector<8x128xf32> to vector<1x8x128xf32>
    tpu.vector_store %arg10[%c8_1078, %c0_1079, %c0_1080], %1415 {strides = array<i32>} : memref<9x8x128xf32, #tpu.memory_space<vmem>>, vector<1x8x128xf32>,
    %c8_1081 = arith.constant 8 : index
    %c0_1082 = arith.constant 0 : index
    %c0_1083 = arith.constant 0 : index
    %1416 = vector.load %arg11[%c8_1081, %c0_1082, %c0_1083] : memref<9x8x128xbf16, #tpu.memory_space<vmem>>, vector<1x8x128xbf16>
    %1417 = vector.shape_cast %1416 : vector<1x8x128xbf16> to vector<8x128xbf16>
    %1418 = vector.shape_cast %1412 : vector<8x128xbf16> to vector<1x8x128xbf16>
    tpu.vector_store %arg11[%c8_1081, %c0_1082, %c0_1083], %1418 {strides = array<i32>} : memref<9x8x128xbf16, #tpu.memory_space<vmem>>, vector<1x8x128xbf16>,
    %c0_1084 = arith.constant 0 : index
    %c0_1085 = arith.constant 0 : index
    %1419 = vector.load %arg6[%c0_1084, %c0_1085] : memref<128x128xbf16, #tpu.memory_space<vmem>>, vector<128x128xbf16>
    %cst_1086 = arith.constant dense<0.000000e+00> : vector<8x128xf32>
    %1420 = tpu.matmul %1412, %1419, %cst_1086 {dimension_numbers = #tpu.dot_dimension_numbers<[1], [0], [0], [1], [0, 0, 1, 1], [], []>} : vector<8x128xbf16>, vector<128x128xbf16>, vector<8x128xf32> -> vector<8x128xf32>
    %c0_1087 = arith.constant 0 : index
    %c0_1088 = arith.constant 0 : index
    %1421 = vector.load %arg7[%c0_1087, %c0_1088] : memref<1x128xf32, #tpu.memory_space<vmem>>, vector<1x128xf32>
    %1422 = vector.broadcast %1421 : vector<1x128xf32> to vector<8x128xf32>
    %1423 = arith.addf %1420, %1422 : vector<8x128xf32>
    %c0_1089 = arith.constant 0 : index
    %c0_1090 = arith.constant 0 : index
    %1424 = vector.load %arg12[%c0_1089, %c0_1090] : memref<8x128xf32, #tpu.memory_space<vmem>>, vector<8x128xf32>
    %cst_1091 = arith.constant 8.000000e-01 : f32
    %1425 = vector.broadcast %cst_1091 : f32 to vector<8x128xf32>
    %1426 = arith.mulf %1425, %1424 : vector<8x128xf32>
    %1427 = arith.addf %1426, %1423 : vector<8x128xf32>
    %c0_1092 = arith.constant 0 : index
    %c0_1093 = arith.constant 0 : index
    %1428 = vector.load %arg13[%c0_1092, %c0_1093] : memref<8x128xf32, #tpu.memory_space<vmem>>, vector<8x128xf32>
    %cst_1094 = arith.constant 5.000000e-01 : f32
    %1429 = vector.broadcast %cst_1094 : f32 to vector<8x128xf32>
    %1430 = arith.mulf %1428, %1429 : vector<8x128xf32>
    %1431 = arith.subf %1427, %1430 : vector<8x128xf32>
    %cst_1095 = arith.constant 5.000000e-01 : f32
    %1432 = vector.broadcast %cst_1095 : f32 to vector<8x128xf32>
    %1433 = arith.cmpf ogt, %1431, %1432 : vector<8x128xf32>
    %1434 = arith.extui %1433 : vector<8x128xi1> to vector<8x128xi32>
    %1435 = arith.sitofp %1434 : vector<8x128xi32> to vector<8x128xf32>
    %c0_1096 = arith.constant 0 : index
    %c0_1097 = arith.constant 0 : index
    %1436 = vector.load %arg12[%c0_1096, %c0_1097] : memref<8x128xf32, #tpu.memory_space<vmem>>, vector<8x128xf32>
    tpu.vector_store %arg12[%c0_1096, %c0_1097], %1431 {strides = array<i32>} : memref<8x128xf32, #tpu.memory_space<vmem>>, vector<8x128xf32>,
    %c0_1098 = arith.constant 0 : index
    %c0_1099 = arith.constant 0 : index
    %1437 = vector.load %arg13[%c0_1098, %c0_1099] : memref<8x128xf32, #tpu.memory_space<vmem>>, vector<8x128xf32>
    tpu.vector_store %arg13[%c0_1098, %c0_1099], %1435 {strides = array<i32>} : memref<8x128xf32, #tpu.memory_space<vmem>>, vector<8x128xf32>,
    %c0_1100 = arith.constant 0 : index
    %c0_1101 = arith.constant 0 : index
    %1438 = vector.load %arg8[%c0_1100, %c0_1101] : memref<8x128xf32, #tpu.memory_space<vmem>>, vector<8x128xf32>
    %1439 = arith.addf %1438, %1435 : vector<8x128xf32>
    %c0_1102 = arith.constant 0 : index
    %c0_1103 = arith.constant 0 : index
    %1440 = vector.load %arg8[%c0_1102, %c0_1103] : memref<8x128xf32, #tpu.memory_space<vmem>>, vector<8x128xf32>
    tpu.vector_store %arg8[%c0_1102, %c0_1103], %1439 {strides = array<i32>} : memref<8x128xf32, #tpu.memory_space<vmem>>, vector<8x128xf32>,
    %cst_1104 = arith.constant dense<0.000000e+00> : vector<8xf32>
    %1441 = vector.multi_reduction <add>, %1435, %cst_1104 [1] : vector<8x128xf32> to vector<8xf32>
    %1442 = vector.shape_cast %1441 : vector<8xf32> to vector<8x1xf32>
    %c20_i32 = arith.constant 20 : i32
    %1443 = vector.broadcast %c20_i32 : i32 to vector<8x128xi32>
    %1444 = arith.cmpi eq, %19, %1443 : vector<8x128xi32>
    %c0_1105 = arith.constant 0 : index
    %c0_1106 = arith.constant 0 : index
    %1445 = vector.load %arg14[%c0_1105, %c0_1106] : memref<8x128xf32, #tpu.memory_space<vmem>>, vector<8x128xf32>
    %1446 = vector.shape_cast %1442 : vector<8x1xf32> to vector<8x1xf32>
    %1447 = vector.broadcast %1446 : vector<8x1xf32> to vector<8x128xf32>
    %1448 = arith.select %1444, %1447, %1445 : vector<8x128xi1>, vector<8x128xf32>
    %c0_1107 = arith.constant 0 : index
    %c0_1108 = arith.constant 0 : index
    %1449 = vector.load %arg14[%c0_1107, %c0_1108] : memref<8x128xf32, #tpu.memory_space<vmem>>, vector<8x128xf32>
    tpu.vector_store %arg14[%c0_1107, %c0_1108], %1448 {strides = array<i32>} : memref<8x128xf32, #tpu.memory_space<vmem>>, vector<8x128xf32>,
    %c0_1109 = arith.constant 0 : index
    %c0_1110 = arith.constant 0 : index
    %1450 = vector.load %arg8[%c0_1109, %c0_1110] : memref<8x128xf32, #tpu.memory_space<vmem>>, vector<8x128xf32>
    %cst_1111 = arith.constant 5.000000e+00 : f32
    %1451 = vector.broadcast %cst_1111 : f32 to vector<8x128xf32>
    %1452 = arith.divf %1450, %1451 : vector<8x128xf32>
    %c0_1112 = arith.constant 0 : index
    %c0_1113 = arith.constant 0 : index
    %1453 = vector.load %arg14[%c0_1112, %c0_1113] : memref<8x128xf32, #tpu.memory_space<vmem>>, vector<8x128xf32>
    %1454 = arith.addf %1452, %1453 : vector<8x128xf32>
    %c0_1114 = arith.constant 0 : index
    %c0_1115 = arith.constant 0 : index
    %1455 = vector.load %arg8[%c0_1114, %c0_1115] : memref<8x128xf32, #tpu.memory_space<vmem>>, vector<8x128xf32>
    tpu.vector_store %arg8[%c0_1114, %c0_1115], %1454 {strides = array<i32>} : memref<8x128xf32, #tpu.memory_space<vmem>>, vector<8x128xf32>,
    return
  }
  func.func @transform_0(%arg0: i32) -> (i32, i32) {
    %c0_i32 = arith.constant 0 : i32
    %c0_i32_0 = arith.constant 0 : i32
    return %arg0, %c0_i32 : i32, i32
  }
  func.func @transform_1(%arg0: i32) -> (i32, i32) {
    %c0_i32 = arith.constant 0 : i32
    %c0_i32_0 = arith.constant 0 : i32
    %c0_i32_1 = arith.constant 0 : i32
    return %c0_i32, %c0_i32_0 : i32, i32
  }
  func.func @transform_2(%arg0: i32) -> (i32, i32) {
    %c0_i32 = arith.constant 0 : i32
    %c0_i32_0 = arith.constant 0 : i32
    %c0_i32_1 = arith.constant 0 : i32
    return %c0_i32, %c0_i32_0 : i32, i32
  }
  func.func @transform_3(%arg0: i32) -> (i32, i32, i32) {
    %c0_i32 = arith.constant 0 : i32
    %c0_i32_0 = arith.constant 0 : i32
    %c0_i32_1 = arith.constant 0 : i32
    %c0_i32_2 = arith.constant 0 : i32
    return %c0_i32, %c0_i32_0, %c0_i32_1 : i32, i32, i32
  }
  func.func @transform_4(%arg0: i32) -> (i32, i32, i32) {
    %c0_i32 = arith.constant 0 : i32
    %c0_i32_0 = arith.constant 0 : i32
    %c0_i32_1 = arith.constant 0 : i32
    %c0_i32_2 = arith.constant 0 : i32
    return %c0_i32, %c0_i32_0, %c0_i32_1 : i32, i32, i32
  }
  func.func @transform_5(%arg0: i32) -> (i32, i32) {
    %c0_i32 = arith.constant 0 : i32
    %c0_i32_0 = arith.constant 0 : i32
    %c0_i32_1 = arith.constant 0 : i32
    return %c0_i32, %c0_i32_0 : i32, i32
  }
  func.func @transform_6(%arg0: i32) -> (i32, i32) {
    %c0_i32 = arith.constant 0 : i32
    %c0_i32_0 = arith.constant 0 : i32
    %c0_i32_1 = arith.constant 0 : i32
    return %c0_i32, %c0_i32_0 : i32, i32
  }
  func.func @transform_7(%arg0: i32) -> (i32, i32) {
    %c0_i32 = arith.constant 0 : i32
    %c0_i32_0 = arith.constant 0 : i32
    return %arg0, %c0_i32 : i32, i32
  }
}

</mosaic_0001>

<llo_original>
// kernel: vit_snn_forward.1
$region0: #{vit_snn_forward.1}
  #allocation0 [shape = 'u32[]', space=smem, size = 0x4, offset = 0x4, fixed_abs, tag = 'smem constant byte address 0x4 - core index']
  #allocation1 [shape = 'u32[144,128]{1,0:T(1,128)}', space=vmem, size = 0x12000, scoped, tag = 'internal scratch']
  #allocation2 [shape = 'f32[8,128]{1,0:T(8,128)}', space=vmem, size = 0x1000, scoped, tag = 'scratch operand']
  #allocation3 [shape = 'f32[9,8,128]{2,1,0:T(8,128)}', space=vmem, size = 0x9000, scoped, tag = 'scratch operand']
  #allocation4 [shape = 'bf16[9,8,128]{2,1,0:T(8,128)(2,1)}', space=vmem, size = 0x4800, scoped, tag = 'scratch operand']
  #allocation5 [shape = 'f32[8,128]{1,0:T(8,128)}', space=vmem, size = 0x1000, scoped, tag = 'scratch operand']
  #allocation6 [shape = 'f32[8,128]{1,0:T(8,128)}', space=vmem, size = 0x1000, scoped, tag = 'scratch operand']
  #allocation7 [shape = 'f32[8,128]{1,0:T(8,128)}', space=vmem, size = 0x1000, scoped, tag = 'scratch operand']
  %s0 = inlined_call_operand.vmem [shape: bf16[8,576], index: 0, kind: input, shape index: {}]
  %s1 = inlined_call_operand.vmem [shape: bf16[576,128], index: 1, kind: input, shape index: {}]
  %s2 = inlined_call_operand.vmem [shape: f32[1,128], index: 2, kind: input, shape index: {}]
  %s3 = inlined_call_operand.vmem [shape: bf16[8,128,128], index: 3, kind: input, shape index: {}]
  %s4 = inlined_call_operand.vmem [shape: f32[8,1,128], index: 4, kind: input, shape index: {}]
  %s5 = inlined_call_operand.vmem [shape: bf16[128,128], index: 5, kind: input, shape index: {}]
  %s6 = inlined_call_operand.vmem [shape: f32[1,128], index: 6, kind: input, shape index: {}]
  %s7 = inlined_call_operand.vmem [shape: f32[8,128], index: 7, kind: output, shape index: {}]
  %s8 = sld [smem:[#allocation0]]
  $region38: #{vit_snn_forward.1} parent=0
    _
  %s10 = ssub.s32 1, %s8
  %s11 = scalar_select 0, %s10, %s8
  // Predicated region
  $region2: #{vit_snn_forward.1} parent=0 // pred_check
    _
  $region3: #{vit_snn_forward.1} parent=0 // pred_check_branch
    %13 = sbr.rel (0) target = $region5
  $region4: #{vit_snn_forward.1} parent=0 // pred_region
    _
  $region5: #{vit_snn_forward.1} parent=0 // pred_fallthru
    _
  // Predicated region
  $region6: #{vit_snn_forward.1} parent=0 // pred_check
    _
  $region7: #{vit_snn_forward.1} parent=0 // pred_check_branch
    %15 = sbr.rel (0) target = $region9
  $region8: #{vit_snn_forward.1} parent=0 // pred_region
    _
  $region9: #{vit_snn_forward.1} parent=0 // pred_fallthru
    _
  // Predicated region
  $region10: #{vit_snn_forward.1} parent=0 // pred_check
    _
  $region11: #{vit_snn_forward.1} parent=0 // pred_check_branch
    %17 = sbr.rel (0) target = $region13
  $region12: #{vit_snn_forward.1} parent=0 // pred_region
    _
  $region13: #{vit_snn_forward.1} parent=0 // pred_fallthru
    _
  // Predicated region
  $region14: #{vit_snn_forward.1} parent=0 // pred_check
    _
  $region15: #{vit_snn_forward.1} parent=0 // pred_check_branch
    %19 = sbr.rel (0) target = $region17
  $region16: #{vit_snn_forward.1} parent=0 // pred_region
    _
  $region17: #{vit_snn_forward.1} parent=0 // pred_fallthru
    _
  // Predicated region
  $region18: #{vit_snn_forward.1} parent=0 // pred_check
    _
  $region19: #{vit_snn_forward.1} parent=0 // pred_check_branch
    %21 = sbr.rel (0) target = $region21
  $region20: #{vit_snn_forward.1} parent=0 // pred_region
    _
  $region21: #{vit_snn_forward.1} parent=0 // pred_fallthru
    _
  // Predicated region
  $region22: #{vit_snn_forward.1} parent=0 // pred_check
    _
  $region23: #{vit_snn_forward.1} parent=0 // pred_check_branch
    %23 = sbr.rel (0) target = $region25
  $region24: #{vit_snn_forward.1} parent=0 // pred_region
    _
  $region25: #{vit_snn_forward.1} parent=0 // pred_fallthru
    _
  // Predicated region
  $region26: #{vit_snn_forward.1} parent=0 // pred_check
    _
  $region27: #{vit_snn_forward.1} parent=0 // pred_check_branch
    %25 = sbr.rel (0) target = $region29
  $region28: #{vit_snn_forward.1} parent=0 // pred_region
    _
  $region29: #{vit_snn_forward.1} parent=0 // pred_fallthru
    _
  %v28 = vld [vmem:[%s0] sm:$0xff]
  %v29 = vld [vmem:[%s0 + $0x8] sm:$0xff]
  %v30 = vld [vmem:[%s0 + $0x10] sm:$0xf]
  %v31 = vld [vmem:[%s1] sm:$0xf]
  %v32 = vld [vmem:[%s1 + $0x4] sm:$0xf]
  %v33 = vld [vmem:[%s1 + $0x8] sm:$0xf]
  %v34 = vld [vmem:[%s1 + $0xc] sm:$0xf]
  %v35 = vld [vmem:[%s1 + $0x10] sm:$0xf]
  %v36 = vld [vmem:[%s1 + $0x14] sm:$0xf]
  %v37 = vld [vmem:[%s1 + $0x18] sm:$0xf]
  %v38 = vld [vmem:[%s1 + $0x1c] sm:$0xf]
  %v39 = vld [vmem:[%s1 + $0x20] sm:$0xf]
  %v40 = vld [vmem:[%s1 + $0x24] sm:$0xf]
  %v41 = vld [vmem:[%s1 + $0x28] sm:$0xf]
  %v42 = vld [vmem:[%s1 + $0x2c] sm:$0xf]
  %v43 = vld [vmem:[%s1 + $0x30] sm:$0xf]
  %v44 = vld [vmem:[%s1 + $0x34] sm:$0xf]
  %v45 = vld [vmem:[%s1 + $0x38] sm:$0xf]
  %v46 = vld [vmem:[%s1 + $0x3c] sm:$0xf]
  %v47 = vld [vmem:[%s1 + $0x40] sm:$0xf]
  %v48 = vld [vmem:[%s1 + $0x44] sm:$0xf]
  %v49 = vld [vmem:[%s1 + $0x48] sm:$0xf]
  %v50 = vld [vmem:[%s1 + $0x4c] sm:$0xf]
  %v51 = vld [vmem:[%s1 + $0x50] sm:$0xf]
  %v52 = vld [vmem:[%s1 + $0x54] sm:$0xf]
  %v53 = vld [vmem:[%s1 + $0x58] sm:$0xf]
  %v54 = vld [vmem:[%s1 + $0x5c] sm:$0xf]
  %v55 = vld [vmem:[%s1 + $0x60] sm:$0xf]
  %v56 = vld [vmem:[%s1 + $0x64] sm:$0xf]
  %v57 = vld [vmem:[%s1 + $0x68] sm:$0xf]
  %v58 = vld [vmem:[%s1 + $0x6c] sm:$0xf]
  %v59 = vld [vmem:[%s1 + $0x70] sm:$0xf]
  %v60 = vld [vmem:[%s1 + $0x74] sm:$0xf]
  %v61 = vld [vmem:[%s1 + $0x78] sm:$0xf]
  %v62 = vld [vmem:[%s1 + $0x7c] sm:$0xf]
  %v63 = vld [vmem:[%s1 + $0x80] sm:$0xf]
  %v64 = vld [vmem:[%s1 + $0x84] sm:$0xf]
  %v65 = vld [vmem:[%s1 + $0x88] sm:$0xf]
  %v66 = vld [vmem:[%s1 + $0x8c] sm:$0xf]
  %v67 = vld [vmem:[%s1 + $0x90] sm:$0xf]
  %v68 = vld [vmem:[%s1 + $0x94] sm:$0xf]
  %v69 = vld [vmem:[%s1 + $0x98] sm:$0xf]
  %v70 = vld [vmem:[%s1 + $0x9c] sm:$0xf]
  %v71 = vld [vmem:[%s1 + $0xa0] sm:$0xf]
  %v72 = vld [vmem:[%s1 + $0xa4] sm:$0xf]
  %v73 = vld [vmem:[%s1 + $0xa8] sm:$0xf]
  %v74 = vld [vmem:[%s1 + $0xac] sm:$0xf]
  %v75 = vld [vmem:[%s1 + $0xb0] sm:$0xf]
  %v76 = vld [vmem:[%s1 + $0xb4] sm:$0xf]
  %v77 = vld [vmem:[%s1 + $0xb8] sm:$0xf]
  %v78 = vld [vmem:[%s1 + $0xbc] sm:$0xf]
  %v79 = vld [vmem:[%s1 + $0xc0] sm:$0xf]
  %v80 = vld [vmem:[%s1 + $0xc4] sm:$0xf]
  %v81 = vld [vmem:[%s1 + $0xc8] sm:$0xf]
  %v82 = vld [vmem:[%s1 + $0xcc] sm:$0xf]
  %v83 = vld [vmem:[%s1 + $0xd0] sm:$0xf]
  %v84 = vld [vmem:[%s1 + $0xd4] sm:$0xf]
  %v85 = vld [vmem:[%s1 + $0xd8] sm:$0xf]
  %v86 = vld [vmem:[%s1 + $0xdc] sm:$0xf]
  %v87 = vld [vmem:[%s1 + $0xe0] sm:$0xf]
  %v88 = vld [vmem:[%s1 + $0xe4] sm:$0xf]
  %v89 = vld [vmem:[%s1 + $0xe8] sm:$0xf]
  %v90 = vld [vmem:[%s1 + $0xec] sm:$0xf]
  %v91 = vld [vmem:[%s1 + $0xf0] sm:$0xf]
  %v92 = vld [vmem:[%s1 + $0xf4] sm:$0xf]
  %v93 = vld [vmem:[%s1 + $0xf8] sm:$0xf]
  %v94 = vld [vmem:[%s1 + $0xfc] sm:$0xf]
  %v95 = vld [vmem:[%s1 + $0x100] sm:$0xf]
  %v96 = vld [vmem:[%s1 + $0x104] sm:$0xf]
  %v97 = vld [vmem:[%s1 + $0x108] sm:$0xf]
  %v98 = vld [vmem:[%s1 + $0x10c] sm:$0xf]
  %v99 = vld [vmem:[%s1 + $0x110] sm:$0xf]
  %v100 = vld [vmem:[%s1 + $0x114] sm:$0xf]
  %v101 = vld [vmem:[%s1 + $0x118] sm:$0xf]
  %v102 = vld [vmem:[%s1 + $0x11c] sm:$0xf]
  %v103 = vld [vmem:[%s2] sm:$0x1]
  %v105 = vlaneseq
  %v106 = vshrl.u32 %v105, 7
  %v107 = vsub.s32 0, %v106
  %v108 = vrot.slane %v103, %v107
  %v113 = vunpack.c.l.b16 %v28
  %v114 = vunpack.c.h.b16 %v28
  %v115 = vunpack.c.l.b16 %v29
  %v116 = vunpack.c.h.b16 %v29
  %v117 = vunpack.c.l.b16 %v30
  %v118 = vpack.c.b16 %v113, %v113
  %v119 = vpack.c.b16 %v114, %v114
  %v120 = vpack.c.b16 %v115, %v115
  %v121 = vpack.c.b16 %v116, %v116
  %v122 = vpack.c.b16 %v117, %v117
  %v199 = vunpack.c.l.b16 %v31
  %v200 = vunpack.c.l.b16 %v32
  %v201 = vunpack.c.l.b16 %v33
  %v202 = vunpack.c.l.b16 %v34
  %v203 = vunpack.c.l.b16 %v35
  %v204 = vunpack.c.l.b16 %v36
  %v205 = vunpack.c.l.b16 %v37
  %v206 = vunpack.c.l.b16 %v38
  %v207 = vunpack.c.l.b16 %v39
  %v208 = vunpack.c.l.b16 %v40
  %v209 = vunpack.c.l.b16 %v41
  %v210 = vunpack.c.l.b16 %v42
  %v211 = vunpack.c.l.b16 %v43
  %v212 = vunpack.c.l.b16 %v44
  %v213 = vunpack.c.l.b16 %v45
  %v214 = vunpack.c.l.b16 %v46
  %v215 = vunpack.c.l.b16 %v47
  %v216 = vunpack.c.l.b16 %v48
  %v217 = vunpack.c.l.b16 %v49
  %v218 = vunpack.c.l.b16 %v50
  %v219 = vunpack.c.l.b16 %v51
  %v220 = vunpack.c.l.b16 %v52
  %v221 = vunpack.c.l.b16 %v53
  %v222 = vunpack.c.l.b16 %v54
  %v223 = vunpack.c.l.b16 %v55
  %v224 = vunpack.c.l.b16 %v56
  %v225 = vunpack.c.l.b16 %v57
  %v226 = vunpack.c.l.b16 %v58
  %v227 = vunpack.c.l.b16 %v59
  %v228 = vunpack.c.l.b16 %v60
  %v229 = vunpack.c.l.b16 %v61
  %v230 = vunpack.c.l.b16 %v62
  %v231 = vunpack.c.l.b16 %v63
  %v232 = vunpack.c.l.b16 %v64
  %v233 = vunpack.c.l.b16 %v65
  %v234 = vunpack.c.l.b16 %v66
  %v235 = vunpack.c.l.b16 %v67
  %v236 = vunpack.c.l.b16 %v68
  %v237 = vunpack.c.l.b16 %v69
  %v238 = vunpack.c.l.b16 %v70
  %v239 = vunpack.c.l.b16 %v71
  %v240 = vunpack.c.l.b16 %v72
  %v241 = vunpack.c.l.b16 %v73
  %v242 = vunpack.c.l.b16 %v74
  %v243 = vunpack.c.l.b16 %v75
  %v244 = vunpack.c.l.b16 %v76
  %v245 = vunpack.c.l.b16 %v77
  %v246 = vunpack.c.l.b16 %v78
  %v247 = vunpack.c.l.b16 %v79
  %v248 = vunpack.c.l.b16 %v80
  %v249 = vunpack.c.l.b16 %v81
  %v250 = vunpack.c.l.b16 %v82
  %v251 = vunpack.c.l.b16 %v83
  %v252 = vunpack.c.l.b16 %v84
  %v253 = vunpack.c.l.b16 %v85
  %v254 = vunpack.c.l.b16 %v86
  %v255 = vunpack.c.l.b16 %v87
  %v256 = vunpack.c.l.b16 %v88
  %v257 = vunpack.c.l.b16 %v89
  %v258 = vunpack.c.l.b16 %v90
  %v259 = vunpack.c.l.b16 %v91
  %v260 = vunpack.c.l.b16 %v92
  %v261 = vunpack.c.l.b16 %v93
  %v262 = vunpack.c.l.b16 %v94
  %v263 = vunpack.c.l.b16 %v95
  %v264 = vunpack.c.l.b16 %v96
  %v265 = vunpack.c.l.b16 %v97
  %v266 = vunpack.c.l.b16 %v98
  %v267 = vunpack.c.l.b16 %v99
  %v268 = vunpack.c.l.b16 %v100
  %v269 = vunpack.c.l.b16 %v101
  %v270 = vunpack.c.l.b16 %v102
  %v271 = vpack.c.b16 %v200, %v199
  %v272 = vpack.c.b16 %v202, %v201
  %v273 = vpack.c.b16 %v204, %v203
  %v274 = vpack.c.b16 %v206, %v205
  %v275 = vpack.c.b16 %v208, %v207
  %v276 = vpack.c.b16 %v210, %v209
  %v277 = vpack.c.b16 %v212, %v211
  %v278 = vpack.c.b16 %v214, %v213
  %v279 = vpack.c.b16 %v216, %v215
  %v280 = vpack.c.b16 %v218, %v217
  %v281 = vpack.c.b16 %v220, %v219
  %v282 = vpack.c.b16 %v222, %v221
  %v283 = vpack.c.b16 %v224, %v223
  %v284 = vpack.c.b16 %v226, %v225
  %v285 = vpack.c.b16 %v228, %v227
  %v286 = vpack.c.b16 %v230, %v229
  %v287 = vpack.c.b16 %v232, %v231
  %v288 = vpack.c.b16 %v234, %v233
  %v289 = vpack.c.b16 %v236, %v235
  %v290 = vpack.c.b16 %v238, %v237
  %v291 = vpack.c.b16 %v240, %v239
  %v292 = vpack.c.b16 %v242, %v241
  %v293 = vpack.c.b16 %v244, %v243
  %v294 = vpack.c.b16 %v246, %v245
  %v295 = vpack.c.b16 %v248, %v247
  %v296 = vpack.c.b16 %v250, %v249
  %v297 = vpack.c.b16 %v252, %v251
  %v298 = vpack.c.b16 %v254, %v253
  %v299 = vpack.c.b16 %v256, %v255
  %v300 = vpack.c.b16 %v258, %v257
  %v301 = vpack.c.b16 %v260, %v259
  %v302 = vpack.c.b16 %v262, %v261
  %v303 = vpack.c.b16 %v264, %v263
  %v304 = vpack.c.b16 %v266, %v265
  %v305 = vpack.c.b16 %v268, %v267
  %v306 = vpack.c.b16 %v270, %v269
  %vm343 = vcmask 523264
  %v345 = vsel %vm343, %v122, 0
  %347 = vmatprep.subr.bf16.mxu0 0
  %348 = vmatpush1.bf16.msra.mxu0 %v271
  %349 = vmatprep.subr.bf16.mxu0 0
  %350 = vmatpush1.bf16.msra.mxu0 %v272
  %351 = vmatprep.subr.bf16.mxu0 0
  %352 = vmatpush1.bf16.msra.mxu0 %v273
  %353 = vmatprep.subr.bf16.mxu0 0
  %354 = vmatpush1.bf16.msra.mxu0 %v274
  %355 = vmatprep.subr.bf16.mxu0 0
  %356 = vmatpush1.bf16.msra.mxu0 %v275
  %357 = vmatprep.subr.bf16.mxu0 0
  %358 = vmatpush1.bf16.msra.mxu0 %v276
  %359 = vmatprep.subr.bf16.mxu0 0
  %360 = vmatpush1.bf16.msra.mxu0 %v277
  %361 = vmatprep.subr.bf16.mxu0 0
  %362 = vmatpush1.bf16.msra.mxu0 %v278
  %363 = vmatprep.subr.bf16.mxu0 0
  %364 = vmatpush1.bf16.msra.mxu0 %v279
  %365 = vmatprep.subr.bf16.mxu0 0
  %366 = vmatpush1.bf16.msra.mxu0 %v280
  %367 = vmatprep.subr.bf16.mxu0 0
  %368 = vmatpush1.bf16.msra.mxu0 %v281
  %369 = vmatprep.subr.bf16.mxu0 0
  %370 = vmatpush1.bf16.msra.mxu0 %v282
  %371 = vmatprep.subr.bf16.mxu0 0
  %372 = vmatpush1.bf16.msra.mxu0 %v283
  %373 = vmatprep.subr.bf16.mxu0 0
  %374 = vmatpush1.bf16.msra.mxu0 %v284
  %375 = vmatprep.subr.bf16.mxu0 0
  %376 = vmatpush1.bf16.msra.mxu0 %v285
  %377 = vmatprep.subr.bf16.mxu0 0
  %378 = vmatpush1.bf16.msra.mxu0 %v286
  %379 = vmatprep.mubr.bf16.mxu0 %v119
  %380 = vmatmul.mubr.bf16.gmra.mrb[0].mxu0 %v118
  %v381 = vpop.f32.mrb[0].mxu0
  %v382 = vadd.f32 %v108, %v381
  %v383 = vpop.f32.mrb[0].mxu0
  %v384 = vpop.f32.mrb[0].mxu0
  %v385 = vpop.f32.mrb[0].mxu0
  %386 = vdwg.mxu0
  %387 = vmatprep.subr.bf16.mxu0 0
  %388 = vmatpush1.bf16.msra.mxu0 %v287
  %389 = vmatprep.subr.bf16.mxu0 0
  %390 = vmatpush1.bf16.msra.mxu0 %v288
  %391 = vmatprep.subr.bf16.mxu0 0
  %392 = vmatpush1.bf16.msra.mxu0 %v289
  %393 = vmatprep.subr.bf16.mxu0 0
  %394 = vmatpush1.bf16.msra.mxu0 %v290
  %395 = vmatprep.subr.bf16.mxu0 0
  %396 = vmatpush1.bf16.msra.mxu0 %v291
  %397 = vmatprep.subr.bf16.mxu0 0
  %398 = vmatpush1.bf16.msra.mxu0 %v292
  %399 = vmatprep.subr.bf16.mxu0 0
  %400 = vmatpush1.bf16.msra.mxu0 %v293
  %401 = vmatprep.subr.bf16.mxu0 0
  %402 = vmatpush1.bf16.msra.mxu0 %v294
  %403 = vmatprep.subr.bf16.mxu0 0
  %404 = vmatpush1.bf16.msra.mxu0 %v295
  %405 = vmatprep.subr.bf16.mxu0 0
  %406 = vmatpush1.bf16.msra.mxu0 %v296
  %407 = vmatprep.subr.bf16.mxu0 0
  %408 = vmatpush1.bf16.msra.mxu0 %v297
  %409 = vmatprep.subr.bf16.mxu0 0
  %410 = vmatpush1.bf16.msra.mxu0 %v298
  %411 = vmatprep.subr.bf16.mxu0 0
  %412 = vmatpush1.bf16.msra.mxu0 %v299
  %413 = vmatprep.subr.bf16.mxu0 0
  %414 = vmatpush1.bf16.msra.mxu0 %v300
  %415 = vmatprep.subr.bf16.mxu0 0
  %416 = vmatpush1.bf16.msra.mxu0 %v301
  %417 = vmatprep.subr.bf16.mxu0 0
  %418 = vmatpush1.bf16.msra.mxu0 %v302
  %419 = vmatprep.mubr.bf16.mxu0 %v121
  %420 = vmatmul.mubr.bf16.gmra.mrb[0].mxu0 %v120
  %v421 = vpop.f32.mrb[0].mxu0
  %v422 = vadd.f32 %v382, %v421
  %v423 = vpop.f32.mrb[0].mxu0
  %v424 = vpop.f32.mrb[0].mxu0
  %v425 = vpop.f32.mrb[0].mxu0
  %426 = vdwg.mxu0
  %427 = vmatprep.subr.bf16.mxu0 0
  %428 = vmatpush1.bf16.msra.mxu0 %v303
  %429 = vmatprep.subr.bf16.mxu0 0
  %430 = vmatpush1.bf16.msra.mxu0 %v304
  %431 = vmatprep.subr.bf16.mxu0 0
  %432 = vmatpush1.bf16.msra.mxu0 %v305
  %433 = vmatprep.subr.bf16.mxu0 0
  %434 = vmatpush1.bf16.msra.mxu0 %v306
  %435 = vmatprep.subr.bf16.mxu0 0
  %436 = vmatpush1.bf16.msra.mxu0 0
  %437 = vmatprep.subr.bf16.mxu0 0
  %438 = vmatpush1.bf16.msra.mxu0 0
  %439 = vmatprep.subr.bf16.mxu0 0
  %440 = vmatpush1.bf16.msra.mxu0 0
  %441 = vmatprep.subr.bf16.mxu0 0
  %442 = vmatpush1.bf16.msra.mxu0 0
  %443 = vmatprep.subr.bf16.mxu0 0
  %444 = vmatpush1.bf16.msra.mxu0 0
  %445 = vmatprep.subr.bf16.mxu0 0
  %446 = vmatpush1.bf16.msra.mxu0 0
  %447 = vmatprep.subr.bf16.mxu0 0
  %448 = vmatpush1.bf16.msra.mxu0 0
  %449 = vmatprep.subr.bf16.mxu0 0
  %450 = vmatpush1.bf16.msra.mxu0 0
  %451 = vmatprep.subr.bf16.mxu0 0
  %452 = vmatpush1.bf16.msra.mxu0 0
  %453 = vmatprep.subr.bf16.mxu0 0
  %454 = vmatpush1.bf16.msra.mxu0 0
  %455 = vmatprep.subr.bf16.mxu0 0
  %456 = vmatpush1.bf16.msra.mxu0 0
  %457 = vmatprep.subr.bf16.mxu0 0
  %458 = vmatpush1.bf16.msra.mxu0 0
  %459 = vmatprep.mubr.bf16.mxu0 0
  %460 = vmatmul.mubr.bf16.gmra.mrb[0].mxu0 %v345
  %v461 = vpop.f32.mrb[0].mxu0
  %v462 = vadd.f32 %v422, %v461
  %v463 = vpop.f32.mrb[0].mxu0
  %v464 = vpop.f32.mrb[0].mxu0
  %v465 = vpop.f32.mrb[0].mxu0
  %466 = vdwg.mxu0
  %467 = vst [vmem:[#allocation2] sm:$0xff] %v462
  %468 = vst [vmem:[#allocation3] sm:$0xff] 0.0
  %469 = vst [vmem:[#allocation3 + $0x8] sm:$0xff] 0.0
  %470 = vst [vmem:[#allocation3 + $0x10] sm:$0xff] 0.0
  %471 = vst [vmem:[#allocation3 + $0x18] sm:$0xff] 0.0
  %472 = vst [vmem:[#allocation3 + $0x20] sm:$0xff] 0.0
  %473 = vst [vmem:[#allocation3 + $0x28] sm:$0xff] 0.0
  %474 = vst [vmem:[#allocation3 + $0x30] sm:$0xff] 0.0
  %475 = vst [vmem:[#allocation3 + $0x38] sm:$0xff] 0.0
  %476 = vst [vmem:[#allocation3 + $0x40] sm:$0xff] 0.0
  %477 = vst [vmem:[#allocation4] sm:$0xf] 0
  %478 = vst [vmem:[#allocation4 + $0x4] sm:$0xf] 0
  %479 = vst [vmem:[#allocation4 + $0x8] sm:$0xf] 0
  %480 = vst [vmem:[#allocation4 + $0xc] sm:$0xf] 0
  %481 = vst [vmem:[#allocation4 + $0x10] sm:$0xf] 0
  %482 = vst [vmem:[#allocation4 + $0x14] sm:$0xf] 0
  %483 = vst [vmem:[#allocation4 + $0x18] sm:$0xf] 0
  %484 = vst [vmem:[#allocation4 + $0x1c] sm:$0xf] 0
  %485 = vst [vmem:[#allocation4 + $0x20] sm:$0xf] 0
  %486 = vst [vmem:[#allocation5] sm:$0xff] 0.0
  %487 = vst [vmem:[#allocation6] sm:$0xff] 0.0
  %488 = vst [vmem:[#allocation7] sm:$0xff] 0.0
  %489 = vst [vmem:[%s7] sm:$0xff] 0.0
  %v490 = vlaneseq
  %v491 = vand.u32 %v490, 127
  %v492 = vld [vmem:[#allocation2] sm:$0xff]
  %v493 = vld [vmem:[#allocation3] sm:$0xff]
  %v494 = vmul.f32 %v493, 0.8
  %v495 = vadd.f32 %v494, %v492
  %v496 = vld [vmem:[#allocation4] sm:$0xf]
  %v497 = vmul.bf16 %v496, 1056980736
  %v498 = vunpack.c.l.bf16 %v497
  %v499 = vsub.f32 %v495, %v498
  %vm500 = vcmp.gt.f32.partialorder %v499, 0.5
  %v501 = vsel %vm500, 1, 0
  %v502 = vcvt.s32.f32 %v501
  %v503 = vpack.c.bf16 %v502, %v502
  %504 = vst [vmem:[#allocation3] sm:$0xff] %v499
  %505 = vst [vmem:[#allocation4] sm:$0xf] %v503
  %v506 = vld [vmem:[%s3] sm:$0xf]
  %v507 = vld [vmem:[%s3 + $0x4] sm:$0xf]
  %v508 = vld [vmem:[%s3 + $0x8] sm:$0xf]
  %v509 = vld [vmem:[%s3 + $0xc] sm:$0xf]
  %v510 = vld [vmem:[%s3 + $0x10] sm:$0xf]
  %v511 = vld [vmem:[%s3 + $0x14] sm:$0xf]
  %v512 = vld [vmem:[%s3 + $0x18] sm:$0xf]
  %v513 = vld [vmem:[%s3 + $0x1c] sm:$0xf]
  %v514 = vld [vmem:[%s3 + $0x20] sm:$0xf]
  %v515 = vld [vmem:[%s3 + $0x24] sm:$0xf]
  %v516 = vld [vmem:[%s3 + $0x28] sm:$0xf]
  %v517 = vld [vmem:[%s3 + $0x2c] sm:$0xf]
  %v518 = vld [vmem:[%s3 + $0x30] sm:$0xf]
  %v519 = vld [vmem:[%s3 + $0x34] sm:$0xf]
  %v520 = vld [vmem:[%s3 + $0x38] sm:$0xf]
  %v521 = vld [vmem:[%s3 + $0x3c] sm:$0xf]
  %v522 = vld [vmem:[%s4] sm:$0x1]
  %v524 = vlaneseq
  %v525 = vshrl.u32 %v524, 7
  %v526 = vsub.s32 0, %v525
  %v527 = vrot.slane %v522, %v526
  %v545 = vunpack.c.l.b16 %v506
  %v546 = vunpack.c.l.b16 %v507
  %v547 = vunpack.c.l.b16 %v508
  %v548 = vunpack.c.l.b16 %v509
  %v549 = vunpack.c.l.b16 %v510
  %v550 = vunpack.c.l.b16 %v511
  %v551 = vunpack.c.l.b16 %v512
  %v552 = vunpack.c.l.b16 %v513
  %v553 = vunpack.c.l.b16 %v514
  %v554 = vunpack.c.l.b16 %v515
  %v555 = vunpack.c.l.b16 %v516
  %v556 = vunpack.c.l.b16 %v517
  %v557 = vunpack.c.l.b16 %v518
  %v558 = vunpack.c.l.b16 %v519
  %v559 = vunpack.c.l.b16 %v520
  %v560 = vunpack.c.l.b16 %v521
  %v561 = vpack.c.b16 %v546, %v545
  %v562 = vpack.c.b16 %v548, %v547
  %v563 = vpack.c.b16 %v550, %v549
  %v564 = vpack.c.b16 %v552, %v551
  %v565 = vpack.c.b16 %v554, %v553
  %v566 = vpack.c.b16 %v556, %v555
  %v567 = vpack.c.b16 %v558, %v557
  %v568 = vpack.c.b16 %v560, %v559
  %577 = vmatprep.subr.bf16.mxu0 0
  %578 = vmatpush1.bf16.msra.mxu0 %v561
  %579 = vmatprep.subr.bf16.mxu0 0
  %580 = vmatpush1.bf16.msra.mxu0 %v562
  %581 = vmatprep.subr.bf16.mxu0 0
  %582 = vmatpush1.bf16.msra.mxu0 %v563
  %583 = vmatprep.subr.bf16.mxu0 0
  %584 = vmatpush1.bf16.msra.mxu0 %v564
  %585 = vmatprep.subr.bf16.mxu0 0
  %586 = vmatpush1.bf16.msra.mxu0 %v565
  %587 = vmatprep.subr.bf16.mxu0 0
  %588 = vmatpush1.bf16.msra.mxu0 %v566
  %589 = vmatprep.subr.bf16.mxu0 0
  %590 = vmatpush1.bf16.msra.mxu0 %v567
  %591 = vmatprep.subr.bf16.mxu0 0
  %592 = vmatpush1.bf16.msra.mxu0 %v568
  %593 = vmatprep.subr.bf16.mxu0 0
  %594 = vmatpush1.bf16.msra.mxu0 0
  %595 = vmatprep.subr.bf16.mxu0 0
  %596 = vmatpush1.bf16.msra.mxu0 0
  %597 = vmatprep.subr.bf16.mxu0 0
  %598 = vmatpush1.bf16.msra.mxu0 0
  %599 = vmatprep.subr.bf16.mxu0 0
  %600 = vmatpush1.bf16.msra.mxu0 0
  %601 = vmatprep.subr.bf16.mxu0 0
  %602 = vmatpush1.bf16.msra.mxu0 0
  %603 = vmatprep.subr.bf16.mxu0 0
  %604 = vmatpush1.bf16.msra.mxu0 0
  %605 = vmatprep.subr.bf16.mxu0 0
  %606 = vmatpush1.bf16.msra.mxu0 0
  %607 = vmatprep.subr.bf16.mxu0 0
  %608 = vmatpush1.bf16.msra.mxu0 0
  %609 = vmatprep.mubr.bf16.mxu0 0
  %610 = vmatmul.mubr.bf16.gmra.mrb[0].mxu0 %v503
  %v611 = vpop.f32.mrb[0].mxu0
  %v612 = vadd.f32 %v527, %v611
  %v613 = vpop.f32.mrb[0].mxu0
  %v614 = vpop.f32.mrb[0].mxu0
  %v615 = vpop.f32.mrb[0].mxu0
  %616 = vdwg.mxu0
  %s617 = scalar_lea.vmem [#allocation3], 8
  %v618 = vld [vmem:[%s617] sm:$0xff]
  %v619 = vmul.f32 %v618, 0.8
  %v620 = vadd.f32 %v619, %v612
  %s621 = scalar_lea.vmem [#allocation4], 4
  %v622 = vld [vmem:[%s621] sm:$0xf]
  %v623 = vmul.bf16 %v622, 1056980736
  %v624 = vunpack.c.l.bf16 %v623
  %v625 = vsub.f32 %v620, %v624
  %vm626 = vcmp.gt.f32.partialorder %v625, 0.5
  %v627 = vsel %vm626, 1, 0
  %v628 = vcvt.s32.f32 %v627
  %v629 = vpack.c.bf16 %v628, %v628
  %630 = vst [vmem:[%s617] sm:$0xff] %v625
  %631 = vst [vmem:[%s621] sm:$0xf] %v629
  %s632 = scalar_lea.vmem %s3, 64
  %v633 = vld [vmem:[%s632] sm:$0xf]
  %v634 = vld [vmem:[%s632 + $0x4] sm:$0xf]
  %v635 = vld [vmem:[%s632 + $0x8] sm:$0xf]
  %v636 = vld [vmem:[%s632 + $0xc] sm:$0xf]
  %v637 = vld [vmem:[%s632 + $0x10] sm:$0xf]
  %v638 = vld [vmem:[%s632 + $0x14] sm:$0xf]
  %v639 = vld [vmem:[%s632 + $0x18] sm:$0xf]
  %v640 = vld [vmem:[%s632 + $0x1c] sm:$0xf]
  %v641 = vld [vmem:[%s632 + $0x20] sm:$0xf]
  %v642 = vld [vmem:[%s632 + $0x24] sm:$0xf]
  %v643 = vld [vmem:[%s632 + $0x28] sm:$0xf]
  %v644 = vld [vmem:[%s632 + $0x2c] sm:$0xf]
  %v645 = vld [vmem:[%s632 + $0x30] sm:$0xf]
  %v646 = vld [vmem:[%s632 + $0x34] sm:$0xf]
  %v647 = vld [vmem:[%s632 + $0x38] sm:$0xf]
  %v648 = vld [vmem:[%s632 + $0x3c] sm:$0xf]
  %s649 = scalar_lea.vmem %s4, 1
  %v650 = vld [vmem:[%s649] sm:$0x1]
  %v652 = vlaneseq
  %v653 = vshrl.u32 %v652, 7
  %v654 = vsub.s32 0, %v653
  %v655 = vrot.slane %v650, %v654
  %v673 = vunpack.c.l.b16 %v633
  %v674 = vunpack.c.l.b16 %v634
  %v675 = vunpack.c.l.b16 %v635
  %v676 = vunpack.c.l.b16 %v636
  %v677 = vunpack.c.l.b16 %v637
  %v678 = vunpack.c.l.b16 %v638
  %v679 = vunpack.c.l.b16 %v639
  %v680 = vunpack.c.l.b16 %v640
  %v681 = vunpack.c.l.b16 %v641
  %v682 = vunpack.c.l.b16 %v642
  %v683 = vunpack.c.l.b16 %v643
  %v684 = vunpack.c.l.b16 %v644
  %v685 = vunpack.c.l.b16 %v645
  %v686 = vunpack.c.l.b16 %v646
  %v687 = vunpack.c.l.b16 %v647
  %v688 = vunpack.c.l.b16 %v648
  %v689 = vpack.c.b16 %v674, %v673
  %v690 = vpack.c.b16 %v676, %v675
  %v691 = vpack.c.b16 %v678, %v677
  %v692 = vpack.c.b16 %v680, %v679
  %v693 = vpack.c.b16 %v682, %v681
  %v694 = vpack.c.b16 %v684, %v683
  %v695 = vpack.c.b16 %v686, %v685
  %v696 = vpack.c.b16 %v688, %v687
  %705 = vmatprep.subr.bf16.mxu0 0
  %706 = vmatpush1.bf16.msra.mxu0 %v689
  %707 = vmatprep.subr.bf16.mxu0 0
  %708 = vmatpush1.bf16.msra.mxu0 %v690
  %709 = vmatprep.subr.bf16.mxu0 0
  %710 = vmatpush1.bf16.msra.mxu0 %v691
  %711 = vmatprep.subr.bf16.mxu0 0
  %712 = vmatpush1.bf16.msra.mxu0 %v692
  %713 = vmatprep.subr.bf16.mxu0 0
  %714 = vmatpush1.bf16.msra.mxu0 %v693
  %715 = vmatprep.subr.bf16.mxu0 0
  %716 = vmatpush1.bf16.msra.mxu0 %v694
  %717 = vmatprep.subr.bf16.mxu0 0
  %718 = vmatpush1.bf16.msra.mxu0 %v695
  %719 = vmatprep.subr.bf16.mxu0 0
  %720 = vmatpush1.bf16.msra.mxu0 %v696
  %721 = vmatprep.subr.bf16.mxu0 0
  %722 = vmatpush1.bf16.msra.mxu0 0
  %723 = vmatprep.subr.bf16.mxu0 0
  %724 = vmatpush1.bf16.msra.mxu0 0
  %725 = vmatprep.subr.bf16.mxu0 0
  %726 = vmatpush1.bf16.msra.mxu0 0
  %727 = vmatprep.subr.bf16.mxu0 0
  %728 = vmatpush1.bf16.msra.mxu0 0
  %729 = vmatprep.subr.bf16.mxu0 0
  %730 = vmatpush1.bf16.msra.mxu0 0
  %731 = vmatprep.subr.bf16.mxu0 0
  %732 = vmatpush1.bf16.msra.mxu0 0
  %733 = vmatprep.subr.bf16.mxu0 0
  %734 = vmatpush1.bf16.msra.mxu0 0
  %735 = vmatprep.subr.bf16.mxu0 0
  %736 = vmatpush1.bf16.msra.mxu0 0
  %737 = vmatprep.mubr.bf16.mxu0 0
  %738 = vmatmul.mubr.bf16.gmra.mrb[0].mxu0 %v629
  %v739 = vpop.f32.mrb[0].mxu0
  %v740 = vadd.f32 %v655, %v739
  %v741 = vpop.f32.mrb[0].mxu0
  %v742 = vpop.f32.mrb[0].mxu0
  %v743 = vpop.f32.mrb[0].mxu0
  %744 = vdwg.mxu0
  %s745 = scalar_lea.vmem [#allocation3], 16
  %v746 = vld [vmem:[%s745] sm:$0xff]
  %v747 = vmul.f32 %v746, 0.8
  %v748 = vadd.f32 %v747, %v740
  %s749 = scalar_lea.vmem [#allocation4], 8
  %v750 = vld [vmem:[%s749] sm:$0xf]
  %v751 = vmul.bf16 %v750, 1056980736
  %v752 = vunpack.c.l.bf16 %v751
  %v753 = vsub.f32 %v748, %v752
  %vm754 = vcmp.gt.f32.partialorder %v753, 0.5
  %v755 = vsel %vm754, 1, 0
  %v756 = vcvt.s32.f32 %v755
  %v757 = vpack.c.bf16 %v756, %v756
  %758 = vst [vmem:[%s745] sm:$0xff] %v753
  %759 = vst [vmem:[%s749] sm:$0xf] %v757
  %s760 = scalar_lea.vmem %s3, 128
  %v761 = vld [vmem:[%s760] sm:$0xf]
  %v762 = vld [vmem:[%s760 + $0x4] sm:$0xf]
  %v763 = vld [vmem:[%s760 + $0x8] sm:$0xf]
  %v764 = vld [vmem:[%s760 + $0xc] sm:$0xf]
  %v765 = vld [vmem:[%s760 + $0x10] sm:$0xf]
  %v766 = vld [vmem:[%s760 + $0x14] sm:$0xf]
  %v767 = vld [vmem:[%s760 + $0x18] sm:$0xf]
  %v768 = vld [vmem:[%s760 + $0x1c] sm:$0xf]
  %v769 = vld [vmem:[%s760 + $0x20] sm:$0xf]
  %v770 = vld [vmem:[%s760 + $0x24] sm:$0xf]
  %v771 = vld [vmem:[%s760 + $0x28] sm:$0xf]
  %v772 = vld [vmem:[%s760 + $0x2c] sm:$0xf]
  %v773 = vld [vmem:[%s760 + $0x30] sm:$0xf]
  %v774 = vld [vmem:[%s760 + $0x34] sm:$0xf]
  %v775 = vld [vmem:[%s760 + $0x38] sm:$0xf]
  %v776 = vld [vmem:[%s760 + $0x3c] sm:$0xf]
  %s777 = scalar_lea.vmem %s4, 2
  %v778 = vld [vmem:[%s777] sm:$0x1]
  %v780 = vlaneseq
  %v781 = vshrl.u32 %v780, 7
  %v782 = vsub.s32 0, %v781
  %v783 = vrot.slane %v778, %v782
  %v801 = vunpack.c.l.b16 %v761
  %v802 = vunpack.c.l.b16 %v762
  %v803 = vunpack.c.l.b16 %v763
  %v804 = vunpack.c.l.b16 %v764
  %v805 = vunpack.c.l.b16 %v765
  %v806 = vunpack.c.l.b16 %v766
  %v807 = vunpack.c.l.b16 %v767
  %v808 = vunpack.c.l.b16 %v768
  %v809 = vunpack.c.l.b16 %v769
  %v810 = vunpack.c.l.b16 %v770
  %v811 = vunpack.c.l.b16 %v771
  %v812 = vunpack.c.l.b16 %v772
  %v813 = vunpack.c.l.b16 %v773
  %v814 = vunpack.c.l.b16 %v774
  %v815 = vunpack.c.l.b16 %v775
  %v816 = vunpack.c.l.b16 %v776
  %v817 = vpack.c.b16 %v802, %v801
  %v818 = vpack.c.b16 %v804, %v803
  %v819 = vpack.c.b16 %v806, %v805
  %v820 = vpack.c.b16 %v808, %v807
  %v821 = vpack.c.b16 %v810, %v809
  %v822 = vpack.c.b16 %v812, %v811
  %v823 = vpack.c.b16 %v814, %v813
  %v824 = vpack.c.b16 %v816, %v815
  %833 = vmatprep.subr.bf16.mxu0 0
  %834 = vmatpush1.bf16.msra.mxu0 %v817
  %835 = vmatprep.subr.bf16.mxu0 0
  %836 = vmatpush1.bf16.msra.mxu0 %v818
  %837 = vmatprep.subr.bf16.mxu0 0
  %838 = vmatpush1.bf16.msra.mxu0 %v819
  %839 = vmatprep.subr.bf16.mxu0 0
  %840 = vmatpush1.bf16.msra.mxu0 %v820
  %841 = vmatprep.subr.bf16.mxu0 0
  %842 = vmatpush1.bf16.msra.mxu0 %v821
  %843 = vmatprep.subr.bf16.mxu0 0
  %844 = vmatpush1.bf16.msra.mxu0 %v822
  %845 = vmatprep.subr.bf16.mxu0 0
  %846 = vmatpush1.bf16.msra.mxu0 %v823
  %847 = vmatprep.subr.bf16.mxu0 0
  %848 = vmatpush1.bf16.msra.mxu0 %v824
  %849 = vmatprep.subr.bf16.mxu0 0
  %850 = vmatpush1.bf16.msra.mxu0 0
  %851 = vmatprep.subr.bf16.mxu0 0
  %852 = vmatpush1.bf16.msra.mxu0 0
  %853 = vmatprep.subr.bf16.mxu0 0
  %854 = vmatpush1.bf16.msra.mxu0 0
  %855 = vmatprep.subr.bf16.mxu0 0
  %856 = vmatpush1.bf16.msra.mxu0 0
  %857 = vmatprep.subr.bf16.mxu0 0
  %858 = vmatpush1.bf16.msra.mxu0 0
  %859 = vmatprep.subr.bf16.mxu0 0
  %860 = vmatpush1.bf16.msra.mxu0 0
  %861 = vmatprep.subr.bf16.mxu0 0
  %862 = vmatpush1.bf16.msra.mxu0 0
  %863 = vmatprep.subr.bf16.mxu0 0
  %864 = vmatpush1.bf16.msra.mxu0 0
  %865 = vmatprep.mubr.bf16.mxu0 0
  %866 = vmatmul.mubr.bf16.gmra.mrb[0].mxu0 %v757
  %v867 = vpop.f32.mrb[0].mxu0
  %v868 = vadd.f32 %v783, %v867
  %v869 = vpop.f32.mrb[0].mxu0
  %v870 = vpop.f32.mrb[0].mxu0
  %v871 = vpop.f32.mrb[0].mxu0
  %872 = vdwg.mxu0
  %s873 = scalar_lea.vmem [#allocation3], 24
  %v874 = vld [vmem:[%s873] sm:$0xff]
  %v875 = vmul.f32 %v874, 0.8
  %v876 = vadd.f32 %v875, %v868
  %s877 = scalar_lea.vmem [#allocation4], 12
  %v878 = vld [vmem:[%s877] sm:$0xf]
  %v879 = vmul.bf16 %v878, 1056980736
  %v880 = vunpack.c.l.bf16 %v879
  %v881 = vsub.f32 %v876, %v880
  %vm882 = vcmp.gt.f32.partialorder %v881, 0.5
  %v883 = vsel %vm882, 1, 0
  %v884 = vcvt.s32.f32 %v883
  %v885 = vpack.c.bf16 %v884, %v884
  %886 = vst [vmem:[%s873] sm:$0xff] %v881
  %887 = vst [vmem:[%s877] sm:$0xf] %v885
  %s888 = scalar_lea.vmem %s3, 192
  %v889 = vld [vmem:[%s888] sm:$0xf]
  %v890 = vld [vmem:[%s888 + $0x4] sm:$0xf]
  %v891 = vld [vmem:[%s888 + $0x8] sm:$0xf]
  %v892 = vld [vmem:[%s888 + $0xc] sm:$0xf]
  %v893 = vld [vmem:[%s888 + $0x10] sm:$0xf]
  %v894 = vld [vmem:[%s888 + $0x14] sm:$0xf]
  %v895 = vld [vmem:[%s888 + $0x18] sm:$0xf]
  %v896 = vld [vmem:[%s888 + $0x1c] sm:$0xf]
  %v897 = vld [vmem:[%s888 + $0x20] sm:$0xf]
  %v898 = vld [vmem:[%s888 + $0x24] sm:$0xf]
  %v899 = vld [vmem:[%s888 + $0x28] sm:$0xf]
  %v900 = vld [vmem:[%s888 + $0x2c] sm:$0xf]
  %v901 = vld [vmem:[%s888 + $0x30] sm:$0xf]
  %v902 = vld [vmem:[%s888 + $0x34] sm:$0xf]
  %v903 = vld [vmem:[%s888 + $0x38] sm:$0xf]
  %v904 = vld [vmem:[%s888 + $0x3c] sm:$0xf]
  %s905 = scalar_lea.vmem %s4, 3
  %v906 = vld [vmem:[%s905] sm:$0x1]
  %v908 = vlaneseq
  %v909 = vshrl.u32 %v908, 7
  %v910 = vsub.s32 0, %v909
  %v911 = vrot.slane %v906, %v910
  %v929 = vunpack.c.l.b16 %v889
  %v930 = vunpack.c.l.b16 %v890
  %v931 = vunpack.c.l.b16 %v891
  %v932 = vunpack.c.l.b16 %v892
  %v933 = vunpack.c.l.b16 %v893
  %v934 = vunpack.c.l.b16 %v894
  %v935 = vunpack.c.l.b16 %v895
  %v936 = vunpack.c.l.b16 %v896
  %v937 = vunpack.c.l.b16 %v897
  %v938 = vunpack.c.l.b16 %v898
  %v939 = vunpack.c.l.b16 %v899
  %v940 = vunpack.c.l.b16 %v900
  %v941 = vunpack.c.l.b16 %v901
  %v942 = vunpack.c.l.b16 %v902
  %v943 = vunpack.c.l.b16 %v903
  %v944 = vunpack.c.l.b16 %v904
  %v945 = vpack.c.b16 %v930, %v929
  %v946 = vpack.c.b16 %v932, %v931
  %v947 = vpack.c.b16 %v934, %v933
  %v948 = vpack.c.b16 %v936, %v935
  %v949 = vpack.c.b16 %v938, %v937
  %v950 = vpack.c.b16 %v940, %v939
  %v951 = vpack.c.b16 %v942, %v941
  %v952 = vpack.c.b16 %v944, %v943
  %961 = vmatprep.subr.bf16.mxu0 0
  %962 = vmatpush1.bf16.msra.mxu0 %v945
  %963 = vmatprep.subr.bf16.mxu0 0
  %964 = vmatpush1.bf16.msra.mxu0 %v946
  %965 = vmatprep.subr.bf16.mxu0 0
  %966 = vmatpush1.bf16.msra.mxu0 %v947
  %967 = vmatprep.subr.bf16.mxu0 0
  %968 = vmatpush1.bf16.msra.mxu0 %v948
  %969 = vmatprep.subr.bf16.mxu0 0
  %970 = vmatpush1.bf16.msra.mxu0 %v949
  %971 = vmatprep.subr.bf16.mxu0 0
  %972 = vmatpush1.bf16.msra.mxu0 %v950
  %973 = vmatprep.subr.bf16.mxu0 0
  %974 = vmatpush1.bf16.msra.mxu0 %v951
  %975 = vmatprep.subr.bf16.mxu0 0
  %976 = vmatpush1.bf16.msra.mxu0 %v952
  %977 = vmatprep.subr.bf16.mxu0 0
  %978 = vmatpush1.bf16.msra.mxu0 0
  %979 = vmatprep.subr.bf16.mxu0 0
  %980 = vmatpush1.bf16.msra.mxu0 0
  %981 = vmatprep.subr.bf16.mxu0 0
  %982 = vmatpush1.bf16.msra.mxu0 0
  %983 = vmatprep.subr.bf16.mxu0 0
  %984 = vmatpush1.bf16.msra.mxu0 0
  %985 = vmatprep.subr.bf16.mxu0 0
  %986 = vmatpush1.bf16.msra.mxu0 0
  %987 = vmatprep.subr.bf16.mxu0 0
  %988 = vmatpush1.bf16.msra.mxu0 0
  %989 = vmatprep.subr.bf16.mxu0 0
  %990 = vmatpush1.bf16.msra.mxu0 0
  %991 = vmatprep.subr.bf16.mxu0 0
  %992 = vmatpush1.bf16.msra.mxu0 0
  %993 = vmatprep.mubr.bf16.mxu0 0
  %994 = vmatmul.mubr.bf16.gmra.mrb[0].mxu0 %v885
  %v995 = vpop.f32.mrb[0].mxu0
  %v996 = vadd.f32 %v911, %v995
  %v997 = vpop.f32.mrb[0].mxu0
  %v998 = vpop.f32.mrb[0].mxu0
  %v999 = vpop.f32.mrb[0].mxu0
  %1000 = vdwg.mxu0
  %s1001 = scalar_lea.vmem [#allocation3], 32
  %v1002 = vld [vmem:[%s1001] sm:$0xff]
  %v1003 = vmul.f32 %v1002, 0.8
  %v1004 = vadd.f32 %v1003, %v996
  %s1005 = scalar_lea.vmem [#allocation4], 16
  %v1006 = vld [vmem:[%s1005] sm:$0xf]
  %v1007 = vmul.bf16 %v1006, 1056980736
  %v1008 = vunpack.c.l.bf16 %v1007
  %v1009 = vsub.f32 %v1004, %v1008
  %vm1010 = vcmp.gt.f32.partialorder %v1009, 0.5
  %v1011 = vsel %vm1010, 1, 0
  %v1012 = vcvt.s32.f32 %v1011
  %v1013 = vpack.c.bf16 %v1012, %v1012
  %1014 = vst [vmem:[%s1001] sm:$0xff] %v1009
  %1015 = vst [vmem:[%s1005] sm:$0xf] %v1013
  %s1016 = scalar_lea.vmem %s3, 256
  %v1017 = vld [vmem:[%s1016] sm:$0xf]
  %v1018 = vld [vmem:[%s1016 + $0x4] sm:$0xf]
  %v1019 = vld [vmem:[%s1016 + $0x8] sm:$0xf]
  %v1020 = vld [vmem:[%s1016 + $0xc] sm:$0xf]
  %v1021 = vld [vmem:[%s1016 + $0x10] sm:$0xf]
  %v1022 = vld [vmem:[%s1016 + $0x14] sm:$0xf]
  %v1023 = vld [vmem:[%s1016 + $0x18] sm:$0xf]
  %v1024 = vld [vmem:[%s1016 + $0x1c] sm:$0xf]
  %v1025 = vld [vmem:[%s1016 + $0x20] sm:$0xf]
  %v1026 = vld [vmem:[%s1016 + $0x24] sm:$0xf]
  %v1027 = vld [vmem:[%s1016 + $0x28] sm:$0xf]
  %v1028 = vld [vmem:[%s1016 + $0x2c] sm:$0xf]
  %v1029 = vld [vmem:[%s1016 + $0x30] sm:$0xf]
  %v1030 = vld [vmem:[%s1016 + $0x34] sm:$0xf]
  %v1031 = vld [vmem:[%s1016 + $0x38] sm:$0xf]
  %v1032 = vld [vmem:[%s1016 + $0x3c] sm:$0xf]
  %s1033 = scalar_lea.vmem %s4, 4
  %v1034 = vld [vmem:[%s1033] sm:$0x1]
  %v1036 = vlaneseq
  %v1037 = vshrl.u32 %v1036, 7
  %v1038 = vsub.s32 0, %v1037
  %v1039 = vrot.slane %v1034, %v1038
  %v1057 = vunpack.c.l.b16 %v1017
  %v1058 = vunpack.c.l.b16 %v1018
  %v1059 = vunpack.c.l.b16 %v1019
  %v1060 = vunpack.c.l.b16 %v1020
  %v1061 = vunpack.c.l.b16 %v1021
  %v1062 = vunpack.c.l.b16 %v1022
  %v1063 = vunpack.c.l.b16 %v1023
  %v1064 = vunpack.c.l.b16 %v1024
  %v1065 = vunpack.c.l.b16 %v1025
  %v1066 = vunpack.c.l.b16 %v1026
  %v1067 = vunpack.c.l.b16 %v1027
  %v1068 = vunpack.c.l.b16 %v1028
  %v1069 = vunpack.c.l.b16 %v1029
  %v1070 = vunpack.c.l.b16 %v1030
  %v1071 = vunpack.c.l.b16 %v1031
  %v1072 = vunpack.c.l.b16 %v1032
  %v1073 = vpack.c.b16 %v1058, %v1057
  %v1074 = vpack.c.b16 %v1060, %v1059
  %v1075 = vpack.c.b16 %v1062, %v1061
  %v1076 = vpack.c.b16 %v1064, %v1063
  %v1077 = vpack.c.b16 %v1066, %v1065
  %v1078 = vpack.c.b16 %v1068, %v1067
  %v1079 = vpack.c.b16 %v1070, %v1069
  %v1080 = vpack.c.b16 %v1072, %v1071
  %1089 = vmatprep.subr.bf16.mxu0 0
  %1090 = vmatpush1.bf16.msra.mxu0 %v1073
  %1091 = vmatprep.subr.bf16.mxu0 0
  %1092 = vmatpush1.bf16.msra.mxu0 %v1074
  %1093 = vmatprep.subr.bf16.mxu0 0
  %1094 = vmatpush1.bf16.msra.mxu0 %v1075
  %1095 = vmatprep.subr.bf16.mxu0 0
  %1096 = vmatpush1.bf16.msra.mxu0 %v1076
  %1097 = vmatprep.subr.bf16.mxu0 0
  %1098 = vmatpush1.bf16.msra.mxu0 %v1077
  %1099 = vmatprep.subr.bf16.mxu0 0
  %1100 = vmatpush1.bf16.msra.mxu0 %v1078
  %1101 = vmatprep.subr.bf16.mxu0 0
  %1102 = vmatpush1.bf16.msra.mxu0 %v1079
  %1103 = vmatprep.subr.bf16.mxu0 0
  %1104 = vmatpush1.bf16.msra.mxu0 %v1080
  %1105 = vmatprep.subr.bf16.mxu0 0
  %1106 = vmatpush1.bf16.msra.mxu0 0
  %1107 = vmatprep.subr.bf16.mxu0 0
  %1108 = vmatpush1.bf16.msra.mxu0 0
  %1109 = vmatprep.subr.bf16.mxu0 0
  %1110 = vmatpush1.bf16.msra.mxu0 0
  %1111 = vmatprep.subr.bf16.mxu0 0
  %1112 = vmatpush1.bf16.msra.mxu0 0
  %1113 = vmatprep.subr.bf16.mxu0 0
  %1114 = vmatpush1.bf16.msra.mxu0 0
  %1115 = vmatprep.subr.bf16.mxu0 0
  %1116 = vmatpush1.bf16.msra.mxu0 0
  %1117 = vmatprep.subr.bf16.mxu0 0
  %1118 = vmatpush1.bf16.msra.mxu0 0
  %1119 = vmatprep.subr.bf16.mxu0 0
  %1120 = vmatpush1.bf16.msra.mxu0 0
  %1121 = vmatprep.mubr.bf16.mxu0 0
  %1122 = vmatmul.mubr.bf16.gmra.mrb[0].mxu0 %v1013
  %v1123 = vpop.f32.mrb[0].mxu0
  %v1124 = vadd.f32 %v1039, %v1123
  %v1125 = vpop.f32.mrb[0].mxu0
  %v1126 = vpop.f32.mrb[0].mxu0
  %v1127 = vpop.f32.mrb[0].mxu0
  %1128 = vdwg.mxu0
  %s1129 = scalar_lea.vmem [#allocation3], 40
  %v1130 = vld [vmem:[%s1129] sm:$0xff]
  %v1131 = vmul.f32 %v1130, 0.8
  %v1132 = vadd.f32 %v1131, %v1124
  %s1133 = scalar_lea.vmem [#allocation4], 20
  %v1134 = vld [vmem:[%s1133] sm:$0xf]
  %v1135 = vmul.bf16 %v1134, 1056980736
  %v1136 = vunpack.c.l.bf16 %v1135
  %v1137 = vsub.f32 %v1132, %v1136
  %vm1138 = vcmp.gt.f32.partialorder %v1137, 0.5
  %v1139 = vsel %vm1138, 1, 0
  %v1140 = vcvt.s32.f32 %v1139
  %v1141 = vpack.c.bf16 %v1140, %v1140
  %1142 = vst [vmem:[%s1129] sm:$0xff] %v1137
  %1143 = vst [vmem:[%s1133] sm:$0xf] %v1141
  %s1144 = scalar_lea.vmem %s3, 320
  %v1145 = vld [vmem:[%s1144] sm:$0xf]
  %v1146 = vld [vmem:[%s1144 + $0x4] sm:$0xf]
  %v1147 = vld [vmem:[%s1144 + $0x8] sm:$0xf]
  %v1148 = vld [vmem:[%s1144 + $0xc] sm:$0xf]
  %v1149 = vld [vmem:[%s1144 + $0x10] sm:$0xf]
  %v1150 = vld [vmem:[%s1144 + $0x14] sm:$0xf]
  %v1151 = vld [vmem:[%s1144 + $0x18] sm:$0xf]
  %v1152 = vld [vmem:[%s1144 + $0x1c] sm:$0xf]
  %v1153 = vld [vmem:[%s1144 + $0x20] sm:$0xf]
  %v1154 = vld [vmem:[%s1144 + $0x24] sm:$0xf]
  %v1155 = vld [vmem:[%s1144 + $0x28] sm:$0xf]
  %v1156 = vld [vmem:[%s1144 + $0x2c] sm:$0xf]
  %v1157 = vld [vmem:[%s1144 + $0x30] sm:$0xf]
  %v1158 = vld [vmem:[%s1144 + $0x34] sm:$0xf]
  %v1159 = vld [vmem:[%s1144 + $0x38] sm:$0xf]
  %v1160 = vld [vmem:[%s1144 + $0x3c] sm:$0xf]
  %s1161 = scalar_lea.vmem %s4, 5
  %v1162 = vld [vmem:[%s1161] sm:$0x1]
  %v1164 = vlaneseq
  %v1165 = vshrl.u32 %v1164, 7
  %v1166 = vsub.s32 0, %v1165
  %v1167 = vrot.slane %v1162, %v1166
  %v1185 = vunpack.c.l.b16 %v1145
  %v1186 = vunpack.c.l.b16 %v1146
  %v1187 = vunpack.c.l.b16 %v1147
  %v1188 = vunpack.c.l.b16 %v1148
  %v1189 = vunpack.c.l.b16 %v1149
  %v1190 = vunpack.c.l.b16 %v1150
  %v1191 = vunpack.c.l.b16 %v1151
  %v1192 = vunpack.c.l.b16 %v1152
  %v1193 = vunpack.c.l.b16 %v1153
  %v1194 = vunpack.c.l.b16 %v1154
  %v1195 = vunpack.c.l.b16 %v1155
  %v1196 = vunpack.c.l.b16 %v1156
  %v1197 = vunpack.c.l.b16 %v1157
  %v1198 = vunpack.c.l.b16 %v1158
  %v1199 = vunpack.c.l.b16 %v1159
  %v1200 = vunpack.c.l.b16 %v1160
  %v1201 = vpack.c.b16 %v1186, %v1185
  %v1202 = vpack.c.b16 %v1188, %v1187
  %v1203 = vpack.c.b16 %v1190, %v1189
  %v1204 = vpack.c.b16 %v1192, %v1191
  %v1205 = vpack.c.b16 %v1194, %v1193
  %v1206 = vpack.c.b16 %v1196, %v1195
  %v1207 = vpack.c.b16 %v1198, %v1197
  %v1208 = vpack.c.b16 %v1200, %v1199
  %1217 = vmatprep.subr.bf16.mxu0 0
  %1218 = vmatpush1.bf16.msra.mxu0 %v1201
  %1219 = vmatprep.subr.bf16.mxu0 0
  %1220 = vmatpush1.bf16.msra.mxu0 %v1202
  %1221 = vmatprep.subr.bf16.mxu0 0
  %1222 = vmatpush1.bf16.msra.mxu0 %v1203
  %1223 = vmatprep.subr.bf16.mxu0 0
  %1224 = vmatpush1.bf16.msra.mxu0 %v1204
  %1225 = vmatprep.subr.bf16.mxu0 0
  %1226 = vmatpush1.bf16.msra.mxu0 %v1205
  %1227 = vmatprep.subr.bf16.mxu0 0
  %1228 = vmatpush1.bf16.msra.mxu0 %v1206
  %1229 = vmatprep.subr.bf16.mxu0 0
  %1230 = vmatpush1.bf16.msra.mxu0 %v1207
  %1231 = vmatprep.subr.bf16.mxu0 0
  %1232 = vmatpush1.bf16.msra.mxu0 %v1208
  %1233 = vmatprep.subr.bf16.mxu0 0
  %1234 = vmatpush1.bf16.msra.mxu0 0
  %1235 = vmatprep.subr.bf16.mxu0 0
  %1236 = vmatpush1.bf16.msra.mxu0 0
  %1237 = vmatprep.subr.bf16.mxu0 0
  %1238 = vmatpush1.bf16.msra.mxu0 0
  %1239 = vmatprep.subr.bf16.mxu0 0
  %1240 = vmatpush1.bf16.msra.mxu0 0
  %1241 = vmatprep.subr.bf16.mxu0 0
  %1242 = vmatpush1.bf16.msra.mxu0 0
  %1243 = vmatprep.subr.bf16.mxu0 0
  %1244 = vmatpush1.bf16.msra.mxu0 0
  %1245 = vmatprep.subr.bf16.mxu0 0
  %1246 = vmatpush1.bf16.msra.mxu0 0
  %1247 = vmatprep.subr.bf16.mxu0 0
  %1248 = vmatpush1.bf16.msra.mxu0 0
  %1249 = vmatprep.mubr.bf16.mxu0 0
  %1250 = vmatmul.mubr.bf16.gmra.mrb[0].mxu0 %v1141
  %v1251 = vpop.f32.mrb[0].mxu0
  %v1252 = vadd.f32 %v1167, %v1251
  %v1253 = vpop.f32.mrb[0].mxu0
  %v1254 = vpop.f32.mrb[0].mxu0
  %v1255 = vpop.f32.mrb[0].mxu0
  %1256 = vdwg.mxu0
  %s1257 = scalar_lea.vmem [#allocation3], 48
  %v1258 = vld [vmem:[%s1257] sm:$0xff]
  %v1259 = vmul.f32 %v1258, 0.8
  %v1260 = vadd.f32 %v1259, %v1252
  %s1261 = scalar_lea.vmem [#allocation4], 24
  %v1262 = vld [vmem:[%s1261] sm:$0xf]
  %v1263 = vmul.bf16 %v1262, 1056980736
  %v1264 = vunpack.c.l.bf16 %v1263
  %v1265 = vsub.f32 %v1260, %v1264
  %vm1266 = vcmp.gt.f32.partialorder %v1265, 0.5
  %v1267 = vsel %vm1266, 1, 0
  %v1268 = vcvt.s32.f32 %v1267
  %v1269 = vpack.c.bf16 %v1268, %v1268
  %1270 = vst [vmem:[%s1257] sm:$0xff] %v1265
  %1271 = vst [vmem:[%s1261] sm:$0xf] %v1269
  %s1272 = scalar_lea.vmem %s3, 384
  %v1273 = vld [vmem:[%s1272] sm:$0xf]
  %v1274 = vld [vmem:[%s1272 + $0x4] sm:$0xf]
  %v1275 = vld [vmem:[%s1272 + $0x8] sm:$0xf]
  %v1276 = vld [vmem:[%s1272 + $0xc] sm:$0xf]
  %v1277 = vld [vmem:[%s1272 + $0x10] sm:$0xf]
  %v1278 = vld [vmem:[%s1272 + $0x14] sm:$0xf]
  %v1279 = vld [vmem:[%s1272 + $0x18] sm:$0xf]
  %v1280 = vld [vmem:[%s1272 + $0x1c] sm:$0xf]
  %v1281 = vld [vmem:[%s1272 + $0x20] sm:$0xf]
  %v1282 = vld [vmem:[%s1272 + $0x24] sm:$0xf]
  %v1283 = vld [vmem:[%s1272 + $0x28] sm:$0xf]
  %v1284 = vld [vmem:[%s1272 + $0x2c] sm:$0xf]
  %v1285 = vld [vmem:[%s1272 + $0x30] sm:$0xf]
  %v1286 = vld [vmem:[%s1272 + $0x34] sm:$0xf]
  %v1287 = vld [vmem:[%s1272 + $0x38] sm:$0xf]
  %v1288 = vld [vmem:[%s1272 + $0x3c] sm:$0xf]
  %s1289 = scalar_lea.vmem %s4, 6
  %v1290 = vld [vmem:[%s1289] sm:$0x1]
  %v1292 = vlaneseq
  %v1293 = vshrl.u32 %v1292, 7
  %v1294 = vsub.s32 0, %v1293
  %v1295 = vrot.slane %v1290, %v1294
  %v1313 = vunpack.c.l.b16 %v1273
  %v1314 = vunpack.c.l.b16 %v1274
  %v1315 = vunpack.c.l.b16 %v1275
  %v1316 = vunpack.c.l.b16 %v1276
  %v1317 = vunpack.c.l.b16 %v1277
  %v1318 = vunpack.c.l.b16 %v1278
  %v1319 = vunpack.c.l.b16 %v1279
  %v1320 = vunpack.c.l.b16 %v1280
  %v1321 = vunpack.c.l.b16 %v1281
  %v1322 = vunpack.c.l.b16 %v1282
  %v1323 = vunpack.c.l.b16 %v1283
  %v1324 = vunpack.c.l.b16 %v1284
  %v1325 = vunpack.c.l.b16 %v1285
  %v1326 = vunpack.c.l.b16 %v1286
  %v1327 = vunpack.c.l.b16 %v1287
  %v1328 = vunpack.c.l.b16 %v1288
  %v1329 = vpack.c.b16 %v1314, %v1313
  %v1330 = vpack.c.b16 %v1316, %v1315
  %v1331 = vpack.c.b16 %v1318, %v1317
  %v1332 = vpack.c.b16 %v1320, %v1319
  %v1333 = vpack.c.b16 %v1322, %v1321
  %v1334 = vpack.c.b16 %v1324, %v1323
  %v1335 = vpack.c.b16 %v1326, %v1325
  %v1336 = vpack.c.b16 %v1328, %v1327
  %1345 = vmatprep.subr.bf16.mxu0 0
  %1346 = vmatpush1.bf16.msra.mxu0 %v1329
  %1347 = vmatprep.subr.bf16.mxu0 0
  %1348 = vmatpush1.bf16.msra.mxu0 %v1330
  %1349 = vmatprep.subr.bf16.mxu0 0
  %1350 = vmatpush1.bf16.msra.mxu0 %v1331
  %1351 = vmatprep.subr.bf16.mxu0 0
  %1352 = vmatpush1.bf16.msra.mxu0 %v1332
  %1353 = vmatprep.subr.bf16.mxu0 0
  %1354 = vmatpush1.bf16.msra.mxu0 %v1333
  %1355 = vmatprep.subr.bf16.mxu0 0
  %1356 = vmatpush1.bf16.msra.mxu0 %v1334
  %1357 = vmatprep.subr.bf16.mxu0 0
  %1358 = vmatpush1.bf16.msra.mxu0 %v1335
  %1359 = vmatprep.subr.bf16.mxu0 0
  %1360 = vmatpush1.bf16.msra.mxu0 %v1336
  %1361 = vmatprep.subr.bf16.mxu0 0
  %1362 = vmatpush1.bf16.msra.mxu0 0
  %1363 = vmatprep.subr.bf16.mxu0 0
  %1364 = vmatpush1.bf16.msra.mxu0 0
  %1365 = vmatprep.subr.bf16.mxu0 0
  %1366 = vmatpush1.bf16.msra.mxu0 0
  %1367 = vmatprep.subr.bf16.mxu0 0
  %1368 = vmatpush1.bf16.msra.mxu0 0
  %1369 = vmatprep.subr.bf16.mxu0 0
  %1370 = vmatpush1.bf16.msra.mxu0 0
  %1371 = vmatprep.subr.bf16.mxu0 0
  %1372 = vmatpush1.bf16.msra.mxu0 0
  %1373 = vmatprep.subr.bf16.mxu0 0
  %1374 = vmatpush1.bf16.msra.mxu0 0
  %1375 = vmatprep.subr.bf16.mxu0 0
  %1376 = vmatpush1.bf16.msra.mxu0 0
  %1377 = vmatprep.mubr.bf16.mxu0 0
  %1378 = vmatmul.mubr.bf16.gmra.mrb[0].mxu0 %v1269
  %v1379 = vpop.f32.mrb[0].mxu0
  %v1380 = vadd.f32 %v1295, %v1379
  %v1381 = vpop.f32.mrb[0].mxu0
  %v1382 = vpop.f32.mrb[0].mxu0
  %v1383 = vpop.f32.mrb[0].mxu0
  %1384 = vdwg.mxu0
  %s1385 = scalar_lea.vmem [#allocation3], 56
  %v1386 = vld [vmem:[%s1385] sm:$0xff]
  %v1387 = vmul.f32 %v1386, 0.8
  %v1388 = vadd.f32 %v1387, %v1380
  %s1389 = scalar_lea.vmem [#allocation4], 28
  %v1390 = vld [vmem:[%s1389] sm:$0xf]
  %v1391 = vmul.bf16 %v1390, 1056980736
  %v1392 = vunpack.c.l.bf16 %v1391
  %v1393 = vsub.f32 %v1388, %v1392
  %vm1394 = vcmp.gt.f32.partialorder %v1393, 0.5
  %v1395 = vsel %vm1394, 1, 0
  %v1396 = vcvt.s32.f32 %v1395
  %v1397 = vpack.c.bf16 %v1396, %v1396
  %1398 = vst [vmem:[%s1385] sm:$0xff] %v1393
  %1399 = vst [vmem:[%s1389] sm:$0xf] %v1397
  %s1400 = scalar_lea.vmem %s3, 448
  %v1401 = vld [vmem:[%s1400] sm:$0xf]
  %v1402 = vld [vmem:[%s1400 + $0x4] sm:$0xf]
  %v1403 = vld [vmem:[%s1400 + $0x8] sm:$0xf]
  %v1404 = vld [vmem:[%s1400 + $0xc] sm:$0xf]
  %v1405 = vld [vmem:[%s1400 + $0x10] sm:$0xf]
  %v1406 = vld [vmem:[%s1400 + $0x14] sm:$0xf]
  %v1407 = vld [vmem:[%s1400 + $0x18] sm:$0xf]
  %v1408 = vld [vmem:[%s1400 + $0x1c] sm:$0xf]
  %v1409 = vld [vmem:[%s1400 + $0x20] sm:$0xf]
  %v1410 = vld [vmem:[%s1400 + $0x24] sm:$0xf]
  %v1411 = vld [vmem:[%s1400 + $0x28] sm:$0xf]
  %v1412 = vld [vmem:[%s1400 + $0x2c] sm:$0xf]
  %v1413 = vld [vmem:[%s1400 + $0x30] sm:$0xf]
  %v1414 = vld [vmem:[%s1400 + $0x34] sm:$0xf]
  %v1415 = vld [vmem:[%s1400 + $0x38] sm:$0xf]
  %v1416 = vld [vmem:[%s1400 + $0x3c] sm:$0xf]
  %s1417 = scalar_lea.vmem %s4, 7
  %v1418 = vld [vmem:[%s1417] sm:$0x1]
  %v1420 = vlaneseq
  %v1421 = vshrl.u32 %v1420, 7
  %v1422 = vsub.s32 0, %v1421
  %v1423 = vrot.slane %v1418, %v1422
  %v1441 = vunpack.c.l.b16 %v1401
  %v1442 = vunpack.c.l.b16 %v1402
  %v1443 = vunpack.c.l.b16 %v1403
  %v1444 = vunpack.c.l.b16 %v1404
  %v1445 = vunpack.c.l.b16 %v1405
  %v1446 = vunpack.c.l.b16 %v1406
  %v1447 = vunpack.c.l.b16 %v1407
  %v1448 = vunpack.c.l.b16 %v1408
  %v1449 = vunpack.c.l.b16 %v1409
  %v1450 = vunpack.c.l.b16 %v1410
  %v1451 = vunpack.c.l.b16 %v1411
  %v1452 = vunpack.c.l.b16 %v1412
  %v1453 = vunpack.c.l.b16 %v1413
  %v1454 = vunpack.c.l.b16 %v1414
  %v1455 = vunpack.c.l.b16 %v1415
  %v1456 = vunpack.c.l.b16 %v1416
  %v1457 = vpack.c.b16 %v1442, %v1441
  %v1458 = vpack.c.b16 %v1444, %v1443
  %v1459 = vpack.c.b16 %v1446, %v1445
  %v1460 = vpack.c.b16 %v1448, %v1447
  %v1461 = vpack.c.b16 %v1450, %v1449
  %v1462 = vpack.c.b16 %v1452, %v1451
  %v1463 = vpack.c.b16 %v1454, %v1453
  %v1464 = vpack.c.b16 %v1456, %v1455
  %1473 = vmatprep.subr.bf16.mxu0 0
  %1474 = vmatpush1.bf16.msra.mxu0 %v1457
  %1475 = vmatprep.subr.bf16.mxu0 0
  %1476 = vmatpush1.bf16.msra.mxu0 %v1458
  %1477 = vmatprep.subr.bf16.mxu0 0
  %1478 = vmatpush1.bf16.msra.mxu0 %v1459
  %1479 = vmatprep.subr.bf16.mxu0 0
  %1480 = vmatpush1.bf16.msra.mxu0 %v1460
  %1481 = vmatprep.subr.bf16.mxu0 0
  %1482 = vmatpush1.bf16.msra.mxu0 %v1461
  %1483 = vmatprep.subr.bf16.mxu0 0
  %1484 = vmatpush1.bf16.msra.mxu0 %v1462
  %1485 = vmatprep.subr.bf16.mxu0 0
  %1486 = vmatpush1.bf16.msra.mxu0 %v1463
  %1487 = vmatprep.subr.bf16.mxu0 0
  %1488 = vmatpush1.bf16.msra.mxu0 %v1464
  %1489 = vmatprep.subr.bf16.mxu0 0
  %1490 = vmatpush1.bf16.msra.mxu0 0
  %1491 = vmatprep.subr.bf16.mxu0 0
  %1492 = vmatpush1.bf16.msra.mxu0 0
  %1493 = vmatprep.subr.bf16.mxu0 0
  %1494 = vmatpush1.bf16.msra.mxu0 0
  %1495 = vmatprep.subr.bf16.mxu0 0
  %1496 = vmatpush1.bf16.msra.mxu0 0
  %1497 = vmatprep.subr.bf16.mxu0 0
  %1498 = vmatpush1.bf16.msra.mxu0 0
  %1499 = vmatprep.subr.bf16.mxu0 0
  %1500 = vmatpush1.bf16.msra.mxu0 0
  %1501 = vmatprep.subr.bf16.mxu0 0
  %1502 = vmatpush1.bf16.msra.mxu0 0
  %1503 = vmatprep.subr.bf16.mxu0 0
  %1504 = vmatpush1.bf16.msra.mxu0 0
  %1505 = vmatprep.mubr.bf16.mxu0 0
  %1506 = vmatmul.mubr.bf16.gmra.mrb[0].mxu0 %v1397
  %v1507 = vpop.f32.mrb[0].mxu0
  %v1508 = vadd.f32 %v1423, %v1507
  %v1509 = vpop.f32.mrb[0].mxu0
  %v1510 = vpop.f32.mrb[0].mxu0
  %v1511 = vpop.f32.mrb[0].mxu0
  %1512 = vdwg.mxu0
  %s1513 = scalar_lea.vmem [#allocation3], 64
  %v1514 = vld [vmem:[%s1513] sm:$0xff]
  %v1515 = vmul.f32 %v1514, 0.8
  %v1516 = vadd.f32 %v1515, %v1508
  %s1517 = scalar_lea.vmem [#allocation4], 32
  %v1518 = vld [vmem:[%s1517] sm:$0xf]
  %v1519 = vmul.bf16 %v1518, 1056980736
  %v1520 = vunpack.c.l.bf16 %v1519
  %v1521 = vsub.f32 %v1516, %v1520
  %vm1522 = vcmp.gt.f32.partialorder %v1521, 0.5
  %v1523 = vsel %vm1522, 1, 0
  %v1524 = vcvt.s32.f32 %v1523
  %v1525 = vpack.c.bf16 %v1524, %v1524
  %1526 = vst [vmem:[%s1513] sm:$0xff] %v1521
  %1527 = vst [vmem:[%s1517] sm:$0xf] %v1525
  %v1528 = vld [vmem:[%s5] sm:$0xf]
  %v1529 = vld [vmem:[%s5 + $0x4] sm:$0xf]
  %v1530 = vld [vmem:[%s5 + $0x8] sm:$0xf]
  %v1531 = vld [vmem:[%s5 + $0xc] sm:$0xf]
  %v1532 = vld [vmem:[%s5 + $0x10] sm:$0xf]
  %v1533 = vld [vmem:[%s5 + $0x14] sm:$0xf]
  %v1534 = vld [vmem:[%s5 + $0x18] sm:$0xf]
  %v1535 = vld [vmem:[%s5 + $0x1c] sm:$0xf]
  %v1536 = vld [vmem:[%s5 + $0x20] sm:$0xf]
  %v1537 = vld [vmem:[%s5 + $0x24] sm:$0xf]
  %v1538 = vld [vmem:[%s5 + $0x28] sm:$0xf]
  %v1539 = vld [vmem:[%s5 + $0x2c] sm:$0xf]
  %v1540 = vld [vmem:[%s5 + $0x30] sm:$0xf]
  %v1541 = vld [vmem:[%s5 + $0x34] sm:$0xf]
  %v1542 = vld [vmem:[%s5 + $0x38] sm:$0xf]
  %v1543 = vld [vmem:[%s5 + $0x3c] sm:$0xf]
  %v1544 = vld [vmem:[%s6] sm:$0x1]
  %v1546 = vlaneseq
  %v1547 = vshrl.u32 %v1546, 7
  %v1548 = vsub.s32 0, %v1547
  %v1549 = vrot.slane %v1544, %v1548
  %v1567 = vunpack.c.l.b16 %v1528
  %v1568 = vunpack.c.l.b16 %v1529
  %v1569 = vunpack.c.l.b16 %v1530
  %v1570 = vunpack.c.l.b16 %v1531
  %v1571 = vunpack.c.l.b16 %v1532
  %v1572 = vunpack.c.l.b16 %v1533
  %v1573 = vunpack.c.l.b16 %v1534
  %v1574 = vunpack.c.l.b16 %v1535
  %v1575 = vunpack.c.l.b16 %v1536
  %v1576 = vunpack.c.l.b16 %v1537
  %v1577 = vunpack.c.l.b16 %v1538
  %v1578 = vunpack.c.l.b16 %v1539
  %v1579 = vunpack.c.l.b16 %v1540
  %v1580 = vunpack.c.l.b16 %v1541
  %v1581 = vunpack.c.l.b16 %v1542
  %v1582 = vunpack.c.l.b16 %v1543
  %v1583 = vpack.c.b16 %v1568, %v1567
  %v1584 = vpack.c.b16 %v1570, %v1569
  %v1585 = vpack.c.b16 %v1572, %v1571
  %v1586 = vpack.c.b16 %v1574, %v1573
  %v1587 = vpack.c.b16 %v1576, %v1575
  %v1588 = vpack.c.b16 %v1578, %v1577
  %v1589 = vpack.c.b16 %v1580, %v1579
  %v1590 = vpack.c.b16 %v1582, %v1581
  %1599 = vmatprep.subr.bf16.mxu0 0
  %1600 = vmatpush1.bf16.msra.mxu0 %v1583
  %1601 = vmatprep.subr.bf16.mxu0 0
  %1602 = vmatpush1.bf16.msra.mxu0 %v1584
  %1603 = vmatprep.subr.bf16.mxu0 0
  %1604 = vmatpush1.bf16.msra.mxu0 %v1585
  %1605 = vmatprep.subr.bf16.mxu0 0
  %1606 = vmatpush1.bf16.msra.mxu0 %v1586
  %1607 = vmatprep.subr.bf16.mxu0 0
  %1608 = vmatpush1.bf16.msra.mxu0 %v1587
  %1609 = vmatprep.subr.bf16.mxu0 0
  %1610 = vmatpush1.bf16.msra.mxu0 %v1588
  %1611 = vmatprep.subr.bf16.mxu0 0
  %1612 = vmatpush1.bf16.msra.mxu0 %v1589
  %1613 = vmatprep.subr.bf16.mxu0 0
  %1614 = vmatpush1.bf16.msra.mxu0 %v1590
  %1615 = vmatprep.subr.bf16.mxu0 0
  %1616 = vmatpush1.bf16.msra.mxu0 0
  %1617 = vmatprep.subr.bf16.mxu0 0
  %1618 = vmatpush1.bf16.msra.mxu0 0
  %1619 = vmatprep.subr.bf16.mxu0 0
  %1620 = vmatpush1.bf16.msra.mxu0 0
  %1621 = vmatprep.subr.bf16.mxu0 0
  %1622 = vmatpush1.bf16.msra.mxu0 0
  %1623 = vmatprep.subr.bf16.mxu0 0
  %1624 = vmatpush1.bf16.msra.mxu0 0
  %1625 = vmatprep.subr.bf16.mxu0 0
  %1626 = vmatpush1.bf16.msra.mxu0 0
  %1627 = vmatprep.subr.bf16.mxu0 0
  %1628 = vmatpush1.bf16.msra.mxu0 0
  %1629 = vmatprep.subr.bf16.mxu0 0
  %1630 = vmatpush1.bf16.msra.mxu0 0
  %1631 = vmatprep.mubr.bf16.mxu0 0
  %1632 = vmatmul.mubr.bf16.gmra.mrb[0].mxu0 %v1525
  %v1633 = vpop.f32.mrb[0].mxu0
  %v1634 = vadd.f32 %v1549, %v1633
  %v1635 = vpop.f32.mrb[0].mxu0
  %v1636 = vpop.f32.mrb[0].mxu0
  %v1637 = vpop.f32.mrb[0].mxu0
  %1638 = vdwg.mxu0
  %v1639 = vld [vmem:[#allocation5] sm:$0xff]
  %v1640 = vmul.f32 %v1639, 0.8
  %v1641 = vadd.f32 %v1640, %v1634
  %v1642 = vld [vmem:[#allocation6] sm:$0xff]
  %v1643 = vmul.f32 %v1642, 0.5
  %v1644 = vsub.f32 %v1641, %v1643
  %vm1645 = vcmp.gt.f32.partialorder %v1644, 0.5
  %v1646 = vsel %vm1645, 1, 0
  %v1647 = vcvt.s32.f32 %v1646
  %1648 = vst [vmem:[#allocation5] sm:$0xff] %v1644
  %1649 = vst [vmem:[#allocation6] sm:$0xff] %v1647
  %v1650 = vld [vmem:[%s7] sm:$0xff]
  %v1651 = vadd.f32 %v1650, %v1647
  %1652 = vst [vmem:[%s7] sm:$0xff] %v1651
  %1653 = vadd.xlane.f32.xlu0 %v1647
  %v1654 = vpop.xlane.xlu0 %1653
  %vm1655 = vcmp.eq.s32.totalorder %v491, 16
  %v1656 = vld [vmem:[#allocation7] sm:$0xff]
  %v1657 = vsel %vm1655, %v1654, %v1656
  %1658 = vst [vmem:[#allocation7] sm:$0xff] %v1657
  %v1659 = vld [vmem:[#allocation2] sm:$0xff]
  %v1660 = vld [vmem:[#allocation3] sm:$0xff]
  %v1661 = vmul.f32 %v1660, 0.8
  %v1662 = vadd.f32 %v1661, %v1659
  %v1663 = vld [vmem:[#allocation4] sm:$0xf]
  %v1664 = vmul.bf16 %v1663, 1056980736
  %v1665 = vunpack.c.l.bf16 %v1664
  %v1666 = vsub.f32 %v1662, %v1665
  %vm1667 = vcmp.gt.f32.partialorder %v1666, 0.5
  %v1668 = vsel %vm1667, 1, 0
  %v1669 = vcvt.s32.f32 %v1668
  %v1670 = vpack.c.bf16 %v1669, %v1669
  %1671 = vst [vmem:[#allocation3] sm:$0xff] %v1666
  %1672 = vst [vmem:[#allocation4] sm:$0xf] %v1670
  %v1673 = vld [vmem:[%s3] sm:$0xf]
  %v1674 = vld [vmem:[%s3 + $0x4] sm:$0xf]
  %v1675 = vld [vmem:[%s3 + $0x8] sm:$0xf]
  %v1676 = vld [vmem:[%s3 + $0xc] sm:$0xf]
  %v1677 = vld [vmem:[%s3 + $0x10] sm:$0xf]
  %v1678 = vld [vmem:[%s3 + $0x14] sm:$0xf]
  %v1679 = vld [vmem:[%s3 + $0x18] sm:$0xf]
  %v1680 = vld [vmem:[%s3 + $0x1c] sm:$0xf]
  %v1681 = vld [vmem:[%s3 + $0x20] sm:$0xf]
  %v1682 = vld [vmem:[%s3 + $0x24] sm:$0xf]
  %v1683 = vld [vmem:[%s3 + $0x28] sm:$0xf]
  %v1684 = vld [vmem:[%s3 + $0x2c] sm:$0xf]
  %v1685 = vld [vmem:[%s3 + $0x30] sm:$0xf]
  %v1686 = vld [vmem:[%s3 + $0x34] sm:$0xf]
  %v1687 = vld [vmem:[%s3 + $0x38] sm:$0xf]
  %v1688 = vld [vmem:[%s3 + $0x3c] sm:$0xf]
  %v1689 = vld [vmem:[%s4] sm:$0x1]
  %v1691 = vlaneseq
  %v1692 = vshrl.u32 %v1691, 7
  %v1693 = vsub.s32 0, %v1692
  %v1694 = vrot.slane %v1689, %v1693
  %v1712 = vunpack.c.l.b16 %v1673
  %v1713 = vunpack.c.l.b16 %v1674
  %v1714 = vunpack.c.l.b16 %v1675
  %v1715 = vunpack.c.l.b16 %v1676
  %v1716 = vunpack.c.l.b16 %v1677
  %v1717 = vunpack.c.l.b16 %v1678
  %v1718 = vunpack.c.l.b16 %v1679
  %v1719 = vunpack.c.l.b16 %v1680
  %v1720 = vunpack.c.l.b16 %v1681
  %v1721 = vunpack.c.l.b16 %v1682
  %v1722 = vunpack.c.l.b16 %v1683
  %v1723 = vunpack.c.l.b16 %v1684
  %v1724 = vunpack.c.l.b16 %v1685
  %v1725 = vunpack.c.l.b16 %v1686
  %v1726 = vunpack.c.l.b16 %v1687
  %v1727 = vunpack.c.l.b16 %v1688
  %v1728 = vpack.c.b16 %v1713, %v1712
  %v1729 = vpack.c.b16 %v1715, %v1714
  %v1730 = vpack.c.b16 %v1717, %v1716
  %v1731 = vpack.c.b16 %v1719, %v1718
  %v1732 = vpack.c.b16 %v1721, %v1720
  %v1733 = vpack.c.b16 %v1723, %v1722
  %v1734 = vpack.c.b16 %v1725, %v1724
  %v1735 = vpack.c.b16 %v1727, %v1726
  %1744 = vmatprep.subr.bf16.mxu0 0
  %1745 = vmatpush1.bf16.msra.mxu0 %v1728
  %1746 = vmatprep.subr.bf16.mxu0 0
  %1747 = vmatpush1.bf16.msra.mxu0 %v1729
  %1748 = vmatprep.subr.bf16.mxu0 0
  %1749 = vmatpush1.bf16.msra.mxu0 %v1730
  %1750 = vmatprep.subr.bf16.mxu0 0
  %1751 = vmatpush1.bf16.msra.mxu0 %v1731
  %1752 = vmatprep.subr.bf16.mxu0 0
  %1753 = vmatpush1.bf16.msra.mxu0 %v1732
  %1754 = vmatprep.subr.bf16.mxu0 0
  %1755 = vmatpush1.bf16.msra.mxu0 %v1733
  %1756 = vmatprep.subr.bf16.mxu0 0
  %1757 = vmatpush1.bf16.msra.mxu0 %v1734
  %1758 = vmatprep.subr.bf16.mxu0 0
  %1759 = vmatpush1.bf16.msra.mxu0 %v1735
  %1760 = vmatprep.subr.bf16.mxu0 0
  %1761 = vmatpush1.bf16.msra.mxu0 0
  %1762 = vmatprep.subr.bf16.mxu0 0
  %1763 = vmatpush1.bf16.msra.mxu0 0
  %1764 = vmatprep.subr.bf16.mxu0 0
  %1765 = vmatpush1.bf16.msra.mxu0 0
  %1766 = vmatprep.subr.bf16.mxu0 0
  %1767 = vmatpush1.bf16.msra.mxu0 0
  %1768 = vmatprep.subr.bf16.mxu0 0
  %1769 = vmatpush1.bf16.msra.mxu0 0
  %1770 = vmatprep.subr.bf16.mxu0 0
  %1771 = vmatpush1.bf16.msra.mxu0 0
  %1772 = vmatprep.subr.bf16.mxu0 0
  %1773 = vmatpush1.bf16.msra.mxu0 0
  %1774 = vmatprep.subr.bf16.mxu0 0
  %1775 = vmatpush1.bf16.msra.mxu0 0
  %1776 = vmatprep.mubr.bf16.mxu0 0
  %1777 = vmatmul.mubr.bf16.gmra.mrb[0].mxu0 %v1670
  %v1778 = vpop.f32.mrb[0].mxu0
  %v1779 = vadd.f32 %v1694, %v1778
  %v1780 = vpop.f32.mrb[0].mxu0
  %v1781 = vpop.f32.mrb[0].mxu0
  %v1782 = vpop.f32.mrb[0].mxu0
  %1783 = vdwg.mxu0
  %v1784 = vld [vmem:[%s617] sm:$0xff]
  %v1785 = vmul.f32 %v1784, 0.8
  %v1786 = vadd.f32 %v1785, %v1779
  %v1787 = vld [vmem:[%s621] sm:$0xf]
  %v1788 = vmul.bf16 %v1787, 1056980736
  %v1789 = vunpack.c.l.bf16 %v1788
  %v1790 = vsub.f32 %v1786, %v1789
  %vm1791 = vcmp.gt.f32.partialorder %v1790, 0.5
  %v1792 = vsel %vm1791, 1, 0
  %v1793 = vcvt.s32.f32 %v1792
  %v1794 = vpack.c.bf16 %v1793, %v1793
  %1795 = vst [vmem:[%s617] sm:$0xff] %v1790
  %1796 = vst [vmem:[%s621] sm:$0xf] %v1794
  %v1797 = vld [vmem:[%s632] sm:$0xf]
  %v1798 = vld [vmem:[%s632 + $0x4] sm:$0xf]
  %v1799 = vld [vmem:[%s632 + $0x8] sm:$0xf]
  %v1800 = vld [vmem:[%s632 + $0xc] sm:$0xf]
  %v1801 = vld [vmem:[%s632 + $0x10] sm:$0xf]
  %v1802 = vld [vmem:[%s632 + $0x14] sm:$0xf]
  %v1803 = vld [vmem:[%s632 + $0x18] sm:$0xf]
  %v1804 = vld [vmem:[%s632 + $0x1c] sm:$0xf]
  %v1805 = vld [vmem:[%s632 + $0x20] sm:$0xf]
  %v1806 = vld [vmem:[%s632 + $0x24] sm:$0xf]
  %v1807 = vld [vmem:[%s632 + $0x28] sm:$0xf]
  %v1808 = vld [vmem:[%s632 + $0x2c] sm:$0xf]
  %v1809 = vld [vmem:[%s632 + $0x30] sm:$0xf]
  %v1810 = vld [vmem:[%s632 + $0x34] sm:$0xf]
  %v1811 = vld [vmem:[%s632 + $0x38] sm:$0xf]
  %v1812 = vld [vmem:[%s632 + $0x3c] sm:$0xf]
  %v1813 = vld [vmem:[%s649] sm:$0x1]
  %v1815 = vlaneseq
  %v1816 = vshrl.u32 %v1815, 7
  %v1817 = vsub.s32 0, %v1816
  %v1818 = vrot.slane %v1813, %v1817
  %v1836 = vunpack.c.l.b16 %v1797
  %v1837 = vunpack.c.l.b16 %v1798
  %v1838 = vunpack.c.l.b16 %v1799
  %v1839 = vunpack.c.l.b16 %v1800
  %v1840 = vunpack.c.l.b16 %v1801
  %v1841 = vunpack.c.l.b16 %v1802
  %v1842 = vunpack.c.l.b16 %v1803
  %v1843 = vunpack.c.l.b16 %v1804
  %v1844 = vunpack.c.l.b16 %v1805
  %v1845 = vunpack.c.l.b16 %v1806
  %v1846 = vunpack.c.l.b16 %v1807
  %v1847 = vunpack.c.l.b16 %v1808
  %v1848 = vunpack.c.l.b16 %v1809
  %v1849 = vunpack.c.l.b16 %v1810
  %v1850 = vunpack.c.l.b16 %v1811
  %v1851 = vunpack.c.l.b16 %v1812
  %v1852 = vpack.c.b16 %v1837, %v1836
  %v1853 = vpack.c.b16 %v1839, %v1838
  %v1854 = vpack.c.b16 %v1841, %v1840
  %v1855 = vpack.c.b16 %v1843, %v1842
  %v1856 = vpack.c.b16 %v1845, %v1844
  %v1857 = vpack.c.b16 %v1847, %v1846
  %v1858 = vpack.c.b16 %v1849, %v1848
  %v1859 = vpack.c.b16 %v1851, %v1850
  %1868 = vmatprep.subr.bf16.mxu0 0
  %1869 = vmatpush1.bf16.msra.mxu0 %v1852
  %1870 = vmatprep.subr.bf16.mxu0 0
  %1871 = vmatpush1.bf16.msra.mxu0 %v1853
  %1872 = vmatprep.subr.bf16.mxu0 0
  %1873 = vmatpush1.bf16.msra.mxu0 %v1854
  %1874 = vmatprep.subr.bf16.mxu0 0
  %1875 = vmatpush1.bf16.msra.mxu0 %v1855
  %1876 = vmatprep.subr.bf16.mxu0 0
  %1877 = vmatpush1.bf16.msra.mxu0 %v1856
  %1878 = vmatprep.subr.bf16.mxu0 0
  %1879 = vmatpush1.bf16.msra.mxu0 %v1857
  %1880 = vmatprep.subr.bf16.mxu0 0
  %1881 = vmatpush1.bf16.msra.mxu0 %v1858
  %1882 = vmatprep.subr.bf16.mxu0 0
  %1883 = vmatpush1.bf16.msra.mxu0 %v1859
  %1884 = vmatprep.subr.bf16.mxu0 0
  %1885 = vmatpush1.bf16.msra.mxu0 0
  %1886 = vmatprep.subr.bf16.mxu0 0
  %1887 = vmatpush1.bf16.msra.mxu0 0
  %1888 = vmatprep.subr.bf16.mxu0 0
  %1889 = vmatpush1.bf16.msra.mxu0 0
  %1890 = vmatprep.subr.bf16.mxu0 0
  %1891 = vmatpush1.bf16.msra.mxu0 0
  %1892 = vmatprep.subr.bf16.mxu0 0
  %1893 = vmatpush1.bf16.msra.mxu0 0
  %1894 = vmatprep.subr.bf16.mxu0 0
  %1895 = vmatpush1.bf16.msra.mxu0 0
  %1896 = vmatprep.subr.bf16.mxu0 0
  %1897 = vmatpush1.bf16.msra.mxu0 0
  %1898 = vmatprep.subr.bf16.mxu0 0
  %1899 = vmatpush1.bf16.msra.mxu0 0
  %1900 = vmatprep.mubr.bf16.mxu0 0
  %1901 = vmatmul.mubr.bf16.gmra.mrb[0].mxu0 %v1794
  %v1902 = vpop.f32.mrb[0].mxu0
  %v1903 = vadd.f32 %v1818, %v1902
  %v1904 = vpop.f32.mrb[0].mxu0
  %v1905 = vpop.f32.mrb[0].mxu0
  %v1906 = vpop.f32.mrb[0].mxu0
  %1907 = vdwg.mxu0
  %v1908 = vld [vmem:[%s745] sm:$0xff]
  %v1909 = vmul.f32 %v1908, 0.8
  %v1910 = vadd.f32 %v1909, %v1903
  %v1911 = vld [vmem:[%s749] sm:$0xf]
  %v1912 = vmul.bf16 %v1911, 1056980736
  %v1913 = vunpack.c.l.bf16 %v1912
  %v1914 = vsub.f32 %v1910, %v1913
  %vm1915 = vcmp.gt.f32.partialorder %v1914, 0.5
  %v1916 = vsel %vm1915, 1, 0
  %v1917 = vcvt.s32.f32 %v1916
  %v1918 = vpack.c.bf16 %v1917, %v1917
  %1919 = vst [vmem:[%s745] sm:$0xff] %v1914
  %1920 = vst [vmem:[%s749] sm:$0xf] %v1918
  %v1921 = vld [vmem:[%s760] sm:$0xf]
  %v1922 = vld [vmem:[%s760 + $0x4] sm:$0xf]
  %v1923 = vld [vmem:[%s760 + $0x8] sm:$0xf]
  %v1924 = vld [vmem:[%s760 + $0xc] sm:$0xf]
  %v1925 = vld [vmem:[%s760 + $0x10] sm:$0xf]
  %v1926 = vld [vmem:[%s760 + $0x14] sm:$0xf]
  %v1927 = vld [vmem:[%s760 + $0x18] sm:$0xf]
  %v1928 = vld [vmem:[%s760 + $0x1c] sm:$0xf]
  %v1929 = vld [vmem:[%s760 + $0x20] sm:$0xf]
  %v1930 = vld [vmem:[%s760 + $0x24] sm:$0xf]
  %v1931 = vld [vmem:[%s760 + $0x28] sm:$0xf]
  %v1932 = vld [vmem:[%s760 + $0x2c] sm:$0xf]
  %v1933 = vld [vmem:[%s760 + $0x30] sm:$0xf]
  %v1934 = vld [vmem:[%s760 + $0x34] sm:$0xf]
  %v1935 = vld [vmem:[%s760 + $0x38] sm:$0xf]
  %v1936 = vld [vmem:[%s760 + $0x3c] sm:$0xf]
  %v1937 = vld [vmem:[%s777] sm:$0x1]
  %v1939 = vlaneseq
  %v1940 = vshrl.u32 %v1939, 7
  %v1941 = vsub.s32 0, %v1940
  %v1942 = vrot.slane %v1937, %v1941
  %v1960 = vunpack.c.l.b16 %v1921
  %v1961 = vunpack.c.l.b16 %v1922
  %v1962 = vunpack.c.l.b16 %v1923
  %v1963 = vunpack.c.l.b16 %v1924
  %v1964 = vunpack.c.l.b16 %v1925
  %v1965 = vunpack.c.l.b16 %v1926
  %v1966 = vunpack.c.l.b16 %v1927
  %v1967 = vunpack.c.l.b16 %v1928
  %v1968 = vunpack.c.l.b16 %v1929
  %v1969 = vunpack.c.l.b16 %v1930
  %v1970 = vunpack.c.l.b16 %v1931
  %v1971 = vunpack.c.l.b16 %v1932
  %v1972 = vunpack.c.l.b16 %v1933
  %v1973 = vunpack.c.l.b16 %v1934
  %v1974 = vunpack.c.l.b16 %v1935
  %v1975 = vunpack.c.l.b16 %v1936
  %v1976 = vpack.c.b16 %v1961, %v1960
  %v1977 = vpack.c.b16 %v1963, %v1962
  %v1978 = vpack.c.b16 %v1965, %v1964
  %v1979 = vpack.c.b16 %v1967, %v1966
  %v1980 = vpack.c.b16 %v1969, %v1968
  %v1981 = vpack.c.b16 %v1971, %v1970
  %v1982 = vpack.c.b16 %v1973, %v1972
  %v1983 = vpack.c.b16 %v1975, %v1974
  %1992 = vmatprep.subr.bf16.mxu0 0
  %1993 = vmatpush1.bf16.msra.mxu0 %v1976
  %1994 = vmatprep.subr.bf16.mxu0 0
  %1995 = vmatpush1.bf16.msra.mxu0 %v1977
  %1996 = vmatprep.subr.bf16.mxu0 0
  %1997 = vmatpush1.bf16.msra.mxu0 %v1978
  %1998 = vmatprep.subr.bf16.mxu0 0
  %1999 = vmatpush1.bf16.msra.mxu0 %v1979
  %2000 = vmatprep.subr.bf16.mxu0 0
  %2001 = vmatpush1.bf16.msra.mxu0 %v1980
  %2002 = vmatprep.subr.bf16.mxu0 0
  %2003 = vmatpush1.bf16.msra.mxu0 %v1981
  %2004 = vmatprep.subr.bf16.mxu0 0
  %2005 = vmatpush1.bf16.msra.mxu0 %v1982
  %2006 = vmatprep.subr.bf16.mxu0 0
  %2007 = vmatpush1.bf16.msra.mxu0 %v1983
  %2008 = vmatprep.subr.bf16.mxu0 0
  %2009 = vmatpush1.bf16.msra.mxu0 0
  %2010 = vmatprep.subr.bf16.mxu0 0
  %2011 = vmatpush1.bf16.msra.mxu0 0
  %2012 = vmatprep.subr.bf16.mxu0 0
  %2013 = vmatpush1.bf16.msra.mxu0 0
  %2014 = vmatprep.subr.bf16.mxu0 0
  %2015 = vmatpush1.bf16.msra.mxu0 0
  %2016 = vmatprep.subr.bf16.mxu0 0
  %2017 = vmatpush1.bf16.msra.mxu0 0
  %2018 = vmatprep.subr.bf16.mxu0 0
  %2019 = vmatpush1.bf16.msra.mxu0 0
  %2020 = vmatprep.subr.bf16.mxu0 0
  %2021 = vmatpush1.bf16.msra.mxu0 0
  %2022 = vmatprep.subr.bf16.mxu0 0
  %2023 = vmatpush1.bf16.msra.mxu0 0
  %2024 = vmatprep.mubr.bf16.mxu0 0
  %2025 = vmatmul.mubr.bf16.gmra.mrb[0].mxu0 %v1918
  %v2026 = vpop.f32.mrb[0].mxu0
  %v2027 = vadd.f32 %v1942, %v2026
  %v2028 = vpop.f32.mrb[0].mxu0
  %v2029 = vpop.f32.mrb[0].mxu0
  %v2030 = vpop.f32.mrb[0].mxu0
  %2031 = vdwg.mxu0
  %v2032 = vld [vmem:[%s873] sm:$0xff]
  %v2033 = vmul.f32 %v2032, 0.8
  %v2034 = vadd.f32 %v2033, %v2027
  %v2035 = vld [vmem:[%s877] sm:$0xf]
  %v2036 = vmul.bf16 %v2035, 1056980736
  %v2037 = vunpack.c.l.bf16 %v2036
  %v2038 = vsub.f32 %v2034, %v2037
  %vm2039 = vcmp.gt.f32.partialorder %v2038, 0.5
  %v2040 = vsel %vm2039, 1, 0
  %v2041 = vcvt.s32.f32 %v2040
  %v2042 = vpack.c.bf16 %v2041, %v2041
  %2043 = vst [vmem:[%s873] sm:$0xff] %v2038
  %2044 = vst [vmem:[%s877] sm:$0xf] %v2042
  %v2045 = vld [vmem:[%s888] sm:$0xf]
  %v2046 = vld [vmem:[%s888 + $0x4] sm:$0xf]
  %v2047 = vld [vmem:[%s888 + $0x8] sm:$0xf]
  %v2048 = vld [vmem:[%s888 + $0xc] sm:$0xf]
  %v2049 = vld [vmem:[%s888 + $0x10] sm:$0xf]
  %v2050 = vld [vmem:[%s888 + $0x14] sm:$0xf]
  %v2051 = vld [vmem:[%s888 + $0x18] sm:$0xf]
  %v2052 = vld [vmem:[%s888 + $0x1c] sm:$0xf]
  %v2053 = vld [vmem:[%s888 + $0x20] sm:$0xf]
  %v2054 = vld [vmem:[%s888 + $0x24] sm:$0xf]
  %v2055 = vld [vmem:[%s888 + $0x28] sm:$0xf]
  %v2056 = vld [vmem:[%s888 + $0x2c] sm:$0xf]
  %v2057 = vld [vmem:[%s888 + $0x30] sm:$0xf]
  %v2058 = vld [vmem:[%s888 + $0x34] sm:$0xf]
  %v2059 = vld [vmem:[%s888 + $0x38] sm:$0xf]
  %v2060 = vld [vmem:[%s888 + $0x3c] sm:$0xf]
  %v2061 = vld [vmem:[%s905] sm:$0x1]
  %v2063 = vlaneseq
  %v2064 = vshrl.u32 %v2063, 7
  %v2065 = vsub.s32 0, %v2064
  %v2066 = vrot.slane %v2061, %v2065
  %v2084 = vunpack.c.l.b16 %v2045
  %v2085 = vunpack.c.l.b16 %v2046
  %v2086 = vunpack.c.l.b16 %v2047
  %v2087 = vunpack.c.l.b16 %v2048
  %v2088 = vunpack.c.l.b16 %v2049
  %v2089 = vunpack.c.l.b16 %v2050
  %v2090 = vunpack.c.l.b16 %v2051
  %v2091 = vunpack.c.l.b16 %v2052
  %v2092 = vunpack.c.l.b16 %v2053
  %v2093 = vunpack.c.l.b16 %v2054
  %v2094 = vunpack.c.l.b16 %v2055
  %v2095 = vunpack.c.l.b16 %v2056
  %v2096 = vunpack.c.l.b16 %v2057
  %v2097 = vunpack.c.l.b16 %v2058
  %v2098 = vunpack.c.l.b16 %v2059
  %v2099 = vunpack.c.l.b16 %v2060
  %v2100 = vpack.c.b16 %v2085, %v2084
  %v2101 = vpack.c.b16 %v2087, %v2086
  %v2102 = vpack.c.b16 %v2089, %v2088
  %v2103 = vpack.c.b16 %v2091, %v2090
  %v2104 = vpack.c.b16 %v2093, %v2092
  %v2105 = vpack.c.b16 %v2095, %v2094
  %v2106 = vpack.c.b16 %v2097, %v2096
  %v2107 = vpack.c.b16 %v2099, %v2098
  %2116 = vmatprep.subr.bf16.mxu0 0
  %2117 = vmatpush1.bf16.msra.mxu0 %v2100
  %2118 = vmatprep.subr.bf16.mxu0 0
  %2119 = vmatpush1.bf16.msra.mxu0 %v2101
  %2120 = vmatprep.subr.bf16.mxu0 0
  %2121 = vmatpush1.bf16.msra.mxu0 %v2102
  %2122 = vmatprep.subr.bf16.mxu0 0
  %2123 = vmatpush1.bf16.msra.mxu0 %v2103
  %2124 = vmatprep.subr.bf16.mxu0 0
  %2125 = vmatpush1.bf16.msra.mxu0 %v2104
  %2126 = vmatprep.subr.bf16.mxu0 0
  %2127 = vmatpush1.bf16.msra.mxu0 %v2105
  %2128 = vmatprep.subr.bf16.mxu0 0
  %2129 = vmatpush1.bf16.msra.mxu0 %v2106
  %2130 = vmatprep.subr.bf16.mxu0 0
  %2131 = vmatpush1.bf16.msra.mxu0 %v2107
  %2132 = vmatprep.subr.bf16.mxu0 0
  %2133 = vmatpush1.bf16.msra.mxu0 0
  %2134 = vmatprep.subr.bf16.mxu0 0
  %2135 = vmatpush1.bf16.msra.mxu0 0
  %2136 = vmatprep.subr.bf16.mxu0 0
  %2137 = vmatpush1.bf16.msra.mxu0 0
  %2138 = vmatprep.subr.bf16.mxu0 0
  %2139 = vmatpush1.bf16.msra.mxu0 0
  %2140 = vmatprep.subr.bf16.mxu0 0
  %2141 = vmatpush1.bf16.msra.mxu0 0
  %2142 = vmatprep.subr.bf16.mxu0 0
  %2143 = vmatpush1.bf16.msra.mxu0 0
  %2144 = vmatprep.subr.bf16.mxu0 0
  %2145 = vmatpush1.bf16.msra.mxu0 0
  %2146 = vmatprep.subr.bf16.mxu0 0
  %2147 = vmatpush1.bf16.msra.mxu0 0
  %2148 = vmatprep.mubr.bf16.mxu0 0
  %2149 = vmatmul.mubr.bf16.gmra.mrb[0].mxu0 %v2042
  %v2150 = vpop.f32.mrb[0].mxu0
  %v2151 = vadd.f32 %v2066, %v2150
  %v2152 = vpop.f32.mrb[0].mxu0
  %v2153 = vpop.f32.mrb[0].mxu0
  %v2154 = vpop.f32.mrb[0].mxu0
  %2155 = vdwg.mxu0
  %v2156 = vld [vmem:[%s1001] sm:$0xff]
  %v2157 = vmul.f32 %v2156, 0.8
  %v2158 = vadd.f32 %v2157, %v2151
  %v2159 = vld [vmem:[%s1005] sm:$0xf]
  %v2160 = vmul.bf16 %v2159, 1056980736
  %v2161 = vunpack.c.l.bf16 %v2160
  %v2162 = vsub.f32 %v2158, %v2161
  %vm2163 = vcmp.gt.f32.partialorder %v2162, 0.5
  %v2164 = vsel %vm2163, 1, 0
  %v2165 = vcvt.s32.f32 %v2164
  %v2166 = vpack.c.bf16 %v2165, %v2165
  %2167 = vst [vmem:[%s1001] sm:$0xff] %v2162
  %2168 = vst [vmem:[%s1005] sm:$0xf] %v2166
  %v2169 = vld [vmem:[%s1016] sm:$0xf]
  %v2170 = vld [vmem:[%s1016 + $0x4] sm:$0xf]
  %v2171 = vld [vmem:[%s1016 + $0x8] sm:$0xf]
  %v2172 = vld [vmem:[%s1016 + $0xc] sm:$0xf]
  %v2173 = vld [vmem:[%s1016 + $0x10] sm:$0xf]
  %v2174 = vld [vmem:[%s1016 + $0x14] sm:$0xf]
  %v2175 = vld [vmem:[%s1016 + $0x18] sm:$0xf]
  %v2176 = vld [vmem:[%s1016 + $0x1c] sm:$0xf]
  %v2177 = vld [vmem:[%s1016 + $0x20] sm:$0xf]
  %v2178 = vld [vmem:[%s1016 + $0x24] sm:$0xf]
  %v2179 = vld [vmem:[%s1016 + $0x28] sm:$0xf]
  %v2180 = vld [vmem:[%s1016 + $0x2c] sm:$0xf]
  %v2181 = vld [vmem:[%s1016 + $0x30] sm:$0xf]
  %v2182 = vld [vmem:[%s1016 + $0x34] sm:$0xf]
  %v2183 = vld [vmem:[%s1016 + $0x38] sm:$0xf]
  %v2184 = vld [vmem:[%s1016 + $0x3c] sm:$0xf]
  %v2185 = vld [vmem:[%s1033] sm:$0x1]
  %v2187 = vlaneseq
  %v2188 = vshrl.u32 %v2187, 7
  %v2189 = vsub.s32 0, %v2188
  %v2190 = vrot.slane %v2185, %v2189
  %v2208 = vunpack.c.l.b16 %v2169
  %v2209 = vunpack.c.l.b16 %v2170
  %v2210 = vunpack.c.l.b16 %v2171
  %v2211 = vunpack.c.l.b16 %v2172
  %v2212 = vunpack.c.l.b16 %v2173
  %v2213 = vunpack.c.l.b16 %v2174
  %v2214 = vunpack.c.l.b16 %v2175
  %v2215 = vunpack.c.l.b16 %v2176
  %v2216 = vunpack.c.l.b16 %v2177
  %v2217 = vunpack.c.l.b16 %v2178
  %v2218 = vunpack.c.l.b16 %v2179
  %v2219 = vunpack.c.l.b16 %v2180
  %v2220 = vunpack.c.l.b16 %v2181
  %v2221 = vunpack.c.l.b16 %v2182
  %v2222 = vunpack.c.l.b16 %v2183
  %v2223 = vunpack.c.l.b16 %v2184
  %v2224 = vpack.c.b16 %v2209, %v2208
  %v2225 = vpack.c.b16 %v2211, %v2210
  %v2226 = vpack.c.b16 %v2213, %v2212
  %v2227 = vpack.c.b16 %v2215, %v2214
  %v2228 = vpack.c.b16 %v2217, %v2216
  %v2229 = vpack.c.b16 %v2219, %v2218
  %v2230 = vpack.c.b16 %v2221, %v2220
  %v2231 = vpack.c.b16 %v2223, %v2222
  %2240 = vmatprep.subr.bf16.mxu0 0
  %2241 = vmatpush1.bf16.msra.mxu0 %v2224
  %2242 = vmatprep.subr.bf16.mxu0 0
  %2243 = vmatpush1.bf16.msra.mxu0 %v2225
  %2244 = vmatprep.subr.bf16.mxu0 0
  %2245 = vmatpush1.bf16.msra.mxu0 %v2226
  %2246 = vmatprep.subr.bf16.mxu0 0
  %2247 = vmatpush1.bf16.msra.mxu0 %v2227
  %2248 = vmatprep.subr.bf16.mxu0 0
  %2249 = vmatpush1.bf16.msra.mxu0 %v2228
  %2250 = vmatprep.subr.bf16.mxu0 0
  %2251 = vmatpush1.bf16.msra.mxu0 %v2229
  %2252 = vmatprep.subr.bf16.mxu0 0
  %2253 = vmatpush1.bf16.msra.mxu0 %v2230
  %2254 = vmatprep.subr.bf16.mxu0 0
  %2255 = vmatpush1.bf16.msra.mxu0 %v2231
  %2256 = vmatprep.subr.bf16.mxu0 0
  %2257 = vmatpush1.bf16.msra.mxu0 0
  %2258 = vmatprep.subr.bf16.mxu0 0
  %2259 = vmatpush1.bf16.msra.mxu0 0
  %2260 = vmatprep.subr.bf16.mxu0 0
  %2261 = vmatpush1.bf16.msra.mxu0 0
  %2262 = vmatprep.subr.bf16.mxu0 0
  %2263 = vmatpush1.bf16.msra.mxu0 0
  %2264 = vmatprep.subr.bf16.mxu0 0
  %2265 = vmatpush1.bf16.msra.mxu0 0
  %2266 = vmatprep.subr.bf16.mxu0 0
  %2267 = vmatpush1.bf16.msra.mxu0 0
  %2268 = vmatprep.subr.bf16.mxu0 0
  %2269 = vmatpush1.bf16.msra.mxu0 0
  %2270 = vmatprep.subr.bf16.mxu0 0
  %2271 = vmatpush1.bf16.msra.mxu0 0
  %2272 = vmatprep.mubr.bf16.mxu0 0
  %2273 = vmatmul.mubr.bf16.gmra.mrb[0].mxu0 %v2166
  %v2274 = vpop.f32.mrb[0].mxu0
  %v2275 = vadd.f32 %v2190, %v2274
  %v2276 = vpop.f32.mrb[0].mxu0
  %v2277 = vpop.f32.mrb[0].mxu0
  %v2278 = vpop.f32.mrb[0].mxu0
  %2279 = vdwg.mxu0
  %v2280 = vld [vmem:[%s1129] sm:$0xff]
  %v2281 = vmul.f32 %v2280, 0.8
  %v2282 = vadd.f32 %v2281, %v2275
  %v2283 = vld [vmem:[%s1133] sm:$0xf]
  %v2284 = vmul.bf16 %v2283, 1056980736
  %v2285 = vunpack.c.l.bf16 %v2284
  %v2286 = vsub.f32 %v2282, %v2285
  %vm2287 = vcmp.gt.f32.partialorder %v2286, 0.5
  %v2288 = vsel %vm2287, 1, 0
  %v2289 = vcvt.s32.f32 %v2288
  %v2290 = vpack.c.bf16 %v2289, %v2289
  %2291 = vst [vmem:[%s1129] sm:$0xff] %v2286
  %2292 = vst [vmem:[%s1133] sm:$0xf] %v2290
  %v2293 = vld [vmem:[%s1144] sm:$0xf]
  %v2294 = vld [vmem:[%s1144 + $0x4] sm:$0xf]
  %v2295 = vld [vmem:[%s1144 + $0x8] sm:$0xf]
  %v2296 = vld [vmem:[%s1144 + $0xc] sm:$0xf]
  %v2297 = vld [vmem:[%s1144 + $0x10] sm:$0xf]
  %v2298 = vld [vmem:[%s1144 + $0x14] sm:$0xf]
  %v2299 = vld [vmem:[%s1144 + $0x18] sm:$0xf]
  %v2300 = vld [vmem:[%s1144 + $0x1c] sm:$0xf]
  %v2301 = vld [vmem:[%s1144 + $0x20] sm:$0xf]
  %v2302 = vld [vmem:[%s1144 + $0x24] sm:$0xf]
  %v2303 = vld [vmem:[%s1144 + $0x28] sm:$0xf]
  %v2304 = vld [vmem:[%s1144 + $0x2c] sm:$0xf]
  %v2305 = vld [vmem:[%s1144 + $0x30] sm:$0xf]
  %v2306 = vld [vmem:[%s1144 + $0x34] sm:$0xf]
  %v2307 = vld [vmem:[%s1144 + $0x38] sm:$0xf]
  %v2308 = vld [vmem:[%s1144 + $0x3c] sm:$0xf]
  %v2309 = vld [vmem:[%s1161] sm:$0x1]
  %v2311 = vlaneseq
  %v2312 = vshrl.u32 %v2311, 7
  %v2313 = vsub.s32 0, %v2312
  %v2314 = vrot.slane %v2309, %v2313
  %v2332 = vunpack.c.l.b16 %v2293
  %v2333 = vunpack.c.l.b16 %v2294
  %v2334 = vunpack.c.l.b16 %v2295
  %v2335 = vunpack.c.l.b16 %v2296
  %v2336 = vunpack.c.l.b16 %v2297
  %v2337 = vunpack.c.l.b16 %v2298
  %v2338 = vunpack.c.l.b16 %v2299
  %v2339 = vunpack.c.l.b16 %v2300
  %v2340 = vunpack.c.l.b16 %v2301
  %v2341 = vunpack.c.l.b16 %v2302
  %v2342 = vunpack.c.l.b16 %v2303
  %v2343 = vunpack.c.l.b16 %v2304
  %v2344 = vunpack.c.l.b16 %v2305
  %v2345 = vunpack.c.l.b16 %v2306
  %v2346 = vunpack.c.l.b16 %v2307
  %v2347 = vunpack.c.l.b16 %v2308
  %v2348 = vpack.c.b16 %v2333, %v2332
  %v2349 = vpack.c.b16 %v2335, %v2334
  %v2350 = vpack.c.b16 %v2337, %v2336
  %v2351 = vpack.c.b16 %v2339, %v2338
  %v2352 = vpack.c.b16 %v2341, %v2340
  %v2353 = vpack.c.b16 %v2343, %v2342
  %v2354 = vpack.c.b16 %v2345, %v2344
  %v2355 = vpack.c.b16 %v2347, %v2346
  %2364 = vmatprep.subr.bf16.mxu0 0
  %2365 = vmatpush1.bf16.msra.mxu0 %v2348
  %2366 = vmatprep.subr.bf16.mxu0 0
  %2367 = vmatpush1.bf16.msra.mxu0 %v2349
  %2368 = vmatprep.subr.bf16.mxu0 0
  %2369 = vmatpush1.bf16.msra.mxu0 %v2350
  %2370 = vmatprep.subr.bf16.mxu0 0
  %2371 = vmatpush1.bf16.msra.mxu0 %v2351
  %2372 = vmatprep.subr.bf16.mxu0 0
  %2373 = vmatpush1.bf16.msra.mxu0 %v2352
  %2374 = vmatprep.subr.bf16.mxu0 0
  %2375 = vmatpush1.bf16.msra.mxu0 %v2353
  %2376 = vmatprep.subr.bf16.mxu0 0
  %2377 = vmatpush1.bf16.msra.mxu0 %v2354
  %2378 = vmatprep.subr.bf16.mxu0 0
  %2379 = vmatpush1.bf16.msra.mxu0 %v2355
  %2380 = vmatprep.subr.bf16.mxu0 0
  %2381 = vmatpush1.bf16.msra.mxu0 0
  %2382 = vmatprep.subr.bf16.mxu0 0
  %2383 = vmatpush1.bf16.msra.mxu0 0
  %2384 = vmatprep.subr.bf16.mxu0 0
  %2385 = vmatpush1.bf16.msra.mxu0 0
  %2386 = vmatprep.subr.bf16.mxu0 0
  %2387 = vmatpush1.bf16.msra.mxu0 0
  %2388 = vmatprep.subr.bf16.mxu0 0
  %2389 = vmatpush1.bf16.msra.mxu0 0
  %2390 = vmatprep.subr.bf16.mxu0 0
  %2391 = vmatpush1.bf16.msra.mxu0 0
  %2392 = vmatprep.subr.bf16.mxu0 0
  %2393 = vmatpush1.bf16.msra.mxu0 0
  %2394 = vmatprep.subr.bf16.mxu0 0
  %2395 = vmatpush1.bf16.msra.mxu0 0
  %2396 = vmatprep.mubr.bf16.mxu0 0
  %2397 = vmatmul.mubr.bf16.gmra.mrb[0].mxu0 %v2290
  %v2398 = vpop.f32.mrb[0].mxu0
  %v2399 = vadd.f32 %v2314, %v2398
  %v2400 = vpop.f32.mrb[0].mxu0
  %v2401 = vpop.f32.mrb[0].mxu0
  %v2402 = vpop.f32.mrb[0].mxu0
  %2403 = vdwg.mxu0
  %v2404 = vld [vmem:[%s1257] sm:$0xff]
  %v2405 = vmul.f32 %v2404, 0.8
  %v2406 = vadd.f32 %v2405, %v2399
  %v2407 = vld [vmem:[%s1261] sm:$0xf]
  %v2408 = vmul.bf16 %v2407, 1056980736
  %v2409 = vunpack.c.l.bf16 %v2408
  %v2410 = vsub.f32 %v2406, %v2409
  %vm2411 = vcmp.gt.f32.partialorder %v2410, 0.5
  %v2412 = vsel %vm2411, 1, 0
  %v2413 = vcvt.s32.f32 %v2412
  %v2414 = vpack.c.bf16 %v2413, %v2413
  %2415 = vst [vmem:[%s1257] sm:$0xff] %v2410
  %2416 = vst [vmem:[%s1261] sm:$0xf] %v2414
  %v2417 = vld [vmem:[%s1272] sm:$0xf]
  %v2418 = vld [vmem:[%s1272 + $0x4] sm:$0xf]
  %v2419 = vld [vmem:[%s1272 + $0x8] sm:$0xf]
  %v2420 = vld [vmem:[%s1272 + $0xc] sm:$0xf]
  %v2421 = vld [vmem:[%s1272 + $0x10] sm:$0xf]
  %v2422 = vld [vmem:[%s1272 + $0x14] sm:$0xf]
  %v2423 = vld [vmem:[%s1272 + $0x18] sm:$0xf]
  %v2424 = vld [vmem:[%s1272 + $0x1c] sm:$0xf]
  %v2425 = vld [vmem:[%s1272 + $0x20] sm:$0xf]
  %v2426 = vld [vmem:[%s1272 + $0x24] sm:$0xf]
  %v2427 = vld [vmem:[%s1272 + $0x28] sm:$0xf]
  %v2428 = vld [vmem:[%s1272 + $0x2c] sm:$0xf]
  %v2429 = vld [vmem:[%s1272 + $0x30] sm:$0xf]
  %v2430 = vld [vmem:[%s1272 + $0x34] sm:$0xf]
  %v2431 = vld [vmem:[%s1272 + $0x38] sm:$0xf]
  %v2432 = vld [vmem:[%s1272 + $0x3c] sm:$0xf]
  %v2433 = vld [vmem:[%s1289] sm:$0x1]
  %v2435 = vlaneseq
  %v2436 = vshrl.u32 %v2435, 7
  %v2437 = vsub.s32 0, %v2436
  %v2438 = vrot.slane %v2433, %v2437
  %v2456 = vunpack.c.l.b16 %v2417
  %v2457 = vunpack.c.l.b16 %v2418
  %v2458 = vunpack.c.l.b16 %v2419
  %v2459 = vunpack.c.l.b16 %v2420
  %v2460 = vunpack.c.l.b16 %v2421
  %v2461 = vunpack.c.l.b16 %v2422
  %v2462 = vunpack.c.l.b16 %v2423
  %v2463 = vunpack.c.l.b16 %v2424
  %v2464 = vunpack.c.l.b16 %v2425
  %v2465 = vunpack.c.l.b16 %v2426
  %v2466 = vunpack.c.l.b16 %v2427
  %v2467 = vunpack.c.l.b16 %v2428
  %v2468 = vunpack.c.l.b16 %v2429
  %v2469 = vunpack.c.l.b16 %v2430
  %v2470 = vunpack.c.l.b16 %v2431
  %v2471 = vunpack.c.l.b16 %v2432
  %v2472 = vpack.c.b16 %v2457, %v2456
  %v2473 = vpack.c.b16 %v2459, %v2458
  %v2474 = vpack.c.b16 %v2461, %v2460
  %v2475 = vpack.c.b16 %v2463, %v2462
  %v2476 = vpack.c.b16 %v2465, %v2464
  %v2477 = vpack.c.b16 %v2467, %v2466
  %v2478 = vpack.c.b16 %v2469, %v2468
  %v2479 = vpack.c.b16 %v2471, %v2470
  %2488 = vmatprep.subr.bf16.mxu0 0
  %2489 = vmatpush1.bf16.msra.mxu0 %v2472
  %2490 = vmatprep.subr.bf16.mxu0 0
  %2491 = vmatpush1.bf16.msra.mxu0 %v2473
  %2492 = vmatprep.subr.bf16.mxu0 0
  %2493 = vmatpush1.bf16.msra.mxu0 %v2474
  %2494 = vmatprep.subr.bf16.mxu0 0
  %2495 = vmatpush1.bf16.msra.mxu0 %v2475
  %2496 = vmatprep.subr.bf16.mxu0 0
  %2497 = vmatpush1.bf16.msra.mxu0 %v2476
  %2498 = vmatprep.subr.bf16.mxu0 0
  %2499 = vmatpush1.bf16.msra.mxu0 %v2477
  %2500 = vmatprep.subr.bf16.mxu0 0
  %2501 = vmatpush1.bf16.msra.mxu0 %v2478
  %2502 = vmatprep.subr.bf16.mxu0 0
  %2503 = vmatpush1.bf16.msra.mxu0 %v2479
  %2504 = vmatprep.subr.bf16.mxu0 0
  %2505 = vmatpush1.bf16.msra.mxu0 0
  %2506 = vmatprep.subr.bf16.mxu0 0
  %2507 = vmatpush1.bf16.msra.mxu0 0
  %2508 = vmatprep.subr.bf16.mxu0 0
  %2509 = vmatpush1.bf16.msra.mxu0 0
  %2510 = vmatprep.subr.bf16.mxu0 0
  %2511 = vmatpush1.bf16.msra.mxu0 0
  %2512 = vmatprep.subr.bf16.mxu0 0
  %2513 = vmatpush1.bf16.msra.mxu0 0
  %2514 = vmatprep.subr.bf16.mxu0 0
  %2515 = vmatpush1.bf16.msra.mxu0 0
  %2516 = vmatprep.subr.bf16.mxu0 0
  %2517 = vmatpush1.bf16.msra.mxu0 0
  %2518 = vmatprep.subr.bf16.mxu0 0
  %2519 = vmatpush1.bf16.msra.mxu0 0
  %2520 = vmatprep.mubr.bf16.mxu0 0
  %2521 = vmatmul.mubr.bf16.gmra.mrb[0].mxu0 %v2414
  %v2522 = vpop.f32.mrb[0].mxu0
  %v2523 = vadd.f32 %v2438, %v2522
  %v2524 = vpop.f32.mrb[0].mxu0
  %v2525 = vpop.f32.mrb[0].mxu0
  %v2526 = vpop.f32.mrb[0].mxu0
  %2527 = vdwg.mxu0
  %v2528 = vld [vmem:[%s1385] sm:$0xff]
  %v2529 = vmul.f32 %v2528, 0.8
  %v2530 = vadd.f32 %v2529, %v2523
  %v2531 = vld [vmem:[%s1389] sm:$0xf]
  %v2532 = vmul.bf16 %v2531, 1056980736
  %v2533 = vunpack.c.l.bf16 %v2532
  %v2534 = vsub.f32 %v2530, %v2533
  %vm2535 = vcmp.gt.f32.partialorder %v2534, 0.5
  %v2536 = vsel %vm2535, 1, 0
  %v2537 = vcvt.s32.f32 %v2536
  %v2538 = vpack.c.bf16 %v2537, %v2537
  %2539 = vst [vmem:[%s1385] sm:$0xff] %v2534
  %2540 = vst [vmem:[%s1389] sm:$0xf] %v2538
  %v2541 = vld [vmem:[%s1400] sm:$0xf]
  %v2542 = vld [vmem:[%s1400 + $0x4] sm:$0xf]
  %v2543 = vld [vmem:[%s1400 + $0x8] sm:$0xf]
  %v2544 = vld [vmem:[%s1400 + $0xc] sm:$0xf]
  %v2545 = vld [vmem:[%s1400 + $0x10] sm:$0xf]
  %v2546 = vld [vmem:[%s1400 + $0x14] sm:$0xf]
  %v2547 = vld [vmem:[%s1400 + $0x18] sm:$0xf]
  %v2548 = vld [vmem:[%s1400 + $0x1c] sm:$0xf]
  %v2549 = vld [vmem:[%s1400 + $0x20] sm:$0xf]
  %v2550 = vld [vmem:[%s1400 + $0x24] sm:$0xf]
  %v2551 = vld [vmem:[%s1400 + $0x28] sm:$0xf]
  %v2552 = vld [vmem:[%s1400 + $0x2c] sm:$0xf]
  %v2553 = vld [vmem:[%s1400 + $0x30] sm:$0xf]
  %v2554 = vld [vmem:[%s1400 + $0x34] sm:$0xf]
  %v2555 = vld [vmem:[%s1400 + $0x38] sm:$0xf]
  %v2556 = vld [vmem:[%s1400 + $0x3c] sm:$0xf]
  %v2557 = vld [vmem:[%s1417] sm:$0x1]
  %v2559 = vlaneseq
  %v2560 = vshrl.u32 %v2559, 7
  %v2561 = vsub.s32 0, %v2560
  %v2562 = vrot.slane %v2557, %v2561
  %v2580 = vunpack.c.l.b16 %v2541
  %v2581 = vunpack.c.l.b16 %v2542
  %v2582 = vunpack.c.l.b16 %v2543
  %v2583 = vunpack.c.l.b16 %v2544
  %v2584 = vunpack.c.l.b16 %v2545
  %v2585 = vunpack.c.l.b16 %v2546
  %v2586 = vunpack.c.l.b16 %v2547
  %v2587 = vunpack.c.l.b16 %v2548
  %v2588 = vunpack.c.l.b16 %v2549
  %v2589 = vunpack.c.l.b16 %v2550
  %v2590 = vunpack.c.l.b16 %v2551
  %v2591 = vunpack.c.l.b16 %v2552
  %v2592 = vunpack.c.l.b16 %v2553
  %v2593 = vunpack.c.l.b16 %v2554
  %v2594 = vunpack.c.l.b16 %v2555
  %v2595 = vunpack.c.l.b16 %v2556
  %v2596 = vpack.c.b16 %v2581, %v2580
  %v2597 = vpack.c.b16 %v2583, %v2582
  %v2598 = vpack.c.b16 %v2585, %v2584
  %v2599 = vpack.c.b16 %v2587, %v2586
  %v2600 = vpack.c.b16 %v2589, %v2588
  %v2601 = vpack.c.b16 %v2591, %v2590
  %v2602 = vpack.c.b16 %v2593, %v2592
  %v2603 = vpack.c.b16 %v2595, %v2594
  %2612 = vmatprep.subr.bf16.mxu0 0
  %2613 = vmatpush1.bf16.msra.mxu0 %v2596
  %2614 = vmatprep.subr.bf16.mxu0 0
  %2615 = vmatpush1.bf16.msra.mxu0 %v2597
  %2616 = vmatprep.subr.bf16.mxu0 0
  %2617 = vmatpush1.bf16.msra.mxu0 %v2598
  %2618 = vmatprep.subr.bf16.mxu0 0
  %2619 = vmatpush1.bf16.msra.mxu0 %v2599
  %2620 = vmatprep.subr.bf16.mxu0 0
  %2621 = vmatpush1.bf16.msra.mxu0 %v2600
  %2622 = vmatprep.subr.bf16.mxu0 0
  %2623 = vmatpush1.bf16.msra.mxu0 %v2601
  %2624 = vmatprep.subr.bf16.mxu0 0
  %2625 = vmatpush1.bf16.msra.mxu0 %v2602
  %2626 = vmatprep.subr.bf16.mxu0 0
  %2627 = vmatpush1.bf16.msra.mxu0 %v2603
  %2628 = vmatprep.subr.bf16.mxu0 0
  %2629 = vmatpush1.bf16.msra.mxu0 0
  %2630 = vmatprep.subr.bf16.mxu0 0
  %2631 = vmatpush1.bf16.msra.mxu0 0
  %2632 = vmatprep.subr.bf16.mxu0 0
  %2633 = vmatpush1.bf16.msra.mxu0 0
  %2634 = vmatprep.subr.bf16.mxu0 0
  %2635 = vmatpush1.bf16.msra.mxu0 0
  %2636 = vmatprep.subr.bf16.mxu0 0
  %2637 = vmatpush1.bf16.msra.mxu0 0
  %2638 = vmatprep.subr.bf16.mxu0 0
  %2639 = vmatpush1.bf16.msra.mxu0 0
  %2640 = vmatprep.subr.bf16.mxu0 0
  %2641 = vmatpush1.bf16.msra.mxu0 0
  %2642 = vmatprep.subr.bf16.mxu0 0
  %2643 = vmatpush1.bf16.msra.mxu0 0
  %2644 = vmatprep.mubr.bf16.mxu0 0
  %2645 = vmatmul.mubr.bf16.gmra.mrb[0].mxu0 %v2538
  %v2646 = vpop.f32.mrb[0].mxu0
  %v2647 = vadd.f32 %v2562, %v2646
  %v2648 = vpop.f32.mrb[0].mxu0
  %v2649 = vpop.f32.mrb[0].mxu0
  %v2650 = vpop.f32.mrb[0].mxu0
  %2651 = vdwg.mxu0
  %v2652 = vld [vmem:[%s1513] sm:$0xff]
  %v2653 = vmul.f32 %v2652, 0.8
  %v2654 = vadd.f32 %v2653, %v2647
  %v2655 = vld [vmem:[%s1517] sm:$0xf]
  %v2656 = vmul.bf16 %v2655, 1056980736
  %v2657 = vunpack.c.l.bf16 %v2656
  %v2658 = vsub.f32 %v2654, %v2657
  %vm2659 = vcmp.gt.f32.partialorder %v2658, 0.5
  %v2660 = vsel %vm2659, 1, 0
  %v2661 = vcvt.s32.f32 %v2660
  %v2662 = vpack.c.bf16 %v2661, %v2661
  %2663 = vst [vmem:[%s1513] sm:$0xff] %v2658
  %2664 = vst [vmem:[%s1517] sm:$0xf] %v2662
  %v2665 = vld [vmem:[%s5] sm:$0xf]
  %v2666 = vld [vmem:[%s5 + $0x4] sm:$0xf]
  %v2667 = vld [vmem:[%s5 + $0x8] sm:$0xf]
  %v2668 = vld [vmem:[%s5 + $0xc] sm:$0xf]
  %v2669 = vld [vmem:[%s5 + $0x10] sm:$0xf]
  %v2670 = vld [vmem:[%s5 + $0x14] sm:$0xf]
  %v2671 = vld [vmem:[%s5 + $0x18] sm:$0xf]
  %v2672 = vld [vmem:[%s5 + $0x1c] sm:$0xf]
  %v2673 = vld [vmem:[%s5 + $0x20] sm:$0xf]
  %v2674 = vld [vmem:[%s5 + $0x24] sm:$0xf]
  %v2675 = vld [vmem:[%s5 + $0x28] sm:$0xf]
  %v2676 = vld [vmem:[%s5 + $0x2c] sm:$0xf]
  %v2677 = vld [vmem:[%s5 + $0x30] sm:$0xf]
  %v2678 = vld [vmem:[%s5 + $0x34] sm:$0xf]
  %v2679 = vld [vmem:[%s5 + $0x38] sm:$0xf]
  %v2680 = vld [vmem:[%s5 + $0x3c] sm:$0xf]
  %v2681 = vld [vmem:[%s6] sm:$0x1]
  %v2683 = vlaneseq
  %v2684 = vshrl.u32 %v2683, 7
  %v2685 = vsub.s32 0, %v2684
  %v2686 = vrot.slane %v2681, %v2685
  %v2704 = vunpack.c.l.b16 %v2665
  %v2705 = vunpack.c.l.b16 %v2666
  %v2706 = vunpack.c.l.b16 %v2667
  %v2707 = vunpack.c.l.b16 %v2668
  %v2708 = vunpack.c.l.b16 %v2669
  %v2709 = vunpack.c.l.b16 %v2670
  %v2710 = vunpack.c.l.b16 %v2671
  %v2711 = vunpack.c.l.b16 %v2672
  %v2712 = vunpack.c.l.b16 %v2673
  %v2713 = vunpack.c.l.b16 %v2674
  %v2714 = vunpack.c.l.b16 %v2675
  %v2715 = vunpack.c.l.b16 %v2676
  %v2716 = vunpack.c.l.b16 %v2677
  %v2717 = vunpack.c.l.b16 %v2678
  %v2718 = vunpack.c.l.b16 %v2679
  %v2719 = vunpack.c.l.b16 %v2680
  %v2720 = vpack.c.b16 %v2705, %v2704
  %v2721 = vpack.c.b16 %v2707, %v2706
  %v2722 = vpack.c.b16 %v2709, %v2708
  %v2723 = vpack.c.b16 %v2711, %v2710
  %v2724 = vpack.c.b16 %v2713, %v2712
  %v2725 = vpack.c.b16 %v2715, %v2714
  %v2726 = vpack.c.b16 %v2717, %v2716
  %v2727 = vpack.c.b16 %v2719, %v2718
  %2736 = vmatprep.subr.bf16.mxu0 0
  %2737 = vmatpush1.bf16.msra.mxu0 %v2720
  %2738 = vmatprep.subr.bf16.mxu0 0
  %2739 = vmatpush1.bf16.msra.mxu0 %v2721
  %2740 = vmatprep.subr.bf16.mxu0 0
  %2741 = vmatpush1.bf16.msra.mxu0 %v2722
  %2742 = vmatprep.subr.bf16.mxu0 0
  %2743 = vmatpush1.bf16.msra.mxu0 %v2723
  %2744 = vmatprep.subr.bf16.mxu0 0
  %2745 = vmatpush1.bf16.msra.mxu0 %v2724
  %2746 = vmatprep.subr.bf16.mxu0 0
  %2747 = vmatpush1.bf16.msra.mxu0 %v2725
  %2748 = vmatprep.subr.bf16.mxu0 0
  %2749 = vmatpush1.bf16.msra.mxu0 %v2726
  %2750 = vmatprep.subr.bf16.mxu0 0
  %2751 = vmatpush1.bf16.msra.mxu0 %v2727
  %2752 = vmatprep.subr.bf16.mxu0 0
  %2753 = vmatpush1.bf16.msra.mxu0 0
  %2754 = vmatprep.subr.bf16.mxu0 0
  %2755 = vmatpush1.bf16.msra.mxu0 0
  %2756 = vmatprep.subr.bf16.mxu0 0
  %2757 = vmatpush1.bf16.msra.mxu0 0
  %2758 = vmatprep.subr.bf16.mxu0 0
  %2759 = vmatpush1.bf16.msra.mxu0 0
  %2760 = vmatprep.subr.bf16.mxu0 0
  %2761 = vmatpush1.bf16.msra.mxu0 0
  %2762 = vmatprep.subr.bf16.mxu0 0
  %2763 = vmatpush1.bf16.msra.mxu0 0
  %2764 = vmatprep.subr.bf16.mxu0 0
  %2765 = vmatpush1.bf16.msra.mxu0 0
  %2766 = vmatprep.subr.bf16.mxu0 0
  %2767 = vmatpush1.bf16.msra.mxu0 0
  %2768 = vmatprep.mubr.bf16.mxu0 0
  %2769 = vmatmul.mubr.bf16.gmra.mrb[0].mxu0 %v2662
  %v2770 = vpop.f32.mrb[0].mxu0
  %v2771 = vadd.f32 %v2686, %v2770
  %v2772 = vpop.f32.mrb[0].mxu0
  %v2773 = vpop.f32.mrb[0].mxu0
  %v2774 = vpop.f32.mrb[0].mxu0
  %2775 = vdwg.mxu0
  %v2776 = vld [vmem:[#allocation5] sm:$0xff]
  %v2777 = vmul.f32 %v2776, 0.8
  %v2778 = vadd.f32 %v2777, %v2771
  %v2779 = vld [vmem:[#allocation6] sm:$0xff]
  %v2780 = vmul.f32 %v2779, 0.5
  %v2781 = vsub.f32 %v2778, %v2780
  %vm2782 = vcmp.gt.f32.partialorder %v2781, 0.5
  %v2783 = vsel %vm2782, 1, 0
  %v2784 = vcvt.s32.f32 %v2783
  %2785 = vst [vmem:[#allocation5] sm:$0xff] %v2781
  %2786 = vst [vmem:[#allocation6] sm:$0xff] %v2784
  %v2787 = vld [vmem:[%s7] sm:$0xff]
  %v2788 = vadd.f32 %v2787, %v2784
  %2789 = vst [vmem:[%s7] sm:$0xff] %v2788
  %2790 = vadd.xlane.f32.xlu0 %v2784
  %v2791 = vpop.xlane.xlu0 %2790
  %vm2792 = vcmp.eq.s32.totalorder %v491, 17
  %v2793 = vld [vmem:[#allocation7] sm:$0xff]
  %v2794 = vsel %vm2792, %v2791, %v2793
  %2795 = vst [vmem:[#allocation7] sm:$0xff] %v2794
  %v2796 = vld [vmem:[#allocation2] sm:$0xff]
  %v2797 = vld [vmem:[#allocation3] sm:$0xff]
  %v2798 = vmul.f32 %v2797, 0.8
  %v2799 = vadd.f32 %v2798, %v2796
  %v2800 = vld [vmem:[#allocation4] sm:$0xf]
  %v2801 = vmul.bf16 %v2800, 1056980736
  %v2802 = vunpack.c.l.bf16 %v2801
  %v2803 = vsub.f32 %v2799, %v2802
  %vm2804 = vcmp.gt.f32.partialorder %v2803, 0.5
  %v2805 = vsel %vm2804, 1, 0
  %v2806 = vcvt.s32.f32 %v2805
  %v2807 = vpack.c.bf16 %v2806, %v2806
  %2808 = vst [vmem:[#allocation3] sm:$0xff] %v2803
  %2809 = vst [vmem:[#allocation4] sm:$0xf] %v2807
  %v2810 = vld [vmem:[%s3] sm:$0xf]
  %v2811 = vld [vmem:[%s3 + $0x4] sm:$0xf]
  %v2812 = vld [vmem:[%s3 + $0x8] sm:$0xf]
  %v2813 = vld [vmem:[%s3 + $0xc] sm:$0xf]
  %v2814 = vld [vmem:[%s3 + $0x10] sm:$0xf]
  %v2815 = vld [vmem:[%s3 + $0x14] sm:$0xf]
  %v2816 = vld [vmem:[%s3 + $0x18] sm:$0xf]
  %v2817 = vld [vmem:[%s3 + $0x1c] sm:$0xf]
  %v2818 = vld [vmem:[%s3 + $0x20] sm:$0xf]
  %v2819 = vld [vmem:[%s3 + $0x24] sm:$0xf]
  %v2820 = vld [vmem:[%s3 + $0x28] sm:$0xf]
  %v2821 = vld [vmem:[%s3 + $0x2c] sm:$0xf]
  %v2822 = vld [vmem:[%s3 + $0x30] sm:$0xf]
  %v2823 = vld [vmem:[%s3 + $0x34] sm:$0xf]
  %v2824 = vld [vmem:[%s3 + $0x38] sm:$0xf]
  %v2825 = vld [vmem:[%s3 + $0x3c] sm:$0xf]
  %v2826 = vld [vmem:[%s4] sm:$0x1]
  %v2828 = vlaneseq
  %v2829 = vshrl.u32 %v2828, 7
  %v2830 = vsub.s32 0, %v2829
  %v2831 = vrot.slane %v2826, %v2830
  %v2849 = vunpack.c.l.b16 %v2810
  %v2850 = vunpack.c.l.b16 %v2811
  %v2851 = vunpack.c.l.b16 %v2812
  %v2852 = vunpack.c.l.b16 %v2813
  %v2853 = vunpack.c.l.b16 %v2814
  %v2854 = vunpack.c.l.b16 %v2815
  %v2855 = vunpack.c.l.b16 %v2816
  %v2856 = vunpack.c.l.b16 %v2817
  %v2857 = vunpack.c.l.b16 %v2818
  %v2858 = vunpack.c.l.b16 %v2819
  %v2859 = vunpack.c.l.b16 %v2820
  %v2860 = vunpack.c.l.b16 %v2821
  %v2861 = vunpack.c.l.b16 %v2822
  %v2862 = vunpack.c.l.b16 %v2823
  %v2863 = vunpack.c.l.b16 %v2824
  %v2864 = vunpack.c.l.b16 %v2825
  %v2865 = vpack.c.b16 %v2850, %v2849
  %v2866 = vpack.c.b16 %v2852, %v2851
  %v2867 = vpack.c.b16 %v2854, %v2853
  %v2868 = vpack.c.b16 %v2856, %v2855
  %v2869 = vpack.c.b16 %v2858, %v2857
  %v2870 = vpack.c.b16 %v2860, %v2859
  %v2871 = vpack.c.b16 %v2862, %v2861
  %v2872 = vpack.c.b16 %v2864, %v2863
  %2881 = vmatprep.subr.bf16.mxu0 0
  %2882 = vmatpush1.bf16.msra.mxu0 %v2865
  %2883 = vmatprep.subr.bf16.mxu0 0
  %2884 = vmatpush1.bf16.msra.mxu0 %v2866
  %2885 = vmatprep.subr.bf16.mxu0 0
  %2886 = vmatpush1.bf16.msra.mxu0 %v2867
  %2887 = vmatprep.subr.bf16.mxu0 0
  %2888 = vmatpush1.bf16.msra.mxu0 %v2868
  %2889 = vmatprep.subr.bf16.mxu0 0
  %2890 = vmatpush1.bf16.msra.mxu0 %v2869
  %2891 = vmatprep.subr.bf16.mxu0 0
  %2892 = vmatpush1.bf16.msra.mxu0 %v2870
  %2893 = vmatprep.subr.bf16.mxu0 0
  %2894 = vmatpush1.bf16.msra.mxu0 %v2871
  %2895 = vmatprep.subr.bf16.mxu0 0
  %2896 = vmatpush1.bf16.msra.mxu0 %v2872
  %2897 = vmatprep.subr.bf16.mxu0 0
  %2898 = vmatpush1.bf16.msra.mxu0 0
  %2899 = vmatprep.subr.bf16.mxu0 0
  %2900 = vmatpush1.bf16.msra.mxu0 0
  %2901 = vmatprep.subr.bf16.mxu0 0
  %2902 = vmatpush1.bf16.msra.mxu0 0
  %2903 = vmatprep.subr.bf16.mxu0 0
  %2904 = vmatpush1.bf16.msra.mxu0 0
  %2905 = vmatprep.subr.bf16.mxu0 0
  %2906 = vmatpush1.bf16.msra.mxu0 0
  %2907 = vmatprep.subr.bf16.mxu0 0
  %2908 = vmatpush1.bf16.msra.mxu0 0
  %2909 = vmatprep.subr.bf16.mxu0 0
  %2910 = vmatpush1.bf16.msra.mxu0 0
  %2911 = vmatprep.subr.bf16.mxu0 0
  %2912 = vmatpush1.bf16.msra.mxu0 0
  %2913 = vmatprep.mubr.bf16.mxu0 0
  %2914 = vmatmul.mubr.bf16.gmra.mrb[0].mxu0 %v2807
  %v2915 = vpop.f32.mrb[0].mxu0
  %v2916 = vadd.f32 %v2831, %v2915
  %v2917 = vpop.f32.mrb[0].mxu0
  %v2918 = vpop.f32.mrb[0].mxu0
  %v2919 = vpop.f32.mrb[0].mxu0
  %2920 = vdwg.mxu0
  %v2921 = vld [vmem:[%s617] sm:$0xff]
  %v2922 = vmul.f32 %v2921, 0.8
  %v2923 = vadd.f32 %v2922, %v2916
  %v2924 = vld [vmem:[%s621] sm:$0xf]
  %v2925 = vmul.bf16 %v2924, 1056980736
  %v2926 = vunpack.c.l.bf16 %v2925
  %v2927 = vsub.f32 %v2923, %v2926
  %vm2928 = vcmp.gt.f32.partialorder %v2927, 0.5
  %v2929 = vsel %vm2928, 1, 0
  %v2930 = vcvt.s32.f32 %v2929
  %v2931 = vpack.c.bf16 %v2930, %v2930
  %2932 = vst [vmem:[%s617] sm:$0xff] %v2927
  %2933 = vst [vmem:[%s621] sm:$0xf] %v2931
  %v2934 = vld [vmem:[%s632] sm:$0xf]
  %v2935 = vld [vmem:[%s632 + $0x4] sm:$0xf]
  %v2936 = vld [vmem:[%s632 + $0x8] sm:$0xf]
  %v2937 = vld [vmem:[%s632 + $0xc] sm:$0xf]
  %v2938 = vld [vmem:[%s632 + $0x10] sm:$0xf]
  %v2939 = vld [vmem:[%s632 + $0x14] sm:$0xf]
  %v2940 = vld [vmem:[%s632 + $0x18] sm:$0xf]
  %v2941 = vld [vmem:[%s632 + $0x1c] sm:$0xf]
  %v2942 = vld [vmem:[%s632 + $0x20] sm:$0xf]
  %v2943 = vld [vmem:[%s632 + $0x24] sm:$0xf]
  %v2944 = vld [vmem:[%s632 + $0x28] sm:$0xf]
  %v2945 = vld [vmem:[%s632 + $0x2c] sm:$0xf]
  %v2946 = vld [vmem:[%s632 + $0x30] sm:$0xf]
  %v2947 = vld [vmem:[%s632 + $0x34] sm:$0xf]
  %v2948 = vld [vmem:[%s632 + $0x38] sm:$0xf]
  %v2949 = vld [vmem:[%s632 + $0x3c] sm:$0xf]
  %v2950 = vld [vmem:[%s649] sm:$0x1]
  %v2952 = vlaneseq
  %v2953 = vshrl.u32 %v2952, 7
  %v2954 = vsub.s32 0, %v2953
  %v2955 = vrot.slane %v2950, %v2954
  %v2973 = vunpack.c.l.b16 %v2934
  %v2974 = vunpack.c.l.b16 %v2935
  %v2975 = vunpack.c.l.b16 %v2936
  %v2976 = vunpack.c.l.b16 %v2937
  %v2977 = vunpack.c.l.b16 %v2938
  %v2978 = vunpack.c.l.b16 %v2939
  %v2979 = vunpack.c.l.b16 %v2940
  %v2980 = vunpack.c.l.b16 %v2941
  %v2981 = vunpack.c.l.b16 %v2942
  %v2982 = vunpack.c.l.b16 %v2943
  %v2983 = vunpack.c.l.b16 %v2944
  %v2984 = vunpack.c.l.b16 %v2945
  %v2985 = vunpack.c.l.b16 %v2946
  %v2986 = vunpack.c.l.b16 %v2947
  %v2987 = vunpack.c.l.b16 %v2948
  %v2988 = vunpack.c.l.b16 %v2949
  %v2989 = vpack.c.b16 %v2974, %v2973
  %v2990 = vpack.c.b16 %v2976, %v2975
  %v2991 = vpack.c.b16 %v2978, %v2977
  %v2992 = vpack.c.b16 %v2980, %v2979
  %v2993 = vpack.c.b16 %v2982, %v2981
  %v2994 = vpack.c.b16 %v2984, %v2983
  %v2995 = vpack.c.b16 %v2986, %v2985
  %v2996 = vpack.c.b16 %v2988, %v2987
  %3005 = vmatprep.subr.bf16.mxu0 0
  %3006 = vmatpush1.bf16.msra.mxu0 %v2989
  %3007 = vmatprep.subr.bf16.mxu0 0
  %3008 = vmatpush1.bf16.msra.mxu0 %v2990
  %3009 = vmatprep.subr.bf16.mxu0 0
  %3010 = vmatpush1.bf16.msra.mxu0 %v2991
  %3011 = vmatprep.subr.bf16.mxu0 0
  %3012 = vmatpush1.bf16.msra.mxu0 %v2992
  %3013 = vmatprep.subr.bf16.mxu0 0
  %3014 = vmatpush1.bf16.msra.mxu0 %v2993
  %3015 = vmatprep.subr.bf16.mxu0 0
  %3016 = vmatpush1.bf16.msra.mxu0 %v2994
  %3017 = vmatprep.subr.bf16.mxu0 0
  %3018 = vmatpush1.bf16.msra.mxu0 %v2995
  %3019 = vmatprep.subr.bf16.mxu0 0
  %3020 = vmatpush1.bf16.msra.mxu0 %v2996
  %3021 = vmatprep.subr.bf16.mxu0 0
  %3022 = vmatpush1.bf16.msra.mxu0 0
  %3023 = vmatprep.subr.bf16.mxu0 0
  %3024 = vmatpush1.bf16.msra.mxu0 0
  %3025 = vmatprep.subr.bf16.mxu0 0
  %3026 = vmatpush1.bf16.msra.mxu0 0
  %3027 = vmatprep.subr.bf16.mxu0 0
  %3028 = vmatpush1.bf16.msra.mxu0 0
  %3029 = vmatprep.subr.bf16.mxu0 0
  %3030 = vmatpush1.bf16.msra.mxu0 0
  %3031 = vmatprep.subr.bf16.mxu0 0
  %3032 = vmatpush1.bf16.msra.mxu0 0
  %3033 = vmatprep.subr.bf16.mxu0 0
  %3034 = vmatpush1.bf16.msra.mxu0 0
  %3035 = vmatprep.subr.bf16.mxu0 0
  %3036 = vmatpush1.bf16.msra.mxu0 0
  %3037 = vmatprep.mubr.bf16.mxu0 0
  %3038 = vmatmul.mubr.bf16.gmra.mrb[0].mxu0 %v2931
  %v3039 = vpop.f32.mrb[0].mxu0
  %v3040 = vadd.f32 %v2955, %v3039
  %v3041 = vpop.f32.mrb[0].mxu0
  %v3042 = vpop.f32.mrb[0].mxu0
  %v3043 = vpop.f32.mrb[0].mxu0
  %3044 = vdwg.mxu0
  %v3045 = vld [vmem:[%s745] sm:$0xff]
  %v3046 = vmul.f32 %v3045, 0.8
  %v3047 = vadd.f32 %v3046, %v3040
  %v3048 = vld [vmem:[%s749] sm:$0xf]
  %v3049 = vmul.bf16 %v3048, 1056980736
  %v3050 = vunpack.c.l.bf16 %v3049
  %v3051 = vsub.f32 %v3047, %v3050
  %vm3052 = vcmp.gt.f32.partialorder %v3051, 0.5
  %v3053 = vsel %vm3052, 1, 0
  %v3054 = vcvt.s32.f32 %v3053
  %v3055 = vpack.c.bf16 %v3054, %v3054
  %3056 = vst [vmem:[%s745] sm:$0xff] %v3051
  %3057 = vst [vmem:[%s749] sm:$0xf] %v3055
  %v3058 = vld [vmem:[%s760] sm:$0xf]
  %v3059 = vld [vmem:[%s760 + $0x4] sm:$0xf]
  %v3060 = vld [vmem:[%s760 + $0x8] sm:$0xf]
  %v3061 = vld [vmem:[%s760 + $0xc] sm:$0xf]
  %v3062 = vld [vmem:[%s760 + $0x10] sm:$0xf]
  %v3063 = vld [vmem:[%s760 + $0x14] sm:$0xf]
  %v3064 = vld [vmem:[%s760 + $0x18] sm:$0xf]
  %v3065 = vld [vmem:[%s760 + $0x1c] sm:$0xf]
  %v3066 = vld [vmem:[%s760 + $0x20] sm:$0xf]
  %v3067 = vld [vmem:[%s760 + $0x24] sm:$0xf]
  %v3068 = vld [vmem:[%s760 + $0x28] sm:$0xf]
  %v3069 = vld [vmem:[%s760 + $0x2c] sm:$0xf]
  %v3070 = vld [vmem:[%s760 + $0x30] sm:$0xf]
  %v3071 = vld [vmem:[%s760 + $0x34] sm:$0xf]
  %v3072 = vld [vmem:[%s760 + $0x38] sm:$0xf]
  %v3073 = vld [vmem:[%s760 + $0x3c] sm:$0xf]
  %v3074 = vld [vmem:[%s777] sm:$0x1]
  %v3076 = vlaneseq
  %v3077 = vshrl.u32 %v3076, 7
  %v3078 = vsub.s32 0, %v3077
  %v3079 = vrot.slane %v3074, %v3078
  %v3097 = vunpack.c.l.b16 %v3058
  %v3098 = vunpack.c.l.b16 %v3059
  %v3099 = vunpack.c.l.b16 %v3060
  %v3100 = vunpack.c.l.b16 %v3061
  %v3101 = vunpack.c.l.b16 %v3062
  %v3102 = vunpack.c.l.b16 %v3063
  %v3103 = vunpack.c.l.b16 %v3064
  %v3104 = vunpack.c.l.b16 %v3065
  %v3105 = vunpack.c.l.b16 %v3066
  %v3106 = vunpack.c.l.b16 %v3067
  %v3107 = vunpack.c.l.b16 %v3068
  %v3108 = vunpack.c.l.b16 %v3069
  %v3109 = vunpack.c.l.b16 %v3070
  %v3110 = vunpack.c.l.b16 %v3071
  %v3111 = vunpack.c.l.b16 %v3072
  %v3112 = vunpack.c.l.b16 %v3073
  %v3113 = vpack.c.b16 %v3098, %v3097
  %v3114 = vpack.c.b16 %v3100, %v3099
  %v3115 = vpack.c.b16 %v3102, %v3101
  %v3116 = vpack.c.b16 %v3104, %v3103
  %v3117 = vpack.c.b16 %v3106, %v3105
  %v3118 = vpack.c.b16 %v3108, %v3107
  %v3119 = vpack.c.b16 %v3110, %v3109
  %v3120 = vpack.c.b16 %v3112, %v3111
  %3129 = vmatprep.subr.bf16.mxu0 0
  %3130 = vmatpush1.bf16.msra.mxu0 %v3113
  %3131 = vmatprep.subr.bf16.mxu0 0
  %3132 = vmatpush1.bf16.msra.mxu0 %v3114
  %3133 = vmatprep.subr.bf16.mxu0 0
  %3134 = vmatpush1.bf16.msra.mxu0 %v3115
  %3135 = vmatprep.subr.bf16.mxu0 0
  %3136 = vmatpush1.bf16.msra.mxu0 %v3116
  %3137 = vmatprep.subr.bf16.mxu0 0
  %3138 = vmatpush1.bf16.msra.mxu0 %v3117
  %3139 = vmatprep.subr.bf16.mxu0 0
  %3140 = vmatpush1.bf16.msra.mxu0 %v3118
  %3141 = vmatprep.subr.bf16.mxu0 0
  %3142 = vmatpush1.bf16.msra.mxu0 %v3119
  %3143 = vmatprep.subr.bf16.mxu0 0
  %3144 = vmatpush1.bf16.msra.mxu0 %v3120
  %3145 = vmatprep.subr.bf16.mxu0 0
  %3146 = vmatpush1.bf16.msra.mxu0 0
  %3147 = vmatprep.subr.bf16.mxu0 0
  %3148 = vmatpush1.bf16.msra.mxu0 0
  %3149 = vmatprep.subr.bf16.mxu0 0
  %3150 = vmatpush1.bf16.msra.mxu0 0
  %3151 = vmatprep.subr.bf16.mxu0 0
  %3152 = vmatpush1.bf16.msra.mxu0 0
  %3153 = vmatprep.subr.bf16.mxu0 0
  %3154 = vmatpush1.bf16.msra.mxu0 0
  %3155 = vmatprep.subr.bf16.mxu0 0
  %3156 = vmatpush1.bf16.msra.mxu0 0
  %3157 = vmatprep.subr.bf16.mxu0 0
  %3158 = vmatpush1.bf16.msra.mxu0 0
  %3159 = vmatprep.subr.bf16.mxu0 0
  %3160 = vmatpush1.bf16.msra.mxu0 0
  %3161 = vmatprep.mubr.bf16.mxu0 0
  %3162 = vmatmul.mubr.bf16.gmra.mrb[0].mxu0 %v3055
  %v3163 = vpop.f32.mrb[0].mxu0
  %v3164 = vadd.f32 %v3079, %v3163
  %v3165 = vpop.f32.mrb[0].mxu0
  %v3166 = vpop.f32.mrb[0].mxu0
  %v3167 = vpop.f32.mrb[0].mxu0
  %3168 = vdwg.mxu0
  %v3169 = vld [vmem:[%s873] sm:$0xff]
  %v3170 = vmul.f32 %v3169, 0.8
  %v3171 = vadd.f32 %v3170, %v3164
  %v3172 = vld [vmem:[%s877] sm:$0xf]
  %v3173 = vmul.bf16 %v3172, 1056980736
  %v3174 = vunpack.c.l.bf16 %v3173
  %v3175 = vsub.f32 %v3171, %v3174
  %vm3176 = vcmp.gt.f32.partialorder %v3175, 0.5
  %v3177 = vsel %vm3176, 1, 0
  %v3178 = vcvt.s32.f32 %v3177
  %v3179 = vpack.c.bf16 %v3178, %v3178
  %3180 = vst [vmem:[%s873] sm:$0xff] %v3175
  %3181 = vst [vmem:[%s877] sm:$0xf] %v3179
  %v3182 = vld [vmem:[%s888] sm:$0xf]
  %v3183 = vld [vmem:[%s888 + $0x4] sm:$0xf]
  %v3184 = vld [vmem:[%s888 + $0x8] sm:$0xf]
  %v3185 = vld [vmem:[%s888 + $0xc] sm:$0xf]
  %v3186 = vld [vmem:[%s888 + $0x10] sm:$0xf]
  %v3187 = vld [vmem:[%s888 + $0x14] sm:$0xf]
  %v3188 = vld [vmem:[%s888 + $0x18] sm:$0xf]
  %v3189 = vld [vmem:[%s888 + $0x1c] sm:$0xf]
  %v3190 = vld [vmem:[%s888 + $0x20] sm:$0xf]
  %v3191 = vld [vmem:[%s888 + $0x24] sm:$0xf]
  %v3192 = vld [vmem:[%s888 + $0x28] sm:$0xf]
  %v3193 = vld [vmem:[%s888 + $0x2c] sm:$0xf]
  %v3194 = vld [vmem:[%s888 + $0x30] sm:$0xf]
  %v3195 = vld [vmem:[%s888 + $0x34] sm:$0xf]
  %v3196 = vld [vmem:[%s888 + $0x38] sm:$0xf]
  %v3197 = vld [vmem:[%s888 + $0x3c] sm:$0xf]
  %v3198 = vld [vmem:[%s905] sm:$0x1]
  %v3200 = vlaneseq
  %v3201 = vshrl.u32 %v3200, 7
  %v3202 = vsub.s32 0, %v3201
  %v3203 = vrot.slane %v3198, %v3202
  %v3221 = vunpack.c.l.b16 %v3182
  %v3222 = vunpack.c.l.b16 %v3183
  %v3223 = vunpack.c.l.b16 %v3184
  %v3224 = vunpack.c.l.b16 %v3185
  %v3225 = vunpack.c.l.b16 %v3186
  %v3226 = vunpack.c.l.b16 %v3187
  %v3227 = vunpack.c.l.b16 %v3188
  %v3228 = vunpack.c.l.b16 %v3189
  %v3229 = vunpack.c.l.b16 %v3190
  %v3230 = vunpack.c.l.b16 %v3191
  %v3231 = vunpack.c.l.b16 %v3192
  %v3232 = vunpack.c.l.b16 %v3193
  %v3233 = vunpack.c.l.b16 %v3194
  %v3234 = vunpack.c.l.b16 %v3195
  %v3235 = vunpack.c.l.b16 %v3196
  %v3236 = vunpack.c.l.b16 %v3197
  %v3237 = vpack.c.b16 %v3222, %v3221
  %v3238 = vpack.c.b16 %v3224, %v3223
  %v3239 = vpack.c.b16 %v3226, %v3225
  %v3240 = vpack.c.b16 %v3228, %v3227
  %v3241 = vpack.c.b16 %v3230, %v3229
  %v3242 = vpack.c.b16 %v3232, %v3231
  %v3243 = vpack.c.b16 %v3234, %v3233
  %v3244 = vpack.c.b16 %v3236, %v3235
  %3253 = vmatprep.subr.bf16.mxu0 0
  %3254 = vmatpush1.bf16.msra.mxu0 %v3237
  %3255 = vmatprep.subr.bf16.mxu0 0
  %3256 = vmatpush1.bf16.msra.mxu0 %v3238
  %3257 = vmatprep.subr.bf16.mxu0 0
  %3258 = vmatpush1.bf16.msra.mxu0 %v3239
  %3259 = vmatprep.subr.bf16.mxu0 0
  %3260 = vmatpush1.bf16.msra.mxu0 %v3240
  %3261 = vmatprep.subr.bf16.mxu0 0
  %3262 = vmatpush1.bf16.msra.mxu0 %v3241
  %3263 = vmatprep.subr.bf16.mxu0 0
  %3264 = vmatpush1.bf16.msra.mxu0 %v3242
  %3265 = vmatprep.subr.bf16.mxu0 0
  %3266 = vmatpush1.bf16.msra.mxu0 %v3243
  %3267 = vmatprep.subr.bf16.mxu0 0
  %3268 = vmatpush1.bf16.msra.mxu0 %v3244
  %3269 = vmatprep.subr.bf16.mxu0 0
  %3270 = vmatpush1.bf16.msra.mxu0 0
  %3271 = vmatprep.subr.bf16.mxu0 0
  %3272 = vmatpush1.bf16.msra.mxu0 0
  %3273 = vmatprep.subr.bf16.mxu0 0
  %3274 = vmatpush1.bf16.msra.mxu0 0
  %3275 = vmatprep.subr.bf16.mxu0 0
  %3276 = vmatpush1.bf16.msra.mxu0 0
  %3277 = vmatprep.subr.bf16.mxu0 0
  %3278 = vmatpush1.bf16.msra.mxu0 0
  %3279 = vmatprep.subr.bf16.mxu0 0
  %3280 = vmatpush1.bf16.msra.mxu0 0
  %3281 = vmatprep.subr.bf16.mxu0 0
  %3282 = vmatpush1.bf16.msra.mxu0 0
  %3283 = vmatprep.subr.bf16.mxu0 0
  %3284 = vmatpush1.bf16.msra.mxu0 0
  %3285 = vmatprep.mubr.bf16.mxu0 0
  %3286 = vmatmul.mubr.bf16.gmra.mrb[0].mxu0 %v3179
  %v3287 = vpop.f32.mrb[0].mxu0
  %v3288 = vadd.f32 %v3203, %v3287
  %v3289 = vpop.f32.mrb[0].mxu0
  %v3290 = vpop.f32.mrb[0].mxu0
  %v3291 = vpop.f32.mrb[0].mxu0
  %3292 = vdwg.mxu0
  %v3293 = vld [vmem:[%s1001] sm:$0xff]
  %v3294 = vmul.f32 %v3293, 0.8
  %v3295 = vadd.f32 %v3294, %v3288
  %v3296 = vld [vmem:[%s1005] sm:$0xf]
  %v3297 = vmul.bf16 %v3296, 1056980736
  %v3298 = vunpack.c.l.bf16 %v3297
  %v3299 = vsub.f32 %v3295, %v3298
  %vm3300 = vcmp.gt.f32.partialorder %v3299, 0.5
  %v3301 = vsel %vm3300, 1, 0
  %v3302 = vcvt.s32.f32 %v3301
  %v3303 = vpack.c.bf16 %v3302, %v3302
  %3304 = vst [vmem:[%s1001] sm:$0xff] %v3299
  %3305 = vst [vmem:[%s1005] sm:$0xf] %v3303
  %v3306 = vld [vmem:[%s1016] sm:$0xf]
  %v3307 = vld [vmem:[%s1016 + $0x4] sm:$0xf]
  %v3308 = vld [vmem:[%s1016 + $0x8] sm:$0xf]
  %v3309 = vld [vmem:[%s1016 + $0xc] sm:$0xf]
  %v3310 = vld [vmem:[%s1016 + $0x10] sm:$0xf]
  %v3311 = vld [vmem:[%s1016 + $0x14] sm:$0xf]
  %v3312 = vld [vmem:[%s1016 + $0x18] sm:$0xf]
  %v3313 = vld [vmem:[%s1016 + $0x1c] sm:$0xf]
  %v3314 = vld [vmem:[%s1016 + $0x20] sm:$0xf]
  %v3315 = vld [vmem:[%s1016 + $0x24] sm:$0xf]
  %v3316 = vld [vmem:[%s1016 + $0x28] sm:$0xf]
  %v3317 = vld [vmem:[%s1016 + $0x2c] sm:$0xf]
  %v3318 = vld [vmem:[%s1016 + $0x30] sm:$0xf]
  %v3319 = vld [vmem:[%s1016 + $0x34] sm:$0xf]
  %v3320 = vld [vmem:[%s1016 + $0x38] sm:$0xf]
  %v3321 = vld [vmem:[%s1016 + $0x3c] sm:$0xf]
  %v3322 = vld [vmem:[%s1033] sm:$0x1]
  %v3324 = vlaneseq
  %v3325 = vshrl.u32 %v3324, 7
  %v3326 = vsub.s32 0, %v3325
  %v3327 = vrot.slane %v3322, %v3326
  %v3345 = vunpack.c.l.b16 %v3306
  %v3346 = vunpack.c.l.b16 %v3307
  %v3347 = vunpack.c.l.b16 %v3308
  %v3348 = vunpack.c.l.b16 %v3309
  %v3349 = vunpack.c.l.b16 %v3310
  %v3350 = vunpack.c.l.b16 %v3311
  %v3351 = vunpack.c.l.b16 %v3312
  %v3352 = vunpack.c.l.b16 %v3313
  %v3353 = vunpack.c.l.b16 %v3314
  %v3354 = vunpack.c.l.b16 %v3315
  %v3355 = vunpack.c.l.b16 %v3316
  %v3356 = vunpack.c.l.b16 %v3317
  %v3357 = vunpack.c.l.b16 %v3318
  %v3358 = vunpack.c.l.b16 %v3319
  %v3359 = vunpack.c.l.b16 %v3320
  %v3360 = vunpack.c.l.b16 %v3321
  %v3361 = vpack.c.b16 %v3346, %v3345
  %v3362 = vpack.c.b16 %v3348, %v3347
  %v3363 = vpack.c.b16 %v3350, %v3349
  %v3364 = vpack.c.b16 %v3352, %v3351
  %v3365 = vpack.c.b16 %v3354, %v3353
  %v3366 = vpack.c.b16 %v3356, %v3355
  %v3367 = vpack.c.b16 %v3358, %v3357
  %v3368 = vpack.c.b16 %v3360, %v3359
  %3377 = vmatprep.subr.bf16.mxu0 0
  %3378 = vmatpush1.bf16.msra.mxu0 %v3361
  %3379 = vmatprep.subr.bf16.mxu0 0
  %3380 = vmatpush1.bf16.msra.mxu0 %v3362
  %3381 = vmatprep.subr.bf16.mxu0 0
  %3382 = vmatpush1.bf16.msra.mxu0 %v3363
  %3383 = vmatprep.subr.bf16.mxu0 0
  %3384 = vmatpush1.bf16.msra.mxu0 %v3364
  %3385 = vmatprep.subr.bf16.mxu0 0
  %3386 = vmatpush1.bf16.msra.mxu0 %v3365
  %3387 = vmatprep.subr.bf16.mxu0 0
  %3388 = vmatpush1.bf16.msra.mxu0 %v3366
  %3389 = vmatprep.subr.bf16.mxu0 0
  %3390 = vmatpush1.bf16.msra.mxu0 %v3367
  %3391 = vmatprep.subr.bf16.mxu0 0
  %3392 = vmatpush1.bf16.msra.mxu0 %v3368
  %3393 = vmatprep.subr.bf16.mxu0 0
  %3394 = vmatpush1.bf16.msra.mxu0 0
  %3395 = vmatprep.subr.bf16.mxu0 0
  %3396 = vmatpush1.bf16.msra.mxu0 0
  %3397 = vmatprep.subr.bf16.mxu0 0
  %3398 = vmatpush1.bf16.msra.mxu0 0
  %3399 = vmatprep.subr.bf16.mxu0 0
  %3400 = vmatpush1.bf16.msra.mxu0 0
  %3401 = vmatprep.subr.bf16.mxu0 0
  %3402 = vmatpush1.bf16.msra.mxu0 0
  %3403 = vmatprep.subr.bf16.mxu0 0
  %3404 = vmatpush1.bf16.msra.mxu0 0
  %3405 = vmatprep.subr.bf16.mxu0 0
  %3406 = vmatpush1.bf16.msra.mxu0 0
  %3407 = vmatprep.subr.bf16.mxu0 0
  %3408 = vmatpush1.bf16.msra.mxu0 0
  %3409 = vmatprep.mubr.bf16.mxu0 0
  %3410 = vmatmul.mubr.bf16.gmra.mrb[0].mxu0 %v3303
  %v3411 = vpop.f32.mrb[0].mxu0
  %v3412 = vadd.f32 %v3327, %v3411
  %v3413 = vpop.f32.mrb[0].mxu0
  %v3414 = vpop.f32.mrb[0].mxu0
  %v3415 = vpop.f32.mrb[0].mxu0
  %3416 = vdwg.mxu0
  %v3417 = vld [vmem:[%s1129] sm:$0xff]
  %v3418 = vmul.f32 %v3417, 0.8
  %v3419 = vadd.f32 %v3418, %v3412
  %v3420 = vld [vmem:[%s1133] sm:$0xf]
  %v3421 = vmul.bf16 %v3420, 1056980736
  %v3422 = vunpack.c.l.bf16 %v3421
  %v3423 = vsub.f32 %v3419, %v3422
  %vm3424 = vcmp.gt.f32.partialorder %v3423, 0.5
  %v3425 = vsel %vm3424, 1, 0
  %v3426 = vcvt.s32.f32 %v3425
  %v3427 = vpack.c.bf16 %v3426, %v3426
  %3428 = vst [vmem:[%s1129] sm:$0xff] %v3423
  %3429 = vst [vmem:[%s1133] sm:$0xf] %v3427
  %v3430 = vld [vmem:[%s1144] sm:$0xf]
  %v3431 = vld [vmem:[%s1144 + $0x4] sm:$0xf]
  %v3432 = vld [vmem:[%s1144 + $0x8] sm:$0xf]
  %v3433 = vld [vmem:[%s1144 + $0xc] sm:$0xf]
  %v3434 = vld [vmem:[%s1144 + $0x10] sm:$0xf]
  %v3435 = vld [vmem:[%s1144 + $0x14] sm:$0xf]
  %v3436 = vld [vmem:[%s1144 + $0x18] sm:$0xf]
  %v3437 = vld [vmem:[%s1144 + $0x1c] sm:$0xf]
  %v3438 = vld [vmem:[%s1144 + $0x20] sm:$0xf]
  %v3439 = vld [vmem:[%s1144 + $0x24] sm:$0xf]
  %v3440 = vld [vmem:[%s1144 + $0x28] sm:$0xf]
  %v3441 = vld [vmem:[%s1144 + $0x2c] sm:$0xf]
  %v3442 = vld [vmem:[%s1144 + $0x30] sm:$0xf]
  %v3443 = vld [vmem:[%s1144 + $0x34] sm:$0xf]
  %v3444 = vld [vmem:[%s1144 + $0x38] sm:$0xf]
  %v3445 = vld [vmem:[%s1144 + $0x3c] sm:$0xf]
  %v3446 = vld [vmem:[%s1161] sm:$0x1]
  %v3448 = vlaneseq
  %v3449 = vshrl.u32 %v3448, 7
  %v3450 = vsub.s32 0, %v3449
  %v3451 = vrot.slane %v3446, %v3450
  %v3469 = vunpack.c.l.b16 %v3430
  %v3470 = vunpack.c.l.b16 %v3431
  %v3471 = vunpack.c.l.b16 %v3432
  %v3472 = vunpack.c.l.b16 %v3433
  %v3473 = vunpack.c.l.b16 %v3434
  %v3474 = vunpack.c.l.b16 %v3435
  %v3475 = vunpack.c.l.b16 %v3436
  %v3476 = vunpack.c.l.b16 %v3437
  %v3477 = vunpack.c.l.b16 %v3438
  %v3478 = vunpack.c.l.b16 %v3439
  %v3479 = vunpack.c.l.b16 %v3440
  %v3480 = vunpack.c.l.b16 %v3441
  %v3481 = vunpack.c.l.b16 %v3442
  %v3482 = vunpack.c.l.b16 %v3443
  %v3483 = vunpack.c.l.b16 %v3444
  %v3484 = vunpack.c.l.b16 %v3445
  %v3485 = vpack.c.b16 %v3470, %v3469
  %v3486 = vpack.c.b16 %v3472, %v3471
  %v3487 = vpack.c.b16 %v3474, %v3473
  %v3488 = vpack.c.b16 %v3476, %v3475
  %v3489 = vpack.c.b16 %v3478, %v3477
  %v3490 = vpack.c.b16 %v3480, %v3479
  %v3491 = vpack.c.b16 %v3482, %v3481
  %v3492 = vpack.c.b16 %v3484, %v3483
  %3501 = vmatprep.subr.bf16.mxu0 0
  %3502 = vmatpush1.bf16.msra.mxu0 %v3485
  %3503 = vmatprep.subr.bf16.mxu0 0
  %3504 = vmatpush1.bf16.msra.mxu0 %v3486
  %3505 = vmatprep.subr.bf16.mxu0 0
  %3506 = vmatpush1.bf16.msra.mxu0 %v3487
  %3507 = vmatprep.subr.bf16.mxu0 0
  %3508 = vmatpush1.bf16.msra.mxu0 %v3488
  %3509 = vmatprep.subr.bf16.mxu0 0
  %3510 = vmatpush1.bf16.msra.mxu0 %v3489
  %3511 = vmatprep.subr.bf16.mxu0 0
  %3512 = vmatpush1.bf16.msra.mxu0 %v3490
  %3513 = vmatprep.subr.bf16.mxu0 0
  %3514 = vmatpush1.bf16.msra.mxu0 %v3491
  %3515 = vmatprep.subr.bf16.mxu0 0
  %3516 = vmatpush1.bf16.msra.mxu0 %v3492
  %3517 = vmatprep.subr.bf16.mxu0 0
  %3518 = vmatpush1.bf16.msra.mxu0 0
  %3519 = vmatprep.subr.bf16.mxu0 0
  %3520 = vmatpush1.bf16.msra.mxu0 0
  %3521 = vmatprep.subr.bf16.mxu0 0
  %3522 = vmatpush1.bf16.msra.mxu0 0
  %3523 = vmatprep.subr.bf16.mxu0 0
  %3524 = vmatpush1.bf16.msra.mxu0 0
  %3525 = vmatprep.subr.bf16.mxu0 0
  %3526 = vmatpush1.bf16.msra.mxu0 0
  %3527 = vmatprep.subr.bf16.mxu0 0
  %3528 = vmatpush1.bf16.msra.mxu0 0
  %3529 = vmatprep.subr.bf16.mxu0 0
  %3530 = vmatpush1.bf16.msra.mxu0 0
  %3531 = vmatprep.subr.bf16.mxu0 0
  %3532 = vmatpush1.bf16.msra.mxu0 0
  %3533 = vmatprep.mubr.bf16.mxu0 0
  %3534 = vmatmul.mubr.bf16.gmra.mrb[0].mxu0 %v3427
  %v3535 = vpop.f32.mrb[0].mxu0
  %v3536 = vadd.f32 %v3451, %v3535
  %v3537 = vpop.f32.mrb[0].mxu0
  %v3538 = vpop.f32.mrb[0].mxu0
  %v3539 = vpop.f32.mrb[0].mxu0
  %3540 = vdwg.mxu0
  %v3541 = vld [vmem:[%s1257] sm:$0xff]
  %v3542 = vmul.f32 %v3541, 0.8
  %v3543 = vadd.f32 %v3542, %v3536
  %v3544 = vld [vmem:[%s1261] sm:$0xf]
  %v3545 = vmul.bf16 %v3544, 1056980736
  %v3546 = vunpack.c.l.bf16 %v3545
  %v3547 = vsub.f32 %v3543, %v3546
  %vm3548 = vcmp.gt.f32.partialorder %v3547, 0.5
  %v3549 = vsel %vm3548, 1, 0
  %v3550 = vcvt.s32.f32 %v3549
  %v3551 = vpack.c.bf16 %v3550, %v3550
  %3552 = vst [vmem:[%s1257] sm:$0xff] %v3547
  %3553 = vst [vmem:[%s1261] sm:$0xf] %v3551
  %v3554 = vld [vmem:[%s1272] sm:$0xf]
  %v3555 = vld [vmem:[%s1272 + $0x4] sm:$0xf]
  %v3556 = vld [vmem:[%s1272 + $0x8] sm:$0xf]
  %v3557 = vld [vmem:[%s1272 + $0xc] sm:$0xf]
  %v3558 = vld [vmem:[%s1272 + $0x10] sm:$0xf]
  %v3559 = vld [vmem:[%s1272 + $0x14] sm:$0xf]
  %v3560 = vld [vmem:[%s1272 + $0x18] sm:$0xf]
  %v3561 = vld [vmem:[%s1272 + $0x1c] sm:$0xf]
  %v3562 = vld [vmem:[%s1272 + $0x20] sm:$0xf]
  %v3563 = vld [vmem:[%s1272 + $0x24] sm:$0xf]
  %v3564 = vld [vmem:[%s1272 + $0x28] sm:$0xf]
  %v3565 = vld [vmem:[%s1272 + $0x2c] sm:$0xf]
  %v3566 = vld [vmem:[%s1272 + $0x30] sm:$0xf]
  %v3567 = vld [vmem:[%s1272 + $0x34] sm:$0xf]
  %v3568 = vld [vmem:[%s1272 + $0x38] sm:$0xf]
  %v3569 = vld [vmem:[%s1272 + $0x3c] sm:$0xf]
  %v3570 = vld [vmem:[%s1289] sm:$0x1]
  %v3572 = vlaneseq
  %v3573 = vshrl.u32 %v3572, 7
  %v3574 = vsub.s32 0, %v3573
  %v3575 = vrot.slane %v3570, %v3574
  %v3593 = vunpack.c.l.b16 %v3554
  %v3594 = vunpack.c.l.b16 %v3555
  %v3595 = vunpack.c.l.b16 %v3556
  %v3596 = vunpack.c.l.b16 %v3557
  %v3597 = vunpack.c.l.b16 %v3558
  %v3598 = vunpack.c.l.b16 %v3559
  %v3599 = vunpack.c.l.b16 %v3560
  %v3600 = vunpack.c.l.b16 %v3561
  %v3601 = vunpack.c.l.b16 %v3562
  %v3602 = vunpack.c.l.b16 %v3563
  %v3603 = vunpack.c.l.b16 %v3564
  %v3604 = vunpack.c.l.b16 %v3565
  %v3605 = vunpack.c.l.b16 %v3566
  %v3606 = vunpack.c.l.b16 %v3567
  %v3607 = vunpack.c.l.b16 %v3568
  %v3608 = vunpack.c.l.b16 %v3569
  %v3609 = vpack.c.b16 %v3594, %v3593
  %v3610 = vpack.c.b16 %v3596, %v3595
  %v3611 = vpack.c.b16 %v3598, %v3597
  %v3612 = vpack.c.b16 %v3600, %v3599
  %v3613 = vpack.c.b16 %v3602, %v3601
  %v3614 = vpack.c.b16 %v3604, %v3603
  %v3615 = vpack.c.b16 %v3606, %v3605
  %v3616 = vpack.c.b16 %v3608, %v3607
  %3625 = vmatprep.subr.bf16.mxu0 0
  %3626 = vmatpush1.bf16.msra.mxu0 %v3609
  %3627 = vmatprep.subr.bf16.mxu0 0
  %3628 = vmatpush1.bf16.msra.mxu0 %v3610
  %3629 = vmatprep.subr.bf16.mxu0 0
  %3630 = vmatpush1.bf16.msra.mxu0 %v3611
  %3631 = vmatprep.subr.bf16.mxu0 0
  %3632 = vmatpush1.bf16.msra.mxu0 %v3612
  %3633 = vmatprep.subr.bf16.mxu0 0
  %3634 = vmatpush1.bf16.msra.mxu0 %v3613
  %3635 = vmatprep.subr.bf16.mxu0 0
  %3636 = vmatpush1.bf16.msra.mxu0 %v3614
  %3637 = vmatprep.subr.bf16.mxu0 0
  %3638 = vmatpush1.bf16.msra.mxu0 %v3615
  %3639 = vmatprep.subr.bf16.mxu0 0
  %3640 = vmatpush1.bf16.msra.mxu0 %v3616
  %3641 = vmatprep.subr.bf16.mxu0 0
  %3642 = vmatpush1.bf16.msra.mxu0 0
  %3643 = vmatprep.subr.bf16.mxu0 0
  %3644 = vmatpush1.bf16.msra.mxu0 0
  %3645 = vmatprep.subr.bf16.mxu0 0
  %3646 = vmatpush1.bf16.msra.mxu0 0
  %3647 = vmatprep.subr.bf16.mxu0 0
  %3648 = vmatpush1.bf16.msra.mxu0 0
  %3649 = vmatprep.subr.bf16.mxu0 0
  %3650 = vmatpush1.bf16.msra.mxu0 0
  %3651 = vmatprep.subr.bf16.mxu0 0
  %3652 = vmatpush1.bf16.msra.mxu0 0
  %3653 = vmatprep.subr.bf16.mxu0 0
  %3654 = vmatpush1.bf16.msra.mxu0 0
  %3655 = vmatprep.subr.bf16.mxu0 0
  %3656 = vmatpush1.bf16.msra.mxu0 0
  %3657 = vmatprep.mubr.bf16.mxu0 0
  %3658 = vmatmul.mubr.bf16.gmra.mrb[0].mxu0 %v3551
  %v3659 = vpop.f32.mrb[0].mxu0
  %v3660 = vadd.f32 %v3575, %v3659
  %v3661 = vpop.f32.mrb[0].mxu0
  %v3662 = vpop.f32.mrb[0].mxu0
  %v3663 = vpop.f32.mrb[0].mxu0
  %3664 = vdwg.mxu0
  %v3665 = vld [vmem:[%s1385] sm:$0xff]
  %v3666 = vmul.f32 %v3665, 0.8
  %v3667 = vadd.f32 %v3666, %v3660
  %v3668 = vld [vmem:[%s1389] sm:$0xf]
  %v3669 = vmul.bf16 %v3668, 1056980736
  %v3670 = vunpack.c.l.bf16 %v3669
  %v3671 = vsub.f32 %v3667, %v3670
  %vm3672 = vcmp.gt.f32.partialorder %v3671, 0.5
  %v3673 = vsel %vm3672, 1, 0
  %v3674 = vcvt.s32.f32 %v3673
  %v3675 = vpack.c.bf16 %v3674, %v3674
  %3676 = vst [vmem:[%s1385] sm:$0xff] %v3671
  %3677 = vst [vmem:[%s1389] sm:$0xf] %v3675
  %v3678 = vld [vmem:[%s1400] sm:$0xf]
  %v3679 = vld [vmem:[%s1400 + $0x4] sm:$0xf]
  %v3680 = vld [vmem:[%s1400 + $0x8] sm:$0xf]
  %v3681 = vld [vmem:[%s1400 + $0xc] sm:$0xf]
  %v3682 = vld [vmem:[%s1400 + $0x10] sm:$0xf]
  %v3683 = vld [vmem:[%s1400 + $0x14] sm:$0xf]
  %v3684 = vld [vmem:[%s1400 + $0x18] sm:$0xf]
  %v3685 = vld [vmem:[%s1400 + $0x1c] sm:$0xf]
  %v3686 = vld [vmem:[%s1400 + $0x20] sm:$0xf]
  %v3687 = vld [vmem:[%s1400 + $0x24] sm:$0xf]
  %v3688 = vld [vmem:[%s1400 + $0x28] sm:$0xf]
  %v3689 = vld [vmem:[%s1400 + $0x2c] sm:$0xf]
  %v3690 = vld [vmem:[%s1400 + $0x30] sm:$0xf]
  %v3691 = vld [vmem:[%s1400 + $0x34] sm:$0xf]
  %v3692 = vld [vmem:[%s1400 + $0x38] sm:$0xf]
  %v3693 = vld [vmem:[%s1400 + $0x3c] sm:$0xf]
  %v3694 = vld [vmem:[%s1417] sm:$0x1]
  %v3696 = vlaneseq
  %v3697 = vshrl.u32 %v3696, 7
  %v3698 = vsub.s32 0, %v3697
  %v3699 = vrot.slane %v3694, %v3698
  %v3717 = vunpack.c.l.b16 %v3678
  %v3718 = vunpack.c.l.b16 %v3679
  %v3719 = vunpack.c.l.b16 %v3680
  %v3720 = vunpack.c.l.b16 %v3681
  %v3721 = vunpack.c.l.b16 %v3682
  %v3722 = vunpack.c.l.b16 %v3683
  %v3723 = vunpack.c.l.b16 %v3684
  %v3724 = vunpack.c.l.b16 %v3685
  %v3725 = vunpack.c.l.b16 %v3686
  %v3726 = vunpack.c.l.b16 %v3687
  %v3727 = vunpack.c.l.b16 %v3688
  %v3728 = vunpack.c.l.b16 %v3689
  %v3729 = vunpack.c.l.b16 %v3690
  %v3730 = vunpack.c.l.b16 %v3691
  %v3731 = vunpack.c.l.b16 %v3692
  %v3732 = vunpack.c.l.b16 %v3693
  %v3733 = vpack.c.b16 %v3718, %v3717
  %v3734 = vpack.c.b16 %v3720, %v3719
  %v3735 = vpack.c.b16 %v3722, %v3721
  %v3736 = vpack.c.b16 %v3724, %v3723
  %v3737 = vpack.c.b16 %v3726, %v3725
  %v3738 = vpack.c.b16 %v3728, %v3727
  %v3739 = vpack.c.b16 %v3730, %v3729
  %v3740 = vpack.c.b16 %v3732, %v3731
  %3749 = vmatprep.subr.bf16.mxu0 0
  %3750 = vmatpush1.bf16.msra.mxu0 %v3733
  %3751 = vmatprep.subr.bf16.mxu0 0
  %3752 = vmatpush1.bf16.msra.mxu0 %v3734
  %3753 = vmatprep.subr.bf16.mxu0 0
  %3754 = vmatpush1.bf16.msra.mxu0 %v3735
  %3755 = vmatprep.subr.bf16.mxu0 0
  %3756 = vmatpush1.bf16.msra.mxu0 %v3736
  %3757 = vmatprep.subr.bf16.mxu0 0
  %3758 = vmatpush1.bf16.msra.mxu0 %v3737
  %3759 = vmatprep.subr.bf16.mxu0 0
  %3760 = vmatpush1.bf16.msra.mxu0 %v3738
  %3761 = vmatprep.subr.bf16.mxu0 0
  %3762 = vmatpush1.bf16.msra.mxu0 %v3739
  %3763 = vmatprep.subr.bf16.mxu0 0
  %3764 = vmatpush1.bf16.msra.mxu0 %v3740
  %3765 = vmatprep.subr.bf16.mxu0 0
  %3766 = vmatpush1.bf16.msra.mxu0 0
  %3767 = vmatprep.subr.bf16.mxu0 0
  %3768 = vmatpush1.bf16.msra.mxu0 0
  %3769 = vmatprep.subr.bf16.mxu0 0
  %3770 = vmatpush1.bf16.msra.mxu0 0
  %3771 = vmatprep.subr.bf16.mxu0 0
  %3772 = vmatpush1.bf16.msra.mxu0 0
  %3773 = vmatprep.subr.bf16.mxu0 0
  %3774 = vmatpush1.bf16.msra.mxu0 0
  %3775 = vmatprep.subr.bf16.mxu0 0
  %3776 = vmatpush1.bf16.msra.mxu0 0
  %3777 = vmatprep.subr.bf16.mxu0 0
  %3778 = vmatpush1.bf16.msra.mxu0 0
  %3779 = vmatprep.subr.bf16.mxu0 0
  %3780 = vmatpush1.bf16.msra.mxu0 0
  %3781 = vmatprep.mubr.bf16.mxu0 0
  %3782 = vmatmul.mubr.bf16.gmra.mrb[0].mxu0 %v3675
  %v3783 = vpop.f32.mrb[0].mxu0
  %v3784 = vadd.f32 %v3699, %v3783
  %v3785 = vpop.f32.mrb[0].mxu0
  %v3786 = vpop.f32.mrb[0].mxu0
  %v3787 = vpop.f32.mrb[0].mxu0
  %3788 = vdwg.mxu0
  %v3789 = vld [vmem:[%s1513] sm:$0xff]
  %v3790 = vmul.f32 %v3789, 0.8
  %v3791 = vadd.f32 %v3790, %v3784
  %v3792 = vld [vmem:[%s1517] sm:$0xf]
  %v3793 = vmul.bf16 %v3792, 1056980736
  %v3794 = vunpack.c.l.bf16 %v3793
  %v3795 = vsub.f32 %v3791, %v3794
  %vm3796 = vcmp.gt.f32.partialorder %v3795, 0.5
  %v3797 = vsel %vm3796, 1, 0
  %v3798 = vcvt.s32.f32 %v3797
  %v3799 = vpack.c.bf16 %v3798, %v3798
  %3800 = vst [vmem:[%s1513] sm:$0xff] %v3795
  %3801 = vst [vmem:[%s1517] sm:$0xf] %v3799
  %v3802 = vld [vmem:[%s5] sm:$0xf]
  %v3803 = vld [vmem:[%s5 + $0x4] sm:$0xf]
  %v3804 = vld [vmem:[%s5 + $0x8] sm:$0xf]
  %v3805 = vld [vmem:[%s5 + $0xc] sm:$0xf]
  %v3806 = vld [vmem:[%s5 + $0x10] sm:$0xf]
  %v3807 = vld [vmem:[%s5 + $0x14] sm:$0xf]
  %v3808 = vld [vmem:[%s5 + $0x18] sm:$0xf]
  %v3809 = vld [vmem:[%s5 + $0x1c] sm:$0xf]
  %v3810 = vld [vmem:[%s5 + $0x20] sm:$0xf]
  %v3811 = vld [vmem:[%s5 + $0x24] sm:$0xf]
  %v3812 = vld [vmem:[%s5 + $0x28] sm:$0xf]
  %v3813 = vld [vmem:[%s5 + $0x2c] sm:$0xf]
  %v3814 = vld [vmem:[%s5 + $0x30] sm:$0xf]
  %v3815 = vld [vmem:[%s5 + $0x34] sm:$0xf]
  %v3816 = vld [vmem:[%s5 + $0x38] sm:$0xf]
  %v3817 = vld [vmem:[%s5 + $0x3c] sm:$0xf]
  %v3818 = vld [vmem:[%s6] sm:$0x1]
  %v3820 = vlaneseq
  %v3821 = vshrl.u32 %v3820, 7
  %v3822 = vsub.s32 0, %v3821
  %v3823 = vrot.slane %v3818, %v3822
  %v3841 = vunpack.c.l.b16 %v3802
  %v3842 = vunpack.c.l.b16 %v3803
  %v3843 = vunpack.c.l.b16 %v3804
  %v3844 = vunpack.c.l.b16 %v3805
  %v3845 = vunpack.c.l.b16 %v3806
  %v3846 = vunpack.c.l.b16 %v3807
  %v3847 = vunpack.c.l.b16 %v3808
  %v3848 = vunpack.c.l.b16 %v3809
  %v3849 = vunpack.c.l.b16 %v3810
  %v3850 = vunpack.c.l.b16 %v3811
  %v3851 = vunpack.c.l.b16 %v3812
  %v3852 = vunpack.c.l.b16 %v3813
  %v3853 = vunpack.c.l.b16 %v3814
  %v3854 = vunpack.c.l.b16 %v3815
  %v3855 = vunpack.c.l.b16 %v3816
  %v3856 = vunpack.c.l.b16 %v3817
  %v3857 = vpack.c.b16 %v3842, %v3841
  %v3858 = vpack.c.b16 %v3844, %v3843
  %v3859 = vpack.c.b16 %v3846, %v3845
  %v3860 = vpack.c.b16 %v3848, %v3847
  %v3861 = vpack.c.b16 %v3850, %v3849
  %v3862 = vpack.c.b16 %v3852, %v3851
  %v3863 = vpack.c.b16 %v3854, %v3853
  %v3864 = vpack.c.b16 %v3856, %v3855
  %3873 = vmatprep.subr.bf16.mxu0 0
  %3874 = vmatpush1.bf16.msra.mxu0 %v3857
  %3875 = vmatprep.subr.bf16.mxu0 0
  %3876 = vmatpush1.bf16.msra.mxu0 %v3858
  %3877 = vmatprep.subr.bf16.mxu0 0
  %3878 = vmatpush1.bf16.msra.mxu0 %v3859
  %3879 = vmatprep.subr.bf16.mxu0 0
  %3880 = vmatpush1.bf16.msra.mxu0 %v3860
  %3881 = vmatprep.subr.bf16.mxu0 0
  %3882 = vmatpush1.bf16.msra.mxu0 %v3861
  %3883 = vmatprep.subr.bf16.mxu0 0
  %3884 = vmatpush1.bf16.msra.mxu0 %v3862
  %3885 = vmatprep.subr.bf16.mxu0 0
  %3886 = vmatpush1.bf16.msra.mxu0 %v3863
  %3887 = vmatprep.subr.bf16.mxu0 0
  %3888 = vmatpush1.bf16.msra.mxu0 %v3864
  %3889 = vmatprep.subr.bf16.mxu0 0
  %3890 = vmatpush1.bf16.msra.mxu0 0
  %3891 = vmatprep.subr.bf16.mxu0 0
  %3892 = vmatpush1.bf16.msra.mxu0 0
  %3893 = vmatprep.subr.bf16.mxu0 0
  %3894 = vmatpush1.bf16.msra.mxu0 0
  %3895 = vmatprep.subr.bf16.mxu0 0
  %3896 = vmatpush1.bf16.msra.mxu0 0
  %3897 = vmatprep.subr.bf16.mxu0 0
  %3898 = vmatpush1.bf16.msra.mxu0 0
  %3899 = vmatprep.subr.bf16.mxu0 0
  %3900 = vmatpush1.bf16.msra.mxu0 0
  %3901 = vmatprep.subr.bf16.mxu0 0
  %3902 = vmatpush1.bf16.msra.mxu0 0
  %3903 = vmatprep.subr.bf16.mxu0 0
  %3904 = vmatpush1.bf16.msra.mxu0 0
  %3905 = vmatprep.mubr.bf16.mxu0 0
  %3906 = vmatmul.mubr.bf16.gmra.mrb[0].mxu0 %v3799
  %v3907 = vpop.f32.mrb[0].mxu0
  %v3908 = vadd.f32 %v3823, %v3907
  %v3909 = vpop.f32.mrb[0].mxu0
  %v3910 = vpop.f32.mrb[0].mxu0
  %v3911 = vpop.f32.mrb[0].mxu0
  %3912 = vdwg.mxu0
  %v3913 = vld [vmem:[#allocation5] sm:$0xff]
  %v3914 = vmul.f32 %v3913, 0.8
  %v3915 = vadd.f32 %v3914, %v3908
  %v3916 = vld [vmem:[#allocation6] sm:$0xff]
  %v3917 = vmul.f32 %v3916, 0.5
  %v3918 = vsub.f32 %v3915, %v3917
  %vm3919 = vcmp.gt.f32.partialorder %v3918, 0.5
  %v3920 = vsel %vm3919, 1, 0
  %v3921 = vcvt.s32.f32 %v3920
  %3922 = vst [vmem:[#allocation5] sm:$0xff] %v3918
  %3923 = vst [vmem:[#allocation6] sm:$0xff] %v3921
  %v3924 = vld [vmem:[%s7] sm:$0xff]
  %v3925 = vadd.f32 %v3924, %v3921
  %3926 = vst [vmem:[%s7] sm:$0xff] %v3925
  %3927 = vadd.xlane.f32.xlu0 %v3921
  %v3928 = vpop.xlane.xlu0 %3927
  %vm3929 = vcmp.eq.s32.totalorder %v491, 18
  %v3930 = vld [vmem:[#allocation7] sm:$0xff]
  %v3931 = vsel %vm3929, %v3928, %v3930
  %3932 = vst [vmem:[#allocation7] sm:$0xff] %v3931
  %v3933 = vld [vmem:[#allocation2] sm:$0xff]
  %v3934 = vld [vmem:[#allocation3] sm:$0xff]
  %v3935 = vmul.f32 %v3934, 0.8
  %v3936 = vadd.f32 %v3935, %v3933
  %v3937 = vld [vmem:[#allocation4] sm:$0xf]
  %v3938 = vmul.bf16 %v3937, 1056980736
  %v3939 = vunpack.c.l.bf16 %v3938
  %v3940 = vsub.f32 %v3936, %v3939
  %vm3941 = vcmp.gt.f32.partialorder %v3940, 0.5
  %v3942 = vsel %vm3941, 1, 0
  %v3943 = vcvt.s32.f32 %v3942
  %v3944 = vpack.c.bf16 %v3943, %v3943
  %3945 = vst [vmem:[#allocation3] sm:$0xff] %v3940
  %3946 = vst [vmem:[#allocation4] sm:$0xf] %v3944
  %v3947 = vld [vmem:[%s3] sm:$0xf]
  %v3948 = vld [vmem:[%s3 + $0x4] sm:$0xf]
  %v3949 = vld [vmem:[%s3 + $0x8] sm:$0xf]
  %v3950 = vld [vmem:[%s3 + $0xc] sm:$0xf]
  %v3951 = vld [vmem:[%s3 + $0x10] sm:$0xf]
  %v3952 = vld [vmem:[%s3 + $0x14] sm:$0xf]
  %v3953 = vld [vmem:[%s3 + $0x18] sm:$0xf]
  %v3954 = vld [vmem:[%s3 + $0x1c] sm:$0xf]
  %v3955 = vld [vmem:[%s3 + $0x20] sm:$0xf]
  %v3956 = vld [vmem:[%s3 + $0x24] sm:$0xf]
  %v3957 = vld [vmem:[%s3 + $0x28] sm:$0xf]
  %v3958 = vld [vmem:[%s3 + $0x2c] sm:$0xf]
  %v3959 = vld [vmem:[%s3 + $0x30] sm:$0xf]
  %v3960 = vld [vmem:[%s3 + $0x34] sm:$0xf]
  %v3961 = vld [vmem:[%s3 + $0x38] sm:$0xf]
  %v3962 = vld [vmem:[%s3 + $0x3c] sm:$0xf]
  %v3963 = vld [vmem:[%s4] sm:$0x1]
  %v3965 = vlaneseq
  %v3966 = vshrl.u32 %v3965, 7
  %v3967 = vsub.s32 0, %v3966
  %v3968 = vrot.slane %v3963, %v3967
  %v3986 = vunpack.c.l.b16 %v3947
  %v3987 = vunpack.c.l.b16 %v3948
  %v3988 = vunpack.c.l.b16 %v3949
  %v3989 = vunpack.c.l.b16 %v3950
  %v3990 = vunpack.c.l.b16 %v3951
  %v3991 = vunpack.c.l.b16 %v3952
  %v3992 = vunpack.c.l.b16 %v3953
  %v3993 = vunpack.c.l.b16 %v3954
  %v3994 = vunpack.c.l.b16 %v3955
  %v3995 = vunpack.c.l.b16 %v3956
  %v3996 = vunpack.c.l.b16 %v3957
  %v3997 = vunpack.c.l.b16 %v3958
  %v3998 = vunpack.c.l.b16 %v3959
  %v3999 = vunpack.c.l.b16 %v3960
  %v4000 = vunpack.c.l.b16 %v3961
  %v4001 = vunpack.c.l.b16 %v3962
  %v4002 = vpack.c.b16 %v3987, %v3986
  %v4003 = vpack.c.b16 %v3989, %v3988
  %v4004 = vpack.c.b16 %v3991, %v3990
  %v4005 = vpack.c.b16 %v3993, %v3992
  %v4006 = vpack.c.b16 %v3995, %v3994
  %v4007 = vpack.c.b16 %v3997, %v3996
  %v4008 = vpack.c.b16 %v3999, %v3998
  %v4009 = vpack.c.b16 %v4001, %v4000
  %4018 = vmatprep.subr.bf16.mxu0 0
  %4019 = vmatpush1.bf16.msra.mxu0 %v4002
  %4020 = vmatprep.subr.bf16.mxu0 0
  %4021 = vmatpush1.bf16.msra.mxu0 %v4003
  %4022 = vmatprep.subr.bf16.mxu0 0
  %4023 = vmatpush1.bf16.msra.mxu0 %v4004
  %4024 = vmatprep.subr.bf16.mxu0 0
  %4025 = vmatpush1.bf16.msra.mxu0 %v4005
  %4026 = vmatprep.subr.bf16.mxu0 0
  %4027 = vmatpush1.bf16.msra.mxu0 %v4006
  %4028 = vmatprep.subr.bf16.mxu0 0
  %4029 = vmatpush1.bf16.msra.mxu0 %v4007
  %4030 = vmatprep.subr.bf16.mxu0 0
  %4031 = vmatpush1.bf16.msra.mxu0 %v4008
  %4032 = vmatprep.subr.bf16.mxu0 0
  %4033 = vmatpush1.bf16.msra.mxu0 %v4009
  %4034 = vmatprep.subr.bf16.mxu0 0
  %4035 = vmatpush1.bf16.msra.mxu0 0
  %4036 = vmatprep.subr.bf16.mxu0 0
  %4037 = vmatpush1.bf16.msra.mxu0 0
  %4038 = vmatprep.subr.bf16.mxu0 0
  %4039 = vmatpush1.bf16.msra.mxu0 0
  %4040 = vmatprep.subr.bf16.mxu0 0
  %4041 = vmatpush1.bf16.msra.mxu0 0
  %4042 = vmatprep.subr.bf16.mxu0 0
  %4043 = vmatpush1.bf16.msra.mxu0 0
  %4044 = vmatprep.subr.bf16.mxu0 0
  %4045 = vmatpush1.bf16.msra.mxu0 0
  %4046 = vmatprep.subr.bf16.mxu0 0
  %4047 = vmatpush1.bf16.msra.mxu0 0
  %4048 = vmatprep.subr.bf16.mxu0 0
  %4049 = vmatpush1.bf16.msra.mxu0 0
  %4050 = vmatprep.mubr.bf16.mxu0 0
  %4051 = vmatmul.mubr.bf16.gmra.mrb[0].mxu0 %v3944
  %v4052 = vpop.f32.mrb[0].mxu0
  %v4053 = vadd.f32 %v3968, %v4052
  %v4054 = vpop.f32.mrb[0].mxu0
  %v4055 = vpop.f32.mrb[0].mxu0
  %v4056 = vpop.f32.mrb[0].mxu0
  %4057 = vdwg.mxu0
  %v4058 = vld [vmem:[%s617] sm:$0xff]
  %v4059 = vmul.f32 %v4058, 0.8
  %v4060 = vadd.f32 %v4059, %v4053
  %v4061 = vld [vmem:[%s621] sm:$0xf]
  %v4062 = vmul.bf16 %v4061, 1056980736
  %v4063 = vunpack.c.l.bf16 %v4062
  %v4064 = vsub.f32 %v4060, %v4063
  %vm4065 = vcmp.gt.f32.partialorder %v4064, 0.5
  %v4066 = vsel %vm4065, 1, 0
  %v4067 = vcvt.s32.f32 %v4066
  %v4068 = vpack.c.bf16 %v4067, %v4067
  %4069 = vst [vmem:[%s617] sm:$0xff] %v4064
  %4070 = vst [vmem:[%s621] sm:$0xf] %v4068
  %v4071 = vld [vmem:[%s632] sm:$0xf]
  %v4072 = vld [vmem:[%s632 + $0x4] sm:$0xf]
  %v4073 = vld [vmem:[%s632 + $0x8] sm:$0xf]
  %v4074 = vld [vmem:[%s632 + $0xc] sm:$0xf]
  %v4075 = vld [vmem:[%s632 + $0x10] sm:$0xf]
  %v4076 = vld [vmem:[%s632 + $0x14] sm:$0xf]
  %v4077 = vld [vmem:[%s632 + $0x18] sm:$0xf]
  %v4078 = vld [vmem:[%s632 + $0x1c] sm:$0xf]
  %v4079 = vld [vmem:[%s632 + $0x20] sm:$0xf]
  %v4080 = vld [vmem:[%s632 + $0x24] sm:$0xf]
  %v4081 = vld [vmem:[%s632 + $0x28] sm:$0xf]
  %v4082 = vld [vmem:[%s632 + $0x2c] sm:$0xf]
  %v4083 = vld [vmem:[%s632 + $0x30] sm:$0xf]
  %v4084 = vld [vmem:[%s632 + $0x34] sm:$0xf]
  %v4085 = vld [vmem:[%s632 + $0x38] sm:$0xf]
  %v4086 = vld [vmem:[%s632 + $0x3c] sm:$0xf]
  %v4087 = vld [vmem:[%s649] sm:$0x1]
  %v4089 = vlaneseq
  %v4090 = vshrl.u32 %v4089, 7
  %v4091 = vsub.s32 0, %v4090
  %v4092 = vrot.slane %v4087, %v4091
  %v4110 = vunpack.c.l.b16 %v4071
  %v4111 = vunpack.c.l.b16 %v4072
  %v4112 = vunpack.c.l.b16 %v4073
  %v4113 = vunpack.c.l.b16 %v4074
  %v4114 = vunpack.c.l.b16 %v4075
  %v4115 = vunpack.c.l.b16 %v4076
  %v4116 = vunpack.c.l.b16 %v4077
  %v4117 = vunpack.c.l.b16 %v4078
  %v4118 = vunpack.c.l.b16 %v4079
  %v4119 = vunpack.c.l.b16 %v4080
  %v4120 = vunpack.c.l.b16 %v4081
  %v4121 = vunpack.c.l.b16 %v4082
  %v4122 = vunpack.c.l.b16 %v4083
  %v4123 = vunpack.c.l.b16 %v4084
  %v4124 = vunpack.c.l.b16 %v4085
  %v4125 = vunpack.c.l.b16 %v4086
  %v4126 = vpack.c.b16 %v4111, %v4110
  %v4127 = vpack.c.b16 %v4113, %v4112
  %v4128 = vpack.c.b16 %v4115, %v4114
  %v4129 = vpack.c.b16 %v4117, %v4116
  %v4130 = vpack.c.b16 %v4119, %v4118
  %v4131 = vpack.c.b16 %v4121, %v4120
  %v4132 = vpack.c.b16 %v4123, %v4122
  %v4133 = vpack.c.b16 %v4125, %v4124
  %4142 = vmatprep.subr.bf16.mxu0 0
  %4143 = vmatpush1.bf16.msra.mxu0 %v4126
  %4144 = vmatprep.subr.bf16.mxu0 0
  %4145 = vmatpush1.bf16.msra.mxu0 %v4127
  %4146 = vmatprep.subr.bf16.mxu0 0
  %4147 = vmatpush1.bf16.msra.mxu0 %v4128
  %4148 = vmatprep.subr.bf16.mxu0 0
  %4149 = vmatpush1.bf16.msra.mxu0 %v4129
  %4150 = vmatprep.subr.bf16.mxu0 0
  %4151 = vmatpush1.bf16.msra.mxu0 %v4130
  %4152 = vmatprep.subr.bf16.mxu0 0
  %4153 = vmatpush1.bf16.msra.mxu0 %v4131
  %4154 = vmatprep.subr.bf16.mxu0 0
  %4155 = vmatpush1.bf16.msra.mxu0 %v4132
  %4156 = vmatprep.subr.bf16.mxu0 0
  %4157 = vmatpush1.bf16.msra.mxu0 %v4133
  %4158 = vmatprep.subr.bf16.mxu0 0
  %4159 = vmatpush1.bf16.msra.mxu0 0
  %4160 = vmatprep.subr.bf16.mxu0 0
  %4161 = vmatpush1.bf16.msra.mxu0 0
  %4162 = vmatprep.subr.bf16.mxu0 0
  %4163 = vmatpush1.bf16.msra.mxu0 0
  %4164 = vmatprep.subr.bf16.mxu0 0
  %4165 = vmatpush1.bf16.msra.mxu0 0
  %4166 = vmatprep.subr.bf16.mxu0 0
  %4167 = vmatpush1.bf16.msra.mxu0 0
  %4168 = vmatprep.subr.bf16.mxu0 0
  %4169 = vmatpush1.bf16.msra.mxu0 0
  %4170 = vmatprep.subr.bf16.mxu0 0
  %4171 = vmatpush1.bf16.msra.mxu0 0
  %4172 = vmatprep.subr.bf16.mxu0 0
  %4173 = vmatpush1.bf16.msra.mxu0 0
  %4174 = vmatprep.mubr.bf16.mxu0 0
  %4175 = vmatmul.mubr.bf16.gmra.mrb[0].mxu0 %v4068
  %v4176 = vpop.f32.mrb[0].mxu0
  %v4177 = vadd.f32 %v4092, %v4176
  %v4178 = vpop.f32.mrb[0].mxu0
  %v4179 = vpop.f32.mrb[0].mxu0
  %v4180 = vpop.f32.mrb[0].mxu0
  %4181 = vdwg.mxu0
  %v4182 = vld [vmem:[%s745] sm:$0xff]
  %v4183 = vmul.f32 %v4182, 0.8
  %v4184 = vadd.f32 %v4183, %v4177
  %v4185 = vld [vmem:[%s749] sm:$0xf]
  %v4186 = vmul.bf16 %v4185, 1056980736
  %v4187 = vunpack.c.l.bf16 %v4186
  %v4188 = vsub.f32 %v4184, %v4187
  %vm4189 = vcmp.gt.f32.partialorder %v4188, 0.5
  %v4190 = vsel %vm4189, 1, 0
  %v4191 = vcvt.s32.f32 %v4190
  %v4192 = vpack.c.bf16 %v4191, %v4191
  %4193 = vst [vmem:[%s745] sm:$0xff] %v4188
  %4194 = vst [vmem:[%s749] sm:$0xf] %v4192
  %v4195 = vld [vmem:[%s760] sm:$0xf]
  %v4196 = vld [vmem:[%s760 + $0x4] sm:$0xf]
  %v4197 = vld [vmem:[%s760 + $0x8] sm:$0xf]
  %v4198 = vld [vmem:[%s760 + $0xc] sm:$0xf]
  %v4199 = vld [vmem:[%s760 + $0x10] sm:$0xf]
  %v4200 = vld [vmem:[%s760 + $0x14] sm:$0xf]
  %v4201 = vld [vmem:[%s760 + $0x18] sm:$0xf]
  %v4202 = vld [vmem:[%s760 + $0x1c] sm:$0xf]
  %v4203 = vld [vmem:[%s760 + $0x20] sm:$0xf]
  %v4204 = vld [vmem:[%s760 + $0x24] sm:$0xf]
  %v4205 = vld [vmem:[%s760 + $0x28] sm:$0xf]
  %v4206 = vld [vmem:[%s760 + $0x2c] sm:$0xf]
  %v4207 = vld [vmem:[%s760 + $0x30] sm:$0xf]
  %v4208 = vld [vmem:[%s760 + $0x34] sm:$0xf]
  %v4209 = vld [vmem:[%s760 + $0x38] sm:$0xf]
  %v4210 = vld [vmem:[%s760 + $0x3c] sm:$0xf]
  %v4211 = vld [vmem:[%s777] sm:$0x1]
  %v4213 = vlaneseq
  %v4214 = vshrl.u32 %v4213, 7
  %v4215 = vsub.s32 0, %v4214
  %v4216 = vrot.slane %v4211, %v4215
  %v4234 = vunpack.c.l.b16 %v4195
  %v4235 = vunpack.c.l.b16 %v4196
  %v4236 = vunpack.c.l.b16 %v4197
  %v4237 = vunpack.c.l.b16 %v4198
  %v4238 = vunpack.c.l.b16 %v4199
  %v4239 = vunpack.c.l.b16 %v4200
  %v4240 = vunpack.c.l.b16 %v4201
  %v4241 = vunpack.c.l.b16 %v4202
  %v4242 = vunpack.c.l.b16 %v4203
  %v4243 = vunpack.c.l.b16 %v4204
  %v4244 = vunpack.c.l.b16 %v4205
  %v4245 = vunpack.c.l.b16 %v4206
  %v4246 = vunpack.c.l.b16 %v4207
  %v4247 = vunpack.c.l.b16 %v4208
  %v4248 = vunpack.c.l.b16 %v4209
  %v4249 = vunpack.c.l.b16 %v4210
  %v4250 = vpack.c.b16 %v4235, %v4234
  %v4251 = vpack.c.b16 %v4237, %v4236
  %v4252 = vpack.c.b16 %v4239, %v4238
  %v4253 = vpack.c.b16 %v4241, %v4240
  %v4254 = vpack.c.b16 %v4243, %v4242
  %v4255 = vpack.c.b16 %v4245, %v4244
  %v4256 = vpack.c.b16 %v4247, %v4246
  %v4257 = vpack.c.b16 %v4249, %v4248
  %4266 = vmatprep.subr.bf16.mxu0 0
  %4267 = vmatpush1.bf16.msra.mxu0 %v4250
  %4268 = vmatprep.subr.bf16.mxu0 0
  %4269 = vmatpush1.bf16.msra.mxu0 %v4251
  %4270 = vmatprep.subr.bf16.mxu0 0
  %4271 = vmatpush1.bf16.msra.mxu0 %v4252
  %4272 = vmatprep.subr.bf16.mxu0 0
  %4273 = vmatpush1.bf16.msra.mxu0 %v4253
  %4274 = vmatprep.subr.bf16.mxu0 0
  %4275 = vmatpush1.bf16.msra.mxu0 %v4254
  %4276 = vmatprep.subr.bf16.mxu0 0
  %4277 = vmatpush1.bf16.msra.mxu0 %v4255
  %4278 = vmatprep.subr.bf16.mxu0 0
  %4279 = vmatpush1.bf16.msra.mxu0 %v4256
  %4280 = vmatprep.subr.bf16.mxu0 0
  %4281 = vmatpush1.bf16.msra.mxu0 %v4257
  %4282 = vmatprep.subr.bf16.mxu0 0
  %4283 = vmatpush1.bf16.msra.mxu0 0
  %4284 = vmatprep.subr.bf16.mxu0 0
  %4285 = vmatpush1.bf16.msra.mxu0 0
  %4286 = vmatprep.subr.bf16.mxu0 0
  %4287 = vmatpush1.bf16.msra.mxu0 0
  %4288 = vmatprep.subr.bf16.mxu0 0
  %4289 = vmatpush1.bf16.msra.mxu0 0
  %4290 = vmatprep.subr.bf16.mxu0 0
  %4291 = vmatpush1.bf16.msra.mxu0 0
  %4292 = vmatprep.subr.bf16.mxu0 0
  %4293 = vmatpush1.bf16.msra.mxu0 0
  %4294 = vmatprep.subr.bf16.mxu0 0
  %4295 = vmatpush1.bf16.msra.mxu0 0
  %4296 = vmatprep.subr.bf16.mxu0 0
  %4297 = vmatpush1.bf16.msra.mxu0 0
  %4298 = vmatprep.mubr.bf16.mxu0 0
  %4299 = vmatmul.mubr.bf16.gmra.mrb[0].mxu0 %v4192
  %v4300 = vpop.f32.mrb[0].mxu0
  %v4301 = vadd.f32 %v4216, %v4300
  %v4302 = vpop.f32.mrb[0].mxu0
  %v4303 = vpop.f32.mrb[0].mxu0
  %v4304 = vpop.f32.mrb[0].mxu0
  %4305 = vdwg.mxu0
  %v4306 = vld [vmem:[%s873] sm:$0xff]
  %v4307 = vmul.f32 %v4306, 0.8
  %v4308 = vadd.f32 %v4307, %v4301
  %v4309 = vld [vmem:[%s877] sm:$0xf]
  %v4310 = vmul.bf16 %v4309, 1056980736
  %v4311 = vunpack.c.l.bf16 %v4310
  %v4312 = vsub.f32 %v4308, %v4311
  %vm4313 = vcmp.gt.f32.partialorder %v4312, 0.5
  %v4314 = vsel %vm4313, 1, 0
  %v4315 = vcvt.s32.f32 %v4314
  %v4316 = vpack.c.bf16 %v4315, %v4315
  %4317 = vst [vmem:[%s873] sm:$0xff] %v4312
  %4318 = vst [vmem:[%s877] sm:$0xf] %v4316
  %v4319 = vld [vmem:[%s888] sm:$0xf]
  %v4320 = vld [vmem:[%s888 + $0x4] sm:$0xf]
  %v4321 = vld [vmem:[%s888 + $0x8] sm:$0xf]
  %v4322 = vld [vmem:[%s888 + $0xc] sm:$0xf]
  %v4323 = vld [vmem:[%s888 + $0x10] sm:$0xf]
  %v4324 = vld [vmem:[%s888 + $0x14] sm:$0xf]
  %v4325 = vld [vmem:[%s888 + $0x18] sm:$0xf]
  %v4326 = vld [vmem:[%s888 + $0x1c] sm:$0xf]
  %v4327 = vld [vmem:[%s888 + $0x20] sm:$0xf]
  %v4328 = vld [vmem:[%s888 + $0x24] sm:$0xf]
  %v4329 = vld [vmem:[%s888 + $0x28] sm:$0xf]
  %v4330 = vld [vmem:[%s888 + $0x2c] sm:$0xf]
  %v4331 = vld [vmem:[%s888 + $0x30] sm:$0xf]
  %v4332 = vld [vmem:[%s888 + $0x34] sm:$0xf]
  %v4333 = vld [vmem:[%s888 + $0x38] sm:$0xf]
  %v4334 = vld [vmem:[%s888 + $0x3c] sm:$0xf]
  %v4335 = vld [vmem:[%s905] sm:$0x1]
  %v4337 = vlaneseq
  %v4338 = vshrl.u32 %v4337, 7
  %v4339 = vsub.s32 0, %v4338
  %v4340 = vrot.slane %v4335, %v4339
  %v4358 = vunpack.c.l.b16 %v4319
  %v4359 = vunpack.c.l.b16 %v4320
  %v4360 = vunpack.c.l.b16 %v4321
  %v4361 = vunpack.c.l.b16 %v4322
  %v4362 = vunpack.c.l.b16 %v4323
  %v4363 = vunpack.c.l.b16 %v4324
  %v4364 = vunpack.c.l.b16 %v4325
  %v4365 = vunpack.c.l.b16 %v4326
  %v4366 = vunpack.c.l.b16 %v4327
  %v4367 = vunpack.c.l.b16 %v4328
  %v4368 = vunpack.c.l.b16 %v4329
  %v4369 = vunpack.c.l.b16 %v4330
  %v4370 = vunpack.c.l.b16 %v4331
  %v4371 = vunpack.c.l.b16 %v4332
  %v4372 = vunpack.c.l.b16 %v4333
  %v4373 = vunpack.c.l.b16 %v4334
  %v4374 = vpack.c.b16 %v4359, %v4358
  %v4375 = vpack.c.b16 %v4361, %v4360
  %v4376 = vpack.c.b16 %v4363, %v4362
  %v4377 = vpack.c.b16 %v4365, %v4364
  %v4378 = vpack.c.b16 %v4367, %v4366
  %v4379 = vpack.c.b16 %v4369, %v4368
  %v4380 = vpack.c.b16 %v4371, %v4370
  %v4381 = vpack.c.b16 %v4373, %v4372
  %4390 = vmatprep.subr.bf16.mxu0 0
  %4391 = vmatpush1.bf16.msra.mxu0 %v4374
  %4392 = vmatprep.subr.bf16.mxu0 0
  %4393 = vmatpush1.bf16.msra.mxu0 %v4375
  %4394 = vmatprep.subr.bf16.mxu0 0
  %4395 = vmatpush1.bf16.msra.mxu0 %v4376
  %4396 = vmatprep.subr.bf16.mxu0 0
  %4397 = vmatpush1.bf16.msra.mxu0 %v4377
  %4398 = vmatprep.subr.bf16.mxu0 0
  %4399 = vmatpush1.bf16.msra.mxu0 %v4378
  %4400 = vmatprep.subr.bf16.mxu0 0
  %4401 = vmatpush1.bf16.msra.mxu0 %v4379
  %4402 = vmatprep.subr.bf16.mxu0 0
  %4403 = vmatpush1.bf16.msra.mxu0 %v4380
  %4404 = vmatprep.subr.bf16.mxu0 0
  %4405 = vmatpush1.bf16.msra.mxu0 %v4381
  %4406 = vmatprep.subr.bf16.mxu0 0
  %4407 = vmatpush1.bf16.msra.mxu0 0
  %4408 = vmatprep.subr.bf16.mxu0 0
  %4409 = vmatpush1.bf16.msra.mxu0 0
  %4410 = vmatprep.subr.bf16.mxu0 0
  %4411 = vmatpush1.bf16.msra.mxu0 0
  %4412 = vmatprep.subr.bf16.mxu0 0
  %4413 = vmatpush1.bf16.msra.mxu0 0
  %4414 = vmatprep.subr.bf16.mxu0 0
  %4415 = vmatpush1.bf16.msra.mxu0 0
  %4416 = vmatprep.subr.bf16.mxu0 0
  %4417 = vmatpush1.bf16.msra.mxu0 0
  %4418 = vmatprep.subr.bf16.mxu0 0
  %4419 = vmatpush1.bf16.msra.mxu0 0
  %4420 = vmatprep.subr.bf16.mxu0 0
  %4421 = vmatpush1.bf16.msra.mxu0 0
  %4422 = vmatprep.mubr.bf16.mxu0 0
  %4423 = vmatmul.mubr.bf16.gmra.mrb[0].mxu0 %v4316
  %v4424 = vpop.f32.mrb[0].mxu0
  %v4425 = vadd.f32 %v4340, %v4424
  %v4426 = vpop.f32.mrb[0].mxu0
  %v4427 = vpop.f32.mrb[0].mxu0
  %v4428 = vpop.f32.mrb[0].mxu0
  %4429 = vdwg.mxu0
  %v4430 = vld [vmem:[%s1001] sm:$0xff]
  %v4431 = vmul.f32 %v4430, 0.8
  %v4432 = vadd.f32 %v4431, %v4425
  %v4433 = vld [vmem:[%s1005] sm:$0xf]
  %v4434 = vmul.bf16 %v4433, 1056980736
  %v4435 = vunpack.c.l.bf16 %v4434
  %v4436 = vsub.f32 %v4432, %v4435
  %vm4437 = vcmp.gt.f32.partialorder %v4436, 0.5
  %v4438 = vsel %vm4437, 1, 0
  %v4439 = vcvt.s32.f32 %v4438
  %v4440 = vpack.c.bf16 %v4439, %v4439
  %4441 = vst [vmem:[%s1001] sm:$0xff] %v4436
  %4442 = vst [vmem:[%s1005] sm:$0xf] %v4440
  %v4443 = vld [vmem:[%s1016] sm:$0xf]
  %v4444 = vld [vmem:[%s1016 + $0x4] sm:$0xf]
  %v4445 = vld [vmem:[%s1016 + $0x8] sm:$0xf]
  %v4446 = vld [vmem:[%s1016 + $0xc] sm:$0xf]
  %v4447 = vld [vmem:[%s1016 + $0x10] sm:$0xf]
  %v4448 = vld [vmem:[%s1016 + $0x14] sm:$0xf]
  %v4449 = vld [vmem:[%s1016 + $0x18] sm:$0xf]
  %v4450 = vld [vmem:[%s1016 + $0x1c] sm:$0xf]
  %v4451 = vld [vmem:[%s1016 + $0x20] sm:$0xf]
  %v4452 = vld [vmem:[%s1016 + $0x24] sm:$0xf]
  %v4453 = vld [vmem:[%s1016 + $0x28] sm:$0xf]
  %v4454 = vld [vmem:[%s1016 + $0x2c] sm:$0xf]
  %v4455 = vld [vmem:[%s1016 + $0x30] sm:$0xf]
  %v4456 = vld [vmem:[%s1016 + $0x34] sm:$0xf]
  %v4457 = vld [vmem:[%s1016 + $0x38] sm:$0xf]
  %v4458 = vld [vmem:[%s1016 + $0x3c] sm:$0xf]
  %v4459 = vld [vmem:[%s1033] sm:$0x1]
  %v4461 = vlaneseq
  %v4462 = vshrl.u32 %v4461, 7
  %v4463 = vsub.s32 0, %v4462
  %v4464 = vrot.slane %v4459, %v4463
  %v4482 = vunpack.c.l.b16 %v4443
  %v4483 = vunpack.c.l.b16 %v4444
  %v4484 = vunpack.c.l.b16 %v4445
  %v4485 = vunpack.c.l.b16 %v4446
  %v4486 = vunpack.c.l.b16 %v4447
  %v4487 = vunpack.c.l.b16 %v4448
  %v4488 = vunpack.c.l.b16 %v4449
  %v4489 = vunpack.c.l.b16 %v4450
  %v4490 = vunpack.c.l.b16 %v4451
  %v4491 = vunpack.c.l.b16 %v4452
  %v4492 = vunpack.c.l.b16 %v4453
  %v4493 = vunpack.c.l.b16 %v4454
  %v4494 = vunpack.c.l.b16 %v4455
  %v4495 = vunpack.c.l.b16 %v4456
  %v4496 = vunpack.c.l.b16 %v4457
  %v4497 = vunpack.c.l.b16 %v4458
  %v4498 = vpack.c.b16 %v4483, %v4482
  %v4499 = vpack.c.b16 %v4485, %v4484
  %v4500 = vpack.c.b16 %v4487, %v4486
  %v4501 = vpack.c.b16 %v4489, %v4488
  %v4502 = vpack.c.b16 %v4491, %v4490
  %v4503 = vpack.c.b16 %v4493, %v4492
  %v4504 = vpack.c.b16 %v4495, %v4494
  %v4505 = vpack.c.b16 %v4497, %v4496
  %4514 = vmatprep.subr.bf16.mxu0 0
  %4515 = vmatpush1.bf16.msra.mxu0 %v4498
  %4516 = vmatprep.subr.bf16.mxu0 0
  %4517 = vmatpush1.bf16.msra.mxu0 %v4499
  %4518 = vmatprep.subr.bf16.mxu0 0
  %4519 = vmatpush1.bf16.msra.mxu0 %v4500
  %4520 = vmatprep.subr.bf16.mxu0 0
  %4521 = vmatpush1.bf16.msra.mxu0 %v4501
  %4522 = vmatprep.subr.bf16.mxu0 0
  %4523 = vmatpush1.bf16.msra.mxu0 %v4502
  %4524 = vmatprep.subr.bf16.mxu0 0
  %4525 = vmatpush1.bf16.msra.mxu0 %v4503
  %4526 = vmatprep.subr.bf16.mxu0 0
  %4527 = vmatpush1.bf16.msra.mxu0 %v4504
  %4528 = vmatprep.subr.bf16.mxu0 0
  %4529 = vmatpush1.bf16.msra.mxu0 %v4505
  %4530 = vmatprep.subr.bf16.mxu0 0
  %4531 = vmatpush1.bf16.msra.mxu0 0
  %4532 = vmatprep.subr.bf16.mxu0 0
  %4533 = vmatpush1.bf16.msra.mxu0 0
  %4534 = vmatprep.subr.bf16.mxu0 0
  %4535 = vmatpush1.bf16.msra.mxu0 0
  %4536 = vmatprep.subr.bf16.mxu0 0
  %4537 = vmatpush1.bf16.msra.mxu0 0
  %4538 = vmatprep.subr.bf16.mxu0 0
  %4539 = vmatpush1.bf16.msra.mxu0 0
  %4540 = vmatprep.subr.bf16.mxu0 0
  %4541 = vmatpush1.bf16.msra.mxu0 0
  %4542 = vmatprep.subr.bf16.mxu0 0
  %4543 = vmatpush1.bf16.msra.mxu0 0
  %4544 = vmatprep.subr.bf16.mxu0 0
  %4545 = vmatpush1.bf16.msra.mxu0 0
  %4546 = vmatprep.mubr.bf16.mxu0 0
  %4547 = vmatmul.mubr.bf16.gmra.mrb[0].mxu0 %v4440
  %v4548 = vpop.f32.mrb[0].mxu0
  %v4549 = vadd.f32 %v4464, %v4548
  %v4550 = vpop.f32.mrb[0].mxu0
  %v4551 = vpop.f32.mrb[0].mxu0
  %v4552 = vpop.f32.mrb[0].mxu0
  %4553 = vdwg.mxu0
  %v4554 = vld [vmem:[%s1129] sm:$0xff]
  %v4555 = vmul.f32 %v4554, 0.8
  %v4556 = vadd.f32 %v4555, %v4549
  %v4557 = vld [vmem:[%s1133] sm:$0xf]
  %v4558 = vmul.bf16 %v4557, 1056980736
  %v4559 = vunpack.c.l.bf16 %v4558
  %v4560 = vsub.f32 %v4556, %v4559
  %vm4561 = vcmp.gt.f32.partialorder %v4560, 0.5
  %v4562 = vsel %vm4561, 1, 0
  %v4563 = vcvt.s32.f32 %v4562
  %v4564 = vpack.c.bf16 %v4563, %v4563
  %4565 = vst [vmem:[%s1129] sm:$0xff] %v4560
  %4566 = vst [vmem:[%s1133] sm:$0xf] %v4564
  %v4567 = vld [vmem:[%s1144] sm:$0xf]
  %v4568 = vld [vmem:[%s1144 + $0x4] sm:$0xf]
  %v4569 = vld [vmem:[%s1144 + $0x8] sm:$0xf]
  %v4570 = vld [vmem:[%s1144 + $0xc] sm:$0xf]
  %v4571 = vld [vmem:[%s1144 + $0x10] sm:$0xf]
  %v4572 = vld [vmem:[%s1144 + $0x14] sm:$0xf]
  %v4573 = vld [vmem:[%s1144 + $0x18] sm:$0xf]
  %v4574 = vld [vmem:[%s1144 + $0x1c] sm:$0xf]
  %v4575 = vld [vmem:[%s1144 + $0x20] sm:$0xf]
  %v4576 = vld [vmem:[%s1144 + $0x24] sm:$0xf]
  %v4577 = vld [vmem:[%s1144 + $0x28] sm:$0xf]
  %v4578 = vld [vmem:[%s1144 + $0x2c] sm:$0xf]
  %v4579 = vld [vmem:[%s1144 + $0x30] sm:$0xf]
  %v4580 = vld [vmem:[%s1144 + $0x34] sm:$0xf]
  %v4581 = vld [vmem:[%s1144 + $0x38] sm:$0xf]
  %v4582 = vld [vmem:[%s1144 + $0x3c] sm:$0xf]
  %v4583 = vld [vmem:[%s1161] sm:$0x1]
  %v4585 = vlaneseq
  %v4586 = vshrl.u32 %v4585, 7
  %v4587 = vsub.s32 0, %v4586
  %v4588 = vrot.slane %v4583, %v4587
  %v4606 = vunpack.c.l.b16 %v4567
  %v4607 = vunpack.c.l.b16 %v4568
  %v4608 = vunpack.c.l.b16 %v4569
  %v4609 = vunpack.c.l.b16 %v4570
  %v4610 = vunpack.c.l.b16 %v4571
  %v4611 = vunpack.c.l.b16 %v4572
  %v4612 = vunpack.c.l.b16 %v4573
  %v4613 = vunpack.c.l.b16 %v4574
  %v4614 = vunpack.c.l.b16 %v4575
  %v4615 = vunpack.c.l.b16 %v4576
  %v4616 = vunpack.c.l.b16 %v4577
  %v4617 = vunpack.c.l.b16 %v4578
  %v4618 = vunpack.c.l.b16 %v4579
  %v4619 = vunpack.c.l.b16 %v4580
  %v4620 = vunpack.c.l.b16 %v4581
  %v4621 = vunpack.c.l.b16 %v4582
  %v4622 = vpack.c.b16 %v4607, %v4606
  %v4623 = vpack.c.b16 %v4609, %v4608
  %v4624 = vpack.c.b16 %v4611, %v4610
  %v4625 = vpack.c.b16 %v4613, %v4612
  %v4626 = vpack.c.b16 %v4615, %v4614
  %v4627 = vpack.c.b16 %v4617, %v4616
  %v4628 = vpack.c.b16 %v4619, %v4618
  %v4629 = vpack.c.b16 %v4621, %v4620
  %4638 = vmatprep.subr.bf16.mxu0 0
  %4639 = vmatpush1.bf16.msra.mxu0 %v4622
  %4640 = vmatprep.subr.bf16.mxu0 0
  %4641 = vmatpush1.bf16.msra.mxu0 %v4623
  %4642 = vmatprep.subr.bf16.mxu0 0
  %4643 = vmatpush1.bf16.msra.mxu0 %v4624
  %4644 = vmatprep.subr.bf16.mxu0 0
  %4645 = vmatpush1.bf16.msra.mxu0 %v4625
  %4646 = vmatprep.subr.bf16.mxu0 0
  %4647 = vmatpush1.bf16.msra.mxu0 %v4626
  %4648 = vmatprep.subr.bf16.mxu0 0
  %4649 = vmatpush1.bf16.msra.mxu0 %v4627
  %4650 = vmatprep.subr.bf16.mxu0 0
  %4651 = vmatpush1.bf16.msra.mxu0 %v4628
  %4652 = vmatprep.subr.bf16.mxu0 0
  %4653 = vmatpush1.bf16.msra.mxu0 %v4629
  %4654 = vmatprep.subr.bf16.mxu0 0
  %4655 = vmatpush1.bf16.msra.mxu0 0
  %4656 = vmatprep.subr.bf16.mxu0 0
  %4657 = vmatpush1.bf16.msra.mxu0 0
  %4658 = vmatprep.subr.bf16.mxu0 0
  %4659 = vmatpush1.bf16.msra.mxu0 0
  %4660 = vmatprep.subr.bf16.mxu0 0
  %4661 = vmatpush1.bf16.msra.mxu0 0
  %4662 = vmatprep.subr.bf16.mxu0 0
  %4663 = vmatpush1.bf16.msra.mxu0 0
  %4664 = vmatprep.subr.bf16.mxu0 0
  %4665 = vmatpush1.bf16.msra.mxu0 0
  %4666 = vmatprep.subr.bf16.mxu0 0
  %4667 = vmatpush1.bf16.msra.mxu0 0
  %4668 = vmatprep.subr.bf16.mxu0 0
  %4669 = vmatpush1.bf16.msra.mxu0 0
  %4670 = vmatprep.mubr.bf16.mxu0 0
  %4671 = vmatmul.mubr.bf16.gmra.mrb[0].mxu0 %v4564
  %v4672 = vpop.f32.mrb[0].mxu0
  %v4673 = vadd.f32 %v4588, %v4672
  %v4674 = vpop.f32.mrb[0].mxu0
  %v4675 = vpop.f32.mrb[0].mxu0
  %v4676 = vpop.f32.mrb[0].mxu0
  %4677 = vdwg.mxu0
  %v4678 = vld [vmem:[%s1257] sm:$0xff]
  %v4679 = vmul.f32 %v4678, 0.8
  %v4680 = vadd.f32 %v4679, %v4673
  %v4681 = vld [vmem:[%s1261] sm:$0xf]
  %v4682 = vmul.bf16 %v4681, 1056980736
  %v4683 = vunpack.c.l.bf16 %v4682
  %v4684 = vsub.f32 %v4680, %v4683
  %vm4685 = vcmp.gt.f32.partialorder %v4684, 0.5
  %v4686 = vsel %vm4685, 1, 0
  %v4687 = vcvt.s32.f32 %v4686
  %v4688 = vpack.c.bf16 %v4687, %v4687
  %4689 = vst [vmem:[%s1257] sm:$0xff] %v4684
  %4690 = vst [vmem:[%s1261] sm:$0xf] %v4688
  %v4691 = vld [vmem:[%s1272] sm:$0xf]
  %v4692 = vld [vmem:[%s1272 + $0x4] sm:$0xf]
  %v4693 = vld [vmem:[%s1272 + $0x8] sm:$0xf]
  %v4694 = vld [vmem:[%s1272 + $0xc] sm:$0xf]
  %v4695 = vld [vmem:[%s1272 + $0x10] sm:$0xf]
  %v4696 = vld [vmem:[%s1272 + $0x14] sm:$0xf]
  %v4697 = vld [vmem:[%s1272 + $0x18] sm:$0xf]
  %v4698 = vld [vmem:[%s1272 + $0x1c] sm:$0xf]
  %v4699 = vld [vmem:[%s1272 + $0x20] sm:$0xf]
  %v4700 = vld [vmem:[%s1272 + $0x24] sm:$0xf]
  %v4701 = vld [vmem:[%s1272 + $0x28] sm:$0xf]
  %v4702 = vld [vmem:[%s1272 + $0x2c] sm:$0xf]
  %v4703 = vld [vmem:[%s1272 + $0x30] sm:$0xf]
  %v4704 = vld [vmem:[%s1272 + $0x34] sm:$0xf]
  %v4705 = vld [vmem:[%s1272 + $0x38] sm:$0xf]
  %v4706 = vld [vmem:[%s1272 + $0x3c] sm:$0xf]
  %v4707 = vld [vmem:[%s1289] sm:$0x1]
  %v4709 = vlaneseq
  %v4710 = vshrl.u32 %v4709, 7
  %v4711 = vsub.s32 0, %v4710
  %v4712 = vrot.slane %v4707, %v4711
  %v4730 = vunpack.c.l.b16 %v4691
  %v4731 = vunpack.c.l.b16 %v4692
  %v4732 = vunpack.c.l.b16 %v4693
  %v4733 = vunpack.c.l.b16 %v4694
  %v4734 = vunpack.c.l.b16 %v4695
  %v4735 = vunpack.c.l.b16 %v4696
  %v4736 = vunpack.c.l.b16 %v4697
  %v4737 = vunpack.c.l.b16 %v4698
  %v4738 = vunpack.c.l.b16 %v4699
  %v4739 = vunpack.c.l.b16 %v4700
  %v4740 = vunpack.c.l.b16 %v4701
  %v4741 = vunpack.c.l.b16 %v4702
  %v4742 = vunpack.c.l.b16 %v4703
  %v4743 = vunpack.c.l.b16 %v4704
  %v4744 = vunpack.c.l.b16 %v4705
  %v4745 = vunpack.c.l.b16 %v4706
  %v4746 = vpack.c.b16 %v4731, %v4730
  %v4747 = vpack.c.b16 %v4733, %v4732
  %v4748 = vpack.c.b16 %v4735, %v4734
  %v4749 = vpack.c.b16 %v4737, %v4736
  %v4750 = vpack.c.b16 %v4739, %v4738
  %v4751 = vpack.c.b16 %v4741, %v4740
  %v4752 = vpack.c.b16 %v4743, %v4742
  %v4753 = vpack.c.b16 %v4745, %v4744
  %4762 = vmatprep.subr.bf16.mxu0 0
  %4763 = vmatpush1.bf16.msra.mxu0 %v4746
  %4764 = vmatprep.subr.bf16.mxu0 0
  %4765 = vmatpush1.bf16.msra.mxu0 %v4747
  %4766 = vmatprep.subr.bf16.mxu0 0
  %4767 = vmatpush1.bf16.msra.mxu0 %v4748
  %4768 = vmatprep.subr.bf16.mxu0 0
  %4769 = vmatpush1.bf16.msra.mxu0 %v4749
  %4770 = vmatprep.subr.bf16.mxu0 0
  %4771 = vmatpush1.bf16.msra.mxu0 %v4750
  %4772 = vmatprep.subr.bf16.mxu0 0
  %4773 = vmatpush1.bf16.msra.mxu0 %v4751
  %4774 = vmatprep.subr.bf16.mxu0 0
  %4775 = vmatpush1.bf16.msra.mxu0 %v4752
  %4776 = vmatprep.subr.bf16.mxu0 0
  %4777 = vmatpush1.bf16.msra.mxu0 %v4753
  %4778 = vmatprep.subr.bf16.mxu0 0
  %4779 = vmatpush1.bf16.msra.mxu0 0
  %4780 = vmatprep.subr.bf16.mxu0 0
  %4781 = vmatpush1.bf16.msra.mxu0 0
  %4782 = vmatprep.subr.bf16.mxu0 0
  %4783 = vmatpush1.bf16.msra.mxu0 0
  %4784 = vmatprep.subr.bf16.mxu0 0
  %4785 = vmatpush1.bf16.msra.mxu0 0
  %4786 = vmatprep.subr.bf16.mxu0 0
  %4787 = vmatpush1.bf16.msra.mxu0 0
  %4788 = vmatprep.subr.bf16.mxu0 0
  %4789 = vmatpush1.bf16.msra.mxu0 0
  %4790 = vmatprep.subr.bf16.mxu0 0
  %4791 = vmatpush1.bf16.msra.mxu0 0
  %4792 = vmatprep.subr.bf16.mxu0 0
  %4793 = vmatpush1.bf16.msra.mxu0 0
  %4794 = vmatprep.mubr.bf16.mxu0 0
  %4795 = vmatmul.mubr.bf16.gmra.mrb[0].mxu0 %v4688
  %v4796 = vpop.f32.mrb[0].mxu0
  %v4797 = vadd.f32 %v4712, %v4796
  %v4798 = vpop.f32.mrb[0].mxu0
  %v4799 = vpop.f32.mrb[0].mxu0
  %v4800 = vpop.f32.mrb[0].mxu0
  %4801 = vdwg.mxu0
  %v4802 = vld [vmem:[%s1385] sm:$0xff]
  %v4803 = vmul.f32 %v4802, 0.8
  %v4804 = vadd.f32 %v4803, %v4797
  %v4805 = vld [vmem:[%s1389] sm:$0xf]
  %v4806 = vmul.bf16 %v4805, 1056980736
  %v4807 = vunpack.c.l.bf16 %v4806
  %v4808 = vsub.f32 %v4804, %v4807
  %vm4809 = vcmp.gt.f32.partialorder %v4808, 0.5
  %v4810 = vsel %vm4809, 1, 0
  %v4811 = vcvt.s32.f32 %v4810
  %v4812 = vpack.c.bf16 %v4811, %v4811
  %4813 = vst [vmem:[%s1385] sm:$0xff] %v4808
  %4814 = vst [vmem:[%s1389] sm:$0xf] %v4812
  %v4815 = vld [vmem:[%s1400] sm:$0xf]
  %v4816 = vld [vmem:[%s1400 + $0x4] sm:$0xf]
  %v4817 = vld [vmem:[%s1400 + $0x8] sm:$0xf]
  %v4818 = vld [vmem:[%s1400 + $0xc] sm:$0xf]
  %v4819 = vld [vmem:[%s1400 + $0x10] sm:$0xf]
  %v4820 = vld [vmem:[%s1400 + $0x14] sm:$0xf]
  %v4821 = vld [vmem:[%s1400 + $0x18] sm:$0xf]
  %v4822 = vld [vmem:[%s1400 + $0x1c] sm:$0xf]
  %v4823 = vld [vmem:[%s1400 + $0x20] sm:$0xf]
  %v4824 = vld [vmem:[%s1400 + $0x24] sm:$0xf]
  %v4825 = vld [vmem:[%s1400 + $0x28] sm:$0xf]
  %v4826 = vld [vmem:[%s1400 + $0x2c] sm:$0xf]
  %v4827 = vld [vmem:[%s1400 + $0x30] sm:$0xf]
  %v4828 = vld [vmem:[%s1400 + $0x34] sm:$0xf]
  %v4829 = vld [vmem:[%s1400 + $0x38] sm:$0xf]
  %v4830 = vld [vmem:[%s1400 + $0x3c] sm:$0xf]
  %v4831 = vld [vmem:[%s1417] sm:$0x1]
  %v4833 = vlaneseq
  %v4834 = vshrl.u32 %v4833, 7
  %v4835 = vsub.s32 0, %v4834
  %v4836 = vrot.slane %v4831, %v4835
  %v4854 = vunpack.c.l.b16 %v4815
  %v4855 = vunpack.c.l.b16 %v4816
  %v4856 = vunpack.c.l.b16 %v4817
  %v4857 = vunpack.c.l.b16 %v4818
  %v4858 = vunpack.c.l.b16 %v4819
  %v4859 = vunpack.c.l.b16 %v4820
  %v4860 = vunpack.c.l.b16 %v4821
  %v4861 = vunpack.c.l.b16 %v4822
  %v4862 = vunpack.c.l.b16 %v4823
  %v4863 = vunpack.c.l.b16 %v4824
  %v4864 = vunpack.c.l.b16 %v4825
  %v4865 = vunpack.c.l.b16 %v4826
  %v4866 = vunpack.c.l.b16 %v4827
  %v4867 = vunpack.c.l.b16 %v4828
  %v4868 = vunpack.c.l.b16 %v4829
  %v4869 = vunpack.c.l.b16 %v4830
  %v4870 = vpack.c.b16 %v4855, %v4854
  %v4871 = vpack.c.b16 %v4857, %v4856
  %v4872 = vpack.c.b16 %v4859, %v4858
  %v4873 = vpack.c.b16 %v4861, %v4860
  %v4874 = vpack.c.b16 %v4863, %v4862
  %v4875 = vpack.c.b16 %v4865, %v4864
  %v4876 = vpack.c.b16 %v4867, %v4866
  %v4877 = vpack.c.b16 %v4869, %v4868
  %4886 = vmatprep.subr.bf16.mxu0 0
  %4887 = vmatpush1.bf16.msra.mxu0 %v4870
  %4888 = vmatprep.subr.bf16.mxu0 0
  %4889 = vmatpush1.bf16.msra.mxu0 %v4871
  %4890 = vmatprep.subr.bf16.mxu0 0
  %4891 = vmatpush1.bf16.msra.mxu0 %v4872
  %4892 = vmatprep.subr.bf16.mxu0 0
  %4893 = vmatpush1.bf16.msra.mxu0 %v4873
  %4894 = vmatprep.subr.bf16.mxu0 0
  %4895 = vmatpush1.bf16.msra.mxu0 %v4874
  %4896 = vmatprep.subr.bf16.mxu0 0
  %4897 = vmatpush1.bf16.msra.mxu0 %v4875
  %4898 = vmatprep.subr.bf16.mxu0 0
  %4899 = vmatpush1.bf16.msra.mxu0 %v4876
  %4900 = vmatprep.subr.bf16.mxu0 0
  %4901 = vmatpush1.bf16.msra.mxu0 %v4877
  %4902 = vmatprep.subr.bf16.mxu0 0
  %4903 = vmatpush1.bf16.msra.mxu0 0
  %4904 = vmatprep.subr.bf16.mxu0 0
  %4905 = vmatpush1.bf16.msra.mxu0 0
  %4906 = vmatprep.subr.bf16.mxu0 0
  %4907 = vmatpush1.bf16.msra.mxu0 0
  %4908 = vmatprep.subr.bf16.mxu0 0
  %4909 = vmatpush1.bf16.msra.mxu0 0
  %4910 = vmatprep.subr.bf16.mxu0 0
  %4911 = vmatpush1.bf16.msra.mxu0 0
  %4912 = vmatprep.subr.bf16.mxu0 0
  %4913 = vmatpush1.bf16.msra.mxu0 0
  %4914 = vmatprep.subr.bf16.mxu0 0
  %4915 = vmatpush1.bf16.msra.mxu0 0
  %4916 = vmatprep.subr.bf16.mxu0 0
  %4917 = vmatpush1.bf16.msra.mxu0 0
  %4918 = vmatprep.mubr.bf16.mxu0 0
  %4919 = vmatmul.mubr.bf16.gmra.mrb[0].mxu0 %v4812
  %v4920 = vpop.f32.mrb[0].mxu0
  %v4921 = vadd.f32 %v4836, %v4920
  %v4922 = vpop.f32.mrb[0].mxu0
  %v4923 = vpop.f32.mrb[0].mxu0
  %v4924 = vpop.f32.mrb[0].mxu0
  %4925 = vdwg.mxu0
  %v4926 = vld [vmem:[%s1513] sm:$0xff]
  %v4927 = vmul.f32 %v4926, 0.8
  %v4928 = vadd.f32 %v4927, %v4921
  %v4929 = vld [vmem:[%s1517] sm:$0xf]
  %v4930 = vmul.bf16 %v4929, 1056980736
  %v4931 = vunpack.c.l.bf16 %v4930
  %v4932 = vsub.f32 %v4928, %v4931
  %vm4933 = vcmp.gt.f32.partialorder %v4932, 0.5
  %v4934 = vsel %vm4933, 1, 0
  %v4935 = vcvt.s32.f32 %v4934
  %v4936 = vpack.c.bf16 %v4935, %v4935
  %4937 = vst [vmem:[%s1513] sm:$0xff] %v4932
  %4938 = vst [vmem:[%s1517] sm:$0xf] %v4936
  %v4939 = vld [vmem:[%s5] sm:$0xf]
  %v4940 = vld [vmem:[%s5 + $0x4] sm:$0xf]
  %v4941 = vld [vmem:[%s5 + $0x8] sm:$0xf]
  %v4942 = vld [vmem:[%s5 + $0xc] sm:$0xf]
  %v4943 = vld [vmem:[%s5 + $0x10] sm:$0xf]
  %v4944 = vld [vmem:[%s5 + $0x14] sm:$0xf]
  %v4945 = vld [vmem:[%s5 + $0x18] sm:$0xf]
  %v4946 = vld [vmem:[%s5 + $0x1c] sm:$0xf]
  %v4947 = vld [vmem:[%s5 + $0x20] sm:$0xf]
  %v4948 = vld [vmem:[%s5 + $0x24] sm:$0xf]
  %v4949 = vld [vmem:[%s5 + $0x28] sm:$0xf]
  %v4950 = vld [vmem:[%s5 + $0x2c] sm:$0xf]
  %v4951 = vld [vmem:[%s5 + $0x30] sm:$0xf]
  %v4952 = vld [vmem:[%s5 + $0x34] sm:$0xf]
  %v4953 = vld [vmem:[%s5 + $0x38] sm:$0xf]
  %v4954 = vld [vmem:[%s5 + $0x3c] sm:$0xf]
  %v4955 = vld [vmem:[%s6] sm:$0x1]
  %v4957 = vlaneseq
  %v4958 = vshrl.u32 %v4957, 7
  %v4959 = vsub.s32 0, %v4958
  %v4960 = vrot.slane %v4955, %v4959
  %v4978 = vunpack.c.l.b16 %v4939
  %v4979 = vunpack.c.l.b16 %v4940
  %v4980 = vunpack.c.l.b16 %v4941
  %v4981 = vunpack.c.l.b16 %v4942
  %v4982 = vunpack.c.l.b16 %v4943
  %v4983 = vunpack.c.l.b16 %v4944
  %v4984 = vunpack.c.l.b16 %v4945
  %v4985 = vunpack.c.l.b16 %v4946
  %v4986 = vunpack.c.l.b16 %v4947
  %v4987 = vunpack.c.l.b16 %v4948
  %v4988 = vunpack.c.l.b16 %v4949
  %v4989 = vunpack.c.l.b16 %v4950
  %v4990 = vunpack.c.l.b16 %v4951
  %v4991 = vunpack.c.l.b16 %v4952
  %v4992 = vunpack.c.l.b16 %v4953
  %v4993 = vunpack.c.l.b16 %v4954
  %v4994 = vpack.c.b16 %v4979, %v4978
  %v4995 = vpack.c.b16 %v4981, %v4980
  %v4996 = vpack.c.b16 %v4983, %v4982
  %v4997 = vpack.c.b16 %v4985, %v4984
  %v4998 = vpack.c.b16 %v4987, %v4986
  %v4999 = vpack.c.b16 %v4989, %v4988
  %v5000 = vpack.c.b16 %v4991, %v4990
  %v5001 = vpack.c.b16 %v4993, %v4992
  %5010 = vmatprep.subr.bf16.mxu0 0
  %5011 = vmatpush1.bf16.msra.mxu0 %v4994
  %5012 = vmatprep.subr.bf16.mxu0 0
  %5013 = vmatpush1.bf16.msra.mxu0 %v4995
  %5014 = vmatprep.subr.bf16.mxu0 0
  %5015 = vmatpush1.bf16.msra.mxu0 %v4996
  %5016 = vmatprep.subr.bf16.mxu0 0
  %5017 = vmatpush1.bf16.msra.mxu0 %v4997
  %5018 = vmatprep.subr.bf16.mxu0 0
  %5019 = vmatpush1.bf16.msra.mxu0 %v4998
  %5020 = vmatprep.subr.bf16.mxu0 0
  %5021 = vmatpush1.bf16.msra.mxu0 %v4999
  %5022 = vmatprep.subr.bf16.mxu0 0
  %5023 = vmatpush1.bf16.msra.mxu0 %v5000
  %5024 = vmatprep.subr.bf16.mxu0 0
  %5025 = vmatpush1.bf16.msra.mxu0 %v5001
  %5026 = vmatprep.subr.bf16.mxu0 0
  %5027 = vmatpush1.bf16.msra.mxu0 0
  %5028 = vmatprep.subr.bf16.mxu0 0
  %5029 = vmatpush1.bf16.msra.mxu0 0
  %5030 = vmatprep.subr.bf16.mxu0 0
  %5031 = vmatpush1.bf16.msra.mxu0 0
  %5032 = vmatprep.subr.bf16.mxu0 0
  %5033 = vmatpush1.bf16.msra.mxu0 0
  %5034 = vmatprep.subr.bf16.mxu0 0
  %5035 = vmatpush1.bf16.msra.mxu0 0
  %5036 = vmatprep.subr.bf16.mxu0 0
  %5037 = vmatpush1.bf16.msra.mxu0 0
  %5038 = vmatprep.subr.bf16.mxu0 0
  %5039 = vmatpush1.bf16.msra.mxu0 0
  %5040 = vmatprep.subr.bf16.mxu0 0
  %5041 = vmatpush1.bf16.msra.mxu0 0
  %5042 = vmatprep.mubr.bf16.mxu0 0
  %5043 = vmatmul.mubr.bf16.gmra.mrb[0].mxu0 %v4936
  %v5044 = vpop.f32.mrb[0].mxu0
  %v5045 = vadd.f32 %v4960, %v5044
  %v5046 = vpop.f32.mrb[0].mxu0
  %v5047 = vpop.f32.mrb[0].mxu0
  %v5048 = vpop.f32.mrb[0].mxu0
  %5049 = vdwg.mxu0
  %v5050 = vld [vmem:[#allocation5] sm:$0xff]
  %v5051 = vmul.f32 %v5050, 0.8
  %v5052 = vadd.f32 %v5051, %v5045
  %v5053 = vld [vmem:[#allocation6] sm:$0xff]
  %v5054 = vmul.f32 %v5053, 0.5
  %v5055 = vsub.f32 %v5052, %v5054
  %vm5056 = vcmp.gt.f32.partialorder %v5055, 0.5
  %v5057 = vsel %vm5056, 1, 0
  %v5058 = vcvt.s32.f32 %v5057
  %5059 = vst [vmem:[#allocation5] sm:$0xff] %v5055
  %5060 = vst [vmem:[#allocation6] sm:$0xff] %v5058
  %v5061 = vld [vmem:[%s7] sm:$0xff]
  %v5062 = vadd.f32 %v5061, %v5058
  %5063 = vst [vmem:[%s7] sm:$0xff] %v5062
  %5064 = vadd.xlane.f32.xlu0 %v5058
  %v5065 = vpop.xlane.xlu0 %5064
  %vm5066 = vcmp.eq.s32.totalorder %v491, 19
  %v5067 = vld [vmem:[#allocation7] sm:$0xff]
  %v5068 = vsel %vm5066, %v5065, %v5067
  %5069 = vst [vmem:[#allocation7] sm:$0xff] %v5068
  %v5070 = vld [vmem:[#allocation2] sm:$0xff]
  %v5071 = vld [vmem:[#allocation3] sm:$0xff]
  %v5072 = vmul.f32 %v5071, 0.8
  %v5073 = vadd.f32 %v5072, %v5070
  %v5074 = vld [vmem:[#allocation4] sm:$0xf]
  %v5075 = vmul.bf16 %v5074, 1056980736
  %v5076 = vunpack.c.l.bf16 %v5075
  %v5077 = vsub.f32 %v5073, %v5076
  %vm5078 = vcmp.gt.f32.partialorder %v5077, 0.5
  %v5079 = vsel %vm5078, 1, 0
  %v5080 = vcvt.s32.f32 %v5079
  %v5081 = vpack.c.bf16 %v5080, %v5080
  %5082 = vst [vmem:[#allocation3] sm:$0xff] %v5077
  %5083 = vst [vmem:[#allocation4] sm:$0xf] %v5081
  %v5084 = vld [vmem:[%s3] sm:$0xf]
  %v5085 = vld [vmem:[%s3 + $0x4] sm:$0xf]
  %v5086 = vld [vmem:[%s3 + $0x8] sm:$0xf]
  %v5087 = vld [vmem:[%s3 + $0xc] sm:$0xf]
  %v5088 = vld [vmem:[%s3 + $0x10] sm:$0xf]
  %v5089 = vld [vmem:[%s3 + $0x14] sm:$0xf]
  %v5090 = vld [vmem:[%s3 + $0x18] sm:$0xf]
  %v5091 = vld [vmem:[%s3 + $0x1c] sm:$0xf]
  %v5092 = vld [vmem:[%s3 + $0x20] sm:$0xf]
  %v5093 = vld [vmem:[%s3 + $0x24] sm:$0xf]
  %v5094 = vld [vmem:[%s3 + $0x28] sm:$0xf]
  %v5095 = vld [vmem:[%s3 + $0x2c] sm:$0xf]
  %v5096 = vld [vmem:[%s3 + $0x30] sm:$0xf]
  %v5097 = vld [vmem:[%s3 + $0x34] sm:$0xf]
  %v5098 = vld [vmem:[%s3 + $0x38] sm:$0xf]
  %v5099 = vld [vmem:[%s3 + $0x3c] sm:$0xf]
  %v5100 = vld [vmem:[%s4] sm:$0x1]
  %v5102 = vlaneseq
  %v5103 = vshrl.u32 %v5102, 7
  %v5104 = vsub.s32 0, %v5103
  %v5105 = vrot.slane %v5100, %v5104
  %v5123 = vunpack.c.l.b16 %v5084
  %v5124 = vunpack.c.l.b16 %v5085
  %v5125 = vunpack.c.l.b16 %v5086
  %v5126 = vunpack.c.l.b16 %v5087
  %v5127 = vunpack.c.l.b16 %v5088
  %v5128 = vunpack.c.l.b16 %v5089
  %v5129 = vunpack.c.l.b16 %v5090
  %v5130 = vunpack.c.l.b16 %v5091
  %v5131 = vunpack.c.l.b16 %v5092
  %v5132 = vunpack.c.l.b16 %v5093
  %v5133 = vunpack.c.l.b16 %v5094
  %v5134 = vunpack.c.l.b16 %v5095
  %v5135 = vunpack.c.l.b16 %v5096
  %v5136 = vunpack.c.l.b16 %v5097
  %v5137 = vunpack.c.l.b16 %v5098
  %v5138 = vunpack.c.l.b16 %v5099
  %v5139 = vpack.c.b16 %v5124, %v5123
  %v5140 = vpack.c.b16 %v5126, %v5125
  %v5141 = vpack.c.b16 %v5128, %v5127
  %v5142 = vpack.c.b16 %v5130, %v5129
  %v5143 = vpack.c.b16 %v5132, %v5131
  %v5144 = vpack.c.b16 %v5134, %v5133
  %v5145 = vpack.c.b16 %v5136, %v5135
  %v5146 = vpack.c.b16 %v5138, %v5137
  %5155 = vmatprep.subr.bf16.mxu0 0
  %5156 = vmatpush1.bf16.msra.mxu0 %v5139
  %5157 = vmatprep.subr.bf16.mxu0 0
  %5158 = vmatpush1.bf16.msra.mxu0 %v5140
  %5159 = vmatprep.subr.bf16.mxu0 0
  %5160 = vmatpush1.bf16.msra.mxu0 %v5141
  %5161 = vmatprep.subr.bf16.mxu0 0
  %5162 = vmatpush1.bf16.msra.mxu0 %v5142
  %5163 = vmatprep.subr.bf16.mxu0 0
  %5164 = vmatpush1.bf16.msra.mxu0 %v5143
  %5165 = vmatprep.subr.bf16.mxu0 0
  %5166 = vmatpush1.bf16.msra.mxu0 %v5144
  %5167 = vmatprep.subr.bf16.mxu0 0
  %5168 = vmatpush1.bf16.msra.mxu0 %v5145
  %5169 = vmatprep.subr.bf16.mxu0 0
  %5170 = vmatpush1.bf16.msra.mxu0 %v5146
  %5171 = vmatprep.subr.bf16.mxu0 0
  %5172 = vmatpush1.bf16.msra.mxu0 0
  %5173 = vmatprep.subr.bf16.mxu0 0
  %5174 = vmatpush1.bf16.msra.mxu0 0
  %5175 = vmatprep.subr.bf16.mxu0 0
  %5176 = vmatpush1.bf16.msra.mxu0 0
  %5177 = vmatprep.subr.bf16.mxu0 0
  %5178 = vmatpush1.bf16.msra.mxu0 0
  %5179 = vmatprep.subr.bf16.mxu0 0
  %5180 = vmatpush1.bf16.msra.mxu0 0
  %5181 = vmatprep.subr.bf16.mxu0 0
  %5182 = vmatpush1.bf16.msra.mxu0 0
  %5183 = vmatprep.subr.bf16.mxu0 0
  %5184 = vmatpush1.bf16.msra.mxu0 0
  %5185 = vmatprep.subr.bf16.mxu0 0
  %5186 = vmatpush1.bf16.msra.mxu0 0
  %5187 = vmatprep.mubr.bf16.mxu0 0
  %5188 = vmatmul.mubr.bf16.gmra.mrb[0].mxu0 %v5081
  %v5189 = vpop.f32.mrb[0].mxu0
  %v5190 = vadd.f32 %v5105, %v5189
  %v5191 = vpop.f32.mrb[0].mxu0
  %v5192 = vpop.f32.mrb[0].mxu0
  %v5193 = vpop.f32.mrb[0].mxu0
  %5194 = vdwg.mxu0
  %v5195 = vld [vmem:[%s617] sm:$0xff]
  %v5196 = vmul.f32 %v5195, 0.8
  %v5197 = vadd.f32 %v5196, %v5190
  %v5198 = vld [vmem:[%s621] sm:$0xf]
  %v5199 = vmul.bf16 %v5198, 1056980736
  %v5200 = vunpack.c.l.bf16 %v5199
  %v5201 = vsub.f32 %v5197, %v5200
  %vm5202 = vcmp.gt.f32.partialorder %v5201, 0.5
  %v5203 = vsel %vm5202, 1, 0
  %v5204 = vcvt.s32.f32 %v5203
  %v5205 = vpack.c.bf16 %v5204, %v5204
  %5206 = vst [vmem:[%s617] sm:$0xff] %v5201
  %5207 = vst [vmem:[%s621] sm:$0xf] %v5205
  %v5208 = vld [vmem:[%s632] sm:$0xf]
  %v5209 = vld [vmem:[%s632 + $0x4] sm:$0xf]
  %v5210 = vld [vmem:[%s632 + $0x8] sm:$0xf]
  %v5211 = vld [vmem:[%s632 + $0xc] sm:$0xf]
  %v5212 = vld [vmem:[%s632 + $0x10] sm:$0xf]
  %v5213 = vld [vmem:[%s632 + $0x14] sm:$0xf]
  %v5214 = vld [vmem:[%s632 + $0x18] sm:$0xf]
  %v5215 = vld [vmem:[%s632 + $0x1c] sm:$0xf]
  %v5216 = vld [vmem:[%s632 + $0x20] sm:$0xf]
  %v5217 = vld [vmem:[%s632 + $0x24] sm:$0xf]
  %v5218 = vld [vmem:[%s632 + $0x28] sm:$0xf]
  %v5219 = vld [vmem:[%s632 + $0x2c] sm:$0xf]
  %v5220 = vld [vmem:[%s632 + $0x30] sm:$0xf]
  %v5221 = vld [vmem:[%s632 + $0x34] sm:$0xf]
  %v5222 = vld [vmem:[%s632 + $0x38] sm:$0xf]
  %v5223 = vld [vmem:[%s632 + $0x3c] sm:$0xf]
  %v5224 = vld [vmem:[%s649] sm:$0x1]
  %v5226 = vlaneseq
  %v5227 = vshrl.u32 %v5226, 7
  %v5228 = vsub.s32 0, %v5227
  %v5229 = vrot.slane %v5224, %v5228
  %v5247 = vunpack.c.l.b16 %v5208
  %v5248 = vunpack.c.l.b16 %v5209
  %v5249 = vunpack.c.l.b16 %v5210
  %v5250 = vunpack.c.l.b16 %v5211
  %v5251 = vunpack.c.l.b16 %v5212
  %v5252 = vunpack.c.l.b16 %v5213
  %v5253 = vunpack.c.l.b16 %v5214
  %v5254 = vunpack.c.l.b16 %v5215
  %v5255 = vunpack.c.l.b16 %v5216
  %v5256 = vunpack.c.l.b16 %v5217
  %v5257 = vunpack.c.l.b16 %v5218
  %v5258 = vunpack.c.l.b16 %v5219
  %v5259 = vunpack.c.l.b16 %v5220
  %v5260 = vunpack.c.l.b16 %v5221
  %v5261 = vunpack.c.l.b16 %v5222
  %v5262 = vunpack.c.l.b16 %v5223
  %v5263 = vpack.c.b16 %v5248, %v5247
  %v5264 = vpack.c.b16 %v5250, %v5249
  %v5265 = vpack.c.b16 %v5252, %v5251
  %v5266 = vpack.c.b16 %v5254, %v5253
  %v5267 = vpack.c.b16 %v5256, %v5255
  %v5268 = vpack.c.b16 %v5258, %v5257
  %v5269 = vpack.c.b16 %v5260, %v5259
  %v5270 = vpack.c.b16 %v5262, %v5261
  %5279 = vmatprep.subr.bf16.mxu0 0
  %5280 = vmatpush1.bf16.msra.mxu0 %v5263
  %5281 = vmatprep.subr.bf16.mxu0 0
  %5282 = vmatpush1.bf16.msra.mxu0 %v5264
  %5283 = vmatprep.subr.bf16.mxu0 0
  %5284 = vmatpush1.bf16.msra.mxu0 %v5265
  %5285 = vmatprep.subr.bf16.mxu0 0
  %5286 = vmatpush1.bf16.msra.mxu0 %v5266
  %5287 = vmatprep.subr.bf16.mxu0 0
  %5288 = vmatpush1.bf16.msra.mxu0 %v5267
  %5289 = vmatprep.subr.bf16.mxu0 0
  %5290 = vmatpush1.bf16.msra.mxu0 %v5268
  %5291 = vmatprep.subr.bf16.mxu0 0
  %5292 = vmatpush1.bf16.msra.mxu0 %v5269
  %5293 = vmatprep.subr.bf16.mxu0 0
  %5294 = vmatpush1.bf16.msra.mxu0 %v5270
  %5295 = vmatprep.subr.bf16.mxu0 0
  %5296 = vmatpush1.bf16.msra.mxu0 0
  %5297 = vmatprep.subr.bf16.mxu0 0
  %5298 = vmatpush1.bf16.msra.mxu0 0
  %5299 = vmatprep.subr.bf16.mxu0 0
  %5300 = vmatpush1.bf16.msra.mxu0 0
  %5301 = vmatprep.subr.bf16.mxu0 0
  %5302 = vmatpush1.bf16.msra.mxu0 0
  %5303 = vmatprep.subr.bf16.mxu0 0
  %5304 = vmatpush1.bf16.msra.mxu0 0
  %5305 = vmatprep.subr.bf16.mxu0 0
  %5306 = vmatpush1.bf16.msra.mxu0 0
  %5307 = vmatprep.subr.bf16.mxu0 0
  %5308 = vmatpush1.bf16.msra.mxu0 0
  %5309 = vmatprep.subr.bf16.mxu0 0
  %5310 = vmatpush1.bf16.msra.mxu0 0
  %5311 = vmatprep.mubr.bf16.mxu0 0
  %5312 = vmatmul.mubr.bf16.gmra.mrb[0].mxu0 %v5205
  %v5313 = vpop.f32.mrb[0].mxu0
  %v5314 = vadd.f32 %v5229, %v5313
  %v5315 = vpop.f32.mrb[0].mxu0
  %v5316 = vpop.f32.mrb[0].mxu0
  %v5317 = vpop.f32.mrb[0].mxu0
  %5318 = vdwg.mxu0
  %v5319 = vld [vmem:[%s745] sm:$0xff]
  %v5320 = vmul.f32 %v5319, 0.8
  %v5321 = vadd.f32 %v5320, %v5314
  %v5322 = vld [vmem:[%s749] sm:$0xf]
  %v5323 = vmul.bf16 %v5322, 1056980736
  %v5324 = vunpack.c.l.bf16 %v5323
  %v5325 = vsub.f32 %v5321, %v5324
  %vm5326 = vcmp.gt.f32.partialorder %v5325, 0.5
  %v5327 = vsel %vm5326, 1, 0
  %v5328 = vcvt.s32.f32 %v5327
  %v5329 = vpack.c.bf16 %v5328, %v5328
  %5330 = vst [vmem:[%s745] sm:$0xff] %v5325
  %5331 = vst [vmem:[%s749] sm:$0xf] %v5329
  %v5332 = vld [vmem:[%s760] sm:$0xf]
  %v5333 = vld [vmem:[%s760 + $0x4] sm:$0xf]
  %v5334 = vld [vmem:[%s760 + $0x8] sm:$0xf]
  %v5335 = vld [vmem:[%s760 + $0xc] sm:$0xf]
  %v5336 = vld [vmem:[%s760 + $0x10] sm:$0xf]
  %v5337 = vld [vmem:[%s760 + $0x14] sm:$0xf]
  %v5338 = vld [vmem:[%s760 + $0x18] sm:$0xf]
  %v5339 = vld [vmem:[%s760 + $0x1c] sm:$0xf]
  %v5340 = vld [vmem:[%s760 + $0x20] sm:$0xf]
  %v5341 = vld [vmem:[%s760 + $0x24] sm:$0xf]
  %v5342 = vld [vmem:[%s760 + $0x28] sm:$0xf]
  %v5343 = vld [vmem:[%s760 + $0x2c] sm:$0xf]
  %v5344 = vld [vmem:[%s760 + $0x30] sm:$0xf]
  %v5345 = vld [vmem:[%s760 + $0x34] sm:$0xf]
  %v5346 = vld [vmem:[%s760 + $0x38] sm:$0xf]
  %v5347 = vld [vmem:[%s760 + $0x3c] sm:$0xf]
  %v5348 = vld [vmem:[%s777] sm:$0x1]
  %v5350 = vlaneseq
  %v5351 = vshrl.u32 %v5350, 7
  %v5352 = vsub.s32 0, %v5351
  %v5353 = vrot.slane %v5348, %v5352
  %v5371 = vunpack.c.l.b16 %v5332
  %v5372 = vunpack.c.l.b16 %v5333
  %v5373 = vunpack.c.l.b16 %v5334
  %v5374 = vunpack.c.l.b16 %v5335
  %v5375 = vunpack.c.l.b16 %v5336
  %v5376 = vunpack.c.l.b16 %v5337
  %v5377 = vunpack.c.l.b16 %v5338
  %v5378 = vunpack.c.l.b16 %v5339
  %v5379 = vunpack.c.l.b16 %v5340
  %v5380 = vunpack.c.l.b16 %v5341
  %v5381 = vunpack.c.l.b16 %v5342
  %v5382 = vunpack.c.l.b16 %v5343
  %v5383 = vunpack.c.l.b16 %v5344
  %v5384 = vunpack.c.l.b16 %v5345
  %v5385 = vunpack.c.l.b16 %v5346
  %v5386 = vunpack.c.l.b16 %v5347
  %v5387 = vpack.c.b16 %v5372, %v5371
  %v5388 = vpack.c.b16 %v5374, %v5373
  %v5389 = vpack.c.b16 %v5376, %v5375
  %v5390 = vpack.c.b16 %v5378, %v5377
  %v5391 = vpack.c.b16 %v5380, %v5379
  %v5392 = vpack.c.b16 %v5382, %v5381
  %v5393 = vpack.c.b16 %v5384, %v5383
  %v5394 = vpack.c.b16 %v5386, %v5385
  %5403 = vmatprep.subr.bf16.mxu0 0
  %5404 = vmatpush1.bf16.msra.mxu0 %v5387
  %5405 = vmatprep.subr.bf16.mxu0 0
  %5406 = vmatpush1.bf16.msra.mxu0 %v5388
  %5407 = vmatprep.subr.bf16.mxu0 0
  %5408 = vmatpush1.bf16.msra.mxu0 %v5389
  %5409 = vmatprep.subr.bf16.mxu0 0
  %5410 = vmatpush1.bf16.msra.mxu0 %v5390
  %5411 = vmatprep.subr.bf16.mxu0 0
  %5412 = vmatpush1.bf16.msra.mxu0 %v5391
  %5413 = vmatprep.subr.bf16.mxu0 0
  %5414 = vmatpush1.bf16.msra.mxu0 %v5392
  %5415 = vmatprep.subr.bf16.mxu0 0
  %5416 = vmatpush1.bf16.msra.mxu0 %v5393
  %5417 = vmatprep.subr.bf16.mxu0 0
  %5418 = vmatpush1.bf16.msra.mxu0 %v5394
  %5419 = vmatprep.subr.bf16.mxu0 0
  %5420 = vmatpush1.bf16.msra.mxu0 0
  %5421 = vmatprep.subr.bf16.mxu0 0
  %5422 = vmatpush1.bf16.msra.mxu0 0
  %5423 = vmatprep.subr.bf16.mxu0 0
  %5424 = vmatpush1.bf16.msra.mxu0 0
  %5425 = vmatprep.subr.bf16.mxu0 0
  %5426 = vmatpush1.bf16.msra.mxu0 0
  %5427 = vmatprep.subr.bf16.mxu0 0
  %5428 = vmatpush1.bf16.msra.mxu0 0
  %5429 = vmatprep.subr.bf16.mxu0 0
  %5430 = vmatpush1.bf16.msra.mxu0 0
  %5431 = vmatprep.subr.bf16.mxu0 0
  %5432 = vmatpush1.bf16.msra.mxu0 0
  %5433 = vmatprep.subr.bf16.mxu0 0
  %5434 = vmatpush1.bf16.msra.mxu0 0
  %5435 = vmatprep.mubr.bf16.mxu0 0
  %5436 = vmatmul.mubr.bf16.gmra.mrb[0].mxu0 %v5329
  %v5437 = vpop.f32.mrb[0].mxu0
  %v5438 = vadd.f32 %v5353, %v5437
  %v5439 = vpop.f32.mrb[0].mxu0
  %v5440 = vpop.f32.mrb[0].mxu0
  %v5441 = vpop.f32.mrb[0].mxu0
  %5442 = vdwg.mxu0
  %v5443 = vld [vmem:[%s873] sm:$0xff]
  %v5444 = vmul.f32 %v5443, 0.8
  %v5445 = vadd.f32 %v5444, %v5438
  %v5446 = vld [vmem:[%s877] sm:$0xf]
  %v5447 = vmul.bf16 %v5446, 1056980736
  %v5448 = vunpack.c.l.bf16 %v5447
  %v5449 = vsub.f32 %v5445, %v5448
  %vm5450 = vcmp.gt.f32.partialorder %v5449, 0.5
  %v5451 = vsel %vm5450, 1, 0
  %v5452 = vcvt.s32.f32 %v5451
  %v5453 = vpack.c.bf16 %v5452, %v5452
  %5454 = vst [vmem:[%s873] sm:$0xff] %v5449
  %5455 = vst [vmem:[%s877] sm:$0xf] %v5453
  %v5456 = vld [vmem:[%s888] sm:$0xf]
  %v5457 = vld [vmem:[%s888 + $0x4] sm:$0xf]
  %v5458 = vld [vmem:[%s888 + $0x8] sm:$0xf]
  %v5459 = vld [vmem:[%s888 + $0xc] sm:$0xf]
  %v5460 = vld [vmem:[%s888 + $0x10] sm:$0xf]
  %v5461 = vld [vmem:[%s888 + $0x14] sm:$0xf]
  %v5462 = vld [vmem:[%s888 + $0x18] sm:$0xf]
  %v5463 = vld [vmem:[%s888 + $0x1c] sm:$0xf]
  %v5464 = vld [vmem:[%s888 + $0x20] sm:$0xf]
  %v5465 = vld [vmem:[%s888 + $0x24] sm:$0xf]
  %v5466 = vld [vmem:[%s888 + $0x28] sm:$0xf]
  %v5467 = vld [vmem:[%s888 + $0x2c] sm:$0xf]
  %v5468 = vld [vmem:[%s888 + $0x30] sm:$0xf]
  %v5469 = vld [vmem:[%s888 + $0x34] sm:$0xf]
  %v5470 = vld [vmem:[%s888 + $0x38] sm:$0xf]
  %v5471 = vld [vmem:[%s888 + $0x3c] sm:$0xf]
  %v5472 = vld [vmem:[%s905] sm:$0x1]
  %v5474 = vlaneseq
  %v5475 = vshrl.u32 %v5474, 7
  %v5476 = vsub.s32 0, %v5475
  %v5477 = vrot.slane %v5472, %v5476
  %v5495 = vunpack.c.l.b16 %v5456
  %v5496 = vunpack.c.l.b16 %v5457
  %v5497 = vunpack.c.l.b16 %v5458
  %v5498 = vunpack.c.l.b16 %v5459
  %v5499 = vunpack.c.l.b16 %v5460
  %v5500 = vunpack.c.l.b16 %v5461
  %v5501 = vunpack.c.l.b16 %v5462
  %v5502 = vunpack.c.l.b16 %v5463
  %v5503 = vunpack.c.l.b16 %v5464
  %v5504 = vunpack.c.l.b16 %v5465
  %v5505 = vunpack.c.l.b16 %v5466
  %v5506 = vunpack.c.l.b16 %v5467
  %v5507 = vunpack.c.l.b16 %v5468
  %v5508 = vunpack.c.l.b16 %v5469
  %v5509 = vunpack.c.l.b16 %v5470
  %v5510 = vunpack.c.l.b16 %v5471
  %v5511 = vpack.c.b16 %v5496, %v5495
  %v5512 = vpack.c.b16 %v5498, %v5497
  %v5513 = vpack.c.b16 %v5500, %v5499
  %v5514 = vpack.c.b16 %v5502, %v5501
  %v5515 = vpack.c.b16 %v5504, %v5503
  %v5516 = vpack.c.b16 %v5506, %v5505
  %v5517 = vpack.c.b16 %v5508, %v5507
  %v5518 = vpack.c.b16 %v5510, %v5509
  %5527 = vmatprep.subr.bf16.mxu0 0
  %5528 = vmatpush1.bf16.msra.mxu0 %v5511
  %5529 = vmatprep.subr.bf16.mxu0 0
  %5530 = vmatpush1.bf16.msra.mxu0 %v5512
  %5531 = vmatprep.subr.bf16.mxu0 0
  %5532 = vmatpush1.bf16.msra.mxu0 %v5513
  %5533 = vmatprep.subr.bf16.mxu0 0
  %5534 = vmatpush1.bf16.msra.mxu0 %v5514
  %5535 = vmatprep.subr.bf16.mxu0 0
  %5536 = vmatpush1.bf16.msra.mxu0 %v5515
  %5537 = vmatprep.subr.bf16.mxu0 0
  %5538 = vmatpush1.bf16.msra.mxu0 %v5516
  %5539 = vmatprep.subr.bf16.mxu0 0
  %5540 = vmatpush1.bf16.msra.mxu0 %v5517
  %5541 = vmatprep.subr.bf16.mxu0 0
  %5542 = vmatpush1.bf16.msra.mxu0 %v5518
  %5543 = vmatprep.subr.bf16.mxu0 0
  %5544 = vmatpush1.bf16.msra.mxu0 0
  %5545 = vmatprep.subr.bf16.mxu0 0
  %5546 = vmatpush1.bf16.msra.mxu0 0
  %5547 = vmatprep.subr.bf16.mxu0 0
  %5548 = vmatpush1.bf16.msra.mxu0 0
  %5549 = vmatprep.subr.bf16.mxu0 0
  %5550 = vmatpush1.bf16.msra.mxu0 0
  %5551 = vmatprep.subr.bf16.mxu0 0
  %5552 = vmatpush1.bf16.msra.mxu0 0
  %5553 = vmatprep.subr.bf16.mxu0 0
  %5554 = vmatpush1.bf16.msra.mxu0 0
  %5555 = vmatprep.subr.bf16.mxu0 0
  %5556 = vmatpush1.bf16.msra.mxu0 0
  %5557 = vmatprep.subr.bf16.mxu0 0
  %5558 = vmatpush1.bf16.msra.mxu0 0
  %5559 = vmatprep.mubr.bf16.mxu0 0
  %5560 = vmatmul.mubr.bf16.gmra.mrb[0].mxu0 %v5453
  %v5561 = vpop.f32.mrb[0].mxu0
  %v5562 = vadd.f32 %v5477, %v5561
  %v5563 = vpop.f32.mrb[0].mxu0
  %v5564 = vpop.f32.mrb[0].mxu0
  %v5565 = vpop.f32.mrb[0].mxu0
  %5566 = vdwg.mxu0
  %v5567 = vld [vmem:[%s1001] sm:$0xff]
  %v5568 = vmul.f32 %v5567, 0.8
  %v5569 = vadd.f32 %v5568, %v5562
  %v5570 = vld [vmem:[%s1005] sm:$0xf]
  %v5571 = vmul.bf16 %v5570, 1056980736
  %v5572 = vunpack.c.l.bf16 %v5571
  %v5573 = vsub.f32 %v5569, %v5572
  %vm5574 = vcmp.gt.f32.partialorder %v5573, 0.5
  %v5575 = vsel %vm5574, 1, 0
  %v5576 = vcvt.s32.f32 %v5575
  %v5577 = vpack.c.bf16 %v5576, %v5576
  %5578 = vst [vmem:[%s1001] sm:$0xff] %v5573
  %5579 = vst [vmem:[%s1005] sm:$0xf] %v5577
  %v5580 = vld [vmem:[%s1016] sm:$0xf]
  %v5581 = vld [vmem:[%s1016 + $0x4] sm:$0xf]
  %v5582 = vld [vmem:[%s1016 + $0x8] sm:$0xf]
  %v5583 = vld [vmem:[%s1016 + $0xc] sm:$0xf]
  %v5584 = vld [vmem:[%s1016 + $0x10] sm:$0xf]
  %v5585 = vld [vmem:[%s1016 + $0x14] sm:$0xf]
  %v5586 = vld [vmem:[%s1016 + $0x18] sm:$0xf]
  %v5587 = vld [vmem:[%s1016 + $0x1c] sm:$0xf]
  %v5588 = vld [vmem:[%s1016 + $0x20] sm:$0xf]
  %v5589 = vld [vmem:[%s1016 + $0x24] sm:$0xf]
  %v5590 = vld [vmem:[%s1016 + $0x28] sm:$0xf]
  %v5591 = vld [vmem:[%s1016 + $0x2c] sm:$0xf]
  %v5592 = vld [vmem:[%s1016 + $0x30] sm:$0xf]
  %v5593 = vld [vmem:[%s1016 + $0x34] sm:$0xf]
  %v5594 = vld [vmem:[%s1016 + $0x38] sm:$0xf]
  %v5595 = vld [vmem:[%s1016 + $0x3c] sm:$0xf]
  %v5596 = vld [vmem:[%s1033] sm:$0x1]
  %v5598 = vlaneseq
  %v5599 = vshrl.u32 %v5598, 7
  %v5600 = vsub.s32 0, %v5599
  %v5601 = vrot.slane %v5596, %v5600
  %v5619 = vunpack.c.l.b16 %v5580
  %v5620 = vunpack.c.l.b16 %v5581
  %v5621 = vunpack.c.l.b16 %v5582
  %v5622 = vunpack.c.l.b16 %v5583
  %v5623 = vunpack.c.l.b16 %v5584
  %v5624 = vunpack.c.l.b16 %v5585
  %v5625 = vunpack.c.l.b16 %v5586
  %v5626 = vunpack.c.l.b16 %v5587
  %v5627 = vunpack.c.l.b16 %v5588
  %v5628 = vunpack.c.l.b16 %v5589
  %v5629 = vunpack.c.l.b16 %v5590
  %v5630 = vunpack.c.l.b16 %v5591
  %v5631 = vunpack.c.l.b16 %v5592
  %v5632 = vunpack.c.l.b16 %v5593
  %v5633 = vunpack.c.l.b16 %v5594
  %v5634 = vunpack.c.l.b16 %v5595
  %v5635 = vpack.c.b16 %v5620, %v5619
  %v5636 = vpack.c.b16 %v5622, %v5621
  %v5637 = vpack.c.b16 %v5624, %v5623
  %v5638 = vpack.c.b16 %v5626, %v5625
  %v5639 = vpack.c.b16 %v5628, %v5627
  %v5640 = vpack.c.b16 %v5630, %v5629
  %v5641 = vpack.c.b16 %v5632, %v5631
  %v5642 = vpack.c.b16 %v5634, %v5633
  %5651 = vmatprep.subr.bf16.mxu0 0
  %5652 = vmatpush1.bf16.msra.mxu0 %v5635
  %5653 = vmatprep.subr.bf16.mxu0 0
  %5654 = vmatpush1.bf16.msra.mxu0 %v5636
  %5655 = vmatprep.subr.bf16.mxu0 0
  %5656 = vmatpush1.bf16.msra.mxu0 %v5637
  %5657 = vmatprep.subr.bf16.mxu0 0
  %5658 = vmatpush1.bf16.msra.mxu0 %v5638
  %5659 = vmatprep.subr.bf16.mxu0 0
  %5660 = vmatpush1.bf16.msra.mxu0 %v5639
  %5661 = vmatprep.subr.bf16.mxu0 0
  %5662 = vmatpush1.bf16.msra.mxu0 %v5640
  %5663 = vmatprep.subr.bf16.mxu0 0
  %5664 = vmatpush1.bf16.msra.mxu0 %v5641
  %5665 = vmatprep.subr.bf16.mxu0 0
  %5666 = vmatpush1.bf16.msra.mxu0 %v5642
  %5667 = vmatprep.subr.bf16.mxu0 0
  %5668 = vmatpush1.bf16.msra.mxu0 0
  %5669 = vmatprep.subr.bf16.mxu0 0
  %5670 = vmatpush1.bf16.msra.mxu0 0
  %5671 = vmatprep.subr.bf16.mxu0 0
  %5672 = vmatpush1.bf16.msra.mxu0 0
  %5673 = vmatprep.subr.bf16.mxu0 0
  %5674 = vmatpush1.bf16.msra.mxu0 0
  %5675 = vmatprep.subr.bf16.mxu0 0
  %5676 = vmatpush1.bf16.msra.mxu0 0
  %5677 = vmatprep.subr.bf16.mxu0 0
  %5678 = vmatpush1.bf16.msra.mxu0 0
  %5679 = vmatprep.subr.bf16.mxu0 0
  %5680 = vmatpush1.bf16.msra.mxu0 0
  %5681 = vmatprep.subr.bf16.mxu0 0
  %5682 = vmatpush1.bf16.msra.mxu0 0
  %5683 = vmatprep.mubr.bf16.mxu0 0
  %5684 = vmatmul.mubr.bf16.gmra.mrb[0].mxu0 %v5577
  %v5685 = vpop.f32.mrb[0].mxu0
  %v5686 = vadd.f32 %v5601, %v5685
  %v5687 = vpop.f32.mrb[0].mxu0
  %v5688 = vpop.f32.mrb[0].mxu0
  %v5689 = vpop.f32.mrb[0].mxu0
  %5690 = vdwg.mxu0
  %v5691 = vld [vmem:[%s1129] sm:$0xff]
  %v5692 = vmul.f32 %v5691, 0.8
  %v5693 = vadd.f32 %v5692, %v5686
  %v5694 = vld [vmem:[%s1133] sm:$0xf]
  %v5695 = vmul.bf16 %v5694, 1056980736
  %v5696 = vunpack.c.l.bf16 %v5695
  %v5697 = vsub.f32 %v5693, %v5696
  %vm5698 = vcmp.gt.f32.partialorder %v5697, 0.5
  %v5699 = vsel %vm5698, 1, 0
  %v5700 = vcvt.s32.f32 %v5699
  %v5701 = vpack.c.bf16 %v5700, %v5700
  %5702 = vst [vmem:[%s1129] sm:$0xff] %v5697
  %5703 = vst [vmem:[%s1133] sm:$0xf] %v5701
  %v5704 = vld [vmem:[%s1144] sm:$0xf]
  %v5705 = vld [vmem:[%s1144 + $0x4] sm:$0xf]
  %v5706 = vld [vmem:[%s1144 + $0x8] sm:$0xf]
  %v5707 = vld [vmem:[%s1144 + $0xc] sm:$0xf]
  %v5708 = vld [vmem:[%s1144 + $0x10] sm:$0xf]
  %v5709 = vld [vmem:[%s1144 + $0x14] sm:$0xf]
  %v5710 = vld [vmem:[%s1144 + $0x18] sm:$0xf]
  %v5711 = vld [vmem:[%s1144 + $0x1c] sm:$0xf]
  %v5712 = vld [vmem:[%s1144 + $0x20] sm:$0xf]
  %v5713 = vld [vmem:[%s1144 + $0x24] sm:$0xf]
  %v5714 = vld [vmem:[%s1144 + $0x28] sm:$0xf]
  %v5715 = vld [vmem:[%s1144 + $0x2c] sm:$0xf]
  %v5716 = vld [vmem:[%s1144 + $0x30] sm:$0xf]
  %v5717 = vld [vmem:[%s1144 + $0x34] sm:$0xf]
  %v5718 = vld [vmem:[%s1144 + $0x38] sm:$0xf]
  %v5719 = vld [vmem:[%s1144 + $0x3c] sm:$0xf]
  %v5720 = vld [vmem:[%s1161] sm:$0x1]
  %v5722 = vlaneseq
  %v5723 = vshrl.u32 %v5722, 7
  %v5724 = vsub.s32 0, %v5723
  %v5725 = vrot.slane %v5720, %v5724
  %v5743 = vunpack.c.l.b16 %v5704
  %v5744 = vunpack.c.l.b16 %v5705
  %v5745 = vunpack.c.l.b16 %v5706
  %v5746 = vunpack.c.l.b16 %v5707
  %v5747 = vunpack.c.l.b16 %v5708
  %v5748 = vunpack.c.l.b16 %v5709
  %v5749 = vunpack.c.l.b16 %v5710
  %v5750 = vunpack.c.l.b16 %v5711
  %v5751 = vunpack.c.l.b16 %v5712
  %v5752 = vunpack.c.l.b16 %v5713
  %v5753 = vunpack.c.l.b16 %v5714
  %v5754 = vunpack.c.l.b16 %v5715
  %v5755 = vunpack.c.l.b16 %v5716
  %v5756 = vunpack.c.l.b16 %v5717
  %v5757 = vunpack.c.l.b16 %v5718
  %v5758 = vunpack.c.l.b16 %v5719
  %v5759 = vpack.c.b16 %v5744, %v5743
  %v5760 = vpack.c.b16 %v5746, %v5745
  %v5761 = vpack.c.b16 %v5748, %v5747
  %v5762 = vpack.c.b16 %v5750, %v5749
  %v5763 = vpack.c.b16 %v5752, %v5751
  %v5764 = vpack.c.b16 %v5754, %v5753
  %v5765 = vpack.c.b16 %v5756, %v5755
  %v5766 = vpack.c.b16 %v5758, %v5757
  %5775 = vmatprep.subr.bf16.mxu0 0
  %5776 = vmatpush1.bf16.msra.mxu0 %v5759
  %5777 = vmatprep.subr.bf16.mxu0 0
  %5778 = vmatpush1.bf16.msra.mxu0 %v5760
  %5779 = vmatprep.subr.bf16.mxu0 0
  %5780 = vmatpush1.bf16.msra.mxu0 %v5761
  %5781 = vmatprep.subr.bf16.mxu0 0
  %5782 = vmatpush1.bf16.msra.mxu0 %v5762
  %5783 = vmatprep.subr.bf16.mxu0 0
  %5784 = vmatpush1.bf16.msra.mxu0 %v5763
  %5785 = vmatprep.subr.bf16.mxu0 0
  %5786 = vmatpush1.bf16.msra.mxu0 %v5764
  %5787 = vmatprep.subr.bf16.mxu0 0
  %5788 = vmatpush1.bf16.msra.mxu0 %v5765
  %5789 = vmatprep.subr.bf16.mxu0 0
  %5790 = vmatpush1.bf16.msra.mxu0 %v5766
  %5791 = vmatprep.subr.bf16.mxu0 0
  %5792 = vmatpush1.bf16.msra.mxu0 0
  %5793 = vmatprep.subr.bf16.mxu0 0
  %5794 = vmatpush1.bf16.msra.mxu0 0
  %5795 = vmatprep.subr.bf16.mxu0 0
  %5796 = vmatpush1.bf16.msra.mxu0 0
  %5797 = vmatprep.subr.bf16.mxu0 0
  %5798 = vmatpush1.bf16.msra.mxu0 0
  %5799 = vmatprep.subr.bf16.mxu0 0
  %5800 = vmatpush1.bf16.msra.mxu0 0
  %5801 = vmatprep.subr.bf16.mxu0 0
  %5802 = vmatpush1.bf16.msra.mxu0 0
  %5803 = vmatprep.subr.bf16.mxu0 0
  %5804 = vmatpush1.bf16.msra.mxu0 0
  %5805 = vmatprep.subr.bf16.mxu0 0
  %5806 = vmatpush1.bf16.msra.mxu0 0
  %5807 = vmatprep.mubr.bf16.mxu0 0
  %5808 = vmatmul.mubr.bf16.gmra.mrb[0].mxu0 %v5701
  %v5809 = vpop.f32.mrb[0].mxu0
  %v5810 = vadd.f32 %v5725, %v5809
  %v5811 = vpop.f32.mrb[0].mxu0
  %v5812 = vpop.f32.mrb[0].mxu0
  %v5813 = vpop.f32.mrb[0].mxu0
  %5814 = vdwg.mxu0
  %v5815 = vld [vmem:[%s1257] sm:$0xff]
  %v5816 = vmul.f32 %v5815, 0.8
  %v5817 = vadd.f32 %v5816, %v5810
  %v5818 = vld [vmem:[%s1261] sm:$0xf]
  %v5819 = vmul.bf16 %v5818, 1056980736
  %v5820 = vunpack.c.l.bf16 %v5819
  %v5821 = vsub.f32 %v5817, %v5820
  %vm5822 = vcmp.gt.f32.partialorder %v5821, 0.5
  %v5823 = vsel %vm5822, 1, 0
  %v5824 = vcvt.s32.f32 %v5823
  %v5825 = vpack.c.bf16 %v5824, %v5824
  %5826 = vst [vmem:[%s1257] sm:$0xff] %v5821
  %5827 = vst [vmem:[%s1261] sm:$0xf] %v5825
  %v5828 = vld [vmem:[%s1272] sm:$0xf]
  %v5829 = vld [vmem:[%s1272 + $0x4] sm:$0xf]
  %v5830 = vld [vmem:[%s1272 + $0x8] sm:$0xf]
  %v5831 = vld [vmem:[%s1272 + $0xc] sm:$0xf]
  %v5832 = vld [vmem:[%s1272 + $0x10] sm:$0xf]
  %v5833 = vld [vmem:[%s1272 + $0x14] sm:$0xf]
  %v5834 = vld [vmem:[%s1272 + $0x18] sm:$0xf]
  %v5835 = vld [vmem:[%s1272 + $0x1c] sm:$0xf]
  %v5836 = vld [vmem:[%s1272 + $0x20] sm:$0xf]
  %v5837 = vld [vmem:[%s1272 + $0x24] sm:$0xf]
  %v5838 = vld [vmem:[%s1272 + $0x28] sm:$0xf]
  %v5839 = vld [vmem:[%s1272 + $0x2c] sm:$0xf]
  %v5840 = vld [vmem:[%s1272 + $0x30] sm:$0xf]
  %v5841 = vld [vmem:[%s1272 + $0x34] sm:$0xf]
  %v5842 = vld [vmem:[%s1272 + $0x38] sm:$0xf]
  %v5843 = vld [vmem:[%s1272 + $0x3c] sm:$0xf]
  %v5844 = vld [vmem:[%s1289] sm:$0x1]
  %v5846 = vlaneseq
  %v5847 = vshrl.u32 %v5846, 7
  %v5848 = vsub.s32 0, %v5847
  %v5849 = vrot.slane %v5844, %v5848
  %v5867 = vunpack.c.l.b16 %v5828
  %v5868 = vunpack.c.l.b16 %v5829
  %v5869 = vunpack.c.l.b16 %v5830
  %v5870 = vunpack.c.l.b16 %v5831
  %v5871 = vunpack.c.l.b16 %v5832
  %v5872 = vunpack.c.l.b16 %v5833
  %v5873 = vunpack.c.l.b16 %v5834
  %v5874 = vunpack.c.l.b16 %v5835
  %v5875 = vunpack.c.l.b16 %v5836
  %v5876 = vunpack.c.l.b16 %v5837
  %v5877 = vunpack.c.l.b16 %v5838
  %v5878 = vunpack.c.l.b16 %v5839
  %v5879 = vunpack.c.l.b16 %v5840
  %v5880 = vunpack.c.l.b16 %v5841
  %v5881 = vunpack.c.l.b16 %v5842
  %v5882 = vunpack.c.l.b16 %v5843
  %v5883 = vpack.c.b16 %v5868, %v5867
  %v5884 = vpack.c.b16 %v5870, %v5869
  %v5885 = vpack.c.b16 %v5872, %v5871
  %v5886 = vpack.c.b16 %v5874, %v5873
  %v5887 = vpack.c.b16 %v5876, %v5875
  %v5888 = vpack.c.b16 %v5878, %v5877
  %v5889 = vpack.c.b16 %v5880, %v5879
  %v5890 = vpack.c.b16 %v5882, %v5881
  %5899 = vmatprep.subr.bf16.mxu0 0
  %5900 = vmatpush1.bf16.msra.mxu0 %v5883
  %5901 = vmatprep.subr.bf16.mxu0 0
  %5902 = vmatpush1.bf16.msra.mxu0 %v5884
  %5903 = vmatprep.subr.bf16.mxu0 0
  %5904 = vmatpush1.bf16.msra.mxu0 %v5885
  %5905 = vmatprep.subr.bf16.mxu0 0
  %5906 = vmatpush1.bf16.msra.mxu0 %v5886
  %5907 = vmatprep.subr.bf16.mxu0 0
  %5908 = vmatpush1.bf16.msra.mxu0 %v5887
  %5909 = vmatprep.subr.bf16.mxu0 0
  %5910 = vmatpush1.bf16.msra.mxu0 %v5888
  %5911 = vmatprep.subr.bf16.mxu0 0
  %5912 = vmatpush1.bf16.msra.mxu0 %v5889
  %5913 = vmatprep.subr.bf16.mxu0 0
  %5914 = vmatpush1.bf16.msra.mxu0 %v5890
  %5915 = vmatprep.subr.bf16.mxu0 0
  %5916 = vmatpush1.bf16.msra.mxu0 0
  %5917 = vmatprep.subr.bf16.mxu0 0
  %5918 = vmatpush1.bf16.msra.mxu0 0
  %5919 = vmatprep.subr.bf16.mxu0 0
  %5920 = vmatpush1.bf16.msra.mxu0 0
  %5921 = vmatprep.subr.bf16.mxu0 0
  %5922 = vmatpush1.bf16.msra.mxu0 0
  %5923 = vmatprep.subr.bf16.mxu0 0
  %5924 = vmatpush1.bf16.msra.mxu0 0
  %5925 = vmatprep.subr.bf16.mxu0 0
  %5926 = vmatpush1.bf16.msra.mxu0 0
  %5927 = vmatprep.subr.bf16.mxu0 0
  %5928 = vmatpush1.bf16.msra.mxu0 0
  %5929 = vmatprep.subr.bf16.mxu0 0
  %5930 = vmatpush1.bf16.msra.mxu0 0
  %5931 = vmatprep.mubr.bf16.mxu0 0
  %5932 = vmatmul.mubr.bf16.gmra.mrb[0].mxu0 %v5825
  %v5933 = vpop.f32.mrb[0].mxu0
  %v5934 = vadd.f32 %v5849, %v5933
  %v5935 = vpop.f32.mrb[0].mxu0
  %v5936 = vpop.f32.mrb[0].mxu0
  %v5937 = vpop.f32.mrb[0].mxu0
  %5938 = vdwg.mxu0
  %v5939 = vld [vmem:[%s1385] sm:$0xff]
  %v5940 = vmul.f32 %v5939, 0.8
  %v5941 = vadd.f32 %v5940, %v5934
  %v5942 = vld [vmem:[%s1389] sm:$0xf]
  %v5943 = vmul.bf16 %v5942, 1056980736
  %v5944 = vunpack.c.l.bf16 %v5943
  %v5945 = vsub.f32 %v5941, %v5944
  %vm5946 = vcmp.gt.f32.partialorder %v5945, 0.5
  %v5947 = vsel %vm5946, 1, 0
  %v5948 = vcvt.s32.f32 %v5947
  %v5949 = vpack.c.bf16 %v5948, %v5948
  %5950 = vst [vmem:[%s1385] sm:$0xff] %v5945
  %5951 = vst [vmem:[%s1389] sm:$0xf] %v5949
  %v5952 = vld [vmem:[%s1400] sm:$0xf]
  %v5953 = vld [vmem:[%s1400 + $0x4] sm:$0xf]
  %v5954 = vld [vmem:[%s1400 + $0x8] sm:$0xf]
  %v5955 = vld [vmem:[%s1400 + $0xc] sm:$0xf]
  %v5956 = vld [vmem:[%s1400 + $0x10] sm:$0xf]
  %v5957 = vld [vmem:[%s1400 + $0x14] sm:$0xf]
  %v5958 = vld [vmem:[%s1400 + $0x18] sm:$0xf]
  %v5959 = vld [vmem:[%s1400 + $0x1c] sm:$0xf]
  %v5960 = vld [vmem:[%s1400 + $0x20] sm:$0xf]
  %v5961 = vld [vmem:[%s1400 + $0x24] sm:$0xf]
  %v5962 = vld [vmem:[%s1400 + $0x28] sm:$0xf]
  %v5963 = vld [vmem:[%s1400 + $0x2c] sm:$0xf]
  %v5964 = vld [vmem:[%s1400 + $0x30] sm:$0xf]
  %v5965 = vld [vmem:[%s1400 + $0x34] sm:$0xf]
  %v5966 = vld [vmem:[%s1400 + $0x38] sm:$0xf]
  %v5967 = vld [vmem:[%s1400 + $0x3c] sm:$0xf]
  %v5968 = vld [vmem:[%s1417] sm:$0x1]
  %v5970 = vlaneseq
  %v5971 = vshrl.u32 %v5970, 7
  %v5972 = vsub.s32 0, %v5971
  %v5973 = vrot.slane %v5968, %v5972
  %v5991 = vunpack.c.l.b16 %v5952
  %v5992 = vunpack.c.l.b16 %v5953
  %v5993 = vunpack.c.l.b16 %v5954
  %v5994 = vunpack.c.l.b16 %v5955
  %v5995 = vunpack.c.l.b16 %v5956
  %v5996 = vunpack.c.l.b16 %v5957
  %v5997 = vunpack.c.l.b16 %v5958
  %v5998 = vunpack.c.l.b16 %v5959
  %v5999 = vunpack.c.l.b16 %v5960
  %v6000 = vunpack.c.l.b16 %v5961
  %v6001 = vunpack.c.l.b16 %v5962
  %v6002 = vunpack.c.l.b16 %v5963
  %v6003 = vunpack.c.l.b16 %v5964
  %v6004 = vunpack.c.l.b16 %v5965
  %v6005 = vunpack.c.l.b16 %v5966
  %v6006 = vunpack.c.l.b16 %v5967
  %v6007 = vpack.c.b16 %v5992, %v5991
  %v6008 = vpack.c.b16 %v5994, %v5993
  %v6009 = vpack.c.b16 %v5996, %v5995
  %v6010 = vpack.c.b16 %v5998, %v5997
  %v6011 = vpack.c.b16 %v6000, %v5999
  %v6012 = vpack.c.b16 %v6002, %v6001
  %v6013 = vpack.c.b16 %v6004, %v6003
  %v6014 = vpack.c.b16 %v6006, %v6005
  %6023 = vmatprep.subr.bf16.mxu0 0
  %6024 = vmatpush1.bf16.msra.mxu0 %v6007
  %6025 = vmatprep.subr.bf16.mxu0 0
  %6026 = vmatpush1.bf16.msra.mxu0 %v6008
  %6027 = vmatprep.subr.bf16.mxu0 0
  %6028 = vmatpush1.bf16.msra.mxu0 %v6009
  %6029 = vmatprep.subr.bf16.mxu0 0
  %6030 = vmatpush1.bf16.msra.mxu0 %v6010
  %6031 = vmatprep.subr.bf16.mxu0 0
  %6032 = vmatpush1.bf16.msra.mxu0 %v6011
  %6033 = vmatprep.subr.bf16.mxu0 0
  %6034 = vmatpush1.bf16.msra.mxu0 %v6012
  %6035 = vmatprep.subr.bf16.mxu0 0
  %6036 = vmatpush1.bf16.msra.mxu0 %v6013
  %6037 = vmatprep.subr.bf16.mxu0 0
  %6038 = vmatpush1.bf16.msra.mxu0 %v6014
  %6039 = vmatprep.subr.bf16.mxu0 0
  %6040 = vmatpush1.bf16.msra.mxu0 0
  %6041 = vmatprep.subr.bf16.mxu0 0
  %6042 = vmatpush1.bf16.msra.mxu0 0
  %6043 = vmatprep.subr.bf16.mxu0 0
  %6044 = vmatpush1.bf16.msra.mxu0 0
  %6045 = vmatprep.subr.bf16.mxu0 0
  %6046 = vmatpush1.bf16.msra.mxu0 0
  %6047 = vmatprep.subr.bf16.mxu0 0
  %6048 = vmatpush1.bf16.msra.mxu0 0
  %6049 = vmatprep.subr.bf16.mxu0 0
  %6050 = vmatpush1.bf16.msra.mxu0 0
  %6051 = vmatprep.subr.bf16.mxu0 0
  %6052 = vmatpush1.bf16.msra.mxu0 0
  %6053 = vmatprep.subr.bf16.mxu0 0
  %6054 = vmatpush1.bf16.msra.mxu0 0
  %6055 = vmatprep.mubr.bf16.mxu0 0
  %6056 = vmatmul.mubr.bf16.gmra.mrb[0].mxu0 %v5949
  %v6057 = vpop.f32.mrb[0].mxu0
  %v6058 = vadd.f32 %v5973, %v6057
  %v6059 = vpop.f32.mrb[0].mxu0
  %v6060 = vpop.f32.mrb[0].mxu0
  %v6061 = vpop.f32.mrb[0].mxu0
  %6062 = vdwg.mxu0
  %v6063 = vld [vmem:[%s1513] sm:$0xff]
  %v6064 = vmul.f32 %v6063, 0.8
  %v6065 = vadd.f32 %v6064, %v6058
  %v6066 = vld [vmem:[%s1517] sm:$0xf]
  %v6067 = vmul.bf16 %v6066, 1056980736
  %v6068 = vunpack.c.l.bf16 %v6067
  %v6069 = vsub.f32 %v6065, %v6068
  %vm6070 = vcmp.gt.f32.partialorder %v6069, 0.5
  %v6071 = vsel %vm6070, 1, 0
  %v6072 = vcvt.s32.f32 %v6071
  %v6073 = vpack.c.bf16 %v6072, %v6072
  %6074 = vst [vmem:[%s1513] sm:$0xff] %v6069
  %6075 = vst [vmem:[%s1517] sm:$0xf] %v6073
  %v6076 = vld [vmem:[%s5] sm:$0xf]
  %v6077 = vld [vmem:[%s5 + $0x4] sm:$0xf]
  %v6078 = vld [vmem:[%s5 + $0x8] sm:$0xf]
  %v6079 = vld [vmem:[%s5 + $0xc] sm:$0xf]
  %v6080 = vld [vmem:[%s5 + $0x10] sm:$0xf]
  %v6081 = vld [vmem:[%s5 + $0x14] sm:$0xf]
  %v6082 = vld [vmem:[%s5 + $0x18] sm:$0xf]
  %v6083 = vld [vmem:[%s5 + $0x1c] sm:$0xf]
  %v6084 = vld [vmem:[%s5 + $0x20] sm:$0xf]
  %v6085 = vld [vmem:[%s5 + $0x24] sm:$0xf]
  %v6086 = vld [vmem:[%s5 + $0x28] sm:$0xf]
  %v6087 = vld [vmem:[%s5 + $0x2c] sm:$0xf]
  %v6088 = vld [vmem:[%s5 + $0x30] sm:$0xf]
  %v6089 = vld [vmem:[%s5 + $0x34] sm:$0xf]
  %v6090 = vld [vmem:[%s5 + $0x38] sm:$0xf]
  %v6091 = vld [vmem:[%s5 + $0x3c] sm:$0xf]
  %v6092 = vld [vmem:[%s6] sm:$0x1]
  %v6094 = vlaneseq
  %v6095 = vshrl.u32 %v6094, 7
  %v6096 = vsub.s32 0, %v6095
  %v6097 = vrot.slane %v6092, %v6096
  %v6115 = vunpack.c.l.b16 %v6076
  %v6116 = vunpack.c.l.b16 %v6077
  %v6117 = vunpack.c.l.b16 %v6078
  %v6118 = vunpack.c.l.b16 %v6079
  %v6119 = vunpack.c.l.b16 %v6080
  %v6120 = vunpack.c.l.b16 %v6081
  %v6121 = vunpack.c.l.b16 %v6082
  %v6122 = vunpack.c.l.b16 %v6083
  %v6123 = vunpack.c.l.b16 %v6084
  %v6124 = vunpack.c.l.b16 %v6085
  %v6125 = vunpack.c.l.b16 %v6086
  %v6126 = vunpack.c.l.b16 %v6087
  %v6127 = vunpack.c.l.b16 %v6088
  %v6128 = vunpack.c.l.b16 %v6089
  %v6129 = vunpack.c.l.b16 %v6090
  %v6130 = vunpack.c.l.b16 %v6091
  %v6131 = vpack.c.b16 %v6116, %v6115
  %v6132 = vpack.c.b16 %v6118, %v6117
  %v6133 = vpack.c.b16 %v6120, %v6119
  %v6134 = vpack.c.b16 %v6122, %v6121
  %v6135 = vpack.c.b16 %v6124, %v6123
  %v6136 = vpack.c.b16 %v6126, %v6125
  %v6137 = vpack.c.b16 %v6128, %v6127
  %v6138 = vpack.c.b16 %v6130, %v6129
  %6147 = vmatprep.subr.bf16.mxu0 0
  %6148 = vmatpush1.bf16.msra.mxu0 %v6131
  %6149 = vmatprep.subr.bf16.mxu0 0
  %6150 = vmatpush1.bf16.msra.mxu0 %v6132
  %6151 = vmatprep.subr.bf16.mxu0 0
  %6152 = vmatpush1.bf16.msra.mxu0 %v6133
  %6153 = vmatprep.subr.bf16.mxu0 0
  %6154 = vmatpush1.bf16.msra.mxu0 %v6134
  %6155 = vmatprep.subr.bf16.mxu0 0
  %6156 = vmatpush1.bf16.msra.mxu0 %v6135
  %6157 = vmatprep.subr.bf16.mxu0 0
  %6158 = vmatpush1.bf16.msra.mxu0 %v6136
  %6159 = vmatprep.subr.bf16.mxu0 0
  %6160 = vmatpush1.bf16.msra.mxu0 %v6137
  %6161 = vmatprep.subr.bf16.mxu0 0
  %6162 = vmatpush1.bf16.msra.mxu0 %v6138
  %6163 = vmatprep.subr.bf16.mxu0 0
  %6164 = vmatpush1.bf16.msra.mxu0 0
  %6165 = vmatprep.subr.bf16.mxu0 0
  %6166 = vmatpush1.bf16.msra.mxu0 0
  %6167 = vmatprep.subr.bf16.mxu0 0
  %6168 = vmatpush1.bf16.msra.mxu0 0
  %6169 = vmatprep.subr.bf16.mxu0 0
  %6170 = vmatpush1.bf16.msra.mxu0 0
  %6171 = vmatprep.subr.bf16.mxu0 0
  %6172 = vmatpush1.bf16.msra.mxu0 0
  %6173 = vmatprep.subr.bf16.mxu0 0
  %6174 = vmatpush1.bf16.msra.mxu0 0
  %6175 = vmatprep.subr.bf16.mxu0 0
  %6176 = vmatpush1.bf16.msra.mxu0 0
  %6177 = vmatprep.subr.bf16.mxu0 0
  %6178 = vmatpush1.bf16.msra.mxu0 0
  %6179 = vmatprep.mubr.bf16.mxu0 0
  %6180 = vmatmul.mubr.bf16.gmra.mrb[0].mxu0 %v6073
  %v6181 = vpop.f32.mrb[0].mxu0
  %v6182 = vadd.f32 %v6097, %v6181
  %v6183 = vpop.f32.mrb[0].mxu0
  %v6184 = vpop.f32.mrb[0].mxu0
  %v6185 = vpop.f32.mrb[0].mxu0
  %6186 = vdwg.mxu0
  %v6187 = vld [vmem:[#allocation5] sm:$0xff]
  %v6188 = vmul.f32 %v6187, 0.8
  %v6189 = vadd.f32 %v6188, %v6182
  %v6190 = vld [vmem:[#allocation6] sm:$0xff]
  %v6191 = vmul.f32 %v6190, 0.5
  %v6192 = vsub.f32 %v6189, %v6191
  %vm6193 = vcmp.gt.f32.partialorder %v6192, 0.5
  %v6194 = vsel %vm6193, 1, 0
  %v6195 = vcvt.s32.f32 %v6194
  %6196 = vst [vmem:[#allocation5] sm:$0xff] %v6192
  %6197 = vst [vmem:[#allocation6] sm:$0xff] %v6195
  %v6198 = vld [vmem:[%s7] sm:$0xff]
  %v6199 = vadd.f32 %v6198, %v6195
  %6200 = vst [vmem:[%s7] sm:$0xff] %v6199
  %6201 = vadd.xlane.f32.xlu0 %v6195
  %v6202 = vpop.xlane.xlu0 %6201
  %vm6203 = vcmp.eq.s32.totalorder %v491, 20
  %v6204 = vld [vmem:[#allocation7] sm:$0xff]
  %v6205 = vsel %vm6203, %v6202, %v6204
  %6206 = vst [vmem:[#allocation7] sm:$0xff] %v6205
  %v6207 = vld [vmem:[%s7] sm:$0xff]
  %v6208 = vrcp.pop 5.0
  %v6209 = vmul.f32 %v6207, %v6208
  %v6210 = vld [vmem:[#allocation7] sm:$0xff]
  %v6211 = vadd.f32 %v6209, %v6210
  %6212 = vst [vmem:[%s7] sm:$0xff] %v6211
  // Predicated region
  $region30: #{vit_snn_forward.1} parent=0 // pred_check
    _
  $region31: #{vit_snn_forward.1} parent=0 // pred_check_branch
    %6214 = sbr.rel (0) target = $region33
  $region32: #{vit_snn_forward.1} parent=0 // pred_region
    _
  $region33: #{vit_snn_forward.1} parent=0 // pred_fallthru
    _
  // Predicated region
  $region34: #{vit_snn_forward.1} parent=0 // pred_check
    _
  $region35: #{vit_snn_forward.1} parent=0 // pred_check_branch
    %6216 = sbr.rel (0) target = $region37
  $region36: #{vit_snn_forward.1} parent=0 // pred_region
    _
  $region37: #{vit_snn_forward.1} parent=0 // pred_fallthru
    _

</llo_original>
